<compile_context>
chip_gen: v6e
topology: v6e:2x2x1
jax: 0.10.0
libtpu: 0.0.40
codegen_flags: <defaults>
</compile_context>

<pallas_src>
import math
import numpy as np
import jax
import jax.numpy as jnp
from jax import lax
from jax.experimental import pallas as pl
from jax.experimental.pallas import tpu as pltpu

# ----------------------------- hyperparameters ------------------------------
IN_FEATURES = 40              # in_features == out_features (residual + LayerNorm)
OUT_FEATURES = 40
NUM_HEADS = 10                # hard-coded num_heads=10 in the module __init__
HEAD_DIM = OUT_FEATURES // NUM_HEADS
ALPHA = 0.2                   # LeakyReLU negative slope (identity here, see above)
LN_EPS = 1e-5                 # torch.nn.LayerNorm default eps
MASK_VAL = -9000000000000000.0

_HI = jax.lax.Precision.HIGHEST   # used only where f32 accuracy is required


# --------------------------------- kernel -----------------------------------
def graph_dot_product_kernel(x_ref, adj_ref, aspb_ref, w_ref, hmask_ref,
                             dmat_ref, smat_ref, gamma_ref, beta_ref, out_ref):
    bb, T, F = x_ref.shape                 # (batch_block, tokens, features)
    H = OUT_FEATURES
    NHT = NUM_HEADS * T                    # stacked (head, token) axis width

    x = x_ref[...]                         # (bb, T, F) f32

    # Fused projection [Q | K | VO | pad] on the bf16 MXU path, f32 accumulate.
    # The aspect half of the (x | aspect) concat is a per-batch rank-1 bias
    # (precomputed in the wrapper) added after the matmul.
    x_flat = x.reshape(bb * T, F).astype(jnp.bfloat16)
    proj = jnp.dot(x_flat, w_ref[...],
                   preferred_element_type=jnp.float32)          # (bb*T, NW)
    proj = proj.reshape(bb, T, -1) + aspb_ref[...]              # + (bb, 1, NW)

    q = proj[..., 0:H].astype(jnp.bfloat16)                     # 1/sqrt(D) pre-folded
    k = proj[..., H:2 * H].astype(jnp.bfloat16)
    vo = proj[..., 2 * H:2 * H + NUM_HEADS * F].astype(jnp.bfloat16)  # (bb,T,NH*F)

    # Head-stacked keys along sublanes: K_rep[b, h*T+t, f] = k[b, t, f], masked
    # so head h only sees its own HEAD_DIM feature slice -> ONE lane-dense
    # score matmul (K=F=40, N=NH*T=80) per batch element, no per-head slicing.
    k_rep = jnp.broadcast_to(k[:, None, :, :],
                             (bb, NUM_HEADS, T, F)).reshape(bb, NHT, F)
    k_rep = k_rep * hmask_ref[...]                              # (bb, NHT, F) bf16
    s = jnp.einsum('bqf,bjf->bqj', q, k_rep,
                   preferred_element_type=jnp.float32)          # (bb, T, NHT) f32

    # Per-head softmax over the stacked axis.  The row-global max is a valid
    # stabilizer (same constant within every head); per-head denominators come
    # from one block-diagonal constant matmul so everything stays 80 lanes
    # wide; divide -> EUP approx reciprocal.  (f32 on the reduction path.)
    sf = s.reshape(bb * T, NHT)
    p = jnp.exp(sf - jnp.max(sf, axis=-1, keepdims=True))
    denom = jnp.dot(p, dmat_ref[...], precision=_HI)            # (bb*T, NHT)
    attn = p * pl.reciprocal(denom, approx=True)

    # Head-averaged attention map via one tiny summation matmul.
    attn_sum = jnp.dot(attn, smat_ref[...], precision=_HI)      # (bb*T, T)
    attention = attn_sum.reshape(bb, T, T) * (1.0 / NUM_HEADS)
    # LeakyReLU(attention) dropped: softmax probs are >= 0 -> exact identity.

    # Per-head values stacked the same way: V_cat[b, h*T+t, f] = (V_h@Wo_h)[b,t,f]
    # -> ONE value matmul with contraction depth NH*T=80 (replaces 10 matmuls
    #    + 10 accumulator adds).
    # TODO(synk): pltpu.einshape("bt(hf)->b(ht)f") could replace the slice+concat
    # rearrangement below once its grouping grammar is verified on this build.
    v_cat = jnp.concatenate(
        [vo[..., h * F:(h + 1) * F] for h in range(NUM_HEADS)], axis=1)  # (bb,NHT,F)
    attn3 = attn.reshape(bb, T, NHT).astype(jnp.bfloat16)
    output = jnp.einsum('bqj,bjf->bqf', attn3, v_cat,
                        preferred_element_type=jnp.float32)     # (bb, T, F) f32

    # Adjacency mask (-9e15) + graph mixing: stays f32 (intermediates ~1e16).
    masked = jnp.where(adj_ref[...] > 0, attention, MASK_VAL)
    h_prime = jnp.einsum('bqk,bkf->bqf', masked, output,
                         preferred_element_type=jnp.float32,
                         precision=_HI)                         # (bb, T, F)

    # Residual + LayerNorm(in_features) in f32 on the VPU.
    hs = x + h_prime
    mean = jnp.mean(hs, axis=-1, keepdims=True)
    var = jnp.mean((hs - mean) ** 2, axis=-1, keepdims=True)
    normed = (hs - mean) * lax.rsqrt(var + LN_EPS)
    out_ref[...] = normed * gamma_ref[...] + beta_ref[...]      # (1,F) broadcasts


# ----------------------------- param preparation -----------------------------
def prepare_fused_params(wq, wk, wv, wo, gamma, beta):
    """Fold Wo into Wv per head, fold 1/sqrt(D) into Wq, order [Q|K|VO], pad to
    a 128-lane multiple, and cast the token half to bf16 for the MXU."""
    scale = 1.0 / math.sqrt(HEAD_DIM)
    wvo = jnp.concatenate(
        [jnp.dot(wv[:, h * HEAD_DIM:(h + 1) * HEAD_DIM],
                 wo[h * HEAD_DIM:(h + 1) * HEAD_DIM, :], precision=_HI)
         for h in range(NUM_HEADS)], axis=1)                    # (2F, NH*F)
    w_all = jnp.concatenate([wq * scale, wk, wvo], axis=1)      # (2F, 2H + NH*F)
    pad = (-w_all.shape[1]) % 128
    w_all = jnp.pad(w_all, ((0, 0), (0, pad)))                  # (2F, 512)
    w_top = w_all[:IN_FEATURES].astype(jnp.bfloat16)            # token rows -> bf16 MXU
    w_bot = w_all[IN_FEATURES:]                                 # aspect rows -> f32 bias
    return (w_top, w_bot, gamma, beta)


# -------------------------------- wrapper ------------------------------------
def graph_dot_product_layer(x, adj, aspect_double_idx, fused_params, *,
                            batch_block=None):
    """x: (B, T, F) f32, adj: (B, T, T) f32, aspect_double_idx: (B, 2) i32."""
    B, T, F = x.shape
    w_top, w_bot, gamma, beta = fused_params
    NW = w_top.shape[1]
    NHT = NUM_HEADS * T

    if batch_block is None:
        # Single grid step: one TensorCore on v5e/v6e makes the grid a serial
        # loop, and the whole working set is << VMEM; bb=B also doubles the
        # projection's M rows.  TODO(synk): on v7x, benchmark grid=(2,) with
        # pltpu.CORE_PARALLEL against this single-step variant.
        batch_block = B
    bb = batch_block
    assert B % bb == 0

    # Aspect hidden state (cheap data-dependent gather) and its rank-1
    # projection through the aspect half of the fused weight -> per-batch
    # (1, NW) f32 bias.  The (B, T, 2F) concatenated input never exists.
    bidx = aspect_double_idx[:, 0]
    eidx = aspect_double_idx[:, 1]
    aspect = jax.vmap(lambda xi, b, e: (xi[b] + xi[e]) * 0.5)(x, bidx, eidx)  # (B,F)
    asp_bias = jnp.dot(aspect, w_bot, precision=_HI)[:, None, :]              # (B,1,NW)

    # Trace-time constant head-bookkeeping matrices (lane-dense matmul operands).
    jj = np.arange(NHT)
    head_of_j = jj // T
    tok_of_j = jj % T
    head_mask = jnp.asarray(
        (np.arange(F)[None, :] // HEAD_DIM) == head_of_j[:, None], jnp.bfloat16)  # (NHT,F)
    denom_mat = jnp.asarray(head_of_j[:, None] == head_of_j[None, :], jnp.float32)  # (NHT,NHT)
    sum_mat = jnp.asarray(tok_of_j[:, None] == np.arange(T)[None, :], jnp.float32)  # (NHT,T)

    # TODO(synk): for realistic graph sizes, tile the key axis (online softmax)
    # and set vmem_limit_bytes (v7x has 64 MiB VMEM); at T=8 everything fits.
    return pl.pallas_call(
        graph_dot_product_kernel,
        out_shape=jax.ShapeDtypeStruct((B, T, F), jnp.float32),
        grid_spec=pltpu.PrefetchScalarGridSpec(
            num_scalar_prefetch=0,
            grid=(B // bb,),
            in_specs=[
                pl.BlockSpec((bb, T, F), lambda i: (i, 0, 0)),      # x
                pl.BlockSpec((bb, T, T), lambda i: (i, 0, 0)),      # adj
                pl.BlockSpec((bb, 1, NW), lambda i: (i, 0, 0)),     # aspect bias
                pl.BlockSpec(w_top.shape, lambda i: (0, 0)),        # fused weight (bf16)
                pl.BlockSpec(head_mask.shape, lambda i: (0, 0)),    # head mask
                pl.BlockSpec(denom_mat.shape, lambda i: (0, 0)),    # softmax denom blocks
                pl.BlockSpec(sum_mat.shape, lambda i: (0, 0)),      # head-sum matrix
                pl.BlockSpec(gamma.shape, lambda i: (0, 0)),
                pl.BlockSpec(beta.shape, lambda i: (0, 0)),
            ],
            out_specs=pl.BlockSpec((bb, T, F), lambda i: (i, 0, 0)),
        ),
        compiler_params=pltpu.CompilerParams(
            dimension_semantics=("arbitrary",)),
    )(x, adj, asp_bias, w_top, head_mask, denom_mat, sum_mat, gamma, beta)


# ------------------------------ pure-JAX reference ---------------------------
def reference(x, adj, aspect_double_idx, params):
    wq, wk, wv, wo, gamma, beta = params
    B, T, F = x.shape
    bidx, eidx = aspect_double_idx[:, 0], aspect_double_idx[:, 1]
    aspect = jax.vmap(lambda xi, b, e: (xi[b] + xi[e]) * 0.5)(x, bidx, eidx)
    xc = jnp.concatenate([x, jnp.broadcast_to(aspect[:, None, :], (B, T, F))], -1)
    q = jnp.dot(xc, wq, precision=_HI)
    k = jnp.dot(xc, wk, precision=_HI)
    v = jnp.dot(xc, wv, precision=_HI)
    qh = q.reshape(B, T, NUM_HEADS, HEAD_DIM).transpose(0, 2, 1, 3)
    kh = k.reshape(B, T, NUM_HEADS, HEAD_DIM).transpose(0, 2, 1, 3)
    vh = v.reshape(B, T, NUM_HEADS, HEAD_DIM).transpose(0, 2, 1, 3)
    scores = jnp.einsum('bhqd,bhkd->bhqk', qh, kh,
                        precision=_HI) / math.sqrt(HEAD_DIM)
    attn = jax.nn.softmax(scores, axis=-1)
    out = jnp.einsum('bhqk,bhkd->bhqd', attn, vh, precision=_HI)
    out = out.transpose(0, 2, 1, 3).reshape(B, T, -1)
    output = jnp.dot(out, wo, precision=_HI)
    attention = attn.mean(axis=1)
    e = jnp.where(attention > 0, attention, ALPHA * attention)   # LeakyReLU
    masked = jnp.where(adj > 0, e, MASK_VAL)
    h_prime = jnp.einsum('bqk,bkd->bqd', masked, output, precision=_HI)
    h = x + h_prime
    mean = h.mean(-1, keepdims=True)
    var = ((h - mean) ** 2).mean(-1, keepdims=True)
    normed = (h - mean) / jnp.sqrt(var + LN_EPS)
    return normed * gamma.reshape(1, 1, F) + beta.reshape(1, 1, F)


# ----------------------------------- main ------------------------------------
def xavier_uniform(key, shape, gain=1.0):
    fan_in, fan_out = shape
    a = gain * math.sqrt(6.0 / (fan_in + fan_out))
    return jax.random.uniform(key, shape, jnp.float32, -a, a)


if __name__ == "__main__":
    key = jax.random.PRNGKey(0)
    B, T, F, H = 8, 8, IN_FEATURES, OUT_FEATURES
    k1, k2, k3, k4, k5, k6, k7, k8, k9 = jax.random.split(key, 9)

    # inputs
    x = jax.random.normal(k1, (B, T, F), jnp.float32)
    adj = (jax.random.uniform(k2, (B, T, T)) > 0.3).astype(jnp.float32)
    b_idx = jax.random.randint(k8, (B,), 0, T // 2)
    e_idx = b_idx + jax.random.randint(k9, (B,), 0, T // 2)
    aspect_double_idx = jnp.stack([b_idx, e_idx], axis=1).astype(jnp.int32)  # (B, 2)

    # parameters (deterministic synthetic init)
    _W_unused = xavier_uniform(k3, (F, H), gain=1.414)   # self.W: unused in forward
    wq = xavier_uniform(k4, (2 * F, H))
    wk = xavier_uniform(k5, (2 * F, H))
    wv = xavier_uniform(k6, (2 * F, H))
    wo = xavier_uniform(k7, (H, F))
    gamma = jnp.ones((1, F), jnp.float32)                # LayerNorm weight
    beta = jnp.zeros((1, F), jnp.float32)                # LayerNorm bias

    fused = prepare_fused_params(wq, wk, wv, wo, gamma, beta)

    out = graph_dot_product_layer(x, adj, aspect_double_idx, fused)
    out = jax.block_until_ready(out)

    ref = reference(x, adj, aspect_double_idx, (wq, wk, wv, wo, gamma, beta))
    ref = jax.block_until_ready(ref)

    assert out.shape == (B, T, F)
    assert bool(jnp.all(jnp.isfinite(out)))
    # bf16 MXU inputs on the projection / score / value path (per perf review)
    # bound parity at ~1e-2 after the -9e15 mask + LayerNorm amplification;
    # the masked matmul, softmax reductions and LayerNorm themselves stay f32.
    assert bool(jnp.allclose(out, ref, rtol=3e-2, atol=3e-2)), "mismatch vs reference"

    print("KERNEL_OK")
</pallas_src>

<mosaic_0001>
module attributes {stable_mosaic.version = 11 : i64} {
  func.func @graph_dot_product_kernel(%arg0: i32, %arg1: memref<8x8x40xf32, #tpu.memory_space<vmem>>, %arg2: memref<8x8x8xf32, #tpu.memory_space<vmem>>, %arg3: memref<8x1x512xf32, #tpu.memory_space<vmem>>, %arg4: memref<40x512xbf16, #tpu.memory_space<vmem>>, %arg5: memref<80x40xbf16, #tpu.memory_space<vmem>>, %arg6: memref<80x80xf32, #tpu.memory_space<vmem>>, %arg7: memref<80x8xf32, #tpu.memory_space<vmem>>, %arg8: memref<1x40xf32, #tpu.memory_space<vmem>>, %arg9: memref<1x40xf32, #tpu.memory_space<vmem>>, %arg10: memref<8x8x40xf32, #tpu.memory_space<vmem>>) attributes {dimension_semantics = [#tpu.dimension_semantics<arbitrary>], iteration_bounds = array<i64: 1>, scalar_prefetch = 0 : i64, scratch_operands = 0 : i64, tpu.core_type = #tpu.core_type<tc>, window_params = [{transform_indices = @transform_0, window_bounds = array<i64: 8, 8, 40>}, {transform_indices = @transform_1, window_bounds = array<i64: 8, 8, 8>}, {transform_indices = @transform_2, window_bounds = array<i64: 8, 1, 512>}, {pipeline_mode = #tpu.pipeline_mode<synchronous>, transform_indices = @transform_3, window_bounds = array<i64: 40, 512>}, {pipeline_mode = #tpu.pipeline_mode<synchronous>, transform_indices = @transform_4, window_bounds = array<i64: 80, 40>}, {pipeline_mode = #tpu.pipeline_mode<synchronous>, transform_indices = @transform_5, window_bounds = array<i64: 80, 80>}, {pipeline_mode = #tpu.pipeline_mode<synchronous>, transform_indices = @transform_6, window_bounds = array<i64: 80, 8>}, {pipeline_mode = #tpu.pipeline_mode<synchronous>, transform_indices = @transform_7, window_bounds = array<i64: 1, 40>}, {pipeline_mode = #tpu.pipeline_mode<synchronous>, transform_indices = @transform_8, window_bounds = array<i64: 1, 40>}, {transform_indices = @transform_9, window_bounds = array<i64: 8, 8, 40>}]} {
    %c0 = arith.constant 0 : index
    %c0_0 = arith.constant 0 : index
    %c0_1 = arith.constant 0 : index
    %0 = vector.load %arg1[%c0, %c0_0, %c0_1] : memref<8x8x40xf32, #tpu.memory_space<vmem>>, vector<8x8x40xf32>
    %1 = vector.shape_cast %0 : vector<8x8x40xf32> to vector<64x40xf32>
    %2 = arith.truncf %1 : vector<64x40xf32> to vector<64x40xbf16>
    %c0_2 = arith.constant 0 : index
    %c0_3 = arith.constant 0 : index
    %3 = vector.load %arg4[%c0_2, %c0_3] : memref<40x512xbf16, #tpu.memory_space<vmem>>, vector<40x512xbf16>
    %cst = arith.constant dense<0.000000e+00> : vector<64x512xf32>
    %4 = tpu.matmul %2, %3, %cst {dimension_numbers = #tpu.dot_dimension_numbers<[1], [0], [0], [1], [0, 0, 1, 1], [], []>} : vector<64x40xbf16>, vector<40x512xbf16>, vector<64x512xf32> -> vector<64x512xf32>
    %5 = vector.shape_cast %4 : vector<64x512xf32> to vector<8x8x512xf32>
    %c0_4 = arith.constant 0 : index
    %c0_5 = arith.constant 0 : index
    %c0_6 = arith.constant 0 : index
    %6 = vector.load %arg3[%c0_4, %c0_5, %c0_6] : memref<8x1x512xf32, #tpu.memory_space<vmem>>, vector<8x1x512xf32>
    %7 = vector.broadcast %6 : vector<8x1x512xf32> to vector<8x8x512xf32>
    %8 = arith.addf %5, %7 : vector<8x8x512xf32>
    %9 = vector.extract_strided_slice %8 {offsets = [0, 0, 0], sizes = [8, 8, 40], strides = [1, 1, 1]} : vector<8x8x512xf32> to vector<8x8x40xf32>
    %10 = arith.truncf %9 : vector<8x8x40xf32> to vector<8x8x40xbf16>
    %11 = vector.extract_strided_slice %8 {offsets = [0, 0, 40], sizes = [8, 8, 40], strides = [1, 1, 1]} : vector<8x8x512xf32> to vector<8x8x40xf32>
    %12 = arith.truncf %11 : vector<8x8x40xf32> to vector<8x8x40xbf16>
    %13 = vector.extract_strided_slice %8 {offsets = [0, 0, 80], sizes = [8, 8, 400], strides = [1, 1, 1]} : vector<8x8x512xf32> to vector<8x8x400xf32>
    %14 = arith.truncf %13 : vector<8x8x400xf32> to vector<8x8x400xbf16>
    %15 = vector.shape_cast %12 : vector<8x8x40xbf16> to vector<8x1x8x40xbf16>
    %16 = vector.shape_cast %15 : vector<8x1x8x40xbf16> to vector<8x1x8x40xbf16>
    %17 = vector.broadcast %16 : vector<8x1x8x40xbf16> to vector<8x10x8x40xbf16>
    %18 = vector.shape_cast %17 : vector<8x10x8x40xbf16> to vector<8x80x40xbf16>
    %c0_7 = arith.constant 0 : index
    %c0_8 = arith.constant 0 : index
    %19 = vector.load %arg5[%c0_7, %c0_8] : memref<80x40xbf16, #tpu.memory_space<vmem>>, vector<80x40xbf16>
    %20 = vector.shape_cast %19 : vector<80x40xbf16> to vector<1x80x40xbf16>
    %21 = vector.broadcast %20 : vector<1x80x40xbf16> to vector<8x80x40xbf16>
    %22 = arith.mulf %18, %21 : vector<8x80x40xbf16>
    "tpu.trace_start"() <{level = 10 : i32, message = "bqf,bjf->bqj"}> : () -> ()
    %cst_9 = arith.constant dense<0.000000e+00> : vector<8x8x80xf32>
    %23 = tpu.matmul %10, %22, %cst_9 {dimension_numbers = #tpu.dot_dimension_numbers<[2], [2], [1], [1], [0, 0, 0, 1, 1, 1], [0], [0]>} : vector<8x8x40xbf16>, vector<8x80x40xbf16>, vector<8x8x80xf32> -> vector<8x8x80xf32>
    "tpu.trace_stop"() : () -> ()
    %24 = vector.shape_cast %23 : vector<8x8x80xf32> to vector<64x80xf32>
    %cst_10 = arith.constant dense<0xFF800000> : vector<64xf32>
    %25 = vector.multi_reduction <maximumf>, %24, %cst_10 [1] : vector<64x80xf32> to vector<64xf32>
    %26 = vector.shape_cast %25 : vector<64xf32> to vector<64x1xf32>
    %27 = vector.broadcast %26 : vector<64x1xf32> to vector<64x80xf32>
    %28 = arith.subf %24, %27 : vector<64x80xf32>
    %29 = math.exp %28 : vector<64x80xf32>
    %c0_11 = arith.constant 0 : index
    %c0_12 = arith.constant 0 : index
    %30 = vector.load %arg6[%c0_11, %c0_12] : memref<80x80xf32, #tpu.memory_space<vmem>>, vector<80x80xf32>
    %cst_13 = arith.constant dense<0.000000e+00> : vector<64x80xf32>
    %31 = tpu.matmul %29, %30, %cst_13 {dimension_numbers = #tpu.dot_dimension_numbers<[1], [0], [0], [1], [0, 0, 1, 1], [], []>, precision = #tpu.contract_precision<fp32>} : vector<64x80xf32>, vector<80x80xf32>, vector<64x80xf32> -> vector<64x80xf32>
    %32 = tpu.reciprocal %31 {approx = true} : vector<64x80xf32> -> vector<64x80xf32>
    %33 = arith.mulf %29, %32 : vector<64x80xf32>
    %c0_14 = arith.constant 0 : index
    %c0_15 = arith.constant 0 : index
    %34 = vector.load %arg7[%c0_14, %c0_15] : memref<80x8xf32, #tpu.memory_space<vmem>>, vector<80x8xf32>
    %cst_16 = arith.constant dense<0.000000e+00> : vector<64x8xf32>
    %35 = tpu.matmul %33, %34, %cst_16 {dimension_numbers = #tpu.dot_dimension_numbers<[1], [0], [0], [1], [0, 0, 1, 1], [], []>, precision = #tpu.contract_precision<fp32>} : vector<64x80xf32>, vector<80x8xf32>, vector<64x8xf32> -> vector<64x8xf32>
    %36 = vector.shape_cast %35 : vector<64x8xf32> to vector<8x8x8xf32>
    %cst_17 = arith.constant 1.000000e-01 : f32
    %37 = vector.broadcast %cst_17 : f32 to vector<8x8x8xf32>
    %38 = arith.mulf %36, %37 : vector<8x8x8xf32>
    %39 = vector.extract_strided_slice %14 {offsets = [0, 0, 0], sizes = [8, 8, 40], strides = [1, 1, 1]} : vector<8x8x400xbf16> to vector<8x8x40xbf16>
    %40 = vector.extract_strided_slice %14 {offsets = [0, 0, 40], sizes = [8, 8, 40], strides = [1, 1, 1]} : vector<8x8x400xbf16> to vector<8x8x40xbf16>
    %41 = vector.extract_strided_slice %14 {offsets = [0, 0, 80], sizes = [8, 8, 40], strides = [1, 1, 1]} : vector<8x8x400xbf16> to vector<8x8x40xbf16>
    %42 = vector.extract_strided_slice %14 {offsets = [0, 0, 120], sizes = [8, 8, 40], strides = [1, 1, 1]} : vector<8x8x400xbf16> to vector<8x8x40xbf16>
    %43 = vector.extract_strided_slice %14 {offsets = [0, 0, 160], sizes = [8, 8, 40], strides = [1, 1, 1]} : vector<8x8x400xbf16> to vector<8x8x40xbf16>
    %44 = vector.extract_strided_slice %14 {offsets = [0, 0, 200], sizes = [8, 8, 40], strides = [1, 1, 1]} : vector<8x8x400xbf16> to vector<8x8x40xbf16>
    %45 = vector.extract_strided_slice %14 {offsets = [0, 0, 240], sizes = [8, 8, 40], strides = [1, 1, 1]} : vector<8x8x400xbf16> to vector<8x8x40xbf16>
    %46 = vector.extract_strided_slice %14 {offsets = [0, 0, 280], sizes = [8, 8, 40], strides = [1, 1, 1]} : vector<8x8x400xbf16> to vector<8x8x40xbf16>
    %47 = vector.extract_strided_slice %14 {offsets = [0, 0, 320], sizes = [8, 8, 40], strides = [1, 1, 1]} : vector<8x8x400xbf16> to vector<8x8x40xbf16>
    %48 = vector.extract_strided_slice %14 {offsets = [0, 0, 360], sizes = [8, 8, 40], strides = [1, 1, 1]} : vector<8x8x400xbf16> to vector<8x8x40xbf16>
    %49 = tpu.concatenate %39, %40, %41, %42, %43, %44, %45, %46, %47, %48 in 1 : vector<8x8x40xbf16>, vector<8x8x40xbf16>, vector<8x8x40xbf16>, vector<8x8x40xbf16>, vector<8x8x40xbf16>, vector<8x8x40xbf16>, vector<8x8x40xbf16>, vector<8x8x40xbf16>, vector<8x8x40xbf16>, vector<8x8x40xbf16> -> vector<8x80x40xbf16>
    %50 = vector.shape_cast %33 : vector<64x80xf32> to vector<8x8x80xf32>
    %51 = arith.truncf %50 : vector<8x8x80xf32> to vector<8x8x80xbf16>
    "tpu.trace_start"() <{level = 10 : i32, message = "bqj,bjf->bqf"}> : () -> ()
    %cst_18 = arith.constant dense<0.000000e+00> : vector<8x8x40xf32>
    %52 = tpu.matmul %51, %49, %cst_18 {dimension_numbers = #tpu.dot_dimension_numbers<[2], [1], [1], [2], [0, 0, 0, 1, 1, 2], [0], [0]>} : vector<8x8x80xbf16>, vector<8x80x40xbf16>, vector<8x8x40xf32> -> vector<8x8x40xf32>
    "tpu.trace_stop"() : () -> ()
    %c0_19 = arith.constant 0 : index
    %c0_20 = arith.constant 0 : index
    %c0_21 = arith.constant 0 : index
    %53 = vector.load %arg2[%c0_19, %c0_20, %c0_21] : memref<8x8x8xf32, #tpu.memory_space<vmem>>, vector<8x8x8xf32>
    %cst_22 = arith.constant 0.000000e+00 : f32
    %54 = vector.broadcast %cst_22 : f32 to vector<8x8x8xf32>
    %55 = arith.cmpf ogt, %53, %54 : vector<8x8x8xf32>
    %cst_23 = arith.constant -9.000000e+15 : f32
    %56 = vector.broadcast %cst_23 : f32 to vector<8x8x8xf32>
    %57 = arith.select %55, %38, %56 : vector<8x8x8xi1>, vector<8x8x8xf32>
    "tpu.trace_start"() <{level = 10 : i32, message = "bqk,bkf->bqf"}> : () -> ()
    %cst_24 = arith.constant dense<0.000000e+00> : vector<8x8x40xf32>
    %58 = tpu.matmul %57, %52, %cst_24 {dimension_numbers = #tpu.dot_dimension_numbers<[2], [1], [1], [2], [0, 0, 0, 1, 1, 2], [0], [0]>, precision = #tpu.contract_precision<fp32>} : vector<8x8x8xf32>, vector<8x8x40xf32>, vector<8x8x40xf32> -> vector<8x8x40xf32>
    "tpu.trace_stop"() : () -> ()
    %59 = arith.addf %0, %58 : vector<8x8x40xf32>
    %cst_25 = arith.constant dense<0.000000e+00> : vector<8x8xf32>
    %60 = vector.multi_reduction <add>, %59, %cst_25 [2] : vector<8x8x40xf32> to vector<8x8xf32>
    %61 = vector.shape_cast %60 : vector<8x8xf32> to vector<8x8x1xf32>
    %cst_26 = arith.constant 4.000000e+01 : f32
    %62 = vector.broadcast %cst_26 : f32 to vector<8x8x1xf32>
    %63 = arith.divf %61, %62 : vector<8x8x1xf32>
    %64 = vector.broadcast %63 : vector<8x8x1xf32> to vector<8x8x40xf32>
    %65 = arith.subf %59, %64 : vector<8x8x40xf32>
    %66 = arith.mulf %65, %65 : vector<8x8x40xf32>
    %cst_27 = arith.constant dense<0.000000e+00> : vector<8x8xf32>
    %67 = vector.multi_reduction <add>, %66, %cst_27 [2] : vector<8x8x40xf32> to vector<8x8xf32>
    %68 = vector.shape_cast %67 : vector<8x8xf32> to vector<8x8x1xf32>
    %cst_28 = arith.constant 4.000000e+01 : f32
    %69 = vector.broadcast %cst_28 : f32 to vector<8x8x1xf32>
    %70 = arith.divf %68, %69 : vector<8x8x1xf32>
    %71 = vector.broadcast %63 : vector<8x8x1xf32> to vector<8x8x40xf32>
    %72 = arith.subf %59, %71 : vector<8x8x40xf32>
    %cst_29 = arith.constant 9.99999974E-6 : f32
    %73 = vector.broadcast %cst_29 : f32 to vector<8x8x1xf32>
    %74 = arith.addf %70, %73 : vector<8x8x1xf32>
    %75 = math.rsqrt %74 : vector<8x8x1xf32>
    %76 = vector.broadcast %75 : vector<8x8x1xf32> to vector<8x8x40xf32>
    %77 = arith.mulf %72, %76 : vector<8x8x40xf32>
    %c0_30 = arith.constant 0 : index
    %c0_31 = arith.constant 0 : index
    %78 = vector.load %arg8[%c0_30, %c0_31] : memref<1x40xf32, #tpu.memory_space<vmem>>, vector<1x40xf32>
    %79 = vector.shape_cast %78 : vector<1x40xf32> to vector<1x1x40xf32>
    %80 = vector.broadcast %79 : vector<1x1x40xf32> to vector<8x8x40xf32>
    %81 = arith.mulf %77, %80 : vector<8x8x40xf32>
    %c0_32 = arith.constant 0 : index
    %c0_33 = arith.constant 0 : index
    %82 = vector.load %arg9[%c0_32, %c0_33] : memref<1x40xf32, #tpu.memory_space<vmem>>, vector<1x40xf32>
    %83 = vector.shape_cast %82 : vector<1x40xf32> to vector<1x1x40xf32>
    %84 = vector.broadcast %83 : vector<1x1x40xf32> to vector<8x8x40xf32>
    %85 = arith.addf %81, %84 : vector<8x8x40xf32>
    %c0_34 = arith.constant 0 : index
    %c0_35 = arith.constant 0 : index
    %c0_36 = arith.constant 0 : index
    %86 = vector.load %arg10[%c0_34, %c0_35, %c0_36] : memref<8x8x40xf32, #tpu.memory_space<vmem>>, vector<8x8x40xf32>
    tpu.vector_store %arg10[%c0_34, %c0_35, %c0_36], %85 {strides = array<i32>} : memref<8x8x40xf32, #tpu.memory_space<vmem>>, vector<8x8x40xf32>,
    return
  }
  func.func @transform_0(%arg0: i32) -> (i32, i32, i32) {
    %c0_i32 = arith.constant 0 : i32
    %c0_i32_0 = arith.constant 0 : i32
    %c0_i32_1 = arith.constant 0 : i32
    return %arg0, %c0_i32, %c0_i32_0 : i32, i32, i32
  }
  func.func @transform_1(%arg0: i32) -> (i32, i32, i32) {
    %c0_i32 = arith.constant 0 : i32
    %c0_i32_0 = arith.constant 0 : i32
    %c0_i32_1 = arith.constant 0 : i32
    return %arg0, %c0_i32, %c0_i32_0 : i32, i32, i32
  }
  func.func @transform_2(%arg0: i32) -> (i32, i32, i32) {
    %c0_i32 = arith.constant 0 : i32
    %c0_i32_0 = arith.constant 0 : i32
    %c0_i32_1 = arith.constant 0 : i32
    return %arg0, %c0_i32, %c0_i32_0 : i32, i32, i32
  }
  func.func @transform_3(%arg0: i32) -> (i32, i32) {
    %c0_i32 = arith.constant 0 : i32
    %c0_i32_0 = arith.constant 0 : i32
    %c0_i32_1 = arith.constant 0 : i32
    return %c0_i32, %c0_i32_0 : i32, i32
  }
  func.func @transform_4(%arg0: i32) -> (i32, i32) {
    %c0_i32 = arith.constant 0 : i32
    %c0_i32_0 = arith.constant 0 : i32
    %c0_i32_1 = arith.constant 0 : i32
    return %c0_i32, %c0_i32_0 : i32, i32
  }
  func.func @transform_5(%arg0: i32) -> (i32, i32) {
    %c0_i32 = arith.constant 0 : i32
    %c0_i32_0 = arith.constant 0 : i32
    %c0_i32_1 = arith.constant 0 : i32
    return %c0_i32, %c0_i32_0 : i32, i32
  }
  func.func @transform_6(%arg0: i32) -> (i32, i32) {
    %c0_i32 = arith.constant 0 : i32
    %c0_i32_0 = arith.constant 0 : i32
    %c0_i32_1 = arith.constant 0 : i32
    return %c0_i32, %c0_i32_0 : i32, i32
  }
  func.func @transform_7(%arg0: i32) -> (i32, i32) {
    %c0_i32 = arith.constant 0 : i32
    %c0_i32_0 = arith.constant 0 : i32
    %c0_i32_1 = arith.constant 0 : i32
    return %c0_i32, %c0_i32_0 : i32, i32
  }
  func.func @transform_8(%arg0: i32) -> (i32, i32) {
    %c0_i32 = arith.constant 0 : i32
    %c0_i32_0 = arith.constant 0 : i32
    %c0_i32_1 = arith.constant 0 : i32
    return %c0_i32, %c0_i32_0 : i32, i32
  }
  func.func @transform_9(%arg0: i32) -> (i32, i32, i32) {
    %c0_i32 = arith.constant 0 : i32
    %c0_i32_0 = arith.constant 0 : i32
    %c0_i32_1 = arith.constant 0 : i32
    return %arg0, %c0_i32, %c0_i32_0 : i32, i32, i32
  }
}

</mosaic_0001>

<llo_original>
// kernel: tpu_custom_call.1
$region0: #{tpu_custom_call.1}
  #allocation0 [shape = 'u32[]', space=smem, size = 0x4, offset = 0x4, fixed_abs, tag = 'smem constant byte address 0x4 - core index']
  #allocation1 [shape = 'u32[144,128]{1,0:T(1,128)}', space=vmem, size = 0x12000, scoped, tag = 'internal scratch']
  %s0 = inlined_call_operand.vmem [shape: f32[8,8,40], index: 0, kind: input, shape index: {}]
  %s1 = inlined_call_operand.hbm [shape: f32[8,8,8], index: 1, kind: input, shape index: {}]
  %s2 = inlined_call_operand.hbm [shape: f32[8,1,512], index: 2, kind: input, shape index: {}]
  %s3 = inlined_call_operand.vmem [shape: bf16[40,512], index: 3, kind: input, shape index: {}]
  %s4 = inlined_call_operand.vmem [shape: bf16[80,40], index: 4, kind: input, shape index: {}]
  %s5 = inlined_call_operand.hbm [shape: f32[80,80], index: 5, kind: input, shape index: {}]
  %s6 = inlined_call_operand.vmem [shape: f32[80,8], index: 6, kind: input, shape index: {}]
  %s7 = inlined_call_operand.vmem [shape: f32[1,40], index: 7, kind: input, shape index: {}]
  %s8 = inlined_call_operand.vmem [shape: f32[1,40], index: 8, kind: input, shape index: {}]
  %s9 = inlined_call_operand.hbm [shape: f32[8,8,40], index: 9, kind: output, shape index: {}]
  %s10 = sld [smem:[#allocation0]]
  $region58: #{tpu_custom_call.1} parent=0
    _
  %s12 = ssub.s32 1, %s10
  %s13 = scalar_select 0, %s12, %s10
  $region1: #{tpu_custom_call.1} parent=0
    #allocation2 [shape = 'u8[32768]{0}', space=vmem, size = 0x8000, scoped, tag = 'input window, operand 1, single buffered']
    #allocation3 [shape = 's32[1]{0}', space=sflag, size = 0x4, scoped, tag = 'scoped memory for tpu_custom_call.1']
    #allocation4 [shape = 's32[1]{0}', space=sflag, size = 0x4, scoped, tag = 'scoped memory for tpu_custom_call.1']
    #allocation5 [shape = 'u8[16384]{0}', space=vmem, size = 0x4000, scoped, tag = 'input window, operand 2, single buffered']
    #allocation6 [shape = 's32[1]{0}', space=sflag, size = 0x4, scoped, tag = 'scoped memory for tpu_custom_call.1']
    #allocation7 [shape = 'u8[40960]{0}', space=vmem, size = 0xa000, scoped, tag = 'input window, operand 5, single buffered']
    #allocation8 [shape = 'u8[32768]{0}', space=vmem, size = 0x8000, scoped, tag = 'output window, operand 0, single buffered']
    %14 = vsyncpa [#allocation3], 0
    %15 = vsyncpa [#allocation6], 0
    %16 = vsyncpa [#allocation4], 0
    // Predicated region
    $region2: #{tpu_custom_call.1} parent=1 // pred_check
      _
    $region3: #{tpu_custom_call.1} parent=1 // pred_check_branch
      %18 = sbr.rel (0) target = $region5
    $region4: #{tpu_custom_call.1} parent=1 // pred_region
      _
    $region5: #{tpu_custom_call.1} parent=1 // pred_fallthru
      _
    // Predicated region
    $region6: #{tpu_custom_call.1} parent=1 // pred_check
      _
    $region7: #{tpu_custom_call.1} parent=1 // pred_check_branch
      %20 = sbr.rel (0) target = $region9
    $region8: #{tpu_custom_call.1} parent=1 // pred_region
      %s22 = ssub.s32 1024, 1024
      %23 = vsyncadd [#allocation3], %s22
      %s24 = sshll.u32 [#allocation2], 4
      %s25 = int_to_ptr.vmem [resolvable:$true] %s24
      %30 = dma.hbm_to_vmem [thread:$0]  %s1, 1024, %s25, [#allocation3], 128, 128, 8
    $region9: #{tpu_custom_call.1} parent=1 // pred_fallthru
      _
    // Predicated region
    $region10: #{tpu_custom_call.1} parent=1 // pred_check
      _
    $region11: #{tpu_custom_call.1} parent=1 // pred_check_branch
      %32 = sbr.rel (0) target = $region13
    $region12: #{tpu_custom_call.1} parent=1 // pred_region
      %s34 = ssub.s32 512, 512
      %35 = vsyncadd [#allocation6], %s34
      %s36 = sshll.u32 [#allocation5], 4
      %s37 = int_to_ptr.vmem [resolvable:$true] %s36
      %42 = dma.hbm_to_vmem [thread:$0]  %s2, 512, %s37, [#allocation6], 64, 64, 4
    $region13: #{tpu_custom_call.1} parent=1 // pred_fallthru
      _
    // Predicated region
    $region14: #{tpu_custom_call.1} parent=1 // pred_check
      _
    $region15: #{tpu_custom_call.1} parent=1 // pred_check_branch
      %44 = sbr.rel (0) target = $region17
    $region16: #{tpu_custom_call.1} parent=1 // pred_region
      _
    $region17: #{tpu_custom_call.1} parent=1 // pred_fallthru
      _
    // Predicated region
    $region18: #{tpu_custom_call.1} parent=1 // pred_check
      _
    $region19: #{tpu_custom_call.1} parent=1 // pred_check_branch
      %46 = sbr.rel (0) target = $region21
    $region20: #{tpu_custom_call.1} parent=1 // pred_region
      _
    $region21: #{tpu_custom_call.1} parent=1 // pred_fallthru
      _
    // Predicated region
    $region22: #{tpu_custom_call.1} parent=1 // pred_check
      _
    $region23: #{tpu_custom_call.1} parent=1 // pred_check_branch
      %48 = sbr.rel (0) target = $region25
    $region24: #{tpu_custom_call.1} parent=1 // pred_region
      %s50 = ssub.s32 1280, 1280
      %51 = vsyncadd [#allocation6], %s50
      %s52 = sshll.u32 [#allocation7], 4
      %s53 = int_to_ptr.vmem [resolvable:$true] %s52
      %58 = dma.hbm_to_vmem [thread:$0]  %s5, 1280, %s53, [#allocation6], 128, 128, 8
    $region25: #{tpu_custom_call.1} parent=1 // pred_fallthru
      _
    // Predicated region
    $region26: #{tpu_custom_call.1} parent=1 // pred_check
      _
    $region27: #{tpu_custom_call.1} parent=1 // pred_check_branch
      %60 = sbr.rel (0) target = $region29
    $region28: #{tpu_custom_call.1} parent=1 // pred_region
      _
    $region29: #{tpu_custom_call.1} parent=1 // pred_fallthru
      _
    // Predicated region
    $region30: #{tpu_custom_call.1} parent=1 // pred_check
      _
    $region31: #{tpu_custom_call.1} parent=1 // pred_check_branch
      %62 = sbr.rel (0) target = $region33
    $region32: #{tpu_custom_call.1} parent=1 // pred_region
      _
    $region33: #{tpu_custom_call.1} parent=1 // pred_fallthru
      _
    // Predicated region
    $region34: #{tpu_custom_call.1} parent=1 // pred_check
      _
    $region35: #{tpu_custom_call.1} parent=1 // pred_check_branch
      %64 = sbr.rel (0) target = $region37
    $region36: #{tpu_custom_call.1} parent=1 // pred_region
      _
    $region37: #{tpu_custom_call.1} parent=1 // pred_fallthru
      _
    // Predicated region
    $region38: #{tpu_custom_call.1} parent=1 // pred_check
      _
    $region39: #{tpu_custom_call.1} parent=1 // pred_check_branch
      %66 = sbr.rel (0) target = $region41
    $region40: #{tpu_custom_call.1} parent=1 // pred_region
      %67 = dma.done [#allocation3], 1024
    $region41: #{tpu_custom_call.1} parent=1 // pred_fallthru
      _
    // Predicated region
    $region42: #{tpu_custom_call.1} parent=1 // pred_check
      _
    $region43: #{tpu_custom_call.1} parent=1 // pred_check_branch
      %69 = sbr.rel (0) target = $region45
    $region44: #{tpu_custom_call.1} parent=1 // pred_region
      %70 = dma.done [#allocation6], 512
    $region45: #{tpu_custom_call.1} parent=1 // pred_fallthru
      _
    // Predicated region
    $region46: #{tpu_custom_call.1} parent=1 // pred_check
      _
    $region47: #{tpu_custom_call.1} parent=1 // pred_check_branch
      %72 = sbr.rel (0) target = $region49
    $region48: #{tpu_custom_call.1} parent=1 // pred_region
      %73 = dma.done [#allocation6], 1280
    $region49: #{tpu_custom_call.1} parent=1 // pred_fallthru
      _
    %v75 = vld [vmem:[%s0] sm:$0xff]
    %v76 = vld [vmem:[%s0 + $0x8] sm:$0xff]
    %v77 = vld [vmem:[%s0 + $0x10] sm:$0xff]
    %v78 = vld [vmem:[%s0 + $0x18] sm:$0xff]
    %v79 = vld [vmem:[%s0 + $0x20] sm:$0xff]
    %v80 = vld [vmem:[%s0 + $0x28] sm:$0xff]
    %v81 = vld [vmem:[%s0 + $0x30] sm:$0xff]
    %v82 = vld [vmem:[%s0 + $0x38] sm:$0xff]
    %v83 = vpack.c.bf16 %v76, %v75
    %v84 = vpack.c.bf16 %v78, %v77
    %v85 = vpack.c.bf16 %v80, %v79
    %v86 = vpack.c.bf16 %v82, %v81
    %v87 = vld [vmem:[%s3] sm:$0xff]
    %v88 = vld [vmem:[%s3 + $0x8] sm:$0xff]
    %v89 = vld [vmem:[%s3 + $0x10] sm:$0xff]
    %v90 = vld [vmem:[%s3 + $0x18] sm:$0xff]
    %v91 = vld [vmem:[%s3 + $0x20] sm:$0xff]
    %v92 = vld [vmem:[%s3 + $0x28] sm:$0xff]
    %v93 = vld [vmem:[%s3 + $0x30] sm:$0xff]
    %v94 = vld [vmem:[%s3 + $0x38] sm:$0xff]
    %v95 = vld [vmem:[%s3 + $0x40] sm:$0xff]
    %v96 = vld [vmem:[%s3 + $0x48] sm:$0xff]
    %v107 = vunpack.c.l.b16 %v87
    %v108 = vunpack.c.h.b16 %v87
    %v109 = vunpack.c.l.b16 %v88
    %v110 = vunpack.c.h.b16 %v88
    %v111 = vunpack.c.l.b16 %v89
    %v112 = vunpack.c.h.b16 %v89
    %v113 = vunpack.c.l.b16 %v90
    %v114 = vunpack.c.h.b16 %v90
    %v115 = vunpack.c.l.b16 %v91
    %v116 = vunpack.c.h.b16 %v91
    %v117 = vunpack.c.l.b16 %v92
    %v118 = vunpack.c.h.b16 %v92
    %v119 = vunpack.c.l.b16 %v93
    %v120 = vunpack.c.h.b16 %v93
    %v121 = vunpack.c.l.b16 %v94
    %v122 = vunpack.c.h.b16 %v94
    %v123 = vunpack.c.l.b16 %v95
    %v124 = vunpack.c.h.b16 %v95
    %v125 = vunpack.c.l.b16 %v96
    %v126 = vunpack.c.h.b16 %v96
    %v127 = vpack.c.b16 %v111, %v107
    %v128 = vpack.c.b16 %v112, %v108
    %v129 = vpack.c.b16 %v113, %v109
    %v130 = vpack.c.b16 %v114, %v110
    %v131 = vpack.c.b16 %v119, %v115
    %v132 = vpack.c.b16 %v120, %v116
    %v133 = vpack.c.b16 %v121, %v117
    %v134 = vpack.c.b16 %v122, %v118
    %v135 = vpack.c.b16 %v123, %v123
    %v136 = vpack.c.b16 %v124, %v124
    %v137 = vpack.c.b16 %v125, %v125
    %v138 = vpack.c.b16 %v126, %v126
    %vm147 = vcmask 326656
    %v149 = vsel %vm147, %v83, 0
    %v152 = vsel %vm147, %v84, 0
    %v155 = vsel %vm147, %v85, 0
    %v158 = vsel %vm147, %v86, 0
    %vm160 = vcmask 1043456
    %v162 = vsel %vm160, %v135, 0
    %v165 = vsel %vm160, %v136, 0
    %v168 = vsel %vm160, %v137, 0
    %v171 = vsel %vm160, %v138, 0
    %173 = vmatprep.subr.bf16.mxu0 0
    %174 = vmatpush1.bf16.msra.mxu0 0
    %175 = vmatprep.subr.bf16.mxu0 0
    %176 = vmatpush1.bf16.msra.mxu0 0
    %177 = vmatprep.subr.bf16.mxu0 0
    %178 = vmatpush1.bf16.msra.mxu0 0
    %179 = vmatprep.subr.bf16.mxu0 0
    %180 = vmatpush1.bf16.msra.mxu0 0
    %181 = vmatprep.subr.bf16.mxu0 0
    %182 = vmatpush1.bf16.msra.mxu0 0
    %183 = vmatprep.subr.bf16.mxu0 %v165
    %184 = vmatpush1.bf16.msra.mxu0 %v162
    %185 = vmatprep.subr.bf16.mxu0 %v132
    %186 = vmatpush1.bf16.msra.mxu0 %v131
    %187 = vmatprep.subr.bf16.mxu0 %v128
    %188 = vmatpush1.bf16.msra.mxu0 %v127
    %189 = vmatprep.subr.bf16.mxu0 0
    %190 = vmatpush2.bf16.msra.mxu0 0
    %191 = vmatprep.subr.bf16.mxu0 0
    %192 = vmatpush2.bf16.msra.mxu0 0
    %193 = vmatprep.subr.bf16.mxu0 0
    %194 = vmatpush2.bf16.msra.mxu0 0
    %195 = vmatprep.subr.bf16.mxu0 0
    %196 = vmatpush2.bf16.msra.mxu0 0
    %197 = vmatprep.subr.bf16.mxu0 0
    %198 = vmatpush2.bf16.msra.mxu0 0
    %199 = vmatprep.subr.bf16.mxu0 0
    %200 = vmatpush2.bf16.msra.mxu0 0
    %201 = vmatprep.subr.bf16.mxu0 0
    %202 = vmatpush2.bf16.msra.mxu0 0
    %203 = vmatprep.subr.bf16.mxu0 0
    %204 = vmatpush2.bf16.msra.mxu0 0
    %205 = vmatprep.mubr.bf16.mxu0 0
    %206 = vmatmul.mubr.bf16.gmra.mxu0 %v149
    %v207 = vpop.f32.mrf.mxu0
    %v208 = vadd.f32 0.0, %v207
    %v209 = vpop.f32.mrf.mxu0
    %v210 = vadd.f32 0.0, %v209
    %v211 = vpop.f32.mrf.mxu0
    %v212 = vadd.f32 0.0, %v211
    %v213 = vpop.f32.mrf.mxu0
    %v214 = vadd.f32 0.0, %v213
    %215 = vmatprep.mubr.bf16.mxu0 0
    %216 = vmatmul.mubr.bf16.gmra.mxu0 %v152
    %v217 = vpop.f32.mrf.mxu0
    %v218 = vadd.f32 0.0, %v217
    %v219 = vpop.f32.mrf.mxu0
    %v220 = vadd.f32 0.0, %v219
    %v221 = vpop.f32.mrf.mxu0
    %v222 = vadd.f32 0.0, %v221
    %v223 = vpop.f32.mrf.mxu0
    %v224 = vadd.f32 0.0, %v223
    %225 = vmatprep.mubr.bf16.mxu0 0
    %226 = vmatmul.mubr.bf16.gmra.mxu0 %v155
    %v227 = vpop.f32.mrf.mxu0
    %v228 = vadd.f32 0.0, %v227
    %v229 = vpop.f32.mrf.mxu0
    %v230 = vadd.f32 0.0, %v229
    %v231 = vpop.f32.mrf.mxu0
    %v232 = vadd.f32 0.0, %v231
    %v233 = vpop.f32.mrf.mxu0
    %v234 = vadd.f32 0.0, %v233
    %235 = vmatprep.mubr.bf16.mxu0 0
    %236 = vmatmul.mubr.bf16.gmra.mxu0 %v158
    %v237 = vpop.f32.mrf.mxu0
    %v238 = vadd.f32 0.0, %v237
    %v239 = vpop.f32.mrf.mxu0
    %v240 = vadd.f32 0.0, %v239
    %v241 = vpop.f32.mrf.mxu0
    %v242 = vadd.f32 0.0, %v241
    %v243 = vpop.f32.mrf.mxu0
    %v244 = vadd.f32 0.0, %v243
    %245 = vdwg.mxu0
    %246 = vmatprep.subr.bf16.mxu0 0
    %247 = vmatpush1.bf16.msra.mxu0 0
    %248 = vmatprep.subr.bf16.mxu0 0
    %249 = vmatpush1.bf16.msra.mxu0 0
    %250 = vmatprep.subr.bf16.mxu0 0
    %251 = vmatpush1.bf16.msra.mxu0 0
    %252 = vmatprep.subr.bf16.mxu0 0
    %253 = vmatpush1.bf16.msra.mxu0 0
    %254 = vmatprep.subr.bf16.mxu0 0
    %255 = vmatpush1.bf16.msra.mxu0 0
    %256 = vmatprep.subr.bf16.mxu0 %v171
    %257 = vmatpush1.bf16.msra.mxu0 %v168
    %258 = vmatprep.subr.bf16.mxu0 %v134
    %259 = vmatpush1.bf16.msra.mxu0 %v133
    %260 = vmatprep.subr.bf16.mxu0 %v130
    %261 = vmatpush1.bf16.msra.mxu0 %v129
    %262 = vmatprep.subr.bf16.mxu0 0
    %263 = vmatpush2.bf16.msra.mxu0 0
    %264 = vmatprep.subr.bf16.mxu0 0
    %265 = vmatpush2.bf16.msra.mxu0 0
    %266 = vmatprep.subr.bf16.mxu0 0
    %267 = vmatpush2.bf16.msra.mxu0 0
    %268 = vmatprep.subr.bf16.mxu0 0
    %269 = vmatpush2.bf16.msra.mxu0 0
    %270 = vmatprep.subr.bf16.mxu0 0
    %271 = vmatpush2.bf16.msra.mxu0 0
    %272 = vmatprep.subr.bf16.mxu0 0
    %273 = vmatpush2.bf16.msra.mxu0 0
    %274 = vmatprep.subr.bf16.mxu0 0
    %275 = vmatpush2.bf16.msra.mxu0 0
    %276 = vmatprep.subr.bf16.mxu0 0
    %277 = vmatpush2.bf16.msra.mxu0 0
    %278 = vmatprep.mubr.bf16.mxu0 0
    %279 = vmatmul.mubr.bf16.gmra.mxu0 %v149
    %v280 = vpop.f32.mrf.mxu0
    %v281 = vadd.f32 0.0, %v280
    %v282 = vpop.f32.mrf.mxu0
    %v283 = vadd.f32 0.0, %v282
    %v284 = vpop.f32.mrf.mxu0
    %v285 = vadd.f32 0.0, %v284
    %v286 = vpop.f32.mrf.mxu0
    %v287 = vadd.f32 0.0, %v286
    %288 = vmatprep.mubr.bf16.mxu0 0
    %289 = vmatmul.mubr.bf16.gmra.mxu0 %v152
    %v290 = vpop.f32.mrf.mxu0
    %v291 = vadd.f32 0.0, %v290
    %v292 = vpop.f32.mrf.mxu0
    %v293 = vadd.f32 0.0, %v292
    %v294 = vpop.f32.mrf.mxu0
    %v295 = vadd.f32 0.0, %v294
    %v296 = vpop.f32.mrf.mxu0
    %v297 = vadd.f32 0.0, %v296
    %298 = vmatprep.mubr.bf16.mxu0 0
    %299 = vmatmul.mubr.bf16.gmra.mxu0 %v155
    %v300 = vpop.f32.mrf.mxu0
    %v301 = vadd.f32 0.0, %v300
    %v302 = vpop.f32.mrf.mxu0
    %v303 = vadd.f32 0.0, %v302
    %v304 = vpop.f32.mrf.mxu0
    %v305 = vadd.f32 0.0, %v304
    %v306 = vpop.f32.mrf.mxu0
    %v307 = vadd.f32 0.0, %v306
    %308 = vmatprep.mubr.bf16.mxu0 0
    %309 = vmatmul.mubr.bf16.gmra.mxu0 %v158
    %v310 = vpop.f32.mrf.mxu0
    %v311 = vadd.f32 0.0, %v310
    %v312 = vpop.f32.mrf.mxu0
    %v313 = vadd.f32 0.0, %v312
    %v314 = vpop.f32.mrf.mxu0
    %v315 = vadd.f32 0.0, %v314
    %v316 = vpop.f32.mrf.mxu0
    %v317 = vadd.f32 0.0, %v316
    %318 = vdwg.mxu0
    %v319 = vld [vmem:[#allocation5] sm:$0xf]
    %v320 = vld [vmem:[#allocation5 + $0x4] sm:$0xf]
    %v321 = vld [vmem:[#allocation5 + $0x8] sm:$0xf]
    %v322 = vld [vmem:[#allocation5 + $0xc] sm:$0xf]
    %v323 = vld [vmem:[#allocation5 + $0x10] sm:$0xf]
    %v324 = vld [vmem:[#allocation5 + $0x14] sm:$0xf]
    %v325 = vld [vmem:[#allocation5 + $0x18] sm:$0xf]
    %v326 = vld [vmem:[#allocation5 + $0x1c] sm:$0xf]
    %v335 = vlaneseq
    %v336 = vshrl.u32 %v335, 7
    %v337 = vsub.s32 0, %v336
    %v338 = vrot.slane %v319, %v337
    %v339 = vlaneseq
    %v340 = vshrl.u32 %v339, 7
    %v341 = vsub.s32 1, %v340
    %v342 = vrot.slane %v319, %v341
    %v343 = vlaneseq
    %v344 = vshrl.u32 %v343, 7
    %v345 = vsub.s32 2, %v344
    %v346 = vrot.slane %v319, %v345
    %v347 = vlaneseq
    %v348 = vshrl.u32 %v347, 7
    %v349 = vsub.s32 3, %v348
    %v350 = vrot.slane %v319, %v349
    %v351 = vlaneseq
    %v352 = vshrl.u32 %v351, 7
    %v353 = vsub.s32 0, %v352
    %v354 = vrot.slane %v320, %v353
    %v355 = vlaneseq
    %v356 = vshrl.u32 %v355, 7
    %v357 = vsub.s32 1, %v356
    %v358 = vrot.slane %v320, %v357
    %v359 = vlaneseq
    %v360 = vshrl.u32 %v359, 7
    %v361 = vsub.s32 2, %v360
    %v362 = vrot.slane %v320, %v361
    %v363 = vlaneseq
    %v364 = vshrl.u32 %v363, 7
    %v365 = vsub.s32 3, %v364
    %v366 = vrot.slane %v320, %v365
    %v367 = vlaneseq
    %v368 = vshrl.u32 %v367, 7
    %v369 = vsub.s32 0, %v368
    %v370 = vrot.slane %v321, %v369
    %v371 = vlaneseq
    %v372 = vshrl.u32 %v371, 7
    %v373 = vsub.s32 1, %v372
    %v374 = vrot.slane %v321, %v373
    %v375 = vlaneseq
    %v376 = vshrl.u32 %v375, 7
    %v377 = vsub.s32 2, %v376
    %v378 = vrot.slane %v321, %v377
    %v379 = vlaneseq
    %v380 = vshrl.u32 %v379, 7
    %v381 = vsub.s32 3, %v380
    %v382 = vrot.slane %v321, %v381
    %v383 = vlaneseq
    %v384 = vshrl.u32 %v383, 7
    %v385 = vsub.s32 0, %v384
    %v386 = vrot.slane %v322, %v385
    %v387 = vlaneseq
    %v388 = vshrl.u32 %v387, 7
    %v389 = vsub.s32 1, %v388
    %v390 = vrot.slane %v322, %v389
    %v391 = vlaneseq
    %v392 = vshrl.u32 %v391, 7
    %v393 = vsub.s32 2, %v392
    %v394 = vrot.slane %v322, %v393
    %v395 = vlaneseq
    %v396 = vshrl.u32 %v395, 7
    %v397 = vsub.s32 3, %v396
    %v398 = vrot.slane %v322, %v397
    %v399 = vlaneseq
    %v400 = vshrl.u32 %v399, 7
    %v401 = vsub.s32 0, %v400
    %v402 = vrot.slane %v323, %v401
    %v403 = vlaneseq
    %v404 = vshrl.u32 %v403, 7
    %v405 = vsub.s32 1, %v404
    %v406 = vrot.slane %v323, %v405
    %v407 = vlaneseq
    %v408 = vshrl.u32 %v407, 7
    %v409 = vsub.s32 2, %v408
    %v410 = vrot.slane %v323, %v409
    %v411 = vlaneseq
    %v412 = vshrl.u32 %v411, 7
    %v413 = vsub.s32 3, %v412
    %v414 = vrot.slane %v323, %v413
    %v415 = vlaneseq
    %v416 = vshrl.u32 %v415, 7
    %v417 = vsub.s32 0, %v416
    %v418 = vrot.slane %v324, %v417
    %v419 = vlaneseq
    %v420 = vshrl.u32 %v419, 7
    %v421 = vsub.s32 1, %v420
    %v422 = vrot.slane %v324, %v421
    %v423 = vlaneseq
    %v424 = vshrl.u32 %v423, 7
    %v425 = vsub.s32 2, %v424
    %v426 = vrot.slane %v324, %v425
    %v427 = vlaneseq
    %v428 = vshrl.u32 %v427, 7
    %v429 = vsub.s32 3, %v428
    %v430 = vrot.slane %v324, %v429
    %v431 = vlaneseq
    %v432 = vshrl.u32 %v431, 7
    %v433 = vsub.s32 0, %v432
    %v434 = vrot.slane %v325, %v433
    %v435 = vlaneseq
    %v436 = vshrl.u32 %v435, 7
    %v437 = vsub.s32 1, %v436
    %v438 = vrot.slane %v325, %v437
    %v439 = vlaneseq
    %v440 = vshrl.u32 %v439, 7
    %v441 = vsub.s32 2, %v440
    %v442 = vrot.slane %v325, %v441
    %v443 = vlaneseq
    %v444 = vshrl.u32 %v443, 7
    %v445 = vsub.s32 3, %v444
    %v446 = vrot.slane %v325, %v445
    %v447 = vlaneseq
    %v448 = vshrl.u32 %v447, 7
    %v449 = vsub.s32 0, %v448
    %v450 = vrot.slane %v326, %v449
    %v451 = vlaneseq
    %v452 = vshrl.u32 %v451, 7
    %v453 = vsub.s32 1, %v452
    %v454 = vrot.slane %v326, %v453
    %v455 = vlaneseq
    %v456 = vshrl.u32 %v455, 7
    %v457 = vsub.s32 2, %v456
    %v458 = vrot.slane %v326, %v457
    %v459 = vlaneseq
    %v460 = vshrl.u32 %v459, 7
    %v461 = vsub.s32 3, %v460
    %v462 = vrot.slane %v326, %v461
    %v495 = vadd.f32 %v208, %v338
    %v496 = vadd.f32 %v210, %v342
    %v497 = vadd.f32 %v281, %v346
    %v498 = vadd.f32 %v283, %v350
    %v499 = vadd.f32 %v212, %v354
    %v500 = vadd.f32 %v214, %v358
    %v501 = vadd.f32 %v285, %v362
    %v502 = vadd.f32 %v287, %v366
    %v503 = vadd.f32 %v218, %v370
    %v504 = vadd.f32 %v220, %v374
    %v505 = vadd.f32 %v291, %v378
    %v506 = vadd.f32 %v293, %v382
    %v507 = vadd.f32 %v222, %v386
    %v508 = vadd.f32 %v224, %v390
    %v509 = vadd.f32 %v295, %v394
    %v510 = vadd.f32 %v297, %v398
    %v511 = vadd.f32 %v228, %v402
    %v512 = vadd.f32 %v230, %v406
    %v513 = vadd.f32 %v301, %v410
    %v514 = vadd.f32 %v303, %v414
    %v515 = vadd.f32 %v232, %v418
    %v516 = vadd.f32 %v234, %v422
    %v517 = vadd.f32 %v305, %v426
    %v518 = vadd.f32 %v307, %v430
    %v519 = vadd.f32 %v238, %v434
    %v520 = vadd.f32 %v240, %v438
    %v521 = vadd.f32 %v311, %v442
    %v522 = vadd.f32 %v313, %v446
    %v523 = vadd.f32 %v242, %v450
    %v524 = vadd.f32 %v244, %v454
    %v525 = vadd.f32 %v315, %v458
    %v526 = vadd.f32 %v317, %v462
    %v527 = vpack.c.bf16 %v495, %v495
    %v528 = vpack.c.bf16 %v499, %v499
    %v529 = vpack.c.bf16 %v503, %v503
    %v530 = vpack.c.bf16 %v507, %v507
    %v531 = vpack.c.bf16 %v511, %v511
    %v532 = vpack.c.bf16 %v515, %v515
    %v533 = vpack.c.bf16 %v519, %v519
    %v534 = vpack.c.bf16 %v523, %v523
    %v535 = vpack.c.bf16 %v496, %v496
    %v536 = vpack.c.bf16 %v497, %v497
    %v537 = vpack.c.bf16 %v498, %v498
    %v538 = vpack.c.bf16 %v500, %v500
    %v539 = vpack.c.bf16 %v501, %v501
    %v540 = vpack.c.bf16 %v502, %v502
    %v541 = vpack.c.bf16 %v504, %v504
    %v542 = vpack.c.bf16 %v505, %v505
    %v543 = vpack.c.bf16 %v506, %v506
    %v544 = vpack.c.bf16 %v508, %v508
    %v545 = vpack.c.bf16 %v509, %v509
    %v546 = vpack.c.bf16 %v510, %v510
    %v547 = vpack.c.bf16 %v512, %v512
    %v548 = vpack.c.bf16 %v513, %v513
    %v549 = vpack.c.bf16 %v514, %v514
    %v550 = vpack.c.bf16 %v516, %v516
    %v551 = vpack.c.bf16 %v517, %v517
    %v552 = vpack.c.bf16 %v518, %v518
    %v553 = vpack.c.bf16 %v520, %v520
    %v554 = vpack.c.bf16 %v521, %v521
    %v555 = vpack.c.bf16 %v522, %v522
    %v556 = vpack.c.bf16 %v524, %v524
    %v557 = vpack.c.bf16 %v525, %v525
    %v558 = vpack.c.bf16 %v526, %v526
    %v559 = vld [vmem:[%s4] sm:$0xf]
    %v560 = vld [vmem:[%s4 + $0x4] sm:$0xf]
    %v561 = vld [vmem:[%s4 + $0x8] sm:$0xf]
    %v562 = vld [vmem:[%s4 + $0xc] sm:$0xf]
    %v563 = vld [vmem:[%s4 + $0x10] sm:$0xf]
    %v564 = vld [vmem:[%s4 + $0x14] sm:$0xf]
    %v565 = vld [vmem:[%s4 + $0x18] sm:$0xf]
    %v566 = vld [vmem:[%s4 + $0x1c] sm:$0xf]
    %v567 = vld [vmem:[%s4 + $0x20] sm:$0xf]
    %v568 = vld [vmem:[%s4 + $0x24] sm:$0xf]
    %579 = vrot.lane.b32.xlu0 %v559, 40
    %v580 = vpop.permute.xlu0 %579
    %581 = vrot.lane.b32.xlu0 %v560, 40
    %v582 = vpop.permute.xlu0 %581
    %583 = vrot.lane.b32.xlu0 %v561, 40
    %v584 = vpop.permute.xlu0 %583
    %585 = vrot.lane.b32.xlu0 %v562, 40
    %v586 = vpop.permute.xlu0 %585
    %587 = vrot.lane.b32.xlu0 %v563, 40
    %v588 = vpop.permute.xlu0 %587
    %589 = vrot.lane.b32.xlu0 %v564, 40
    %v590 = vpop.permute.xlu0 %589
    %591 = vrot.lane.b32.xlu0 %v565, 40
    %v592 = vpop.permute.xlu0 %591
    %593 = vrot.lane.b32.xlu0 %v566, 40
    %v594 = vpop.permute.xlu0 %593
    %595 = vrot.lane.b32.xlu0 %v567, 40
    %v596 = vpop.permute.xlu0 %595
    %597 = vrot.lane.b32.xlu0 %v568, 40
    %v598 = vpop.permute.xlu0 %597
    %v609 = vmul.bf16 %v527, %v580
    %v610 = vmul.bf16 %v527, %v582
    %v611 = vmul.bf16 %v527, %v584
    %v612 = vmul.bf16 %v527, %v586
    %v613 = vmul.bf16 %v527, %v588
    %v614 = vmul.bf16 %v527, %v590
    %v615 = vmul.bf16 %v527, %v592
    %v616 = vmul.bf16 %v527, %v594
    %v617 = vmul.bf16 %v527, %v596
    %v618 = vmul.bf16 %v527, %v598
    %v619 = vmul.bf16 %v528, %v580
    %v620 = vmul.bf16 %v528, %v582
    %v621 = vmul.bf16 %v528, %v584
    %v622 = vmul.bf16 %v528, %v586
    %v623 = vmul.bf16 %v528, %v588
    %v624 = vmul.bf16 %v528, %v590
    %v625 = vmul.bf16 %v528, %v592
    %v626 = vmul.bf16 %v528, %v594
    %v627 = vmul.bf16 %v528, %v596
    %v628 = vmul.bf16 %v528, %v598
    %v629 = vmul.bf16 %v529, %v580
    %v630 = vmul.bf16 %v529, %v582
    %v631 = vmul.bf16 %v529, %v584
    %v632 = vmul.bf16 %v529, %v586
    %v633 = vmul.bf16 %v529, %v588
    %v634 = vmul.bf16 %v529, %v590
    %v635 = vmul.bf16 %v529, %v592
    %v636 = vmul.bf16 %v529, %v594
    %v637 = vmul.bf16 %v529, %v596
    %v638 = vmul.bf16 %v529, %v598
    %v639 = vmul.bf16 %v530, %v580
    %v640 = vmul.bf16 %v530, %v582
    %v641 = vmul.bf16 %v530, %v584
    %v642 = vmul.bf16 %v530, %v586
    %v643 = vmul.bf16 %v530, %v588
    %v644 = vmul.bf16 %v530, %v590
    %v645 = vmul.bf16 %v530, %v592
    %v646 = vmul.bf16 %v530, %v594
    %v647 = vmul.bf16 %v530, %v596
    %v648 = vmul.bf16 %v530, %v598
    %v649 = vmul.bf16 %v531, %v580
    %v650 = vmul.bf16 %v531, %v582
    %v651 = vmul.bf16 %v531, %v584
    %v652 = vmul.bf16 %v531, %v586
    %v653 = vmul.bf16 %v531, %v588
    %v654 = vmul.bf16 %v531, %v590
    %v655 = vmul.bf16 %v531, %v592
    %v656 = vmul.bf16 %v531, %v594
    %v657 = vmul.bf16 %v531, %v596
    %v658 = vmul.bf16 %v531, %v598
    %v659 = vmul.bf16 %v532, %v580
    %v660 = vmul.bf16 %v532, %v582
    %v661 = vmul.bf16 %v532, %v584
    %v662 = vmul.bf16 %v532, %v586
    %v663 = vmul.bf16 %v532, %v588
    %v664 = vmul.bf16 %v532, %v590
    %v665 = vmul.bf16 %v532, %v592
    %v666 = vmul.bf16 %v532, %v594
    %v667 = vmul.bf16 %v532, %v596
    %v668 = vmul.bf16 %v532, %v598
    %v669 = vmul.bf16 %v533, %v580
    %v670 = vmul.bf16 %v533, %v582
    %v671 = vmul.bf16 %v533, %v584
    %v672 = vmul.bf16 %v533, %v586
    %v673 = vmul.bf16 %v533, %v588
    %v674 = vmul.bf16 %v533, %v590
    %v675 = vmul.bf16 %v533, %v592
    %v676 = vmul.bf16 %v533, %v594
    %v677 = vmul.bf16 %v533, %v596
    %v678 = vmul.bf16 %v533, %v598
    %v679 = vmul.bf16 %v534, %v580
    %v680 = vmul.bf16 %v534, %v582
    %v681 = vmul.bf16 %v534, %v584
    %v682 = vmul.bf16 %v534, %v586
    %v683 = vmul.bf16 %v534, %v588
    %v684 = vmul.bf16 %v534, %v590
    %v685 = vmul.bf16 %v534, %v592
    %v686 = vmul.bf16 %v534, %v594
    %v687 = vmul.bf16 %v534, %v596
    %v688 = vmul.bf16 %v534, %v598
    %v699 = vunpack.c.l.b16 %v609
    %v700 = vunpack.c.l.b16 %v610
    %v701 = vunpack.c.l.b16 %v611
    %v702 = vunpack.c.l.b16 %v612
    %v703 = vunpack.c.l.b16 %v613
    %v704 = vunpack.c.l.b16 %v614
    %v705 = vunpack.c.l.b16 %v615
    %v706 = vunpack.c.l.b16 %v616
    %v707 = vunpack.c.l.b16 %v617
    %v708 = vunpack.c.l.b16 %v618
    %v709 = vpack.c.b16 %v700, %v699
    %v710 = vpack.c.b16 %v702, %v701
    %v711 = vpack.c.b16 %v704, %v703
    %v712 = vpack.c.b16 %v706, %v705
    %v713 = vpack.c.b16 %v708, %v707
    %714 = vrot.lane.b32.xlu0 %v709, 88
    %v715 = vpop.permute.xlu0 %714
    %716 = vrot.lane.b32.xlu0 %v710, 88
    %v717 = vpop.permute.xlu0 %716
    %718 = vrot.lane.b32.xlu0 %v711, 88
    %v719 = vpop.permute.xlu0 %718
    %720 = vrot.lane.b32.xlu0 %v712, 88
    %v721 = vpop.permute.xlu0 %720
    %722 = vrot.lane.b32.xlu0 %v713, 88
    %v723 = vpop.permute.xlu0 %722
    %v725 = vsel %vm147, %v527, 0
    %v728 = vsel %vm147, %v715, 0
    %v731 = vsel %vm147, %v717, 0
    %v734 = vsel %vm147, %v719, 0
    %v737 = vsel %vm147, %v721, 0
    %v740 = vsel %vm147, %v723, 0
    %742 = vmatprep.subr.bf16.mxu0 0
    %743 = vmatpush1.bf16.xpose.msra.mxu0 0
    %744 = vmatprep.subr.bf16.mxu0 0
    %745 = vmatpush1.bf16.xpose.msra.mxu0 0
    %746 = vmatprep.subr.bf16.mxu0 0
    %747 = vmatpush1.bf16.xpose.msra.mxu0 0
    %748 = vmatprep.subr.bf16.mxu0 0
    %749 = vmatpush1.bf16.xpose.msra.mxu0 %v740
    %750 = vmatprep.subr.bf16.mxu0 0
    %751 = vmatpush1.bf16.xpose.msra.mxu0 %v737
    %752 = vmatprep.subr.bf16.mxu0 0
    %753 = vmatpush1.bf16.xpose.msra.mxu0 %v734
    %754 = vmatprep.subr.bf16.mxu0 0
    %755 = vmatpush1.bf16.xpose.msra.mxu0 %v731
    %756 = vmatprep.subr.bf16.mxu0 0
    %757 = vmatpush1.bf16.xpose.msra.mxu0 %v728
    %758 = vmatprep.subr.bf16.mxu0 0
    %759 = vmatpush2.bf16.xpose.msra.mxu0 0
    %760 = vmatprep.subr.bf16.mxu0 0
    %761 = vmatpush2.bf16.xpose.msra.mxu0 0
    %762 = vmatprep.subr.bf16.mxu0 0
    %763 = vmatpush2.bf16.xpose.msra.mxu0 0
    %764 = vmatprep.subr.bf16.mxu0 0
    %765 = vmatpush2.bf16.xpose.msra.mxu0 0
    %766 = vmatprep.subr.bf16.mxu0 0
    %767 = vmatpush2.bf16.xpose.msra.mxu0 0
    %768 = vmatprep.subr.bf16.mxu0 0
    %769 = vmatpush2.bf16.xpose.msra.mxu0 0
    %770 = vmatprep.subr.bf16.mxu0 0
    %771 = vmatpush2.bf16.xpose.msra.mxu0 0
    %772 = vmatprep.subr.bf16.mxu0 0
    %773 = vmatpush2.bf16.xpose.msra.mxu0 0
    %774 = vmatprep.mubr.bf16.mxu0 0
    %775 = vmatmul.mubr.bf16.gmra.mxu0 %v725
    %v776 = vpop.f32.mrf.mxu0
    %v777 = vadd.f32 0.0, %v776
    %v778 = vpop.f32.mrf.mxu0
    %v779 = vpop.f32.mrf.mxu0
    %v780 = vpop.f32.mrf.mxu0
    %781 = vdwg.mxu0
    %v792 = vunpack.c.l.b16 %v619
    %v793 = vunpack.c.l.b16 %v620
    %v794 = vunpack.c.l.b16 %v621
    %v795 = vunpack.c.l.b16 %v622
    %v796 = vunpack.c.l.b16 %v623
    %v797 = vunpack.c.l.b16 %v624
    %v798 = vunpack.c.l.b16 %v625
    %v799 = vunpack.c.l.b16 %v626
    %v800 = vunpack.c.l.b16 %v627
    %v801 = vunpack.c.l.b16 %v628
    %v802 = vpack.c.b16 %v793, %v792
    %v803 = vpack.c.b16 %v795, %v794
    %v804 = vpack.c.b16 %v797, %v796
    %v805 = vpack.c.b16 %v799, %v798
    %v806 = vpack.c.b16 %v801, %v800
    %807 = vrot.lane.b32.xlu0 %v802, 88
    %v808 = vpop.permute.xlu0 %807
    %809 = vrot.lane.b32.xlu0 %v803, 88
    %v810 = vpop.permute.xlu0 %809
    %811 = vrot.lane.b32.xlu0 %v804, 88
    %v812 = vpop.permute.xlu0 %811
    %813 = vrot.lane.b32.xlu0 %v805, 88
    %v814 = vpop.permute.xlu0 %813
    %815 = vrot.lane.b32.xlu0 %v806, 88
    %v816 = vpop.permute.xlu0 %815
    %v818 = vsel %vm147, %v528, 0
    %v821 = vsel %vm147, %v808, 0
    %v824 = vsel %vm147, %v810, 0
    %v827 = vsel %vm147, %v812, 0
    %v830 = vsel %vm147, %v814, 0
    %v833 = vsel %vm147, %v816, 0
    %835 = vmatprep.subr.bf16.mxu0 0
    %836 = vmatpush1.bf16.xpose.msra.mxu0 0
    %837 = vmatprep.subr.bf16.mxu0 0
    %838 = vmatpush1.bf16.xpose.msra.mxu0 0
    %839 = vmatprep.subr.bf16.mxu0 0
    %840 = vmatpush1.bf16.xpose.msra.mxu0 0
    %841 = vmatprep.subr.bf16.mxu0 0
    %842 = vmatpush1.bf16.xpose.msra.mxu0 %v833
    %843 = vmatprep.subr.bf16.mxu0 0
    %844 = vmatpush1.bf16.xpose.msra.mxu0 %v830
    %845 = vmatprep.subr.bf16.mxu0 0
    %846 = vmatpush1.bf16.xpose.msra.mxu0 %v827
    %847 = vmatprep.subr.bf16.mxu0 0
    %848 = vmatpush1.bf16.xpose.msra.mxu0 %v824
    %849 = vmatprep.subr.bf16.mxu0 0
    %850 = vmatpush1.bf16.xpose.msra.mxu0 %v821
    %851 = vmatprep.subr.bf16.mxu0 0
    %852 = vmatpush2.bf16.xpose.msra.mxu0 0
    %853 = vmatprep.subr.bf16.mxu0 0
    %854 = vmatpush2.bf16.xpose.msra.mxu0 0
    %855 = vmatprep.subr.bf16.mxu0 0
    %856 = vmatpush2.bf16.xpose.msra.mxu0 0
    %857 = vmatprep.subr.bf16.mxu0 0
    %858 = vmatpush2.bf16.xpose.msra.mxu0 0
    %859 = vmatprep.subr.bf16.mxu0 0
    %860 = vmatpush2.bf16.xpose.msra.mxu0 0
    %861 = vmatprep.subr.bf16.mxu0 0
    %862 = vmatpush2.bf16.xpose.msra.mxu0 0
    %863 = vmatprep.subr.bf16.mxu0 0
    %864 = vmatpush2.bf16.xpose.msra.mxu0 0
    %865 = vmatprep.subr.bf16.mxu0 0
    %866 = vmatpush2.bf16.xpose.msra.mxu0 0
    %867 = vmatprep.mubr.bf16.mxu0 0
    %868 = vmatmul.mubr.bf16.gmra.mxu0 %v818
    %v869 = vpop.f32.mrf.mxu0
    %v870 = vadd.f32 0.0, %v869
    %v871 = vpop.f32.mrf.mxu0
    %v872 = vpop.f32.mrf.mxu0
    %v873 = vpop.f32.mrf.mxu0
    %874 = vdwg.mxu0
    %v885 = vunpack.c.l.b16 %v629
    %v886 = vunpack.c.l.b16 %v630
    %v887 = vunpack.c.l.b16 %v631
    %v888 = vunpack.c.l.b16 %v632
    %v889 = vunpack.c.l.b16 %v633
    %v890 = vunpack.c.l.b16 %v634
    %v891 = vunpack.c.l.b16 %v635
    %v892 = vunpack.c.l.b16 %v636
    %v893 = vunpack.c.l.b16 %v637
    %v894 = vunpack.c.l.b16 %v638
    %v895 = vpack.c.b16 %v886, %v885
    %v896 = vpack.c.b16 %v888, %v887
    %v897 = vpack.c.b16 %v890, %v889
    %v898 = vpack.c.b16 %v892, %v891
    %v899 = vpack.c.b16 %v894, %v893
    %900 = vrot.lane.b32.xlu0 %v895, 88
    %v901 = vpop.permute.xlu0 %900
    %902 = vrot.lane.b32.xlu0 %v896, 88
    %v903 = vpop.permute.xlu0 %902
    %904 = vrot.lane.b32.xlu0 %v897, 88
    %v905 = vpop.permute.xlu0 %904
    %906 = vrot.lane.b32.xlu0 %v898, 88
    %v907 = vpop.permute.xlu0 %906
    %908 = vrot.lane.b32.xlu0 %v899, 88
    %v909 = vpop.permute.xlu0 %908
    %v911 = vsel %vm147, %v529, 0
    %v914 = vsel %vm147, %v901, 0
    %v917 = vsel %vm147, %v903, 0
    %v920 = vsel %vm147, %v905, 0
    %v923 = vsel %vm147, %v907, 0
    %v926 = vsel %vm147, %v909, 0
    %928 = vmatprep.subr.bf16.mxu0 0
    %929 = vmatpush1.bf16.xpose.msra.mxu0 0
    %930 = vmatprep.subr.bf16.mxu0 0
    %931 = vmatpush1.bf16.xpose.msra.mxu0 0
    %932 = vmatprep.subr.bf16.mxu0 0
    %933 = vmatpush1.bf16.xpose.msra.mxu0 0
    %934 = vmatprep.subr.bf16.mxu0 0
    %935 = vmatpush1.bf16.xpose.msra.mxu0 %v926
    %936 = vmatprep.subr.bf16.mxu0 0
    %937 = vmatpush1.bf16.xpose.msra.mxu0 %v923
    %938 = vmatprep.subr.bf16.mxu0 0
    %939 = vmatpush1.bf16.xpose.msra.mxu0 %v920
    %940 = vmatprep.subr.bf16.mxu0 0
    %941 = vmatpush1.bf16.xpose.msra.mxu0 %v917
    %942 = vmatprep.subr.bf16.mxu0 0
    %943 = vmatpush1.bf16.xpose.msra.mxu0 %v914
    %944 = vmatprep.subr.bf16.mxu0 0
    %945 = vmatpush2.bf16.xpose.msra.mxu0 0
    %946 = vmatprep.subr.bf16.mxu0 0
    %947 = vmatpush2.bf16.xpose.msra.mxu0 0
    %948 = vmatprep.subr.bf16.mxu0 0
    %949 = vmatpush2.bf16.xpose.msra.mxu0 0
    %950 = vmatprep.subr.bf16.mxu0 0
    %951 = vmatpush2.bf16.xpose.msra.mxu0 0
    %952 = vmatprep.subr.bf16.mxu0 0
    %953 = vmatpush2.bf16.xpose.msra.mxu0 0
    %954 = vmatprep.subr.bf16.mxu0 0
    %955 = vmatpush2.bf16.xpose.msra.mxu0 0
    %956 = vmatprep.subr.bf16.mxu0 0
    %957 = vmatpush2.bf16.xpose.msra.mxu0 0
    %958 = vmatprep.subr.bf16.mxu0 0
    %959 = vmatpush2.bf16.xpose.msra.mxu0 0
    %960 = vmatprep.mubr.bf16.mxu0 0
    %961 = vmatmul.mubr.bf16.gmra.mxu0 %v911
    %v962 = vpop.f32.mrf.mxu0
    %v963 = vadd.f32 0.0, %v962
    %v964 = vpop.f32.mrf.mxu0
    %v965 = vpop.f32.mrf.mxu0
    %v966 = vpop.f32.mrf.mxu0
    %967 = vdwg.mxu0
    %v978 = vunpack.c.l.b16 %v639
    %v979 = vunpack.c.l.b16 %v640
    %v980 = vunpack.c.l.b16 %v641
    %v981 = vunpack.c.l.b16 %v642
    %v982 = vunpack.c.l.b16 %v643
    %v983 = vunpack.c.l.b16 %v644
    %v984 = vunpack.c.l.b16 %v645
    %v985 = vunpack.c.l.b16 %v646
    %v986 = vunpack.c.l.b16 %v647
    %v987 = vunpack.c.l.b16 %v648
    %v988 = vpack.c.b16 %v979, %v978
    %v989 = vpack.c.b16 %v981, %v980
    %v990 = vpack.c.b16 %v983, %v982
    %v991 = vpack.c.b16 %v985, %v984
    %v992 = vpack.c.b16 %v987, %v986
    %993 = vrot.lane.b32.xlu0 %v988, 88
    %v994 = vpop.permute.xlu0 %993
    %995 = vrot.lane.b32.xlu0 %v989, 88
    %v996 = vpop.permute.xlu0 %995
    %997 = vrot.lane.b32.xlu0 %v990, 88
    %v998 = vpop.permute.xlu0 %997
    %999 = vrot.lane.b32.xlu0 %v991, 88
    %v1000 = vpop.permute.xlu0 %999
    %1001 = vrot.lane.b32.xlu0 %v992, 88
    %v1002 = vpop.permute.xlu0 %1001
    %v1004 = vsel %vm147, %v530, 0
    %v1007 = vsel %vm147, %v994, 0
    %v1010 = vsel %vm147, %v996, 0
    %v1013 = vsel %vm147, %v998, 0
    %v1016 = vsel %vm147, %v1000, 0
    %v1019 = vsel %vm147, %v1002, 0
    %1021 = vmatprep.subr.bf16.mxu0 0
    %1022 = vmatpush1.bf16.xpose.msra.mxu0 0
    %1023 = vmatprep.subr.bf16.mxu0 0
    %1024 = vmatpush1.bf16.xpose.msra.mxu0 0
    %1025 = vmatprep.subr.bf16.mxu0 0
    %1026 = vmatpush1.bf16.xpose.msra.mxu0 0
    %1027 = vmatprep.subr.bf16.mxu0 0
    %1028 = vmatpush1.bf16.xpose.msra.mxu0 %v1019
    %1029 = vmatprep.subr.bf16.mxu0 0
    %1030 = vmatpush1.bf16.xpose.msra.mxu0 %v1016
    %1031 = vmatprep.subr.bf16.mxu0 0
    %1032 = vmatpush1.bf16.xpose.msra.mxu0 %v1013
    %1033 = vmatprep.subr.bf16.mxu0 0
    %1034 = vmatpush1.bf16.xpose.msra.mxu0 %v1010
    %1035 = vmatprep.subr.bf16.mxu0 0
    %1036 = vmatpush1.bf16.xpose.msra.mxu0 %v1007
    %1037 = vmatprep.subr.bf16.mxu0 0
    %1038 = vmatpush2.bf16.xpose.msra.mxu0 0
    %1039 = vmatprep.subr.bf16.mxu0 0
    %1040 = vmatpush2.bf16.xpose.msra.mxu0 0
    %1041 = vmatprep.subr.bf16.mxu0 0
    %1042 = vmatpush2.bf16.xpose.msra.mxu0 0
    %1043 = vmatprep.subr.bf16.mxu0 0
    %1044 = vmatpush2.bf16.xpose.msra.mxu0 0
    %1045 = vmatprep.subr.bf16.mxu0 0
    %1046 = vmatpush2.bf16.xpose.msra.mxu0 0
    %1047 = vmatprep.subr.bf16.mxu0 0
    %1048 = vmatpush2.bf16.xpose.msra.mxu0 0
    %1049 = vmatprep.subr.bf16.mxu0 0
    %1050 = vmatpush2.bf16.xpose.msra.mxu0 0
    %1051 = vmatprep.subr.bf16.mxu0 0
    %1052 = vmatpush2.bf16.xpose.msra.mxu0 0
    %1053 = vmatprep.mubr.bf16.mxu0 0
    %1054 = vmatmul.mubr.bf16.gmra.mxu0 %v1004
    %v1055 = vpop.f32.mrf.mxu0
    %v1056 = vadd.f32 0.0, %v1055
    %v1057 = vpop.f32.mrf.mxu0
    %v1058 = vpop.f32.mrf.mxu0
    %v1059 = vpop.f32.mrf.mxu0
    %1060 = vdwg.mxu0
    %v1071 = vunpack.c.l.b16 %v649
    %v1072 = vunpack.c.l.b16 %v650
    %v1073 = vunpack.c.l.b16 %v651
    %v1074 = vunpack.c.l.b16 %v652
    %v1075 = vunpack.c.l.b16 %v653
    %v1076 = vunpack.c.l.b16 %v654
    %v1077 = vunpack.c.l.b16 %v655
    %v1078 = vunpack.c.l.b16 %v656
    %v1079 = vunpack.c.l.b16 %v657
    %v1080 = vunpack.c.l.b16 %v658
    %v1081 = vpack.c.b16 %v1072, %v1071
    %v1082 = vpack.c.b16 %v1074, %v1073
    %v1083 = vpack.c.b16 %v1076, %v1075
    %v1084 = vpack.c.b16 %v1078, %v1077
    %v1085 = vpack.c.b16 %v1080, %v1079
    %1086 = vrot.lane.b32.xlu0 %v1081, 88
    %v1087 = vpop.permute.xlu0 %1086
    %1088 = vrot.lane.b32.xlu0 %v1082, 88
    %v1089 = vpop.permute.xlu0 %1088
    %1090 = vrot.lane.b32.xlu0 %v1083, 88
    %v1091 = vpop.permute.xlu0 %1090
    %1092 = vrot.lane.b32.xlu0 %v1084, 88
    %v1093 = vpop.permute.xlu0 %1092
    %1094 = vrot.lane.b32.xlu0 %v1085, 88
    %v1095 = vpop.permute.xlu0 %1094
    %v1097 = vsel %vm147, %v531, 0
    %v1100 = vsel %vm147, %v1087, 0
    %v1103 = vsel %vm147, %v1089, 0
    %v1106 = vsel %vm147, %v1091, 0
    %v1109 = vsel %vm147, %v1093, 0
    %v1112 = vsel %vm147, %v1095, 0
    %1114 = vmatprep.subr.bf16.mxu0 0
    %1115 = vmatpush1.bf16.xpose.msra.mxu0 0
    %1116 = vmatprep.subr.bf16.mxu0 0
    %1117 = vmatpush1.bf16.xpose.msra.mxu0 0
    %1118 = vmatprep.subr.bf16.mxu0 0
    %1119 = vmatpush1.bf16.xpose.msra.mxu0 0
    %1120 = vmatprep.subr.bf16.mxu0 0
    %1121 = vmatpush1.bf16.xpose.msra.mxu0 %v1112
    %1122 = vmatprep.subr.bf16.mxu0 0
    %1123 = vmatpush1.bf16.xpose.msra.mxu0 %v1109
    %1124 = vmatprep.subr.bf16.mxu0 0
    %1125 = vmatpush1.bf16.xpose.msra.mxu0 %v1106
    %1126 = vmatprep.subr.bf16.mxu0 0
    %1127 = vmatpush1.bf16.xpose.msra.mxu0 %v1103
    %1128 = vmatprep.subr.bf16.mxu0 0
    %1129 = vmatpush1.bf16.xpose.msra.mxu0 %v1100
    %1130 = vmatprep.subr.bf16.mxu0 0
    %1131 = vmatpush2.bf16.xpose.msra.mxu0 0
    %1132 = vmatprep.subr.bf16.mxu0 0
    %1133 = vmatpush2.bf16.xpose.msra.mxu0 0
    %1134 = vmatprep.subr.bf16.mxu0 0
    %1135 = vmatpush2.bf16.xpose.msra.mxu0 0
    %1136 = vmatprep.subr.bf16.mxu0 0
    %1137 = vmatpush2.bf16.xpose.msra.mxu0 0
    %1138 = vmatprep.subr.bf16.mxu0 0
    %1139 = vmatpush2.bf16.xpose.msra.mxu0 0
    %1140 = vmatprep.subr.bf16.mxu0 0
    %1141 = vmatpush2.bf16.xpose.msra.mxu0 0
    %1142 = vmatprep.subr.bf16.mxu0 0
    %1143 = vmatpush2.bf16.xpose.msra.mxu0 0
    %1144 = vmatprep.subr.bf16.mxu0 0
    %1145 = vmatpush2.bf16.xpose.msra.mxu0 0
    %1146 = vmatprep.mubr.bf16.mxu0 0
    %1147 = vmatmul.mubr.bf16.gmra.mxu0 %v1097
    %v1148 = vpop.f32.mrf.mxu0
    %v1149 = vadd.f32 0.0, %v1148
    %v1150 = vpop.f32.mrf.mxu0
    %v1151 = vpop.f32.mrf.mxu0
    %v1152 = vpop.f32.mrf.mxu0
    %1153 = vdwg.mxu0
    %v1164 = vunpack.c.l.b16 %v659
    %v1165 = vunpack.c.l.b16 %v660
    %v1166 = vunpack.c.l.b16 %v661
    %v1167 = vunpack.c.l.b16 %v662
    %v1168 = vunpack.c.l.b16 %v663
    %v1169 = vunpack.c.l.b16 %v664
    %v1170 = vunpack.c.l.b16 %v665
    %v1171 = vunpack.c.l.b16 %v666
    %v1172 = vunpack.c.l.b16 %v667
    %v1173 = vunpack.c.l.b16 %v668
    %v1174 = vpack.c.b16 %v1165, %v1164
    %v1175 = vpack.c.b16 %v1167, %v1166
    %v1176 = vpack.c.b16 %v1169, %v1168
    %v1177 = vpack.c.b16 %v1171, %v1170
    %v1178 = vpack.c.b16 %v1173, %v1172
    %1179 = vrot.lane.b32.xlu0 %v1174, 88
    %v1180 = vpop.permute.xlu0 %1179
    %1181 = vrot.lane.b32.xlu0 %v1175, 88
    %v1182 = vpop.permute.xlu0 %1181
    %1183 = vrot.lane.b32.xlu0 %v1176, 88
    %v1184 = vpop.permute.xlu0 %1183
    %1185 = vrot.lane.b32.xlu0 %v1177, 88
    %v1186 = vpop.permute.xlu0 %1185
    %1187 = vrot.lane.b32.xlu0 %v1178, 88
    %v1188 = vpop.permute.xlu0 %1187
    %v1190 = vsel %vm147, %v532, 0
    %v1193 = vsel %vm147, %v1180, 0
    %v1196 = vsel %vm147, %v1182, 0
    %v1199 = vsel %vm147, %v1184, 0
    %v1202 = vsel %vm147, %v1186, 0
    %v1205 = vsel %vm147, %v1188, 0
    %1207 = vmatprep.subr.bf16.mxu0 0
    %1208 = vmatpush1.bf16.xpose.msra.mxu0 0
    %1209 = vmatprep.subr.bf16.mxu0 0
    %1210 = vmatpush1.bf16.xpose.msra.mxu0 0
    %1211 = vmatprep.subr.bf16.mxu0 0
    %1212 = vmatpush1.bf16.xpose.msra.mxu0 0
    %1213 = vmatprep.subr.bf16.mxu0 0
    %1214 = vmatpush1.bf16.xpose.msra.mxu0 %v1205
    %1215 = vmatprep.subr.bf16.mxu0 0
    %1216 = vmatpush1.bf16.xpose.msra.mxu0 %v1202
    %1217 = vmatprep.subr.bf16.mxu0 0
    %1218 = vmatpush1.bf16.xpose.msra.mxu0 %v1199
    %1219 = vmatprep.subr.bf16.mxu0 0
    %1220 = vmatpush1.bf16.xpose.msra.mxu0 %v1196
    %1221 = vmatprep.subr.bf16.mxu0 0
    %1222 = vmatpush1.bf16.xpose.msra.mxu0 %v1193
    %1223 = vmatprep.subr.bf16.mxu0 0
    %1224 = vmatpush2.bf16.xpose.msra.mxu0 0
    %1225 = vmatprep.subr.bf16.mxu0 0
    %1226 = vmatpush2.bf16.xpose.msra.mxu0 0
    %1227 = vmatprep.subr.bf16.mxu0 0
    %1228 = vmatpush2.bf16.xpose.msra.mxu0 0
    %1229 = vmatprep.subr.bf16.mxu0 0
    %1230 = vmatpush2.bf16.xpose.msra.mxu0 0
    %1231 = vmatprep.subr.bf16.mxu0 0
    %1232 = vmatpush2.bf16.xpose.msra.mxu0 0
    %1233 = vmatprep.subr.bf16.mxu0 0
    %1234 = vmatpush2.bf16.xpose.msra.mxu0 0
    %1235 = vmatprep.subr.bf16.mxu0 0
    %1236 = vmatpush2.bf16.xpose.msra.mxu0 0
    %1237 = vmatprep.subr.bf16.mxu0 0
    %1238 = vmatpush2.bf16.xpose.msra.mxu0 0
    %1239 = vmatprep.mubr.bf16.mxu0 0
    %1240 = vmatmul.mubr.bf16.gmra.mxu0 %v1190
    %v1241 = vpop.f32.mrf.mxu0
    %v1242 = vadd.f32 0.0, %v1241
    %v1243 = vpop.f32.mrf.mxu0
    %v1244 = vpop.f32.mrf.mxu0
    %v1245 = vpop.f32.mrf.mxu0
    %1246 = vdwg.mxu0
    %v1257 = vunpack.c.l.b16 %v669
    %v1258 = vunpack.c.l.b16 %v670
    %v1259 = vunpack.c.l.b16 %v671
    %v1260 = vunpack.c.l.b16 %v672
    %v1261 = vunpack.c.l.b16 %v673
    %v1262 = vunpack.c.l.b16 %v674
    %v1263 = vunpack.c.l.b16 %v675
    %v1264 = vunpack.c.l.b16 %v676
    %v1265 = vunpack.c.l.b16 %v677
    %v1266 = vunpack.c.l.b16 %v678
    %v1267 = vpack.c.b16 %v1258, %v1257
    %v1268 = vpack.c.b16 %v1260, %v1259
    %v1269 = vpack.c.b16 %v1262, %v1261
    %v1270 = vpack.c.b16 %v1264, %v1263
    %v1271 = vpack.c.b16 %v1266, %v1265
    %1272 = vrot.lane.b32.xlu0 %v1267, 88
    %v1273 = vpop.permute.xlu0 %1272
    %1274 = vrot.lane.b32.xlu0 %v1268, 88
    %v1275 = vpop.permute.xlu0 %1274
    %1276 = vrot.lane.b32.xlu0 %v1269, 88
    %v1277 = vpop.permute.xlu0 %1276
    %1278 = vrot.lane.b32.xlu0 %v1270, 88
    %v1279 = vpop.permute.xlu0 %1278
    %1280 = vrot.lane.b32.xlu0 %v1271, 88
    %v1281 = vpop.permute.xlu0 %1280
    %v1283 = vsel %vm147, %v533, 0
    %v1286 = vsel %vm147, %v1273, 0
    %v1289 = vsel %vm147, %v1275, 0
    %v1292 = vsel %vm147, %v1277, 0
    %v1295 = vsel %vm147, %v1279, 0
    %v1298 = vsel %vm147, %v1281, 0
    %1300 = vmatprep.subr.bf16.mxu0 0
    %1301 = vmatpush1.bf16.xpose.msra.mxu0 0
    %1302 = vmatprep.subr.bf16.mxu0 0
    %1303 = vmatpush1.bf16.xpose.msra.mxu0 0
    %1304 = vmatprep.subr.bf16.mxu0 0
    %1305 = vmatpush1.bf16.xpose.msra.mxu0 0
    %1306 = vmatprep.subr.bf16.mxu0 0
    %1307 = vmatpush1.bf16.xpose.msra.mxu0 %v1298
    %1308 = vmatprep.subr.bf16.mxu0 0
    %1309 = vmatpush1.bf16.xpose.msra.mxu0 %v1295
    %1310 = vmatprep.subr.bf16.mxu0 0
    %1311 = vmatpush1.bf16.xpose.msra.mxu0 %v1292
    %1312 = vmatprep.subr.bf16.mxu0 0
    %1313 = vmatpush1.bf16.xpose.msra.mxu0 %v1289
    %1314 = vmatprep.subr.bf16.mxu0 0
    %1315 = vmatpush1.bf16.xpose.msra.mxu0 %v1286
    %1316 = vmatprep.subr.bf16.mxu0 0
    %1317 = vmatpush2.bf16.xpose.msra.mxu0 0
    %1318 = vmatprep.subr.bf16.mxu0 0
    %1319 = vmatpush2.bf16.xpose.msra.mxu0 0
    %1320 = vmatprep.subr.bf16.mxu0 0
    %1321 = vmatpush2.bf16.xpose.msra.mxu0 0
    %1322 = vmatprep.subr.bf16.mxu0 0
    %1323 = vmatpush2.bf16.xpose.msra.mxu0 0
    %1324 = vmatprep.subr.bf16.mxu0 0
    %1325 = vmatpush2.bf16.xpose.msra.mxu0 0
    %1326 = vmatprep.subr.bf16.mxu0 0
    %1327 = vmatpush2.bf16.xpose.msra.mxu0 0
    %1328 = vmatprep.subr.bf16.mxu0 0
    %1329 = vmatpush2.bf16.xpose.msra.mxu0 0
    %1330 = vmatprep.subr.bf16.mxu0 0
    %1331 = vmatpush2.bf16.xpose.msra.mxu0 0
    %1332 = vmatprep.mubr.bf16.mxu0 0
    %1333 = vmatmul.mubr.bf16.gmra.mxu0 %v1283
    %v1334 = vpop.f32.mrf.mxu0
    %v1335 = vadd.f32 0.0, %v1334
    %v1336 = vpop.f32.mrf.mxu0
    %v1337 = vpop.f32.mrf.mxu0
    %v1338 = vpop.f32.mrf.mxu0
    %1339 = vdwg.mxu0
    %v1350 = vunpack.c.l.b16 %v679
    %v1351 = vunpack.c.l.b16 %v680
    %v1352 = vunpack.c.l.b16 %v681
    %v1353 = vunpack.c.l.b16 %v682
    %v1354 = vunpack.c.l.b16 %v683
    %v1355 = vunpack.c.l.b16 %v684
    %v1356 = vunpack.c.l.b16 %v685
    %v1357 = vunpack.c.l.b16 %v686
    %v1358 = vunpack.c.l.b16 %v687
    %v1359 = vunpack.c.l.b16 %v688
    %v1360 = vpack.c.b16 %v1351, %v1350
    %v1361 = vpack.c.b16 %v1353, %v1352
    %v1362 = vpack.c.b16 %v1355, %v1354
    %v1363 = vpack.c.b16 %v1357, %v1356
    %v1364 = vpack.c.b16 %v1359, %v1358
    %1365 = vrot.lane.b32.xlu0 %v1360, 88
    %v1366 = vpop.permute.xlu0 %1365
    %1367 = vrot.lane.b32.xlu0 %v1361, 88
    %v1368 = vpop.permute.xlu0 %1367
    %1369 = vrot.lane.b32.xlu0 %v1362, 88
    %v1370 = vpop.permute.xlu0 %1369
    %1371 = vrot.lane.b32.xlu0 %v1363, 88
    %v1372 = vpop.permute.xlu0 %1371
    %1373 = vrot.lane.b32.xlu0 %v1364, 88
    %v1374 = vpop.permute.xlu0 %1373
    %v1376 = vsel %vm147, %v534, 0
    %v1379 = vsel %vm147, %v1366, 0
    %v1382 = vsel %vm147, %v1368, 0
    %v1385 = vsel %vm147, %v1370, 0
    %v1388 = vsel %vm147, %v1372, 0
    %v1391 = vsel %vm147, %v1374, 0
    %1393 = vmatprep.subr.bf16.mxu0 0
    %1394 = vmatpush1.bf16.xpose.msra.mxu0 0
    %1395 = vmatprep.subr.bf16.mxu0 0
    %1396 = vmatpush1.bf16.xpose.msra.mxu0 0
    %1397 = vmatprep.subr.bf16.mxu0 0
    %1398 = vmatpush1.bf16.xpose.msra.mxu0 0
    %1399 = vmatprep.subr.bf16.mxu0 0
    %1400 = vmatpush1.bf16.xpose.msra.mxu0 %v1391
    %1401 = vmatprep.subr.bf16.mxu0 0
    %1402 = vmatpush1.bf16.xpose.msra.mxu0 %v1388
    %1403 = vmatprep.subr.bf16.mxu0 0
    %1404 = vmatpush1.bf16.xpose.msra.mxu0 %v1385
    %1405 = vmatprep.subr.bf16.mxu0 0
    %1406 = vmatpush1.bf16.xpose.msra.mxu0 %v1382
    %1407 = vmatprep.subr.bf16.mxu0 0
    %1408 = vmatpush1.bf16.xpose.msra.mxu0 %v1379
    %1409 = vmatprep.subr.bf16.mxu0 0
    %1410 = vmatpush2.bf16.xpose.msra.mxu0 0
    %1411 = vmatprep.subr.bf16.mxu0 0
    %1412 = vmatpush2.bf16.xpose.msra.mxu0 0
    %1413 = vmatprep.subr.bf16.mxu0 0
    %1414 = vmatpush2.bf16.xpose.msra.mxu0 0
    %1415 = vmatprep.subr.bf16.mxu0 0
    %1416 = vmatpush2.bf16.xpose.msra.mxu0 0
    %1417 = vmatprep.subr.bf16.mxu0 0
    %1418 = vmatpush2.bf16.xpose.msra.mxu0 0
    %1419 = vmatprep.subr.bf16.mxu0 0
    %1420 = vmatpush2.bf16.xpose.msra.mxu0 0
    %1421 = vmatprep.subr.bf16.mxu0 0
    %1422 = vmatpush2.bf16.xpose.msra.mxu0 0
    %1423 = vmatprep.subr.bf16.mxu0 0
    %1424 = vmatpush2.bf16.xpose.msra.mxu0 0
    %1425 = vmatprep.mubr.bf16.mxu0 0
    %1426 = vmatmul.mubr.bf16.gmra.mxu0 %v1376
    %v1427 = vpop.f32.mrf.mxu0
    %v1428 = vadd.f32 0.0, %v1427
    %v1429 = vpop.f32.mrf.mxu0
    %v1430 = vpop.f32.mrf.mxu0
    %v1431 = vpop.f32.mrf.mxu0
    %1432 = vdwg.mxu0
    %vm1433 = vcmask 654336
    %v1434 = vsel %vm1433, %v777, -inf
    %1435 = vmax.xlane.f32.xlu0 %v1434
    %v1436 = vpop.xlane.xlu0 %1435
    %v1437 = vsel %vm1433, %v870, -inf
    %1438 = vmax.xlane.f32.xlu0 %v1437
    %v1439 = vpop.xlane.xlu0 %1438
    %v1440 = vsel %vm1433, %v963, -inf
    %1441 = vmax.xlane.f32.xlu0 %v1440
    %v1442 = vpop.xlane.xlu0 %1441
    %v1443 = vsel %vm1433, %v1056, -inf
    %1444 = vmax.xlane.f32.xlu0 %v1443
    %v1445 = vpop.xlane.xlu0 %1444
    %v1446 = vsel %vm1433, %v1149, -inf
    %1447 = vmax.xlane.f32.xlu0 %v1446
    %v1448 = vpop.xlane.xlu0 %1447
    %v1449 = vsel %vm1433, %v1242, -inf
    %1450 = vmax.xlane.f32.xlu0 %v1449
    %v1451 = vpop.xlane.xlu0 %1450
    %v1452 = vsel %vm1433, %v1335, -inf
    %1453 = vmax.xlane.f32.xlu0 %v1452
    %v1454 = vpop.xlane.xlu0 %1453
    %v1455 = vsel %vm1433, %v1428, -inf
    %1456 = vmax.xlane.f32.xlu0 %v1455
    %v1457 = vpop.xlane.xlu0 %1456
    %v1458 = vsub.f32 %v777, %v1436
    %v1459 = vsub.f32 %v870, %v1439
    %v1460 = vsub.f32 %v963, %v1442
    %v1461 = vsub.f32 %v1056, %v1445
    %v1462 = vsub.f32 %v1149, %v1448
    %v1463 = vsub.f32 %v1242, %v1451
    %v1464 = vsub.f32 %v1335, %v1454
    %v1465 = vsub.f32 %v1428, %v1457
    %v1466 = vmul.f32 %v1458, 1.442695
    %v1467 = vpow.pop %v1466
    %v1468 = vmul.f32 %v1459, 1.442695
    %v1469 = vpow.pop %v1468
    %v1470 = vmul.f32 %v1460, 1.442695
    %v1471 = vpow.pop %v1470
    %v1472 = vmul.f32 %v1461, 1.442695
    %v1473 = vpow.pop %v1472
    %v1474 = vmul.f32 %v1462, 1.442695
    %v1475 = vpow.pop %v1474
    %v1476 = vmul.f32 %v1463, 1.442695
    %v1477 = vpow.pop %v1476
    %v1478 = vmul.f32 %v1464, 1.442695
    %v1479 = vpow.pop %v1478
    %v1480 = vmul.f32 %v1465, 1.442695
    %v1481 = vpow.pop %v1480
    %v1482 = vld [vmem:[#allocation7] sm:$0xff]
    %v1483 = vld [vmem:[#allocation7 + $0x8] sm:$0xff]
    %v1484 = vld [vmem:[#allocation7 + $0x10] sm:$0xff]
    %v1485 = vld [vmem:[#allocation7 + $0x18] sm:$0xff]
    %v1486 = vld [vmem:[#allocation7 + $0x20] sm:$0xff]
    %v1487 = vld [vmem:[#allocation7 + $0x28] sm:$0xff]
    %v1488 = vld [vmem:[#allocation7 + $0x30] sm:$0xff]
    %v1489 = vld [vmem:[#allocation7 + $0x38] sm:$0xff]
    %v1490 = vld [vmem:[#allocation7 + $0x40] sm:$0xff]
    %v1491 = vld [vmem:[#allocation7 + $0x48] sm:$0xff]
    %v1493 = vsel %vm1433, %v1467, 0
    %v1496 = vsel %vm1433, %v1469, 0
    %v1499 = vsel %vm1433, %v1471, 0
    %v1502 = vsel %vm1433, %v1473, 0
    %v1505 = vsel %vm1433, %v1475, 0
    %v1508 = vsel %vm1433, %v1477, 0
    %v1511 = vsel %vm1433, %v1479, 0
    %v1514 = vsel %vm1433, %v1481, 0
    %1516 = vmatprep.subr.mxu0 0.0
    %1517 = vmatpush1.msra.mxu0 0.0
    %1518 = vmatprep.subr.mxu0 0.0
    %1519 = vmatpush1.msra.mxu0 0.0
    %1520 = vmatprep.subr.mxu0 0.0
    %1521 = vmatpush1.msra.mxu0 0.0
    %1522 = vmatprep.subr.mxu0 0.0
    %1523 = vmatpush1.msra.mxu0 0.0
    %1524 = vmatprep.subr.mxu0 0.0
    %1525 = vmatpush1.msra.mxu0 0.0
    %1526 = vmatprep.subr.mxu0 0.0
    %1527 = vmatpush1.msra.mxu0 0.0
    %1528 = vmatprep.subr.mxu0 0.0
    %v1529 = vand.u32 %v1491, 4294901760
    %1530 = vmatpush1.msra.mxu0 %v1529
    %1531 = vmatprep.subr.mxu0 0.0
    %v1532 = vand.u32 %v1490, 4294901760
    %1533 = vmatpush1.msra.mxu0 %v1532
    %1534 = vmatprep.subr.mxu0 0.0
    %v1535 = vand.u32 %v1489, 4294901760
    %1536 = vmatpush1.msra.mxu0 %v1535
    %1537 = vmatprep.subr.mxu0 0.0
    %v1538 = vand.u32 %v1488, 4294901760
    %1539 = vmatpush1.msra.mxu0 %v1538
    %1540 = vmatprep.subr.mxu0 0.0
    %v1541 = vand.u32 %v1487, 4294901760
    %1542 = vmatpush1.msra.mxu0 %v1541
    %1543 = vmatprep.subr.mxu0 0.0
    %v1544 = vand.u32 %v1486, 4294901760
    %1545 = vmatpush1.msra.mxu0 %v1544
    %1546 = vmatprep.subr.mxu0 0.0
    %v1547 = vand.u32 %v1485, 4294901760
    %1548 = vmatpush1.msra.mxu0 %v1547
    %1549 = vmatprep.subr.mxu0 0.0
    %v1550 = vand.u32 %v1484, 4294901760
    %1551 = vmatpush1.msra.mxu0 %v1550
    %1552 = vmatprep.subr.mxu0 0.0
    %v1553 = vand.u32 %v1483, 4294901760
    %1554 = vmatpush1.msra.mxu0 %v1553
    %1555 = vmatprep.subr.mxu0 0.0
    %v1556 = vand.u32 %v1482, 4294901760
    %1557 = vmatpush1.msra.mxu0 %v1556
    %1558 = vmatprep.subr.mxu0 0.0
    %1559 = vmatpush2.msra.mxu0 0.0
    %1560 = vmatprep.subr.mxu0 0.0
    %1561 = vmatpush2.msra.mxu0 0.0
    %1562 = vmatprep.subr.mxu0 0.0
    %1563 = vmatpush2.msra.mxu0 0.0
    %1564 = vmatprep.subr.mxu0 0.0
    %1565 = vmatpush2.msra.mxu0 0.0
    %1566 = vmatprep.subr.mxu0 0.0
    %1567 = vmatpush2.msra.mxu0 0.0
    %1568 = vmatprep.subr.mxu0 0.0
    %1569 = vmatpush2.msra.mxu0 0.0
    %1570 = vmatprep.subr.mxu0 0.0
    %1571 = vmatpush2.msra.mxu0 0.0
    %1572 = vmatprep.subr.mxu0 0.0
    %1573 = vmatpush2.msra.mxu0 0.0
    %1574 = vmatprep.subr.mxu0 0.0
    %1575 = vmatpush2.msra.mxu0 0.0
    %1576 = vmatprep.subr.mxu0 0.0
    %1577 = vmatpush2.msra.mxu0 0.0
    %1578 = vmatprep.subr.mxu0 0.0
    %1579 = vmatpush2.msra.mxu0 0.0
    %1580 = vmatprep.subr.mxu0 0.0
    %1581 = vmatpush2.msra.mxu0 0.0
    %1582 = vmatprep.subr.mxu0 0.0
    %1583 = vmatpush2.msra.mxu0 0.0
    %1584 = vmatprep.subr.mxu0 0.0
    %1585 = vmatpush2.msra.mxu0 0.0
    %1586 = vmatprep.subr.mxu0 0.0
    %1587 = vmatpush2.msra.mxu0 0.0
    %1588 = vmatprep.subr.mxu0 0.0
    %1589 = vmatpush2.msra.mxu0 0.0
    %1590 = vmatprep.mubr.f32.mxu0 0.0
    %v1591 = vand.u32 %v1493, 4294901760
    %v1592 = vsub.f32 %v1493, %v1591
    %v1593 = vand.u32 %v1592, 4294901760
    %v1594 = vsub.f32 %v1592, %v1593
    %v1595 = vand.u32 %v1594, 4294901760
    %1596 = vmatmul.mubr.f32.gmra.mxu0 %v1595
    %v1597 = vpop.f32.mrf.mxu0
    %v1598 = vadd.f32 0.0, %v1597
    %v1599 = vpop.f32.mrf.mxu0
    %1600 = vmatprep.mubr.f32.mxu0 0.0
    %v1601 = vand.u32 %v1496, 4294901760
    %v1602 = vsub.f32 %v1496, %v1601
    %v1603 = vand.u32 %v1602, 4294901760
    %v1604 = vsub.f32 %v1602, %v1603
    %v1605 = vand.u32 %v1604, 4294901760
    %1606 = vmatmul.mubr.f32.gmra.mxu0 %v1605
    %v1607 = vpop.f32.mrf.mxu0
    %v1608 = vadd.f32 0.0, %v1607
    %v1609 = vpop.f32.mrf.mxu0
    %1610 = vmatprep.mubr.f32.mxu0 0.0
    %v1611 = vand.u32 %v1499, 4294901760
    %v1612 = vsub.f32 %v1499, %v1611
    %v1613 = vand.u32 %v1612, 4294901760
    %v1614 = vsub.f32 %v1612, %v1613
    %v1615 = vand.u32 %v1614, 4294901760
    %1616 = vmatmul.mubr.f32.gmra.mxu0 %v1615
    %v1617 = vpop.f32.mrf.mxu0
    %v1618 = vadd.f32 0.0, %v1617
    %v1619 = vpop.f32.mrf.mxu0
    %1620 = vmatprep.mubr.f32.mxu0 0.0
    %v1621 = vand.u32 %v1502, 4294901760
    %v1622 = vsub.f32 %v1502, %v1621
    %v1623 = vand.u32 %v1622, 4294901760
    %v1624 = vsub.f32 %v1622, %v1623
    %v1625 = vand.u32 %v1624, 4294901760
    %1626 = vmatmul.mubr.f32.gmra.mxu0 %v1625
    %v1627 = vpop.f32.mrf.mxu0
    %v1628 = vadd.f32 0.0, %v1627
    %v1629 = vpop.f32.mrf.mxu0
    %1630 = vmatprep.mubr.f32.mxu0 0.0
    %v1631 = vand.u32 %v1505, 4294901760
    %v1632 = vsub.f32 %v1505, %v1631
    %v1633 = vand.u32 %v1632, 4294901760
    %v1634 = vsub.f32 %v1632, %v1633
    %v1635 = vand.u32 %v1634, 4294901760
    %1636 = vmatmul.mubr.f32.gmra.mxu0 %v1635
    %v1637 = vpop.f32.mrf.mxu0
    %v1638 = vadd.f32 0.0, %v1637
    %v1639 = vpop.f32.mrf.mxu0
    %1640 = vmatprep.mubr.f32.mxu0 0.0
    %v1641 = vand.u32 %v1508, 4294901760
    %v1642 = vsub.f32 %v1508, %v1641
    %v1643 = vand.u32 %v1642, 4294901760
    %v1644 = vsub.f32 %v1642, %v1643
    %v1645 = vand.u32 %v1644, 4294901760
    %1646 = vmatmul.mubr.f32.gmra.mxu0 %v1645
    %v1647 = vpop.f32.mrf.mxu0
    %v1648 = vadd.f32 0.0, %v1647
    %v1649 = vpop.f32.mrf.mxu0
    %1650 = vmatprep.mubr.f32.mxu0 0.0
    %v1651 = vand.u32 %v1511, 4294901760
    %v1652 = vsub.f32 %v1511, %v1651
    %v1653 = vand.u32 %v1652, 4294901760
    %v1654 = vsub.f32 %v1652, %v1653
    %v1655 = vand.u32 %v1654, 4294901760
    %1656 = vmatmul.mubr.f32.gmra.mxu0 %v1655
    %v1657 = vpop.f32.mrf.mxu0
    %v1658 = vadd.f32 0.0, %v1657
    %v1659 = vpop.f32.mrf.mxu0
    %1660 = vmatprep.mubr.f32.mxu0 0.0
    %v1661 = vand.u32 %v1514, 4294901760
    %v1662 = vsub.f32 %v1514, %v1661
    %v1663 = vand.u32 %v1662, 4294901760
    %v1664 = vsub.f32 %v1662, %v1663
    %v1665 = vand.u32 %v1664, 4294901760
    %1666 = vmatmul.mubr.f32.gmra.mxu0 %v1665
    %v1667 = vpop.f32.mrf.mxu0
    %v1668 = vadd.f32 0.0, %v1667
    %v1669 = vpop.f32.mrf.mxu0
    %1670 = vdwg.mxu0
    %1671 = vmatprep.subr.mxu0 0.0
    %1672 = vmatpush1.msra.mxu0 0.0
    %1673 = vmatprep.subr.mxu0 0.0
    %1674 = vmatpush1.msra.mxu0 0.0
    %1675 = vmatprep.subr.mxu0 0.0
    %1676 = vmatpush1.msra.mxu0 0.0
    %1677 = vmatprep.subr.mxu0 0.0
    %1678 = vmatpush1.msra.mxu0 0.0
    %1679 = vmatprep.subr.mxu0 0.0
    %1680 = vmatpush1.msra.mxu0 0.0
    %1681 = vmatprep.subr.mxu0 0.0
    %1682 = vmatpush1.msra.mxu0 0.0
    %1683 = vmatprep.subr.mxu0 0.0
    %v1684 = vand.u32 %v1491, 4294901760
    %v1685 = vsub.f32 %v1491, %v1684
    %v1686 = vand.u32 %v1685, 4294901760
    %v1687 = vsub.f32 %v1685, %v1686
    %v1688 = vand.u32 %v1687, 4294901760
    %1689 = vmatpush1.msra.mxu0 %v1688
    %1690 = vmatprep.subr.mxu0 0.0
    %v1691 = vand.u32 %v1490, 4294901760
    %v1692 = vsub.f32 %v1490, %v1691
    %v1693 = vand.u32 %v1692, 4294901760
    %v1694 = vsub.f32 %v1692, %v1693
    %v1695 = vand.u32 %v1694, 4294901760
    %1696 = vmatpush1.msra.mxu0 %v1695
    %1697 = vmatprep.subr.mxu0 0.0
    %v1698 = vand.u32 %v1489, 4294901760
    %v1699 = vsub.f32 %v1489, %v1698
    %v1700 = vand.u32 %v1699, 4294901760
    %v1701 = vsub.f32 %v1699, %v1700
    %v1702 = vand.u32 %v1701, 4294901760
    %1703 = vmatpush1.msra.mxu0 %v1702
    %1704 = vmatprep.subr.mxu0 0.0
    %v1705 = vand.u32 %v1488, 4294901760
    %v1706 = vsub.f32 %v1488, %v1705
    %v1707 = vand.u32 %v1706, 4294901760
    %v1708 = vsub.f32 %v1706, %v1707
    %v1709 = vand.u32 %v1708, 4294901760
    %1710 = vmatpush1.msra.mxu0 %v1709
    %1711 = vmatprep.subr.mxu0 0.0
    %v1712 = vand.u32 %v1487, 4294901760
    %v1713 = vsub.f32 %v1487, %v1712
    %v1714 = vand.u32 %v1713, 4294901760
    %v1715 = vsub.f32 %v1713, %v1714
    %v1716 = vand.u32 %v1715, 4294901760
    %1717 = vmatpush1.msra.mxu0 %v1716
    %1718 = vmatprep.subr.mxu0 0.0
    %v1719 = vand.u32 %v1486, 4294901760
    %v1720 = vsub.f32 %v1486, %v1719
    %v1721 = vand.u32 %v1720, 4294901760
    %v1722 = vsub.f32 %v1720, %v1721
    %v1723 = vand.u32 %v1722, 4294901760
    %1724 = vmatpush1.msra.mxu0 %v1723
    %1725 = vmatprep.subr.mxu0 0.0
    %v1726 = vand.u32 %v1485, 4294901760
    %v1727 = vsub.f32 %v1485, %v1726
    %v1728 = vand.u32 %v1727, 4294901760
    %v1729 = vsub.f32 %v1727, %v1728
    %v1730 = vand.u32 %v1729, 4294901760
    %1731 = vmatpush1.msra.mxu0 %v1730
    %1732 = vmatprep.subr.mxu0 0.0
    %v1733 = vand.u32 %v1484, 4294901760
    %v1734 = vsub.f32 %v1484, %v1733
    %v1735 = vand.u32 %v1734, 4294901760
    %v1736 = vsub.f32 %v1734, %v1735
    %v1737 = vand.u32 %v1736, 4294901760
    %1738 = vmatpush1.msra.mxu0 %v1737
    %1739 = vmatprep.subr.mxu0 0.0
    %v1740 = vand.u32 %v1483, 4294901760
    %v1741 = vsub.f32 %v1483, %v1740
    %v1742 = vand.u32 %v1741, 4294901760
    %v1743 = vsub.f32 %v1741, %v1742
    %v1744 = vand.u32 %v1743, 4294901760
    %1745 = vmatpush1.msra.mxu0 %v1744
    %1746 = vmatprep.subr.mxu0 0.0
    %v1747 = vand.u32 %v1482, 4294901760
    %v1748 = vsub.f32 %v1482, %v1747
    %v1749 = vand.u32 %v1748, 4294901760
    %v1750 = vsub.f32 %v1748, %v1749
    %v1751 = vand.u32 %v1750, 4294901760
    %1752 = vmatpush1.msra.mxu0 %v1751
    %1753 = vmatprep.subr.mxu0 0.0
    %1754 = vmatpush2.msra.mxu0 0.0
    %1755 = vmatprep.subr.mxu0 0.0
    %1756 = vmatpush2.msra.mxu0 0.0
    %1757 = vmatprep.subr.mxu0 0.0
    %1758 = vmatpush2.msra.mxu0 0.0
    %1759 = vmatprep.subr.mxu0 0.0
    %1760 = vmatpush2.msra.mxu0 0.0
    %1761 = vmatprep.subr.mxu0 0.0
    %1762 = vmatpush2.msra.mxu0 0.0
    %1763 = vmatprep.subr.mxu0 0.0
    %1764 = vmatpush2.msra.mxu0 0.0
    %1765 = vmatprep.subr.mxu0 0.0
    %1766 = vmatpush2.msra.mxu0 0.0
    %1767 = vmatprep.subr.mxu0 0.0
    %1768 = vmatpush2.msra.mxu0 0.0
    %1769 = vmatprep.subr.mxu0 0.0
    %1770 = vmatpush2.msra.mxu0 0.0
    %1771 = vmatprep.subr.mxu0 0.0
    %1772 = vmatpush2.msra.mxu0 0.0
    %1773 = vmatprep.subr.mxu0 0.0
    %1774 = vmatpush2.msra.mxu0 0.0
    %1775 = vmatprep.subr.mxu0 0.0
    %1776 = vmatpush2.msra.mxu0 0.0
    %1777 = vmatprep.subr.mxu0 0.0
    %1778 = vmatpush2.msra.mxu0 0.0
    %1779 = vmatprep.subr.mxu0 0.0
    %1780 = vmatpush2.msra.mxu0 0.0
    %1781 = vmatprep.subr.mxu0 0.0
    %1782 = vmatpush2.msra.mxu0 0.0
    %1783 = vmatprep.subr.mxu0 0.0
    %1784 = vmatpush2.msra.mxu0 0.0
    %1785 = vmatprep.mubr.f32.mxu0 0.0
    %v1786 = vand.u32 %v1493, 4294901760
    %1787 = vmatmul.mubr.f32.gmra.mxu0 %v1786
    %v1788 = vpop.f32.mrf.mxu0
    %v1789 = vadd.f32 %v1598, %v1788
    %v1790 = vpop.f32.mrf.mxu0
    %1791 = vmatprep.mubr.f32.mxu0 0.0
    %v1792 = vand.u32 %v1496, 4294901760
    %1793 = vmatmul.mubr.f32.gmra.mxu0 %v1792
    %v1794 = vpop.f32.mrf.mxu0
    %v1795 = vadd.f32 %v1608, %v1794
    %v1796 = vpop.f32.mrf.mxu0
    %1797 = vmatprep.mubr.f32.mxu0 0.0
    %v1798 = vand.u32 %v1499, 4294901760
    %1799 = vmatmul.mubr.f32.gmra.mxu0 %v1798
    %v1800 = vpop.f32.mrf.mxu0
    %v1801 = vadd.f32 %v1618, %v1800
    %v1802 = vpop.f32.mrf.mxu0
    %1803 = vmatprep.mubr.f32.mxu0 0.0
    %v1804 = vand.u32 %v1502, 4294901760
    %1805 = vmatmul.mubr.f32.gmra.mxu0 %v1804
    %v1806 = vpop.f32.mrf.mxu0
    %v1807 = vadd.f32 %v1628, %v1806
    %v1808 = vpop.f32.mrf.mxu0
    %1809 = vmatprep.mubr.f32.mxu0 0.0
    %v1810 = vand.u32 %v1505, 4294901760
    %1811 = vmatmul.mubr.f32.gmra.mxu0 %v1810
    %v1812 = vpop.f32.mrf.mxu0
    %v1813 = vadd.f32 %v1638, %v1812
    %v1814 = vpop.f32.mrf.mxu0
    %1815 = vmatprep.mubr.f32.mxu0 0.0
    %v1816 = vand.u32 %v1508, 4294901760
    %1817 = vmatmul.mubr.f32.gmra.mxu0 %v1816
    %v1818 = vpop.f32.mrf.mxu0
    %v1819 = vadd.f32 %v1648, %v1818
    %v1820 = vpop.f32.mrf.mxu0
    %1821 = vmatprep.mubr.f32.mxu0 0.0
    %v1822 = vand.u32 %v1511, 4294901760
    %1823 = vmatmul.mubr.f32.gmra.mxu0 %v1822
    %v1824 = vpop.f32.mrf.mxu0
    %v1825 = vadd.f32 %v1658, %v1824
    %v1826 = vpop.f32.mrf.mxu0
    %1827 = vmatprep.mubr.f32.mxu0 0.0
    %v1828 = vand.u32 %v1514, 4294901760
    %1829 = vmatmul.mubr.f32.gmra.mxu0 %v1828
    %v1830 = vpop.f32.mrf.mxu0
    %v1831 = vadd.f32 %v1668, %v1830
    %v1832 = vpop.f32.mrf.mxu0
    %1833 = vdwg.mxu0
    %1834 = vmatprep.subr.mxu0 0.0
    %1835 = vmatpush1.msra.mxu0 0.0
    %1836 = vmatprep.subr.mxu0 0.0
    %1837 = vmatpush1.msra.mxu0 0.0
    %1838 = vmatprep.subr.mxu0 0.0
    %1839 = vmatpush1.msra.mxu0 0.0
    %1840 = vmatprep.subr.mxu0 0.0
    %1841 = vmatpush1.msra.mxu0 0.0
    %1842 = vmatprep.subr.mxu0 0.0
    %1843 = vmatpush1.msra.mxu0 0.0
    %1844 = vmatprep.subr.mxu0 0.0
    %1845 = vmatpush1.msra.mxu0 0.0
    %1846 = vmatprep.subr.mxu0 0.0
    %v1847 = vand.u32 %v1491, 4294901760
    %v1848 = vsub.f32 %v1491, %v1847
    %1849 = vmatpush1.msra.mxu0 %v1848
    %1850 = vmatprep.subr.mxu0 0.0
    %v1851 = vand.u32 %v1490, 4294901760
    %v1852 = vsub.f32 %v1490, %v1851
    %1853 = vmatpush1.msra.mxu0 %v1852
    %1854 = vmatprep.subr.mxu0 0.0
    %v1855 = vand.u32 %v1489, 4294901760
    %v1856 = vsub.f32 %v1489, %v1855
    %1857 = vmatpush1.msra.mxu0 %v1856
    %1858 = vmatprep.subr.mxu0 0.0
    %v1859 = vand.u32 %v1488, 4294901760
    %v1860 = vsub.f32 %v1488, %v1859
    %1861 = vmatpush1.msra.mxu0 %v1860
    %1862 = vmatprep.subr.mxu0 0.0
    %v1863 = vand.u32 %v1487, 4294901760
    %v1864 = vsub.f32 %v1487, %v1863
    %1865 = vmatpush1.msra.mxu0 %v1864
    %1866 = vmatprep.subr.mxu0 0.0
    %v1867 = vand.u32 %v1486, 4294901760
    %v1868 = vsub.f32 %v1486, %v1867
    %1869 = vmatpush1.msra.mxu0 %v1868
    %1870 = vmatprep.subr.mxu0 0.0
    %v1871 = vand.u32 %v1485, 4294901760
    %v1872 = vsub.f32 %v1485, %v1871
    %1873 = vmatpush1.msra.mxu0 %v1872
    %1874 = vmatprep.subr.mxu0 0.0
    %v1875 = vand.u32 %v1484, 4294901760
    %v1876 = vsub.f32 %v1484, %v1875
    %1877 = vmatpush1.msra.mxu0 %v1876
    %1878 = vmatprep.subr.mxu0 0.0
    %v1879 = vand.u32 %v1483, 4294901760
    %v1880 = vsub.f32 %v1483, %v1879
    %1881 = vmatpush1.msra.mxu0 %v1880
    %1882 = vmatprep.subr.mxu0 0.0
    %v1883 = vand.u32 %v1482, 4294901760
    %v1884 = vsub.f32 %v1482, %v1883
    %1885 = vmatpush1.msra.mxu0 %v1884
    %1886 = vmatprep.subr.mxu0 0.0
    %1887 = vmatpush2.msra.mxu0 0.0
    %1888 = vmatprep.subr.mxu0 0.0
    %1889 = vmatpush2.msra.mxu0 0.0
    %1890 = vmatprep.subr.mxu0 0.0
    %1891 = vmatpush2.msra.mxu0 0.0
    %1892 = vmatprep.subr.mxu0 0.0
    %1893 = vmatpush2.msra.mxu0 0.0
    %1894 = vmatprep.subr.mxu0 0.0
    %1895 = vmatpush2.msra.mxu0 0.0
    %1896 = vmatprep.subr.mxu0 0.0
    %1897 = vmatpush2.msra.mxu0 0.0
    %1898 = vmatprep.subr.mxu0 0.0
    %1899 = vmatpush2.msra.mxu0 0.0
    %1900 = vmatprep.subr.mxu0 0.0
    %1901 = vmatpush2.msra.mxu0 0.0
    %1902 = vmatprep.subr.mxu0 0.0
    %1903 = vmatpush2.msra.mxu0 0.0
    %1904 = vmatprep.subr.mxu0 0.0
    %1905 = vmatpush2.msra.mxu0 0.0
    %1906 = vmatprep.subr.mxu0 0.0
    %1907 = vmatpush2.msra.mxu0 0.0
    %1908 = vmatprep.subr.mxu0 0.0
    %1909 = vmatpush2.msra.mxu0 0.0
    %1910 = vmatprep.subr.mxu0 0.0
    %1911 = vmatpush2.msra.mxu0 0.0
    %1912 = vmatprep.subr.mxu0 0.0
    %1913 = vmatpush2.msra.mxu0 0.0
    %1914 = vmatprep.subr.mxu0 0.0
    %1915 = vmatpush2.msra.mxu0 0.0
    %1916 = vmatprep.subr.mxu0 0.0
    %1917 = vmatpush2.msra.mxu0 0.0
    %1918 = vmatprep.mubr.f32.mxu0 0.0
    %v1919 = vand.u32 %v1493, 4294901760
    %v1920 = vsub.f32 %v1493, %v1919
    %1921 = vmatmul.mubr.f32.gmra.mxu0 %v1920
    %v1922 = vpop.f32.mrf.mxu0
    %v1923 = vadd.f32 %v1789, %v1922
    %v1924 = vpop.f32.mrf.mxu0
    %1925 = vmatprep.mubr.f32.mxu0 0.0
    %v1926 = vand.u32 %v1496, 4294901760
    %v1927 = vsub.f32 %v1496, %v1926
    %1928 = vmatmul.mubr.f32.gmra.mxu0 %v1927
    %v1929 = vpop.f32.mrf.mxu0
    %v1930 = vadd.f32 %v1795, %v1929
    %v1931 = vpop.f32.mrf.mxu0
    %1932 = vmatprep.mubr.f32.mxu0 0.0
    %v1933 = vand.u32 %v1499, 4294901760
    %v1934 = vsub.f32 %v1499, %v1933
    %1935 = vmatmul.mubr.f32.gmra.mxu0 %v1934
    %v1936 = vpop.f32.mrf.mxu0
    %v1937 = vadd.f32 %v1801, %v1936
    %v1938 = vpop.f32.mrf.mxu0
    %1939 = vmatprep.mubr.f32.mxu0 0.0
    %v1940 = vand.u32 %v1502, 4294901760
    %v1941 = vsub.f32 %v1502, %v1940
    %1942 = vmatmul.mubr.f32.gmra.mxu0 %v1941
    %v1943 = vpop.f32.mrf.mxu0
    %v1944 = vadd.f32 %v1807, %v1943
    %v1945 = vpop.f32.mrf.mxu0
    %1946 = vmatprep.mubr.f32.mxu0 0.0
    %v1947 = vand.u32 %v1505, 4294901760
    %v1948 = vsub.f32 %v1505, %v1947
    %1949 = vmatmul.mubr.f32.gmra.mxu0 %v1948
    %v1950 = vpop.f32.mrf.mxu0
    %v1951 = vadd.f32 %v1813, %v1950
    %v1952 = vpop.f32.mrf.mxu0
    %1953 = vmatprep.mubr.f32.mxu0 0.0
    %v1954 = vand.u32 %v1508, 4294901760
    %v1955 = vsub.f32 %v1508, %v1954
    %1956 = vmatmul.mubr.f32.gmra.mxu0 %v1955
    %v1957 = vpop.f32.mrf.mxu0
    %v1958 = vadd.f32 %v1819, %v1957
    %v1959 = vpop.f32.mrf.mxu0
    %1960 = vmatprep.mubr.f32.mxu0 0.0
    %v1961 = vand.u32 %v1511, 4294901760
    %v1962 = vsub.f32 %v1511, %v1961
    %1963 = vmatmul.mubr.f32.gmra.mxu0 %v1962
    %v1964 = vpop.f32.mrf.mxu0
    %v1965 = vadd.f32 %v1825, %v1964
    %v1966 = vpop.f32.mrf.mxu0
    %1967 = vmatprep.mubr.f32.mxu0 0.0
    %v1968 = vand.u32 %v1514, 4294901760
    %v1969 = vsub.f32 %v1514, %v1968
    %1970 = vmatmul.mubr.f32.gmra.mxu0 %v1969
    %v1971 = vpop.f32.mrf.mxu0
    %v1972 = vadd.f32 %v1831, %v1971
    %v1973 = vpop.f32.mrf.mxu0
    %1974 = vdwg.mxu0
    %1975 = vmatprep.subr.mxu0 0.0
    %1976 = vmatpush1.msra.mxu0 0.0
    %1977 = vmatprep.subr.mxu0 0.0
    %1978 = vmatpush1.msra.mxu0 0.0
    %1979 = vmatprep.subr.mxu0 0.0
    %1980 = vmatpush1.msra.mxu0 0.0
    %1981 = vmatprep.subr.mxu0 0.0
    %1982 = vmatpush1.msra.mxu0 0.0
    %1983 = vmatprep.subr.mxu0 0.0
    %1984 = vmatpush1.msra.mxu0 0.0
    %1985 = vmatprep.subr.mxu0 0.0
    %1986 = vmatpush1.msra.mxu0 0.0
    %1987 = vmatprep.subr.mxu0 0.0
    %v1988 = vand.u32 %v1491, 4294901760
    %1989 = vmatpush1.msra.mxu0 %v1988
    %1990 = vmatprep.subr.mxu0 0.0
    %v1991 = vand.u32 %v1490, 4294901760
    %1992 = vmatpush1.msra.mxu0 %v1991
    %1993 = vmatprep.subr.mxu0 0.0
    %v1994 = vand.u32 %v1489, 4294901760
    %1995 = vmatpush1.msra.mxu0 %v1994
    %1996 = vmatprep.subr.mxu0 0.0
    %v1997 = vand.u32 %v1488, 4294901760
    %1998 = vmatpush1.msra.mxu0 %v1997
    %1999 = vmatprep.subr.mxu0 0.0
    %v2000 = vand.u32 %v1487, 4294901760
    %2001 = vmatpush1.msra.mxu0 %v2000
    %2002 = vmatprep.subr.mxu0 0.0
    %v2003 = vand.u32 %v1486, 4294901760
    %2004 = vmatpush1.msra.mxu0 %v2003
    %2005 = vmatprep.subr.mxu0 0.0
    %v2006 = vand.u32 %v1485, 4294901760
    %2007 = vmatpush1.msra.mxu0 %v2006
    %2008 = vmatprep.subr.mxu0 0.0
    %v2009 = vand.u32 %v1484, 4294901760
    %2010 = vmatpush1.msra.mxu0 %v2009
    %2011 = vmatprep.subr.mxu0 0.0
    %v2012 = vand.u32 %v1483, 4294901760
    %2013 = vmatpush1.msra.mxu0 %v2012
    %2014 = vmatprep.subr.mxu0 0.0
    %v2015 = vand.u32 %v1482, 4294901760
    %2016 = vmatpush1.msra.mxu0 %v2015
    %2017 = vmatprep.subr.mxu0 0.0
    %2018 = vmatpush2.msra.mxu0 0.0
    %2019 = vmatprep.subr.mxu0 0.0
    %2020 = vmatpush2.msra.mxu0 0.0
    %2021 = vmatprep.subr.mxu0 0.0
    %2022 = vmatpush2.msra.mxu0 0.0
    %2023 = vmatprep.subr.mxu0 0.0
    %2024 = vmatpush2.msra.mxu0 0.0
    %2025 = vmatprep.subr.mxu0 0.0
    %2026 = vmatpush2.msra.mxu0 0.0
    %2027 = vmatprep.subr.mxu0 0.0
    %2028 = vmatpush2.msra.mxu0 0.0
    %2029 = vmatprep.subr.mxu0 0.0
    %2030 = vmatpush2.msra.mxu0 0.0
    %2031 = vmatprep.subr.mxu0 0.0
    %2032 = vmatpush2.msra.mxu0 0.0
    %2033 = vmatprep.subr.mxu0 0.0
    %2034 = vmatpush2.msra.mxu0 0.0
    %2035 = vmatprep.subr.mxu0 0.0
    %2036 = vmatpush2.msra.mxu0 0.0
    %2037 = vmatprep.subr.mxu0 0.0
    %2038 = vmatpush2.msra.mxu0 0.0
    %2039 = vmatprep.subr.mxu0 0.0
    %2040 = vmatpush2.msra.mxu0 0.0
    %2041 = vmatprep.subr.mxu0 0.0
    %2042 = vmatpush2.msra.mxu0 0.0
    %2043 = vmatprep.subr.mxu0 0.0
    %2044 = vmatpush2.msra.mxu0 0.0
    %2045 = vmatprep.subr.mxu0 0.0
    %2046 = vmatpush2.msra.mxu0 0.0
    %2047 = vmatprep.subr.mxu0 0.0
    %2048 = vmatpush2.msra.mxu0 0.0
    %2049 = vmatprep.mubr.f32.mxu0 0.0
    %v2050 = vand.u32 %v1493, 4294901760
    %v2051 = vsub.f32 %v1493, %v2050
    %v2052 = vand.u32 %v2051, 4294901760
    %2053 = vmatmul.mubr.f32.gmra.mxu0 %v2052
    %v2054 = vpop.f32.mrf.mxu0
    %v2055 = vadd.f32 %v1923, %v2054
    %v2056 = vpop.f32.mrf.mxu0
    %2057 = vmatprep.mubr.f32.mxu0 0.0
    %v2058 = vand.u32 %v1496, 4294901760
    %v2059 = vsub.f32 %v1496, %v2058
    %v2060 = vand.u32 %v2059, 4294901760
    %2061 = vmatmul.mubr.f32.gmra.mxu0 %v2060
    %v2062 = vpop.f32.mrf.mxu0
    %v2063 = vadd.f32 %v1930, %v2062
    %v2064 = vpop.f32.mrf.mxu0
    %2065 = vmatprep.mubr.f32.mxu0 0.0
    %v2066 = vand.u32 %v1499, 4294901760
    %v2067 = vsub.f32 %v1499, %v2066
    %v2068 = vand.u32 %v2067, 4294901760
    %2069 = vmatmul.mubr.f32.gmra.mxu0 %v2068
    %v2070 = vpop.f32.mrf.mxu0
    %v2071 = vadd.f32 %v1937, %v2070
    %v2072 = vpop.f32.mrf.mxu0
    %2073 = vmatprep.mubr.f32.mxu0 0.0
    %v2074 = vand.u32 %v1502, 4294901760
    %v2075 = vsub.f32 %v1502, %v2074
    %v2076 = vand.u32 %v2075, 4294901760
    %2077 = vmatmul.mubr.f32.gmra.mxu0 %v2076
    %v2078 = vpop.f32.mrf.mxu0
    %v2079 = vadd.f32 %v1944, %v2078
    %v2080 = vpop.f32.mrf.mxu0
    %2081 = vmatprep.mubr.f32.mxu0 0.0
    %v2082 = vand.u32 %v1505, 4294901760
    %v2083 = vsub.f32 %v1505, %v2082
    %v2084 = vand.u32 %v2083, 4294901760
    %2085 = vmatmul.mubr.f32.gmra.mxu0 %v2084
    %v2086 = vpop.f32.mrf.mxu0
    %v2087 = vadd.f32 %v1951, %v2086
    %v2088 = vpop.f32.mrf.mxu0
    %2089 = vmatprep.mubr.f32.mxu0 0.0
    %v2090 = vand.u32 %v1508, 4294901760
    %v2091 = vsub.f32 %v1508, %v2090
    %v2092 = vand.u32 %v2091, 4294901760
    %2093 = vmatmul.mubr.f32.gmra.mxu0 %v2092
    %v2094 = vpop.f32.mrf.mxu0
    %v2095 = vadd.f32 %v1958, %v2094
    %v2096 = vpop.f32.mrf.mxu0
    %2097 = vmatprep.mubr.f32.mxu0 0.0
    %v2098 = vand.u32 %v1511, 4294901760
    %v2099 = vsub.f32 %v1511, %v2098
    %v2100 = vand.u32 %v2099, 4294901760
    %2101 = vmatmul.mubr.f32.gmra.mxu0 %v2100
    %v2102 = vpop.f32.mrf.mxu0
    %v2103 = vadd.f32 %v1965, %v2102
    %v2104 = vpop.f32.mrf.mxu0
    %2105 = vmatprep.mubr.f32.mxu0 0.0
    %v2106 = vand.u32 %v1514, 4294901760
    %v2107 = vsub.f32 %v1514, %v2106
    %v2108 = vand.u32 %v2107, 4294901760
    %2109 = vmatmul.mubr.f32.gmra.mxu0 %v2108
    %v2110 = vpop.f32.mrf.mxu0
    %v2111 = vadd.f32 %v1972, %v2110
    %v2112 = vpop.f32.mrf.mxu0
    %2113 = vdwg.mxu0
    %2114 = vmatprep.subr.mxu0 0.0
    %2115 = vmatpush1.msra.mxu0 0.0
    %2116 = vmatprep.subr.mxu0 0.0
    %2117 = vmatpush1.msra.mxu0 0.0
    %2118 = vmatprep.subr.mxu0 0.0
    %2119 = vmatpush1.msra.mxu0 0.0
    %2120 = vmatprep.subr.mxu0 0.0
    %2121 = vmatpush1.msra.mxu0 0.0
    %2122 = vmatprep.subr.mxu0 0.0
    %2123 = vmatpush1.msra.mxu0 0.0
    %2124 = vmatprep.subr.mxu0 0.0
    %2125 = vmatpush1.msra.mxu0 0.0
    %2126 = vmatprep.subr.mxu0 0.0
    %v2127 = vand.u32 %v1491, 4294901760
    %v2128 = vsub.f32 %v1491, %v2127
    %v2129 = vand.u32 %v2128, 4294901760
    %2130 = vmatpush1.msra.mxu0 %v2129
    %2131 = vmatprep.subr.mxu0 0.0
    %v2132 = vand.u32 %v1490, 4294901760
    %v2133 = vsub.f32 %v1490, %v2132
    %v2134 = vand.u32 %v2133, 4294901760
    %2135 = vmatpush1.msra.mxu0 %v2134
    %2136 = vmatprep.subr.mxu0 0.0
    %v2137 = vand.u32 %v1489, 4294901760
    %v2138 = vsub.f32 %v1489, %v2137
    %v2139 = vand.u32 %v2138, 4294901760
    %2140 = vmatpush1.msra.mxu0 %v2139
    %2141 = vmatprep.subr.mxu0 0.0
    %v2142 = vand.u32 %v1488, 4294901760
    %v2143 = vsub.f32 %v1488, %v2142
    %v2144 = vand.u32 %v2143, 4294901760
    %2145 = vmatpush1.msra.mxu0 %v2144
    %2146 = vmatprep.subr.mxu0 0.0
    %v2147 = vand.u32 %v1487, 4294901760
    %v2148 = vsub.f32 %v1487, %v2147
    %v2149 = vand.u32 %v2148, 4294901760
    %2150 = vmatpush1.msra.mxu0 %v2149
    %2151 = vmatprep.subr.mxu0 0.0
    %v2152 = vand.u32 %v1486, 4294901760
    %v2153 = vsub.f32 %v1486, %v2152
    %v2154 = vand.u32 %v2153, 4294901760
    %2155 = vmatpush1.msra.mxu0 %v2154
    %2156 = vmatprep.subr.mxu0 0.0
    %v2157 = vand.u32 %v1485, 4294901760
    %v2158 = vsub.f32 %v1485, %v2157
    %v2159 = vand.u32 %v2158, 4294901760
    %2160 = vmatpush1.msra.mxu0 %v2159
    %2161 = vmatprep.subr.mxu0 0.0
    %v2162 = vand.u32 %v1484, 4294901760
    %v2163 = vsub.f32 %v1484, %v2162
    %v2164 = vand.u32 %v2163, 4294901760
    %2165 = vmatpush1.msra.mxu0 %v2164
    %2166 = vmatprep.subr.mxu0 0.0
    %v2167 = vand.u32 %v1483, 4294901760
    %v2168 = vsub.f32 %v1483, %v2167
    %v2169 = vand.u32 %v2168, 4294901760
    %2170 = vmatpush1.msra.mxu0 %v2169
    %2171 = vmatprep.subr.mxu0 0.0
    %v2172 = vand.u32 %v1482, 4294901760
    %v2173 = vsub.f32 %v1482, %v2172
    %v2174 = vand.u32 %v2173, 4294901760
    %2175 = vmatpush1.msra.mxu0 %v2174
    %2176 = vmatprep.subr.mxu0 0.0
    %2177 = vmatpush2.msra.mxu0 0.0
    %2178 = vmatprep.subr.mxu0 0.0
    %2179 = vmatpush2.msra.mxu0 0.0
    %2180 = vmatprep.subr.mxu0 0.0
    %2181 = vmatpush2.msra.mxu0 0.0
    %2182 = vmatprep.subr.mxu0 0.0
    %2183 = vmatpush2.msra.mxu0 0.0
    %2184 = vmatprep.subr.mxu0 0.0
    %2185 = vmatpush2.msra.mxu0 0.0
    %2186 = vmatprep.subr.mxu0 0.0
    %2187 = vmatpush2.msra.mxu0 0.0
    %2188 = vmatprep.subr.mxu0 0.0
    %2189 = vmatpush2.msra.mxu0 0.0
    %2190 = vmatprep.subr.mxu0 0.0
    %2191 = vmatpush2.msra.mxu0 0.0
    %2192 = vmatprep.subr.mxu0 0.0
    %2193 = vmatpush2.msra.mxu0 0.0
    %2194 = vmatprep.subr.mxu0 0.0
    %2195 = vmatpush2.msra.mxu0 0.0
    %2196 = vmatprep.subr.mxu0 0.0
    %2197 = vmatpush2.msra.mxu0 0.0
    %2198 = vmatprep.subr.mxu0 0.0
    %2199 = vmatpush2.msra.mxu0 0.0
    %2200 = vmatprep.subr.mxu0 0.0
    %2201 = vmatpush2.msra.mxu0 0.0
    %2202 = vmatprep.subr.mxu0 0.0
    %2203 = vmatpush2.msra.mxu0 0.0
    %2204 = vmatprep.subr.mxu0 0.0
    %2205 = vmatpush2.msra.mxu0 0.0
    %2206 = vmatprep.subr.mxu0 0.0
    %2207 = vmatpush2.msra.mxu0 0.0
    %2208 = vmatprep.mubr.f32.mxu0 0.0
    %v2209 = vand.u32 %v1493, 4294901760
    %2210 = vmatmul.mubr.f32.gmra.mxu0 %v2209
    %v2211 = vpop.f32.mrf.mxu0
    %v2212 = vadd.f32 %v2055, %v2211
    %v2213 = vpop.f32.mrf.mxu0
    %2214 = vmatprep.mubr.f32.mxu0 0.0
    %v2215 = vand.u32 %v1496, 4294901760
    %2216 = vmatmul.mubr.f32.gmra.mxu0 %v2215
    %v2217 = vpop.f32.mrf.mxu0
    %v2218 = vadd.f32 %v2063, %v2217
    %v2219 = vpop.f32.mrf.mxu0
    %2220 = vmatprep.mubr.f32.mxu0 0.0
    %v2221 = vand.u32 %v1499, 4294901760
    %2222 = vmatmul.mubr.f32.gmra.mxu0 %v2221
    %v2223 = vpop.f32.mrf.mxu0
    %v2224 = vadd.f32 %v2071, %v2223
    %v2225 = vpop.f32.mrf.mxu0
    %2226 = vmatprep.mubr.f32.mxu0 0.0
    %v2227 = vand.u32 %v1502, 4294901760
    %2228 = vmatmul.mubr.f32.gmra.mxu0 %v2227
    %v2229 = vpop.f32.mrf.mxu0
    %v2230 = vadd.f32 %v2079, %v2229
    %v2231 = vpop.f32.mrf.mxu0
    %2232 = vmatprep.mubr.f32.mxu0 0.0
    %v2233 = vand.u32 %v1505, 4294901760
    %2234 = vmatmul.mubr.f32.gmra.mxu0 %v2233
    %v2235 = vpop.f32.mrf.mxu0
    %v2236 = vadd.f32 %v2087, %v2235
    %v2237 = vpop.f32.mrf.mxu0
    %2238 = vmatprep.mubr.f32.mxu0 0.0
    %v2239 = vand.u32 %v1508, 4294901760
    %2240 = vmatmul.mubr.f32.gmra.mxu0 %v2239
    %v2241 = vpop.f32.mrf.mxu0
    %v2242 = vadd.f32 %v2095, %v2241
    %v2243 = vpop.f32.mrf.mxu0
    %2244 = vmatprep.mubr.f32.mxu0 0.0
    %v2245 = vand.u32 %v1511, 4294901760
    %2246 = vmatmul.mubr.f32.gmra.mxu0 %v2245
    %v2247 = vpop.f32.mrf.mxu0
    %v2248 = vadd.f32 %v2103, %v2247
    %v2249 = vpop.f32.mrf.mxu0
    %2250 = vmatprep.mubr.f32.mxu0 0.0
    %v2251 = vand.u32 %v1514, 4294901760
    %2252 = vmatmul.mubr.f32.gmra.mxu0 %v2251
    %v2253 = vpop.f32.mrf.mxu0
    %v2254 = vadd.f32 %v2111, %v2253
    %v2255 = vpop.f32.mrf.mxu0
    %2256 = vdwg.mxu0
    %2257 = vmatprep.subr.mxu0 0.0
    %2258 = vmatpush1.msra.mxu0 0.0
    %2259 = vmatprep.subr.mxu0 0.0
    %2260 = vmatpush1.msra.mxu0 0.0
    %2261 = vmatprep.subr.mxu0 0.0
    %2262 = vmatpush1.msra.mxu0 0.0
    %2263 = vmatprep.subr.mxu0 0.0
    %2264 = vmatpush1.msra.mxu0 0.0
    %2265 = vmatprep.subr.mxu0 0.0
    %2266 = vmatpush1.msra.mxu0 0.0
    %2267 = vmatprep.subr.mxu0 0.0
    %2268 = vmatpush1.msra.mxu0 0.0
    %2269 = vmatprep.subr.mxu0 0.0
    %v2270 = vand.u32 %v1491, 4294901760
    %2271 = vmatpush1.msra.mxu0 %v2270
    %2272 = vmatprep.subr.mxu0 0.0
    %v2273 = vand.u32 %v1490, 4294901760
    %2274 = vmatpush1.msra.mxu0 %v2273
    %2275 = vmatprep.subr.mxu0 0.0
    %v2276 = vand.u32 %v1489, 4294901760
    %2277 = vmatpush1.msra.mxu0 %v2276
    %2278 = vmatprep.subr.mxu0 0.0
    %v2279 = vand.u32 %v1488, 4294901760
    %2280 = vmatpush1.msra.mxu0 %v2279
    %2281 = vmatprep.subr.mxu0 0.0
    %v2282 = vand.u32 %v1487, 4294901760
    %2283 = vmatpush1.msra.mxu0 %v2282
    %2284 = vmatprep.subr.mxu0 0.0
    %v2285 = vand.u32 %v1486, 4294901760
    %2286 = vmatpush1.msra.mxu0 %v2285
    %2287 = vmatprep.subr.mxu0 0.0
    %v2288 = vand.u32 %v1485, 4294901760
    %2289 = vmatpush1.msra.mxu0 %v2288
    %2290 = vmatprep.subr.mxu0 0.0
    %v2291 = vand.u32 %v1484, 4294901760
    %2292 = vmatpush1.msra.mxu0 %v2291
    %2293 = vmatprep.subr.mxu0 0.0
    %v2294 = vand.u32 %v1483, 4294901760
    %2295 = vmatpush1.msra.mxu0 %v2294
    %2296 = vmatprep.subr.mxu0 0.0
    %v2297 = vand.u32 %v1482, 4294901760
    %2298 = vmatpush1.msra.mxu0 %v2297
    %2299 = vmatprep.subr.mxu0 0.0
    %2300 = vmatpush2.msra.mxu0 0.0
    %2301 = vmatprep.subr.mxu0 0.0
    %2302 = vmatpush2.msra.mxu0 0.0
    %2303 = vmatprep.subr.mxu0 0.0
    %2304 = vmatpush2.msra.mxu0 0.0
    %2305 = vmatprep.subr.mxu0 0.0
    %2306 = vmatpush2.msra.mxu0 0.0
    %2307 = vmatprep.subr.mxu0 0.0
    %2308 = vmatpush2.msra.mxu0 0.0
    %2309 = vmatprep.subr.mxu0 0.0
    %2310 = vmatpush2.msra.mxu0 0.0
    %2311 = vmatprep.subr.mxu0 0.0
    %2312 = vmatpush2.msra.mxu0 0.0
    %2313 = vmatprep.subr.mxu0 0.0
    %2314 = vmatpush2.msra.mxu0 0.0
    %2315 = vmatprep.subr.mxu0 0.0
    %2316 = vmatpush2.msra.mxu0 0.0
    %2317 = vmatprep.subr.mxu0 0.0
    %2318 = vmatpush2.msra.mxu0 0.0
    %2319 = vmatprep.subr.mxu0 0.0
    %2320 = vmatpush2.msra.mxu0 0.0
    %2321 = vmatprep.subr.mxu0 0.0
    %2322 = vmatpush2.msra.mxu0 0.0
    %2323 = vmatprep.subr.mxu0 0.0
    %2324 = vmatpush2.msra.mxu0 0.0
    %2325 = vmatprep.subr.mxu0 0.0
    %2326 = vmatpush2.msra.mxu0 0.0
    %2327 = vmatprep.subr.mxu0 0.0
    %2328 = vmatpush2.msra.mxu0 0.0
    %2329 = vmatprep.subr.mxu0 0.0
    %2330 = vmatpush2.msra.mxu0 0.0
    %2331 = vmatprep.mubr.f32.mxu0 0.0
    %v2332 = vand.u32 %v1493, 4294901760
    %2333 = vmatmul.mubr.f32.gmra.mxu0 %v2332
    %v2334 = vpop.f32.mrf.mxu0
    %v2335 = vadd.f32 %v2212, %v2334
    %v2336 = vpop.f32.mrf.mxu0
    %2337 = vmatprep.mubr.f32.mxu0 0.0
    %v2338 = vand.u32 %v1496, 4294901760
    %2339 = vmatmul.mubr.f32.gmra.mxu0 %v2338
    %v2340 = vpop.f32.mrf.mxu0
    %v2341 = vadd.f32 %v2218, %v2340
    %v2342 = vpop.f32.mrf.mxu0
    %2343 = vmatprep.mubr.f32.mxu0 0.0
    %v2344 = vand.u32 %v1499, 4294901760
    %2345 = vmatmul.mubr.f32.gmra.mxu0 %v2344
    %v2346 = vpop.f32.mrf.mxu0
    %v2347 = vadd.f32 %v2224, %v2346
    %v2348 = vpop.f32.mrf.mxu0
    %2349 = vmatprep.mubr.f32.mxu0 0.0
    %v2350 = vand.u32 %v1502, 4294901760
    %2351 = vmatmul.mubr.f32.gmra.mxu0 %v2350
    %v2352 = vpop.f32.mrf.mxu0
    %v2353 = vadd.f32 %v2230, %v2352
    %v2354 = vpop.f32.mrf.mxu0
    %2355 = vmatprep.mubr.f32.mxu0 0.0
    %v2356 = vand.u32 %v1505, 4294901760
    %2357 = vmatmul.mubr.f32.gmra.mxu0 %v2356
    %v2358 = vpop.f32.mrf.mxu0
    %v2359 = vadd.f32 %v2236, %v2358
    %v2360 = vpop.f32.mrf.mxu0
    %2361 = vmatprep.mubr.f32.mxu0 0.0
    %v2362 = vand.u32 %v1508, 4294901760
    %2363 = vmatmul.mubr.f32.gmra.mxu0 %v2362
    %v2364 = vpop.f32.mrf.mxu0
    %v2365 = vadd.f32 %v2242, %v2364
    %v2366 = vpop.f32.mrf.mxu0
    %2367 = vmatprep.mubr.f32.mxu0 0.0
    %v2368 = vand.u32 %v1511, 4294901760
    %2369 = vmatmul.mubr.f32.gmra.mxu0 %v2368
    %v2370 = vpop.f32.mrf.mxu0
    %v2371 = vadd.f32 %v2248, %v2370
    %v2372 = vpop.f32.mrf.mxu0
    %2373 = vmatprep.mubr.f32.mxu0 0.0
    %v2374 = vand.u32 %v1514, 4294901760
    %2375 = vmatmul.mubr.f32.gmra.mxu0 %v2374
    %v2376 = vpop.f32.mrf.mxu0
    %v2377 = vadd.f32 %v2254, %v2376
    %v2378 = vpop.f32.mrf.mxu0
    %2379 = vdwg.mxu0
    %v2380 = vrcp.pop %v2335
    %v2381 = vrcp.pop %v2341
    %v2382 = vrcp.pop %v2347
    %v2383 = vrcp.pop %v2353
    %v2384 = vrcp.pop %v2359
    %v2385 = vrcp.pop %v2365
    %v2386 = vrcp.pop %v2371
    %v2387 = vrcp.pop %v2377
    %v2388 = vmul.f32 %v1467, %v2380
    %v2389 = vmul.f32 %v1469, %v2381
    %v2390 = vmul.f32 %v1471, %v2382
    %v2391 = vmul.f32 %v1473, %v2383
    %v2392 = vmul.f32 %v1475, %v2384
    %v2393 = vmul.f32 %v1477, %v2385
    %v2394 = vmul.f32 %v1479, %v2386
    %v2395 = vmul.f32 %v1481, %v2387
    %v2396 = vld [vmem:[%s6] sm:$0xff]
    %v2397 = vld [vmem:[%s6 + $0x8] sm:$0xff]
    %v2398 = vld [vmem:[%s6 + $0x10] sm:$0xff]
    %v2399 = vld [vmem:[%s6 + $0x18] sm:$0xff]
    %v2400 = vld [vmem:[%s6 + $0x20] sm:$0xff]
    %v2401 = vld [vmem:[%s6 + $0x28] sm:$0xff]
    %v2402 = vld [vmem:[%s6 + $0x30] sm:$0xff]
    %v2403 = vld [vmem:[%s6 + $0x38] sm:$0xff]
    %v2404 = vld [vmem:[%s6 + $0x40] sm:$0xff]
    %v2405 = vld [vmem:[%s6 + $0x48] sm:$0xff]
    %v2407 = vsel %vm1433, %v2388, 0
    %v2410 = vsel %vm1433, %v2389, 0
    %v2413 = vsel %vm1433, %v2390, 0
    %v2416 = vsel %vm1433, %v2391, 0
    %v2419 = vsel %vm1433, %v2392, 0
    %v2422 = vsel %vm1433, %v2393, 0
    %v2425 = vsel %vm1433, %v2394, 0
    %v2428 = vsel %vm1433, %v2395, 0
    %2430 = vmatprep.subr.mxu0 0.0
    %2431 = vmatpush1.msra.mxu0 0.0
    %2432 = vmatprep.subr.mxu0 0.0
    %2433 = vmatpush1.msra.mxu0 0.0
    %2434 = vmatprep.subr.mxu0 0.0
    %2435 = vmatpush1.msra.mxu0 0.0
    %2436 = vmatprep.subr.mxu0 0.0
    %2437 = vmatpush1.msra.mxu0 0.0
    %2438 = vmatprep.subr.mxu0 0.0
    %2439 = vmatpush1.msra.mxu0 0.0
    %2440 = vmatprep.subr.mxu0 0.0
    %2441 = vmatpush1.msra.mxu0 0.0
    %2442 = vmatprep.subr.mxu0 0.0
    %v2443 = vand.u32 %v2405, 4294901760
    %2444 = vmatpush1.msra.mxu0 %v2443
    %2445 = vmatprep.subr.mxu0 0.0
    %v2446 = vand.u32 %v2404, 4294901760
    %2447 = vmatpush1.msra.mxu0 %v2446
    %2448 = vmatprep.subr.mxu0 0.0
    %v2449 = vand.u32 %v2403, 4294901760
    %2450 = vmatpush1.msra.mxu0 %v2449
    %2451 = vmatprep.subr.mxu0 0.0
    %v2452 = vand.u32 %v2402, 4294901760
    %2453 = vmatpush1.msra.mxu0 %v2452
    %2454 = vmatprep.subr.mxu0 0.0
    %v2455 = vand.u32 %v2401, 4294901760
    %2456 = vmatpush1.msra.mxu0 %v2455
    %2457 = vmatprep.subr.mxu0 0.0
    %v2458 = vand.u32 %v2400, 4294901760
    %2459 = vmatpush1.msra.mxu0 %v2458
    %2460 = vmatprep.subr.mxu0 0.0
    %v2461 = vand.u32 %v2399, 4294901760
    %2462 = vmatpush1.msra.mxu0 %v2461
    %2463 = vmatprep.subr.mxu0 0.0
    %v2464 = vand.u32 %v2398, 4294901760
    %2465 = vmatpush1.msra.mxu0 %v2464
    %2466 = vmatprep.subr.mxu0 0.0
    %v2467 = vand.u32 %v2397, 4294901760
    %2468 = vmatpush1.msra.mxu0 %v2467
    %2469 = vmatprep.subr.mxu0 0.0
    %v2470 = vand.u32 %v2396, 4294901760
    %2471 = vmatpush1.msra.mxu0 %v2470
    %2472 = vmatprep.subr.mxu0 0.0
    %2473 = vmatpush2.msra.mxu0 0.0
    %2474 = vmatprep.subr.mxu0 0.0
    %2475 = vmatpush2.msra.mxu0 0.0
    %2476 = vmatprep.subr.mxu0 0.0
    %2477 = vmatpush2.msra.mxu0 0.0
    %2478 = vmatprep.subr.mxu0 0.0
    %2479 = vmatpush2.msra.mxu0 0.0
    %2480 = vmatprep.subr.mxu0 0.0
    %2481 = vmatpush2.msra.mxu0 0.0
    %2482 = vmatprep.subr.mxu0 0.0
    %2483 = vmatpush2.msra.mxu0 0.0
    %2484 = vmatprep.subr.mxu0 0.0
    %2485 = vmatpush2.msra.mxu0 0.0
    %2486 = vmatprep.subr.mxu0 0.0
    %2487 = vmatpush2.msra.mxu0 0.0
    %2488 = vmatprep.subr.mxu0 0.0
    %2489 = vmatpush2.msra.mxu0 0.0
    %2490 = vmatprep.subr.mxu0 0.0
    %2491 = vmatpush2.msra.mxu0 0.0
    %2492 = vmatprep.subr.mxu0 0.0
    %2493 = vmatpush2.msra.mxu0 0.0
    %2494 = vmatprep.subr.mxu0 0.0
    %2495 = vmatpush2.msra.mxu0 0.0
    %2496 = vmatprep.subr.mxu0 0.0
    %2497 = vmatpush2.msra.mxu0 0.0
    %2498 = vmatprep.subr.mxu0 0.0
    %2499 = vmatpush2.msra.mxu0 0.0
    %2500 = vmatprep.subr.mxu0 0.0
    %2501 = vmatpush2.msra.mxu0 0.0
    %2502 = vmatprep.subr.mxu0 0.0
    %2503 = vmatpush2.msra.mxu0 0.0
    %2504 = vmatprep.mubr.f32.mxu0 0.0
    %v2505 = vand.u32 %v2407, 4294901760
    %v2506 = vsub.f32 %v2407, %v2505
    %v2507 = vand.u32 %v2506, 4294901760
    %v2508 = vsub.f32 %v2506, %v2507
    %v2509 = vand.u32 %v2508, 4294901760
    %2510 = vmatmul.mubr.f32.gmra.mxu0 %v2509
    %v2511 = vpop.f32.mrf.mxu0
    %v2512 = vadd.f32 0.0, %v2511
    %v2513 = vpop.f32.mrf.mxu0
    %2514 = vmatprep.mubr.f32.mxu0 0.0
    %v2515 = vand.u32 %v2410, 4294901760
    %v2516 = vsub.f32 %v2410, %v2515
    %v2517 = vand.u32 %v2516, 4294901760
    %v2518 = vsub.f32 %v2516, %v2517
    %v2519 = vand.u32 %v2518, 4294901760
    %2520 = vmatmul.mubr.f32.gmra.mxu0 %v2519
    %v2521 = vpop.f32.mrf.mxu0
    %v2522 = vadd.f32 0.0, %v2521
    %v2523 = vpop.f32.mrf.mxu0
    %2524 = vmatprep.mubr.f32.mxu0 0.0
    %v2525 = vand.u32 %v2413, 4294901760
    %v2526 = vsub.f32 %v2413, %v2525
    %v2527 = vand.u32 %v2526, 4294901760
    %v2528 = vsub.f32 %v2526, %v2527
    %v2529 = vand.u32 %v2528, 4294901760
    %2530 = vmatmul.mubr.f32.gmra.mxu0 %v2529
    %v2531 = vpop.f32.mrf.mxu0
    %v2532 = vadd.f32 0.0, %v2531
    %v2533 = vpop.f32.mrf.mxu0
    %2534 = vmatprep.mubr.f32.mxu0 0.0
    %v2535 = vand.u32 %v2416, 4294901760
    %v2536 = vsub.f32 %v2416, %v2535
    %v2537 = vand.u32 %v2536, 4294901760
    %v2538 = vsub.f32 %v2536, %v2537
    %v2539 = vand.u32 %v2538, 4294901760
    %2540 = vmatmul.mubr.f32.gmra.mxu0 %v2539
    %v2541 = vpop.f32.mrf.mxu0
    %v2542 = vadd.f32 0.0, %v2541
    %v2543 = vpop.f32.mrf.mxu0
    %2544 = vmatprep.mubr.f32.mxu0 0.0
    %v2545 = vand.u32 %v2419, 4294901760
    %v2546 = vsub.f32 %v2419, %v2545
    %v2547 = vand.u32 %v2546, 4294901760
    %v2548 = vsub.f32 %v2546, %v2547
    %v2549 = vand.u32 %v2548, 4294901760
    %2550 = vmatmul.mubr.f32.gmra.mxu0 %v2549
    %v2551 = vpop.f32.mrf.mxu0
    %v2552 = vadd.f32 0.0, %v2551
    %v2553 = vpop.f32.mrf.mxu0
    %2554 = vmatprep.mubr.f32.mxu0 0.0
    %v2555 = vand.u32 %v2422, 4294901760
    %v2556 = vsub.f32 %v2422, %v2555
    %v2557 = vand.u32 %v2556, 4294901760
    %v2558 = vsub.f32 %v2556, %v2557
    %v2559 = vand.u32 %v2558, 4294901760
    %2560 = vmatmul.mubr.f32.gmra.mxu0 %v2559
    %v2561 = vpop.f32.mrf.mxu0
    %v2562 = vadd.f32 0.0, %v2561
    %v2563 = vpop.f32.mrf.mxu0
    %2564 = vmatprep.mubr.f32.mxu0 0.0
    %v2565 = vand.u32 %v2425, 4294901760
    %v2566 = vsub.f32 %v2425, %v2565
    %v2567 = vand.u32 %v2566, 4294901760
    %v2568 = vsub.f32 %v2566, %v2567
    %v2569 = vand.u32 %v2568, 4294901760
    %2570 = vmatmul.mubr.f32.gmra.mxu0 %v2569
    %v2571 = vpop.f32.mrf.mxu0
    %v2572 = vadd.f32 0.0, %v2571
    %v2573 = vpop.f32.mrf.mxu0
    %2574 = vmatprep.mubr.f32.mxu0 0.0
    %v2575 = vand.u32 %v2428, 4294901760
    %v2576 = vsub.f32 %v2428, %v2575
    %v2577 = vand.u32 %v2576, 4294901760
    %v2578 = vsub.f32 %v2576, %v2577
    %v2579 = vand.u32 %v2578, 4294901760
    %2580 = vmatmul.mubr.f32.gmra.mxu0 %v2579
    %v2581 = vpop.f32.mrf.mxu0
    %v2582 = vadd.f32 0.0, %v2581
    %v2583 = vpop.f32.mrf.mxu0
    %2584 = vdwg.mxu0
    %2585 = vmatprep.subr.mxu0 0.0
    %2586 = vmatpush1.msra.mxu0 0.0
    %2587 = vmatprep.subr.mxu0 0.0
    %2588 = vmatpush1.msra.mxu0 0.0
    %2589 = vmatprep.subr.mxu0 0.0
    %2590 = vmatpush1.msra.mxu0 0.0
    %2591 = vmatprep.subr.mxu0 0.0
    %2592 = vmatpush1.msra.mxu0 0.0
    %2593 = vmatprep.subr.mxu0 0.0
    %2594 = vmatpush1.msra.mxu0 0.0
    %2595 = vmatprep.subr.mxu0 0.0
    %2596 = vmatpush1.msra.mxu0 0.0
    %2597 = vmatprep.subr.mxu0 0.0
    %v2598 = vand.u32 %v2405, 4294901760
    %v2599 = vsub.f32 %v2405, %v2598
    %v2600 = vand.u32 %v2599, 4294901760
    %v2601 = vsub.f32 %v2599, %v2600
    %v2602 = vand.u32 %v2601, 4294901760
    %2603 = vmatpush1.msra.mxu0 %v2602
    %2604 = vmatprep.subr.mxu0 0.0
    %v2605 = vand.u32 %v2404, 4294901760
    %v2606 = vsub.f32 %v2404, %v2605
    %v2607 = vand.u32 %v2606, 4294901760
    %v2608 = vsub.f32 %v2606, %v2607
    %v2609 = vand.u32 %v2608, 4294901760
    %2610 = vmatpush1.msra.mxu0 %v2609
    %2611 = vmatprep.subr.mxu0 0.0
    %v2612 = vand.u32 %v2403, 4294901760
    %v2613 = vsub.f32 %v2403, %v2612
    %v2614 = vand.u32 %v2613, 4294901760
    %v2615 = vsub.f32 %v2613, %v2614
    %v2616 = vand.u32 %v2615, 4294901760
    %2617 = vmatpush1.msra.mxu0 %v2616
    %2618 = vmatprep.subr.mxu0 0.0
    %v2619 = vand.u32 %v2402, 4294901760
    %v2620 = vsub.f32 %v2402, %v2619
    %v2621 = vand.u32 %v2620, 4294901760
    %v2622 = vsub.f32 %v2620, %v2621
    %v2623 = vand.u32 %v2622, 4294901760
    %2624 = vmatpush1.msra.mxu0 %v2623
    %2625 = vmatprep.subr.mxu0 0.0
    %v2626 = vand.u32 %v2401, 4294901760
    %v2627 = vsub.f32 %v2401, %v2626
    %v2628 = vand.u32 %v2627, 4294901760
    %v2629 = vsub.f32 %v2627, %v2628
    %v2630 = vand.u32 %v2629, 4294901760
    %2631 = vmatpush1.msra.mxu0 %v2630
    %2632 = vmatprep.subr.mxu0 0.0
    %v2633 = vand.u32 %v2400, 4294901760
    %v2634 = vsub.f32 %v2400, %v2633
    %v2635 = vand.u32 %v2634, 4294901760
    %v2636 = vsub.f32 %v2634, %v2635
    %v2637 = vand.u32 %v2636, 4294901760
    %2638 = vmatpush1.msra.mxu0 %v2637
    %2639 = vmatprep.subr.mxu0 0.0
    %v2640 = vand.u32 %v2399, 4294901760
    %v2641 = vsub.f32 %v2399, %v2640
    %v2642 = vand.u32 %v2641, 4294901760
    %v2643 = vsub.f32 %v2641, %v2642
    %v2644 = vand.u32 %v2643, 4294901760
    %2645 = vmatpush1.msra.mxu0 %v2644
    %2646 = vmatprep.subr.mxu0 0.0
    %v2647 = vand.u32 %v2398, 4294901760
    %v2648 = vsub.f32 %v2398, %v2647
    %v2649 = vand.u32 %v2648, 4294901760
    %v2650 = vsub.f32 %v2648, %v2649
    %v2651 = vand.u32 %v2650, 4294901760
    %2652 = vmatpush1.msra.mxu0 %v2651
    %2653 = vmatprep.subr.mxu0 0.0
    %v2654 = vand.u32 %v2397, 4294901760
    %v2655 = vsub.f32 %v2397, %v2654
    %v2656 = vand.u32 %v2655, 4294901760
    %v2657 = vsub.f32 %v2655, %v2656
    %v2658 = vand.u32 %v2657, 4294901760
    %2659 = vmatpush1.msra.mxu0 %v2658
    %2660 = vmatprep.subr.mxu0 0.0
    %v2661 = vand.u32 %v2396, 4294901760
    %v2662 = vsub.f32 %v2396, %v2661
    %v2663 = vand.u32 %v2662, 4294901760
    %v2664 = vsub.f32 %v2662, %v2663
    %v2665 = vand.u32 %v2664, 4294901760
    %2666 = vmatpush1.msra.mxu0 %v2665
    %2667 = vmatprep.subr.mxu0 0.0
    %2668 = vmatpush2.msra.mxu0 0.0
    %2669 = vmatprep.subr.mxu0 0.0
    %2670 = vmatpush2.msra.mxu0 0.0
    %2671 = vmatprep.subr.mxu0 0.0
    %2672 = vmatpush2.msra.mxu0 0.0
    %2673 = vmatprep.subr.mxu0 0.0
    %2674 = vmatpush2.msra.mxu0 0.0
    %2675 = vmatprep.subr.mxu0 0.0
    %2676 = vmatpush2.msra.mxu0 0.0
    %2677 = vmatprep.subr.mxu0 0.0
    %2678 = vmatpush2.msra.mxu0 0.0
    %2679 = vmatprep.subr.mxu0 0.0
    %2680 = vmatpush2.msra.mxu0 0.0
    %2681 = vmatprep.subr.mxu0 0.0
    %2682 = vmatpush2.msra.mxu0 0.0
    %2683 = vmatprep.subr.mxu0 0.0
    %2684 = vmatpush2.msra.mxu0 0.0
    %2685 = vmatprep.subr.mxu0 0.0
    %2686 = vmatpush2.msra.mxu0 0.0
    %2687 = vmatprep.subr.mxu0 0.0
    %2688 = vmatpush2.msra.mxu0 0.0
    %2689 = vmatprep.subr.mxu0 0.0
    %2690 = vmatpush2.msra.mxu0 0.0
    %2691 = vmatprep.subr.mxu0 0.0
    %2692 = vmatpush2.msra.mxu0 0.0
    %2693 = vmatprep.subr.mxu0 0.0
    %2694 = vmatpush2.msra.mxu0 0.0
    %2695 = vmatprep.subr.mxu0 0.0
    %2696 = vmatpush2.msra.mxu0 0.0
    %2697 = vmatprep.subr.mxu0 0.0
    %2698 = vmatpush2.msra.mxu0 0.0
    %2699 = vmatprep.mubr.f32.mxu0 0.0
    %v2700 = vand.u32 %v2407, 4294901760
    %2701 = vmatmul.mubr.f32.gmra.mxu0 %v2700
    %v2702 = vpop.f32.mrf.mxu0
    %v2703 = vadd.f32 %v2512, %v2702
    %v2704 = vpop.f32.mrf.mxu0
    %2705 = vmatprep.mubr.f32.mxu0 0.0
    %v2706 = vand.u32 %v2410, 4294901760
    %2707 = vmatmul.mubr.f32.gmra.mxu0 %v2706
    %v2708 = vpop.f32.mrf.mxu0
    %v2709 = vadd.f32 %v2522, %v2708
    %v2710 = vpop.f32.mrf.mxu0
    %2711 = vmatprep.mubr.f32.mxu0 0.0
    %v2712 = vand.u32 %v2413, 4294901760
    %2713 = vmatmul.mubr.f32.gmra.mxu0 %v2712
    %v2714 = vpop.f32.mrf.mxu0
    %v2715 = vadd.f32 %v2532, %v2714
    %v2716 = vpop.f32.mrf.mxu0
    %2717 = vmatprep.mubr.f32.mxu0 0.0
    %v2718 = vand.u32 %v2416, 4294901760
    %2719 = vmatmul.mubr.f32.gmra.mxu0 %v2718
    %v2720 = vpop.f32.mrf.mxu0
    %v2721 = vadd.f32 %v2542, %v2720
    %v2722 = vpop.f32.mrf.mxu0
    %2723 = vmatprep.mubr.f32.mxu0 0.0
    %v2724 = vand.u32 %v2419, 4294901760
    %2725 = vmatmul.mubr.f32.gmra.mxu0 %v2724
    %v2726 = vpop.f32.mrf.mxu0
    %v2727 = vadd.f32 %v2552, %v2726
    %v2728 = vpop.f32.mrf.mxu0
    %2729 = vmatprep.mubr.f32.mxu0 0.0
    %v2730 = vand.u32 %v2422, 4294901760
    %2731 = vmatmul.mubr.f32.gmra.mxu0 %v2730
    %v2732 = vpop.f32.mrf.mxu0
    %v2733 = vadd.f32 %v2562, %v2732
    %v2734 = vpop.f32.mrf.mxu0
    %2735 = vmatprep.mubr.f32.mxu0 0.0
    %v2736 = vand.u32 %v2425, 4294901760
    %2737 = vmatmul.mubr.f32.gmra.mxu0 %v2736
    %v2738 = vpop.f32.mrf.mxu0
    %v2739 = vadd.f32 %v2572, %v2738
    %v2740 = vpop.f32.mrf.mxu0
    %2741 = vmatprep.mubr.f32.mxu0 0.0
    %v2742 = vand.u32 %v2428, 4294901760
    %2743 = vmatmul.mubr.f32.gmra.mxu0 %v2742
    %v2744 = vpop.f32.mrf.mxu0
    %v2745 = vadd.f32 %v2582, %v2744
    %v2746 = vpop.f32.mrf.mxu0
    %2747 = vdwg.mxu0
    %2748 = vmatprep.subr.mxu0 0.0
    %2749 = vmatpush1.msra.mxu0 0.0
    %2750 = vmatprep.subr.mxu0 0.0
    %2751 = vmatpush1.msra.mxu0 0.0
    %2752 = vmatprep.subr.mxu0 0.0
    %2753 = vmatpush1.msra.mxu0 0.0
    %2754 = vmatprep.subr.mxu0 0.0
    %2755 = vmatpush1.msra.mxu0 0.0
    %2756 = vmatprep.subr.mxu0 0.0
    %2757 = vmatpush1.msra.mxu0 0.0
    %2758 = vmatprep.subr.mxu0 0.0
    %2759 = vmatpush1.msra.mxu0 0.0
    %2760 = vmatprep.subr.mxu0 0.0
    %v2761 = vand.u32 %v2405, 4294901760
    %v2762 = vsub.f32 %v2405, %v2761
    %2763 = vmatpush1.msra.mxu0 %v2762
    %2764 = vmatprep.subr.mxu0 0.0
    %v2765 = vand.u32 %v2404, 4294901760
    %v2766 = vsub.f32 %v2404, %v2765
    %2767 = vmatpush1.msra.mxu0 %v2766
    %2768 = vmatprep.subr.mxu0 0.0
    %v2769 = vand.u32 %v2403, 4294901760
    %v2770 = vsub.f32 %v2403, %v2769
    %2771 = vmatpush1.msra.mxu0 %v2770
    %2772 = vmatprep.subr.mxu0 0.0
    %v2773 = vand.u32 %v2402, 4294901760
    %v2774 = vsub.f32 %v2402, %v2773
    %2775 = vmatpush1.msra.mxu0 %v2774
    %2776 = vmatprep.subr.mxu0 0.0
    %v2777 = vand.u32 %v2401, 4294901760
    %v2778 = vsub.f32 %v2401, %v2777
    %2779 = vmatpush1.msra.mxu0 %v2778
    %2780 = vmatprep.subr.mxu0 0.0
    %v2781 = vand.u32 %v2400, 4294901760
    %v2782 = vsub.f32 %v2400, %v2781
    %2783 = vmatpush1.msra.mxu0 %v2782
    %2784 = vmatprep.subr.mxu0 0.0
    %v2785 = vand.u32 %v2399, 4294901760
    %v2786 = vsub.f32 %v2399, %v2785
    %2787 = vmatpush1.msra.mxu0 %v2786
    %2788 = vmatprep.subr.mxu0 0.0
    %v2789 = vand.u32 %v2398, 4294901760
    %v2790 = vsub.f32 %v2398, %v2789
    %2791 = vmatpush1.msra.mxu0 %v2790
    %2792 = vmatprep.subr.mxu0 0.0
    %v2793 = vand.u32 %v2397, 4294901760
    %v2794 = vsub.f32 %v2397, %v2793
    %2795 = vmatpush1.msra.mxu0 %v2794
    %2796 = vmatprep.subr.mxu0 0.0
    %v2797 = vand.u32 %v2396, 4294901760
    %v2798 = vsub.f32 %v2396, %v2797
    %2799 = vmatpush1.msra.mxu0 %v2798
    %2800 = vmatprep.subr.mxu0 0.0
    %2801 = vmatpush2.msra.mxu0 0.0
    %2802 = vmatprep.subr.mxu0 0.0
    %2803 = vmatpush2.msra.mxu0 0.0
    %2804 = vmatprep.subr.mxu0 0.0
    %2805 = vmatpush2.msra.mxu0 0.0
    %2806 = vmatprep.subr.mxu0 0.0
    %2807 = vmatpush2.msra.mxu0 0.0
    %2808 = vmatprep.subr.mxu0 0.0
    %2809 = vmatpush2.msra.mxu0 0.0
    %2810 = vmatprep.subr.mxu0 0.0
    %2811 = vmatpush2.msra.mxu0 0.0
    %2812 = vmatprep.subr.mxu0 0.0
    %2813 = vmatpush2.msra.mxu0 0.0
    %2814 = vmatprep.subr.mxu0 0.0
    %2815 = vmatpush2.msra.mxu0 0.0
    %2816 = vmatprep.subr.mxu0 0.0
    %2817 = vmatpush2.msra.mxu0 0.0
    %2818 = vmatprep.subr.mxu0 0.0
    %2819 = vmatpush2.msra.mxu0 0.0
    %2820 = vmatprep.subr.mxu0 0.0
    %2821 = vmatpush2.msra.mxu0 0.0
    %2822 = vmatprep.subr.mxu0 0.0
    %2823 = vmatpush2.msra.mxu0 0.0
    %2824 = vmatprep.subr.mxu0 0.0
    %2825 = vmatpush2.msra.mxu0 0.0
    %2826 = vmatprep.subr.mxu0 0.0
    %2827 = vmatpush2.msra.mxu0 0.0
    %2828 = vmatprep.subr.mxu0 0.0
    %2829 = vmatpush2.msra.mxu0 0.0
    %2830 = vmatprep.subr.mxu0 0.0
    %2831 = vmatpush2.msra.mxu0 0.0
    %2832 = vmatprep.mubr.f32.mxu0 0.0
    %v2833 = vand.u32 %v2407, 4294901760
    %v2834 = vsub.f32 %v2407, %v2833
    %2835 = vmatmul.mubr.f32.gmra.mxu0 %v2834
    %v2836 = vpop.f32.mrf.mxu0
    %v2837 = vadd.f32 %v2703, %v2836
    %v2838 = vpop.f32.mrf.mxu0
    %2839 = vmatprep.mubr.f32.mxu0 0.0
    %v2840 = vand.u32 %v2410, 4294901760
    %v2841 = vsub.f32 %v2410, %v2840
    %2842 = vmatmul.mubr.f32.gmra.mxu0 %v2841
    %v2843 = vpop.f32.mrf.mxu0
    %v2844 = vadd.f32 %v2709, %v2843
    %v2845 = vpop.f32.mrf.mxu0
    %2846 = vmatprep.mubr.f32.mxu0 0.0
    %v2847 = vand.u32 %v2413, 4294901760
    %v2848 = vsub.f32 %v2413, %v2847
    %2849 = vmatmul.mubr.f32.gmra.mxu0 %v2848
    %v2850 = vpop.f32.mrf.mxu0
    %v2851 = vadd.f32 %v2715, %v2850
    %v2852 = vpop.f32.mrf.mxu0
    %2853 = vmatprep.mubr.f32.mxu0 0.0
    %v2854 = vand.u32 %v2416, 4294901760
    %v2855 = vsub.f32 %v2416, %v2854
    %2856 = vmatmul.mubr.f32.gmra.mxu0 %v2855
    %v2857 = vpop.f32.mrf.mxu0
    %v2858 = vadd.f32 %v2721, %v2857
    %v2859 = vpop.f32.mrf.mxu0
    %2860 = vmatprep.mubr.f32.mxu0 0.0
    %v2861 = vand.u32 %v2419, 4294901760
    %v2862 = vsub.f32 %v2419, %v2861
    %2863 = vmatmul.mubr.f32.gmra.mxu0 %v2862
    %v2864 = vpop.f32.mrf.mxu0
    %v2865 = vadd.f32 %v2727, %v2864
    %v2866 = vpop.f32.mrf.mxu0
    %2867 = vmatprep.mubr.f32.mxu0 0.0
    %v2868 = vand.u32 %v2422, 4294901760
    %v2869 = vsub.f32 %v2422, %v2868
    %2870 = vmatmul.mubr.f32.gmra.mxu0 %v2869
    %v2871 = vpop.f32.mrf.mxu0
    %v2872 = vadd.f32 %v2733, %v2871
    %v2873 = vpop.f32.mrf.mxu0
    %2874 = vmatprep.mubr.f32.mxu0 0.0
    %v2875 = vand.u32 %v2425, 4294901760
    %v2876 = vsub.f32 %v2425, %v2875
    %2877 = vmatmul.mubr.f32.gmra.mxu0 %v2876
    %v2878 = vpop.f32.mrf.mxu0
    %v2879 = vadd.f32 %v2739, %v2878
    %v2880 = vpop.f32.mrf.mxu0
    %2881 = vmatprep.mubr.f32.mxu0 0.0
    %v2882 = vand.u32 %v2428, 4294901760
    %v2883 = vsub.f32 %v2428, %v2882
    %2884 = vmatmul.mubr.f32.gmra.mxu0 %v2883
    %v2885 = vpop.f32.mrf.mxu0
    %v2886 = vadd.f32 %v2745, %v2885
    %v2887 = vpop.f32.mrf.mxu0
    %2888 = vdwg.mxu0
    %2889 = vmatprep.subr.mxu0 0.0
    %2890 = vmatpush1.msra.mxu0 0.0
    %2891 = vmatprep.subr.mxu0 0.0
    %2892 = vmatpush1.msra.mxu0 0.0
    %2893 = vmatprep.subr.mxu0 0.0
    %2894 = vmatpush1.msra.mxu0 0.0
    %2895 = vmatprep.subr.mxu0 0.0
    %2896 = vmatpush1.msra.mxu0 0.0
    %2897 = vmatprep.subr.mxu0 0.0
    %2898 = vmatpush1.msra.mxu0 0.0
    %2899 = vmatprep.subr.mxu0 0.0
    %2900 = vmatpush1.msra.mxu0 0.0
    %2901 = vmatprep.subr.mxu0 0.0
    %v2902 = vand.u32 %v2405, 4294901760
    %2903 = vmatpush1.msra.mxu0 %v2902
    %2904 = vmatprep.subr.mxu0 0.0
    %v2905 = vand.u32 %v2404, 4294901760
    %2906 = vmatpush1.msra.mxu0 %v2905
    %2907 = vmatprep.subr.mxu0 0.0
    %v2908 = vand.u32 %v2403, 4294901760
    %2909 = vmatpush1.msra.mxu0 %v2908
    %2910 = vmatprep.subr.mxu0 0.0
    %v2911 = vand.u32 %v2402, 4294901760
    %2912 = vmatpush1.msra.mxu0 %v2911
    %2913 = vmatprep.subr.mxu0 0.0
    %v2914 = vand.u32 %v2401, 4294901760
    %2915 = vmatpush1.msra.mxu0 %v2914
    %2916 = vmatprep.subr.mxu0 0.0
    %v2917 = vand.u32 %v2400, 4294901760
    %2918 = vmatpush1.msra.mxu0 %v2917
    %2919 = vmatprep.subr.mxu0 0.0
    %v2920 = vand.u32 %v2399, 4294901760
    %2921 = vmatpush1.msra.mxu0 %v2920
    %2922 = vmatprep.subr.mxu0 0.0
    %v2923 = vand.u32 %v2398, 4294901760
    %2924 = vmatpush1.msra.mxu0 %v2923
    %2925 = vmatprep.subr.mxu0 0.0
    %v2926 = vand.u32 %v2397, 4294901760
    %2927 = vmatpush1.msra.mxu0 %v2926
    %2928 = vmatprep.subr.mxu0 0.0
    %v2929 = vand.u32 %v2396, 4294901760
    %2930 = vmatpush1.msra.mxu0 %v2929
    %2931 = vmatprep.subr.mxu0 0.0
    %2932 = vmatpush2.msra.mxu0 0.0
    %2933 = vmatprep.subr.mxu0 0.0
    %2934 = vmatpush2.msra.mxu0 0.0
    %2935 = vmatprep.subr.mxu0 0.0
    %2936 = vmatpush2.msra.mxu0 0.0
    %2937 = vmatprep.subr.mxu0 0.0
    %2938 = vmatpush2.msra.mxu0 0.0
    %2939 = vmatprep.subr.mxu0 0.0
    %2940 = vmatpush2.msra.mxu0 0.0
    %2941 = vmatprep.subr.mxu0 0.0
    %2942 = vmatpush2.msra.mxu0 0.0
    %2943 = vmatprep.subr.mxu0 0.0
    %2944 = vmatpush2.msra.mxu0 0.0
    %2945 = vmatprep.subr.mxu0 0.0
    %2946 = vmatpush2.msra.mxu0 0.0
    %2947 = vmatprep.subr.mxu0 0.0
    %2948 = vmatpush2.msra.mxu0 0.0
    %2949 = vmatprep.subr.mxu0 0.0
    %2950 = vmatpush2.msra.mxu0 0.0
    %2951 = vmatprep.subr.mxu0 0.0
    %2952 = vmatpush2.msra.mxu0 0.0
    %2953 = vmatprep.subr.mxu0 0.0
    %2954 = vmatpush2.msra.mxu0 0.0
    %2955 = vmatprep.subr.mxu0 0.0
    %2956 = vmatpush2.msra.mxu0 0.0
    %2957 = vmatprep.subr.mxu0 0.0
    %2958 = vmatpush2.msra.mxu0 0.0
    %2959 = vmatprep.subr.mxu0 0.0
    %2960 = vmatpush2.msra.mxu0 0.0
    %2961 = vmatprep.subr.mxu0 0.0
    %2962 = vmatpush2.msra.mxu0 0.0
    %2963 = vmatprep.mubr.f32.mxu0 0.0
    %v2964 = vand.u32 %v2407, 4294901760
    %v2965 = vsub.f32 %v2407, %v2964
    %v2966 = vand.u32 %v2965, 4294901760
    %2967 = vmatmul.mubr.f32.gmra.mxu0 %v2966
    %v2968 = vpop.f32.mrf.mxu0
    %v2969 = vadd.f32 %v2837, %v2968
    %v2970 = vpop.f32.mrf.mxu0
    %2971 = vmatprep.mubr.f32.mxu0 0.0
    %v2972 = vand.u32 %v2410, 4294901760
    %v2973 = vsub.f32 %v2410, %v2972
    %v2974 = vand.u32 %v2973, 4294901760
    %2975 = vmatmul.mubr.f32.gmra.mxu0 %v2974
    %v2976 = vpop.f32.mrf.mxu0
    %v2977 = vadd.f32 %v2844, %v2976
    %v2978 = vpop.f32.mrf.mxu0
    %2979 = vmatprep.mubr.f32.mxu0 0.0
    %v2980 = vand.u32 %v2413, 4294901760
    %v2981 = vsub.f32 %v2413, %v2980
    %v2982 = vand.u32 %v2981, 4294901760
    %2983 = vmatmul.mubr.f32.gmra.mxu0 %v2982
    %v2984 = vpop.f32.mrf.mxu0
    %v2985 = vadd.f32 %v2851, %v2984
    %v2986 = vpop.f32.mrf.mxu0
    %2987 = vmatprep.mubr.f32.mxu0 0.0
    %v2988 = vand.u32 %v2416, 4294901760
    %v2989 = vsub.f32 %v2416, %v2988
    %v2990 = vand.u32 %v2989, 4294901760
    %2991 = vmatmul.mubr.f32.gmra.mxu0 %v2990
    %v2992 = vpop.f32.mrf.mxu0
    %v2993 = vadd.f32 %v2858, %v2992
    %v2994 = vpop.f32.mrf.mxu0
    %2995 = vmatprep.mubr.f32.mxu0 0.0
    %v2996 = vand.u32 %v2419, 4294901760
    %v2997 = vsub.f32 %v2419, %v2996
    %v2998 = vand.u32 %v2997, 4294901760
    %2999 = vmatmul.mubr.f32.gmra.mxu0 %v2998
    %v3000 = vpop.f32.mrf.mxu0
    %v3001 = vadd.f32 %v2865, %v3000
    %v3002 = vpop.f32.mrf.mxu0
    %3003 = vmatprep.mubr.f32.mxu0 0.0
    %v3004 = vand.u32 %v2422, 4294901760
    %v3005 = vsub.f32 %v2422, %v3004
    %v3006 = vand.u32 %v3005, 4294901760
    %3007 = vmatmul.mubr.f32.gmra.mxu0 %v3006
    %v3008 = vpop.f32.mrf.mxu0
    %v3009 = vadd.f32 %v2872, %v3008
    %v3010 = vpop.f32.mrf.mxu0
    %3011 = vmatprep.mubr.f32.mxu0 0.0
    %v3012 = vand.u32 %v2425, 4294901760
    %v3013 = vsub.f32 %v2425, %v3012
    %v3014 = vand.u32 %v3013, 4294901760
    %3015 = vmatmul.mubr.f32.gmra.mxu0 %v3014
    %v3016 = vpop.f32.mrf.mxu0
    %v3017 = vadd.f32 %v2879, %v3016
    %v3018 = vpop.f32.mrf.mxu0
    %3019 = vmatprep.mubr.f32.mxu0 0.0
    %v3020 = vand.u32 %v2428, 4294901760
    %v3021 = vsub.f32 %v2428, %v3020
    %v3022 = vand.u32 %v3021, 4294901760
    %3023 = vmatmul.mubr.f32.gmra.mxu0 %v3022
    %v3024 = vpop.f32.mrf.mxu0
    %v3025 = vadd.f32 %v2886, %v3024
    %v3026 = vpop.f32.mrf.mxu0
    %3027 = vdwg.mxu0
    %3028 = vmatprep.subr.mxu0 0.0
    %3029 = vmatpush1.msra.mxu0 0.0
    %3030 = vmatprep.subr.mxu0 0.0
    %3031 = vmatpush1.msra.mxu0 0.0
    %3032 = vmatprep.subr.mxu0 0.0
    %3033 = vmatpush1.msra.mxu0 0.0
    %3034 = vmatprep.subr.mxu0 0.0
    %3035 = vmatpush1.msra.mxu0 0.0
    %3036 = vmatprep.subr.mxu0 0.0
    %3037 = vmatpush1.msra.mxu0 0.0
    %3038 = vmatprep.subr.mxu0 0.0
    %3039 = vmatpush1.msra.mxu0 0.0
    %3040 = vmatprep.subr.mxu0 0.0
    %v3041 = vand.u32 %v2405, 4294901760
    %v3042 = vsub.f32 %v2405, %v3041
    %v3043 = vand.u32 %v3042, 4294901760
    %3044 = vmatpush1.msra.mxu0 %v3043
    %3045 = vmatprep.subr.mxu0 0.0
    %v3046 = vand.u32 %v2404, 4294901760
    %v3047 = vsub.f32 %v2404, %v3046
    %v3048 = vand.u32 %v3047, 4294901760
    %3049 = vmatpush1.msra.mxu0 %v3048
    %3050 = vmatprep.subr.mxu0 0.0
    %v3051 = vand.u32 %v2403, 4294901760
    %v3052 = vsub.f32 %v2403, %v3051
    %v3053 = vand.u32 %v3052, 4294901760
    %3054 = vmatpush1.msra.mxu0 %v3053
    %3055 = vmatprep.subr.mxu0 0.0
    %v3056 = vand.u32 %v2402, 4294901760
    %v3057 = vsub.f32 %v2402, %v3056
    %v3058 = vand.u32 %v3057, 4294901760
    %3059 = vmatpush1.msra.mxu0 %v3058
    %3060 = vmatprep.subr.mxu0 0.0
    %v3061 = vand.u32 %v2401, 4294901760
    %v3062 = vsub.f32 %v2401, %v3061
    %v3063 = vand.u32 %v3062, 4294901760
    %3064 = vmatpush1.msra.mxu0 %v3063
    %3065 = vmatprep.subr.mxu0 0.0
    %v3066 = vand.u32 %v2400, 4294901760
    %v3067 = vsub.f32 %v2400, %v3066
    %v3068 = vand.u32 %v3067, 4294901760
    %3069 = vmatpush1.msra.mxu0 %v3068
    %3070 = vmatprep.subr.mxu0 0.0
    %v3071 = vand.u32 %v2399, 4294901760
    %v3072 = vsub.f32 %v2399, %v3071
    %v3073 = vand.u32 %v3072, 4294901760
    %3074 = vmatpush1.msra.mxu0 %v3073
    %3075 = vmatprep.subr.mxu0 0.0
    %v3076 = vand.u32 %v2398, 4294901760
    %v3077 = vsub.f32 %v2398, %v3076
    %v3078 = vand.u32 %v3077, 4294901760
    %3079 = vmatpush1.msra.mxu0 %v3078
    %3080 = vmatprep.subr.mxu0 0.0
    %v3081 = vand.u32 %v2397, 4294901760
    %v3082 = vsub.f32 %v2397, %v3081
    %v3083 = vand.u32 %v3082, 4294901760
    %3084 = vmatpush1.msra.mxu0 %v3083
    %3085 = vmatprep.subr.mxu0 0.0
    %v3086 = vand.u32 %v2396, 4294901760
    %v3087 = vsub.f32 %v2396, %v3086
    %v3088 = vand.u32 %v3087, 4294901760
    %3089 = vmatpush1.msra.mxu0 %v3088
    %3090 = vmatprep.subr.mxu0 0.0
    %3091 = vmatpush2.msra.mxu0 0.0
    %3092 = vmatprep.subr.mxu0 0.0
    %3093 = vmatpush2.msra.mxu0 0.0
    %3094 = vmatprep.subr.mxu0 0.0
    %3095 = vmatpush2.msra.mxu0 0.0
    %3096 = vmatprep.subr.mxu0 0.0
    %3097 = vmatpush2.msra.mxu0 0.0
    %3098 = vmatprep.subr.mxu0 0.0
    %3099 = vmatpush2.msra.mxu0 0.0
    %3100 = vmatprep.subr.mxu0 0.0
    %3101 = vmatpush2.msra.mxu0 0.0
    %3102 = vmatprep.subr.mxu0 0.0
    %3103 = vmatpush2.msra.mxu0 0.0
    %3104 = vmatprep.subr.mxu0 0.0
    %3105 = vmatpush2.msra.mxu0 0.0
    %3106 = vmatprep.subr.mxu0 0.0
    %3107 = vmatpush2.msra.mxu0 0.0
    %3108 = vmatprep.subr.mxu0 0.0
    %3109 = vmatpush2.msra.mxu0 0.0
    %3110 = vmatprep.subr.mxu0 0.0
    %3111 = vmatpush2.msra.mxu0 0.0
    %3112 = vmatprep.subr.mxu0 0.0
    %3113 = vmatpush2.msra.mxu0 0.0
    %3114 = vmatprep.subr.mxu0 0.0
    %3115 = vmatpush2.msra.mxu0 0.0
    %3116 = vmatprep.subr.mxu0 0.0
    %3117 = vmatpush2.msra.mxu0 0.0
    %3118 = vmatprep.subr.mxu0 0.0
    %3119 = vmatpush2.msra.mxu0 0.0
    %3120 = vmatprep.subr.mxu0 0.0
    %3121 = vmatpush2.msra.mxu0 0.0
    %3122 = vmatprep.mubr.f32.mxu0 0.0
    %v3123 = vand.u32 %v2407, 4294901760
    %3124 = vmatmul.mubr.f32.gmra.mxu0 %v3123
    %v3125 = vpop.f32.mrf.mxu0
    %v3126 = vadd.f32 %v2969, %v3125
    %v3127 = vpop.f32.mrf.mxu0
    %3128 = vmatprep.mubr.f32.mxu0 0.0
    %v3129 = vand.u32 %v2410, 4294901760
    %3130 = vmatmul.mubr.f32.gmra.mxu0 %v3129
    %v3131 = vpop.f32.mrf.mxu0
    %v3132 = vadd.f32 %v2977, %v3131
    %v3133 = vpop.f32.mrf.mxu0
    %3134 = vmatprep.mubr.f32.mxu0 0.0
    %v3135 = vand.u32 %v2413, 4294901760
    %3136 = vmatmul.mubr.f32.gmra.mxu0 %v3135
    %v3137 = vpop.f32.mrf.mxu0
    %v3138 = vadd.f32 %v2985, %v3137
    %v3139 = vpop.f32.mrf.mxu0
    %3140 = vmatprep.mubr.f32.mxu0 0.0
    %v3141 = vand.u32 %v2416, 4294901760
    %3142 = vmatmul.mubr.f32.gmra.mxu0 %v3141
    %v3143 = vpop.f32.mrf.mxu0
    %v3144 = vadd.f32 %v2993, %v3143
    %v3145 = vpop.f32.mrf.mxu0
    %3146 = vmatprep.mubr.f32.mxu0 0.0
    %v3147 = vand.u32 %v2419, 4294901760
    %3148 = vmatmul.mubr.f32.gmra.mxu0 %v3147
    %v3149 = vpop.f32.mrf.mxu0
    %v3150 = vadd.f32 %v3001, %v3149
    %v3151 = vpop.f32.mrf.mxu0
    %3152 = vmatprep.mubr.f32.mxu0 0.0
    %v3153 = vand.u32 %v2422, 4294901760
    %3154 = vmatmul.mubr.f32.gmra.mxu0 %v3153
    %v3155 = vpop.f32.mrf.mxu0
    %v3156 = vadd.f32 %v3009, %v3155
    %v3157 = vpop.f32.mrf.mxu0
    %3158 = vmatprep.mubr.f32.mxu0 0.0
    %v3159 = vand.u32 %v2425, 4294901760
    %3160 = vmatmul.mubr.f32.gmra.mxu0 %v3159
    %v3161 = vpop.f32.mrf.mxu0
    %v3162 = vadd.f32 %v3017, %v3161
    %v3163 = vpop.f32.mrf.mxu0
    %3164 = vmatprep.mubr.f32.mxu0 0.0
    %v3165 = vand.u32 %v2428, 4294901760
    %3166 = vmatmul.mubr.f32.gmra.mxu0 %v3165
    %v3167 = vpop.f32.mrf.mxu0
    %v3168 = vadd.f32 %v3025, %v3167
    %v3169 = vpop.f32.mrf.mxu0
    %3170 = vdwg.mxu0
    %3171 = vmatprep.subr.mxu0 0.0
    %3172 = vmatpush1.msra.mxu0 0.0
    %3173 = vmatprep.subr.mxu0 0.0
    %3174 = vmatpush1.msra.mxu0 0.0
    %3175 = vmatprep.subr.mxu0 0.0
    %3176 = vmatpush1.msra.mxu0 0.0
    %3177 = vmatprep.subr.mxu0 0.0
    %3178 = vmatpush1.msra.mxu0 0.0
    %3179 = vmatprep.subr.mxu0 0.0
    %3180 = vmatpush1.msra.mxu0 0.0
    %3181 = vmatprep.subr.mxu0 0.0
    %3182 = vmatpush1.msra.mxu0 0.0
    %3183 = vmatprep.subr.mxu0 0.0
    %v3184 = vand.u32 %v2405, 4294901760
    %3185 = vmatpush1.msra.mxu0 %v3184
    %3186 = vmatprep.subr.mxu0 0.0
    %v3187 = vand.u32 %v2404, 4294901760
    %3188 = vmatpush1.msra.mxu0 %v3187
    %3189 = vmatprep.subr.mxu0 0.0
    %v3190 = vand.u32 %v2403, 4294901760
    %3191 = vmatpush1.msra.mxu0 %v3190
    %3192 = vmatprep.subr.mxu0 0.0
    %v3193 = vand.u32 %v2402, 4294901760
    %3194 = vmatpush1.msra.mxu0 %v3193
    %3195 = vmatprep.subr.mxu0 0.0
    %v3196 = vand.u32 %v2401, 4294901760
    %3197 = vmatpush1.msra.mxu0 %v3196
    %3198 = vmatprep.subr.mxu0 0.0
    %v3199 = vand.u32 %v2400, 4294901760
    %3200 = vmatpush1.msra.mxu0 %v3199
    %3201 = vmatprep.subr.mxu0 0.0
    %v3202 = vand.u32 %v2399, 4294901760
    %3203 = vmatpush1.msra.mxu0 %v3202
    %3204 = vmatprep.subr.mxu0 0.0
    %v3205 = vand.u32 %v2398, 4294901760
    %3206 = vmatpush1.msra.mxu0 %v3205
    %3207 = vmatprep.subr.mxu0 0.0
    %v3208 = vand.u32 %v2397, 4294901760
    %3209 = vmatpush1.msra.mxu0 %v3208
    %3210 = vmatprep.subr.mxu0 0.0
    %v3211 = vand.u32 %v2396, 4294901760
    %3212 = vmatpush1.msra.mxu0 %v3211
    %3213 = vmatprep.subr.mxu0 0.0
    %3214 = vmatpush2.msra.mxu0 0.0
    %3215 = vmatprep.subr.mxu0 0.0
    %3216 = vmatpush2.msra.mxu0 0.0
    %3217 = vmatprep.subr.mxu0 0.0
    %3218 = vmatpush2.msra.mxu0 0.0
    %3219 = vmatprep.subr.mxu0 0.0
    %3220 = vmatpush2.msra.mxu0 0.0
    %3221 = vmatprep.subr.mxu0 0.0
    %3222 = vmatpush2.msra.mxu0 0.0
    %3223 = vmatprep.subr.mxu0 0.0
    %3224 = vmatpush2.msra.mxu0 0.0
    %3225 = vmatprep.subr.mxu0 0.0
    %3226 = vmatpush2.msra.mxu0 0.0
    %3227 = vmatprep.subr.mxu0 0.0
    %3228 = vmatpush2.msra.mxu0 0.0
    %3229 = vmatprep.subr.mxu0 0.0
    %3230 = vmatpush2.msra.mxu0 0.0
    %3231 = vmatprep.subr.mxu0 0.0
    %3232 = vmatpush2.msra.mxu0 0.0
    %3233 = vmatprep.subr.mxu0 0.0
    %3234 = vmatpush2.msra.mxu0 0.0
    %3235 = vmatprep.subr.mxu0 0.0
    %3236 = vmatpush2.msra.mxu0 0.0
    %3237 = vmatprep.subr.mxu0 0.0
    %3238 = vmatpush2.msra.mxu0 0.0
    %3239 = vmatprep.subr.mxu0 0.0
    %3240 = vmatpush2.msra.mxu0 0.0
    %3241 = vmatprep.subr.mxu0 0.0
    %3242 = vmatpush2.msra.mxu0 0.0
    %3243 = vmatprep.subr.mxu0 0.0
    %3244 = vmatpush2.msra.mxu0 0.0
    %3245 = vmatprep.mubr.f32.mxu0 0.0
    %v3246 = vand.u32 %v2407, 4294901760
    %3247 = vmatmul.mubr.f32.gmra.mxu0 %v3246
    %v3248 = vpop.f32.mrf.mxu0
    %v3249 = vadd.f32 %v3126, %v3248
    %v3250 = vpop.f32.mrf.mxu0
    %3251 = vmatprep.mubr.f32.mxu0 0.0
    %v3252 = vand.u32 %v2410, 4294901760
    %3253 = vmatmul.mubr.f32.gmra.mxu0 %v3252
    %v3254 = vpop.f32.mrf.mxu0
    %v3255 = vadd.f32 %v3132, %v3254
    %v3256 = vpop.f32.mrf.mxu0
    %3257 = vmatprep.mubr.f32.mxu0 0.0
    %v3258 = vand.u32 %v2413, 4294901760
    %3259 = vmatmul.mubr.f32.gmra.mxu0 %v3258
    %v3260 = vpop.f32.mrf.mxu0
    %v3261 = vadd.f32 %v3138, %v3260
    %v3262 = vpop.f32.mrf.mxu0
    %3263 = vmatprep.mubr.f32.mxu0 0.0
    %v3264 = vand.u32 %v2416, 4294901760
    %3265 = vmatmul.mubr.f32.gmra.mxu0 %v3264
    %v3266 = vpop.f32.mrf.mxu0
    %v3267 = vadd.f32 %v3144, %v3266
    %v3268 = vpop.f32.mrf.mxu0
    %3269 = vmatprep.mubr.f32.mxu0 0.0
    %v3270 = vand.u32 %v2419, 4294901760
    %3271 = vmatmul.mubr.f32.gmra.mxu0 %v3270
    %v3272 = vpop.f32.mrf.mxu0
    %v3273 = vadd.f32 %v3150, %v3272
    %v3274 = vpop.f32.mrf.mxu0
    %3275 = vmatprep.mubr.f32.mxu0 0.0
    %v3276 = vand.u32 %v2422, 4294901760
    %3277 = vmatmul.mubr.f32.gmra.mxu0 %v3276
    %v3278 = vpop.f32.mrf.mxu0
    %v3279 = vadd.f32 %v3156, %v3278
    %v3280 = vpop.f32.mrf.mxu0
    %3281 = vmatprep.mubr.f32.mxu0 0.0
    %v3282 = vand.u32 %v2425, 4294901760
    %3283 = vmatmul.mubr.f32.gmra.mxu0 %v3282
    %v3284 = vpop.f32.mrf.mxu0
    %v3285 = vadd.f32 %v3162, %v3284
    %v3286 = vpop.f32.mrf.mxu0
    %3287 = vmatprep.mubr.f32.mxu0 0.0
    %v3288 = vand.u32 %v2428, 4294901760
    %3289 = vmatmul.mubr.f32.gmra.mxu0 %v3288
    %v3290 = vpop.f32.mrf.mxu0
    %v3291 = vadd.f32 %v3168, %v3290
    %v3292 = vpop.f32.mrf.mxu0
    %3293 = vdwg.mxu0
    %v3294 = vmul.f32 %v3249, 0.1
    %v3295 = vmul.f32 %v3255, 0.1
    %v3296 = vmul.f32 %v3261, 0.1
    %v3297 = vmul.f32 %v3267, 0.1
    %v3298 = vmul.f32 %v3273, 0.1
    %v3299 = vmul.f32 %v3279, 0.1
    %v3300 = vmul.f32 %v3285, 0.1
    %v3301 = vmul.f32 %v3291, 0.1
    %v3318 = vrot.slane %v527, 4
    %v3319 = vrot.slane %v535, 4
    %v3320 = vrot.slane %v528, 4
    %v3321 = vrot.slane %v538, 4
    %v3322 = vrot.slane %v529, 4
    %v3323 = vrot.slane %v541, 4
    %v3324 = vrot.slane %v530, 4
    %v3325 = vrot.slane %v544, 4
    %v3326 = vrot.slane %v531, 4
    %v3327 = vrot.slane %v547, 4
    %v3328 = vrot.slane %v532, 4
    %v3329 = vrot.slane %v550, 4
    %v3330 = vrot.slane %v533, 4
    %v3331 = vrot.slane %v553, 4
    %v3332 = vrot.slane %v534, 4
    %v3333 = vrot.slane %v556, 4
    %3334 = vrot.lane.b32.xlu0 %v3318, 88
    %v3335 = vpop.permute.xlu0 %3334
    %3336 = vrot.lane.b32.xlu0 %v3319, 88
    %v3337 = vpop.permute.xlu0 %3336
    %3338 = vrot.lane.b32.xlu0 %v3320, 88
    %v3339 = vpop.permute.xlu0 %3338
    %3340 = vrot.lane.b32.xlu0 %v3321, 88
    %v3341 = vpop.permute.xlu0 %3340
    %3342 = vrot.lane.b32.xlu0 %v3322, 88
    %v3343 = vpop.permute.xlu0 %3342
    %3344 = vrot.lane.b32.xlu0 %v3323, 88
    %v3345 = vpop.permute.xlu0 %3344
    %3346 = vrot.lane.b32.xlu0 %v3324, 88
    %v3347 = vpop.permute.xlu0 %3346
    %3348 = vrot.lane.b32.xlu0 %v3325, 88
    %v3349 = vpop.permute.xlu0 %3348
    %3350 = vrot.lane.b32.xlu0 %v3326, 88
    %v3351 = vpop.permute.xlu0 %3350
    %3352 = vrot.lane.b32.xlu0 %v3327, 88
    %v3353 = vpop.permute.xlu0 %3352
    %3354 = vrot.lane.b32.xlu0 %v3328, 88
    %v3355 = vpop.permute.xlu0 %3354
    %3356 = vrot.lane.b32.xlu0 %v3329, 88
    %v3357 = vpop.permute.xlu0 %3356
    %3358 = vrot.lane.b32.xlu0 %v3330, 88
    %v3359 = vpop.permute.xlu0 %3358
    %3360 = vrot.lane.b32.xlu0 %v3331, 88
    %v3361 = vpop.permute.xlu0 %3360
    %3362 = vrot.lane.b32.xlu0 %v3332, 88
    %v3363 = vpop.permute.xlu0 %3362
    %3364 = vrot.lane.b32.xlu0 %v3333, 88
    %v3365 = vpop.permute.xlu0 %3364
    %vm3366 = vcmask 719872
    %v3367 = vsel %vm3366, %v3335, %v3337
    %v3368 = vsel %vm3366, %v3339, %v3341
    %v3369 = vsel %vm3366, %v3343, %v3345
    %v3370 = vsel %vm3366, %v3347, %v3349
    %v3371 = vsel %vm3366, %v3351, %v3353
    %v3372 = vsel %vm3366, %v3355, %v3357
    %v3373 = vsel %vm3366, %v3359, %v3361
    %v3374 = vsel %vm3366, %v3363, %v3365
    %3375 = vrot.lane.b32.xlu0 %v535, 48
    %v3376 = vpop.permute.xlu0 %3375
    %3377 = vrot.lane.b32.xlu0 %v538, 48
    %v3378 = vpop.permute.xlu0 %3377
    %3379 = vrot.lane.b32.xlu0 %v541, 48
    %v3380 = vpop.permute.xlu0 %3379
    %3381 = vrot.lane.b32.xlu0 %v544, 48
    %v3382 = vpop.permute.xlu0 %3381
    %3383 = vrot.lane.b32.xlu0 %v547, 48
    %v3384 = vpop.permute.xlu0 %3383
    %3385 = vrot.lane.b32.xlu0 %v550, 48
    %v3386 = vpop.permute.xlu0 %3385
    %3387 = vrot.lane.b32.xlu0 %v553, 48
    %v3388 = vpop.permute.xlu0 %3387
    %3389 = vrot.lane.b32.xlu0 %v556, 48
    %v3390 = vpop.permute.xlu0 %3389
    %3391 = vrot.lane.b32.xlu0 %v3319, 8
    %v3392 = vpop.permute.xlu0 %3391
    %3393 = vrot.lane.b32.xlu0 %v3321, 8
    %v3394 = vpop.permute.xlu0 %3393
    %3395 = vrot.lane.b32.xlu0 %v3323, 8
    %v3396 = vpop.permute.xlu0 %3395
    %3397 = vrot.lane.b32.xlu0 %v3325, 8
    %v3398 = vpop.permute.xlu0 %3397
    %3399 = vrot.lane.b32.xlu0 %v3327, 8
    %v3400 = vpop.permute.xlu0 %3399
    %3401 = vrot.lane.b32.xlu0 %v3329, 8
    %v3402 = vpop.permute.xlu0 %3401
    %3403 = vrot.lane.b32.xlu0 %v3331, 8
    %v3404 = vpop.permute.xlu0 %3403
    %3405 = vrot.lane.b32.xlu0 %v3333, 8
    %v3406 = vpop.permute.xlu0 %3405
    %3415 = vrot.lane.b32.xlu0 %v535, 96
    %v3416 = vpop.permute.xlu0 %3415
    %3417 = vrot.lane.b32.xlu0 %v536, 96
    %v3418 = vpop.permute.xlu0 %3417
    %3419 = vrot.lane.b32.xlu0 %v538, 96
    %v3420 = vpop.permute.xlu0 %3419
    %3421 = vrot.lane.b32.xlu0 %v539, 96
    %v3422 = vpop.permute.xlu0 %3421
    %3423 = vrot.lane.b32.xlu0 %v541, 96
    %v3424 = vpop.permute.xlu0 %3423
    %3425 = vrot.lane.b32.xlu0 %v542, 96
    %v3426 = vpop.permute.xlu0 %3425
    %3427 = vrot.lane.b32.xlu0 %v544, 96
    %v3428 = vpop.permute.xlu0 %3427
    %3429 = vrot.lane.b32.xlu0 %v545, 96
    %v3430 = vpop.permute.xlu0 %3429
    %3431 = vrot.lane.b32.xlu0 %v547, 96
    %v3432 = vpop.permute.xlu0 %3431
    %3433 = vrot.lane.b32.xlu0 %v548, 96
    %v3434 = vpop.permute.xlu0 %3433
    %3435 = vrot.lane.b32.xlu0 %v550, 96
    %v3436 = vpop.permute.xlu0 %3435
    %3437 = vrot.lane.b32.xlu0 %v551, 96
    %v3438 = vpop.permute.xlu0 %3437
    %3439 = vrot.lane.b32.xlu0 %v553, 96
    %v3440 = vpop.permute.xlu0 %3439
    %3441 = vrot.lane.b32.xlu0 %v554, 96
    %v3442 = vpop.permute.xlu0 %3441
    %3443 = vrot.lane.b32.xlu0 %v556, 96
    %v3444 = vpop.permute.xlu0 %3443
    %3445 = vrot.lane.b32.xlu0 %v557, 96
    %v3446 = vpop.permute.xlu0 %3445
    %vm3447 = vcmask 785408
    %v3448 = vsel %vm3447, %v3416, %v3418
    %v3449 = vsel %vm3447, %v3420, %v3422
    %v3450 = vsel %vm3447, %v3424, %v3426
    %v3451 = vsel %vm3447, %v3428, %v3430
    %v3452 = vsel %vm3447, %v3432, %v3434
    %v3453 = vsel %vm3447, %v3436, %v3438
    %v3454 = vsel %vm3447, %v3440, %v3442
    %v3455 = vsel %vm3447, %v3444, %v3446
    %v3456 = vrot.slane %v536, 4
    %v3457 = vrot.slane %v539, 4
    %v3458 = vrot.slane %v542, 4
    %v3459 = vrot.slane %v545, 4
    %v3460 = vrot.slane %v548, 4
    %v3461 = vrot.slane %v551, 4
    %v3462 = vrot.slane %v554, 4
    %v3463 = vrot.slane %v557, 4
    %3464 = vrot.lane.b32.xlu0 %v3456, 56
    %v3465 = vpop.permute.xlu0 %3464
    %3466 = vrot.lane.b32.xlu0 %v3457, 56
    %v3467 = vpop.permute.xlu0 %3466
    %3468 = vrot.lane.b32.xlu0 %v3458, 56
    %v3469 = vpop.permute.xlu0 %3468
    %3470 = vrot.lane.b32.xlu0 %v3459, 56
    %v3471 = vpop.permute.xlu0 %3470
    %3472 = vrot.lane.b32.xlu0 %v3460, 56
    %v3473 = vpop.permute.xlu0 %3472
    %3474 = vrot.lane.b32.xlu0 %v3461, 56
    %v3475 = vpop.permute.xlu0 %3474
    %3476 = vrot.lane.b32.xlu0 %v3462, 56
    %v3477 = vpop.permute.xlu0 %3476
    %3478 = vrot.lane.b32.xlu0 %v3463, 56
    %v3479 = vpop.permute.xlu0 %3478
    %3480 = vrot.lane.b32.xlu0 %v536, 16
    %v3481 = vpop.permute.xlu0 %3480
    %3482 = vrot.lane.b32.xlu0 %v539, 16
    %v3483 = vpop.permute.xlu0 %3482
    %3484 = vrot.lane.b32.xlu0 %v542, 16
    %v3485 = vpop.permute.xlu0 %3484
    %3486 = vrot.lane.b32.xlu0 %v545, 16
    %v3487 = vpop.permute.xlu0 %3486
    %3488 = vrot.lane.b32.xlu0 %v548, 16
    %v3489 = vpop.permute.xlu0 %3488
    %3490 = vrot.lane.b32.xlu0 %v551, 16
    %v3491 = vpop.permute.xlu0 %3490
    %3492 = vrot.lane.b32.xlu0 %v554, 16
    %v3493 = vpop.permute.xlu0 %3492
    %3494 = vrot.lane.b32.xlu0 %v557, 16
    %v3495 = vpop.permute.xlu0 %3494
    %v3504 = vrot.slane %v537, 4
    %v3505 = vrot.slane %v540, 4
    %v3506 = vrot.slane %v543, 4
    %v3507 = vrot.slane %v546, 4
    %v3508 = vrot.slane %v549, 4
    %v3509 = vrot.slane %v552, 4
    %v3510 = vrot.slane %v555, 4
    %v3511 = vrot.slane %v558, 4
    %3512 = vrot.lane.b32.xlu0 %v3456, 104
    %v3513 = vpop.permute.xlu0 %3512
    %3514 = vrot.lane.b32.xlu0 %v3504, 104
    %v3515 = vpop.permute.xlu0 %3514
    %3516 = vrot.lane.b32.xlu0 %v3457, 104
    %v3517 = vpop.permute.xlu0 %3516
    %3518 = vrot.lane.b32.xlu0 %v3505, 104
    %v3519 = vpop.permute.xlu0 %3518
    %3520 = vrot.lane.b32.xlu0 %v3458, 104
    %v3521 = vpop.permute.xlu0 %3520
    %3522 = vrot.lane.b32.xlu0 %v3506, 104
    %v3523 = vpop.permute.xlu0 %3522
    %3524 = vrot.lane.b32.xlu0 %v3459, 104
    %v3525 = vpop.permute.xlu0 %3524
    %3526 = vrot.lane.b32.xlu0 %v3507, 104
    %v3527 = vpop.permute.xlu0 %3526
    %3528 = vrot.lane.b32.xlu0 %v3460, 104
    %v3529 = vpop.permute.xlu0 %3528
    %3530 = vrot.lane.b32.xlu0 %v3508, 104
    %v3531 = vpop.permute.xlu0 %3530
    %3532 = vrot.lane.b32.xlu0 %v3461, 104
    %v3533 = vpop.permute.xlu0 %3532
    %3534 = vrot.lane.b32.xlu0 %v3509, 104
    %v3535 = vpop.permute.xlu0 %3534
    %3536 = vrot.lane.b32.xlu0 %v3462, 104
    %v3537 = vpop.permute.xlu0 %3536
    %3538 = vrot.lane.b32.xlu0 %v3510, 104
    %v3539 = vpop.permute.xlu0 %3538
    %3540 = vrot.lane.b32.xlu0 %v3463, 104
    %v3541 = vpop.permute.xlu0 %3540
    %3542 = vrot.lane.b32.xlu0 %v3511, 104
    %v3543 = vpop.permute.xlu0 %3542
    %vm3544 = vcmask 850944
    %v3545 = vsel %vm3544, %v3513, %v3515
    %v3546 = vsel %vm3544, %v3517, %v3519
    %v3547 = vsel %vm3544, %v3521, %v3523
    %v3548 = vsel %vm3544, %v3525, %v3527
    %v3549 = vsel %vm3544, %v3529, %v3531
    %v3550 = vsel %vm3544, %v3533, %v3535
    %v3551 = vsel %vm3544, %v3537, %v3539
    %v3552 = vsel %vm3544, %v3541, %v3543
    %3553 = vrot.lane.b32.xlu0 %v537, 64
    %v3554 = vpop.permute.xlu0 %3553
    %3555 = vrot.lane.b32.xlu0 %v540, 64
    %v3556 = vpop.permute.xlu0 %3555
    %3557 = vrot.lane.b32.xlu0 %v543, 64
    %v3558 = vpop.permute.xlu0 %3557
    %3559 = vrot.lane.b32.xlu0 %v546, 64
    %v3560 = vpop.permute.xlu0 %3559
    %3561 = vrot.lane.b32.xlu0 %v549, 64
    %v3562 = vpop.permute.xlu0 %3561
    %3563 = vrot.lane.b32.xlu0 %v552, 64
    %v3564 = vpop.permute.xlu0 %3563
    %3565 = vrot.lane.b32.xlu0 %v555, 64
    %v3566 = vpop.permute.xlu0 %3565
    %3567 = vrot.lane.b32.xlu0 %v558, 64
    %v3568 = vpop.permute.xlu0 %3567
    %3569 = vrot.lane.b32.xlu0 %v3504, 24
    %v3570 = vpop.permute.xlu0 %3569
    %3571 = vrot.lane.b32.xlu0 %v3505, 24
    %v3572 = vpop.permute.xlu0 %3571
    %3573 = vrot.lane.b32.xlu0 %v3506, 24
    %v3574 = vpop.permute.xlu0 %3573
    %3575 = vrot.lane.b32.xlu0 %v3507, 24
    %v3576 = vpop.permute.xlu0 %3575
    %3577 = vrot.lane.b32.xlu0 %v3508, 24
    %v3578 = vpop.permute.xlu0 %3577
    %3579 = vrot.lane.b32.xlu0 %v3509, 24
    %v3580 = vpop.permute.xlu0 %3579
    %3581 = vrot.lane.b32.xlu0 %v3510, 24
    %v3582 = vpop.permute.xlu0 %3581
    %3583 = vrot.lane.b32.xlu0 %v3511, 24
    %v3584 = vpop.permute.xlu0 %3583
    %v3586 = vsel %vm160, %v527, %v3367
    %v3588 = vsel %vm160, %v528, %v3368
    %v3590 = vsel %vm160, %v529, %v3369
    %v3592 = vsel %vm160, %v530, %v3370
    %v3594 = vsel %vm160, %v531, %v3371
    %v3596 = vsel %vm160, %v532, %v3372
    %v3598 = vsel %vm160, %v533, %v3373
    %v3600 = vsel %vm160, %v534, %v3374
    %v3603 = vsel %vm160, %v3376, %v3392
    %v3606 = vsel %vm160, %v3378, %v3394
    %v3609 = vsel %vm160, %v3380, %v3396
    %v3612 = vsel %vm160, %v3382, %v3398
    %v3615 = vsel %vm160, %v3384, %v3400
    %v3618 = vsel %vm160, %v3386, %v3402
    %v3621 = vsel %vm160, %v3388, %v3404
    %v3624 = vsel %vm160, %v3390, %v3406
    %v3627 = vsel %vm160, %v3448, %v3465
    %v3630 = vsel %vm160, %v3449, %v3467
    %v3633 = vsel %vm160, %v3450, %v3469
    %v3636 = vsel %vm160, %v3451, %v3471
    %v3639 = vsel %vm160, %v3452, %v3473
    %v3642 = vsel %vm160, %v3453, %v3475
    %v3645 = vsel %vm160, %v3454, %v3477
    %v3648 = vsel %vm160, %v3455, %v3479
    %v3651 = vsel %vm160, %v3481, %v3545
    %v3654 = vsel %vm160, %v3483, %v3546
    %v3657 = vsel %vm160, %v3485, %v3547
    %v3660 = vsel %vm160, %v3487, %v3548
    %v3663 = vsel %vm160, %v3489, %v3549
    %v3666 = vsel %vm160, %v3491, %v3550
    %v3669 = vsel %vm160, %v3493, %v3551
    %v3672 = vsel %vm160, %v3495, %v3552
    %v3675 = vsel %vm160, %v3554, %v3570
    %v3678 = vsel %vm160, %v3556, %v3572
    %v3681 = vsel %vm160, %v3558, %v3574
    %v3684 = vsel %vm160, %v3560, %v3576
    %v3687 = vsel %vm160, %v3562, %v3578
    %v3690 = vsel %vm160, %v3564, %v3580
    %v3693 = vsel %vm160, %v3566, %v3582
    %v3696 = vsel %vm160, %v3568, %v3584
    %v3697 = vpack.c.bf16 %v2388, %v2388
    %v3698 = vpack.c.bf16 %v2389, %v2389
    %v3699 = vpack.c.bf16 %v2390, %v2390
    %v3700 = vpack.c.bf16 %v2391, %v2391
    %v3701 = vpack.c.bf16 %v2392, %v2392
    %v3702 = vpack.c.bf16 %v2393, %v2393
    %v3703 = vpack.c.bf16 %v2394, %v2394
    %v3704 = vpack.c.bf16 %v2395, %v2395
    %3710 = vrot.lane.b32.xlu0 %v3586, 48
    %v3711 = vpop.permute.xlu0 %3710
    %3712 = vrot.lane.b32.xlu0 %v3603, 48
    %v3713 = vpop.permute.xlu0 %3712
    %3714 = vrot.lane.b32.xlu0 %v3627, 48
    %v3715 = vpop.permute.xlu0 %3714
    %3716 = vrot.lane.b32.xlu0 %v3651, 48
    %v3717 = vpop.permute.xlu0 %3716
    %3718 = vrot.lane.b32.xlu0 %v3675, 48
    %v3719 = vpop.permute.xlu0 %3718
    %v3726 = vsel %vm1433, %v3697, 0
    %3728 = vmatprep.subr.bf16.mxu0 0
    %3729 = vmatpush1.bf16.msra.mxu0 0
    %3730 = vmatprep.subr.bf16.mxu0 0
    %3731 = vmatpush1.bf16.msra.mxu0 0
    %3732 = vmatprep.subr.bf16.mxu0 0
    %3733 = vmatpush1.bf16.msra.mxu0 0
    %3734 = vmatprep.subr.bf16.mxu0 0
    %3735 = vmatpush1.bf16.msra.mxu0 %v3719
    %3736 = vmatprep.subr.bf16.mxu0 0
    %3737 = vmatpush1.bf16.msra.mxu0 %v3717
    %3738 = vmatprep.subr.bf16.mxu0 0
    %3739 = vmatpush1.bf16.msra.mxu0 %v3715
    %3740 = vmatprep.subr.bf16.mxu0 0
    %3741 = vmatpush1.bf16.msra.mxu0 %v3713
    %3742 = vmatprep.subr.bf16.mxu0 0
    %3743 = vmatpush1.bf16.msra.mxu0 %v3711
    %3744 = vmatprep.subr.bf16.mxu0 0
    %3745 = vmatpush2.bf16.msra.mxu0 0
    %3746 = vmatprep.subr.bf16.mxu0 0
    %3747 = vmatpush2.bf16.msra.mxu0 0
    %3748 = vmatprep.subr.bf16.mxu0 0
    %3749 = vmatpush2.bf16.msra.mxu0 0
    %3750 = vmatprep.subr.bf16.mxu0 0
    %3751 = vmatpush2.bf16.msra.mxu0 0
    %3752 = vmatprep.subr.bf16.mxu0 0
    %3753 = vmatpush2.bf16.msra.mxu0 0
    %3754 = vmatprep.subr.bf16.mxu0 0
    %3755 = vmatpush2.bf16.msra.mxu0 0
    %3756 = vmatprep.subr.bf16.mxu0 0
    %3757 = vmatpush2.bf16.msra.mxu0 0
    %3758 = vmatprep.subr.bf16.mxu0 0
    %3759 = vmatpush2.bf16.msra.mxu0 0
    %3760 = vmatprep.mubr.bf16.mxu0 0
    %3761 = vmatmul.mubr.bf16.gmra.mxu0 %v3726
    %v3762 = vpop.f32.mrf.mxu0
    %v3763 = vadd.f32 0.0, %v3762
    %v3764 = vpop.f32.mrf.mxu0
    %v3765 = vpop.f32.mrf.mxu0
    %v3766 = vpop.f32.mrf.mxu0
    %3767 = vdwg.mxu0
    %3773 = vrot.lane.b32.xlu0 %v3588, 48
    %v3774 = vpop.permute.xlu0 %3773
    %3775 = vrot.lane.b32.xlu0 %v3606, 48
    %v3776 = vpop.permute.xlu0 %3775
    %3777 = vrot.lane.b32.xlu0 %v3630, 48
    %v3778 = vpop.permute.xlu0 %3777
    %3779 = vrot.lane.b32.xlu0 %v3654, 48
    %v3780 = vpop.permute.xlu0 %3779
    %3781 = vrot.lane.b32.xlu0 %v3678, 48
    %v3782 = vpop.permute.xlu0 %3781
    %v3789 = vsel %vm1433, %v3698, 0
    %3791 = vmatprep.subr.bf16.mxu0 0
    %3792 = vmatpush1.bf16.msra.mxu0 0
    %3793 = vmatprep.subr.bf16.mxu0 0
    %3794 = vmatpush1.bf16.msra.mxu0 0
    %3795 = vmatprep.subr.bf16.mxu0 0
    %3796 = vmatpush1.bf16.msra.mxu0 0
    %3797 = vmatprep.subr.bf16.mxu0 0
    %3798 = vmatpush1.bf16.msra.mxu0 %v3782
    %3799 = vmatprep.subr.bf16.mxu0 0
    %3800 = vmatpush1.bf16.msra.mxu0 %v3780
    %3801 = vmatprep.subr.bf16.mxu0 0
    %3802 = vmatpush1.bf16.msra.mxu0 %v3778
    %3803 = vmatprep.subr.bf16.mxu0 0
    %3804 = vmatpush1.bf16.msra.mxu0 %v3776
    %3805 = vmatprep.subr.bf16.mxu0 0
    %3806 = vmatpush1.bf16.msra.mxu0 %v3774
    %3807 = vmatprep.subr.bf16.mxu0 0
    %3808 = vmatpush2.bf16.msra.mxu0 0
    %3809 = vmatprep.subr.bf16.mxu0 0
    %3810 = vmatpush2.bf16.msra.mxu0 0
    %3811 = vmatprep.subr.bf16.mxu0 0
    %3812 = vmatpush2.bf16.msra.mxu0 0
    %3813 = vmatprep.subr.bf16.mxu0 0
    %3814 = vmatpush2.bf16.msra.mxu0 0
    %3815 = vmatprep.subr.bf16.mxu0 0
    %3816 = vmatpush2.bf16.msra.mxu0 0
    %3817 = vmatprep.subr.bf16.mxu0 0
    %3818 = vmatpush2.bf16.msra.mxu0 0
    %3819 = vmatprep.subr.bf16.mxu0 0
    %3820 = vmatpush2.bf16.msra.mxu0 0
    %3821 = vmatprep.subr.bf16.mxu0 0
    %3822 = vmatpush2.bf16.msra.mxu0 0
    %3823 = vmatprep.mubr.bf16.mxu0 0
    %3824 = vmatmul.mubr.bf16.gmra.mxu0 %v3789
    %v3825 = vpop.f32.mrf.mxu0
    %v3826 = vadd.f32 0.0, %v3825
    %v3827 = vpop.f32.mrf.mxu0
    %v3828 = vpop.f32.mrf.mxu0
    %v3829 = vpop.f32.mrf.mxu0
    %3830 = vdwg.mxu0
    %3836 = vrot.lane.b32.xlu0 %v3590, 48
    %v3837 = vpop.permute.xlu0 %3836
    %3838 = vrot.lane.b32.xlu0 %v3609, 48
    %v3839 = vpop.permute.xlu0 %3838
    %3840 = vrot.lane.b32.xlu0 %v3633, 48
    %v3841 = vpop.permute.xlu0 %3840
    %3842 = vrot.lane.b32.xlu0 %v3657, 48
    %v3843 = vpop.permute.xlu0 %3842
    %3844 = vrot.lane.b32.xlu0 %v3681, 48
    %v3845 = vpop.permute.xlu0 %3844
    %v3852 = vsel %vm1433, %v3699, 0
    %3854 = vmatprep.subr.bf16.mxu0 0
    %3855 = vmatpush1.bf16.msra.mxu0 0
    %3856 = vmatprep.subr.bf16.mxu0 0
    %3857 = vmatpush1.bf16.msra.mxu0 0
    %3858 = vmatprep.subr.bf16.mxu0 0
    %3859 = vmatpush1.bf16.msra.mxu0 0
    %3860 = vmatprep.subr.bf16.mxu0 0
    %3861 = vmatpush1.bf16.msra.mxu0 %v3845
    %3862 = vmatprep.subr.bf16.mxu0 0
    %3863 = vmatpush1.bf16.msra.mxu0 %v3843
    %3864 = vmatprep.subr.bf16.mxu0 0
    %3865 = vmatpush1.bf16.msra.mxu0 %v3841
    %3866 = vmatprep.subr.bf16.mxu0 0
    %3867 = vmatpush1.bf16.msra.mxu0 %v3839
    %3868 = vmatprep.subr.bf16.mxu0 0
    %3869 = vmatpush1.bf16.msra.mxu0 %v3837
    %3870 = vmatprep.subr.bf16.mxu0 0
    %3871 = vmatpush2.bf16.msra.mxu0 0
    %3872 = vmatprep.subr.bf16.mxu0 0
    %3873 = vmatpush2.bf16.msra.mxu0 0
    %3874 = vmatprep.subr.bf16.mxu0 0
    %3875 = vmatpush2.bf16.msra.mxu0 0
    %3876 = vmatprep.subr.bf16.mxu0 0
    %3877 = vmatpush2.bf16.msra.mxu0 0
    %3878 = vmatprep.subr.bf16.mxu0 0
    %3879 = vmatpush2.bf16.msra.mxu0 0
    %3880 = vmatprep.subr.bf16.mxu0 0
    %3881 = vmatpush2.bf16.msra.mxu0 0
    %3882 = vmatprep.subr.bf16.mxu0 0
    %3883 = vmatpush2.bf16.msra.mxu0 0
    %3884 = vmatprep.subr.bf16.mxu0 0
    %3885 = vmatpush2.bf16.msra.mxu0 0
    %3886 = vmatprep.mubr.bf16.mxu0 0
    %3887 = vmatmul.mubr.bf16.gmra.mxu0 %v3852
    %v3888 = vpop.f32.mrf.mxu0
    %v3889 = vadd.f32 0.0, %v3888
    %v3890 = vpop.f32.mrf.mxu0
    %v3891 = vpop.f32.mrf.mxu0
    %v3892 = vpop.f32.mrf.mxu0
    %3893 = vdwg.mxu0
    %3899 = vrot.lane.b32.xlu0 %v3592, 48
    %v3900 = vpop.permute.xlu0 %3899
    %3901 = vrot.lane.b32.xlu0 %v3612, 48
    %v3902 = vpop.permute.xlu0 %3901
    %3903 = vrot.lane.b32.xlu0 %v3636, 48
    %v3904 = vpop.permute.xlu0 %3903
    %3905 = vrot.lane.b32.xlu0 %v3660, 48
    %v3906 = vpop.permute.xlu0 %3905
    %3907 = vrot.lane.b32.xlu0 %v3684, 48
    %v3908 = vpop.permute.xlu0 %3907
    %v3915 = vsel %vm1433, %v3700, 0
    %3917 = vmatprep.subr.bf16.mxu0 0
    %3918 = vmatpush1.bf16.msra.mxu0 0
    %3919 = vmatprep.subr.bf16.mxu0 0
    %3920 = vmatpush1.bf16.msra.mxu0 0
    %3921 = vmatprep.subr.bf16.mxu0 0
    %3922 = vmatpush1.bf16.msra.mxu0 0
    %3923 = vmatprep.subr.bf16.mxu0 0
    %3924 = vmatpush1.bf16.msra.mxu0 %v3908
    %3925 = vmatprep.subr.bf16.mxu0 0
    %3926 = vmatpush1.bf16.msra.mxu0 %v3906
    %3927 = vmatprep.subr.bf16.mxu0 0
    %3928 = vmatpush1.bf16.msra.mxu0 %v3904
    %3929 = vmatprep.subr.bf16.mxu0 0
    %3930 = vmatpush1.bf16.msra.mxu0 %v3902
    %3931 = vmatprep.subr.bf16.mxu0 0
    %3932 = vmatpush1.bf16.msra.mxu0 %v3900
    %3933 = vmatprep.subr.bf16.mxu0 0
    %3934 = vmatpush2.bf16.msra.mxu0 0
    %3935 = vmatprep.subr.bf16.mxu0 0
    %3936 = vmatpush2.bf16.msra.mxu0 0
    %3937 = vmatprep.subr.bf16.mxu0 0
    %3938 = vmatpush2.bf16.msra.mxu0 0
    %3939 = vmatprep.subr.bf16.mxu0 0
    %3940 = vmatpush2.bf16.msra.mxu0 0
    %3941 = vmatprep.subr.bf16.mxu0 0
    %3942 = vmatpush2.bf16.msra.mxu0 0
    %3943 = vmatprep.subr.bf16.mxu0 0
    %3944 = vmatpush2.bf16.msra.mxu0 0
    %3945 = vmatprep.subr.bf16.mxu0 0
    %3946 = vmatpush2.bf16.msra.mxu0 0
    %3947 = vmatprep.subr.bf16.mxu0 0
    %3948 = vmatpush2.bf16.msra.mxu0 0
    %3949 = vmatprep.mubr.bf16.mxu0 0
    %3950 = vmatmul.mubr.bf16.gmra.mxu0 %v3915
    %v3951 = vpop.f32.mrf.mxu0
    %v3952 = vadd.f32 0.0, %v3951
    %v3953 = vpop.f32.mrf.mxu0
    %v3954 = vpop.f32.mrf.mxu0
    %v3955 = vpop.f32.mrf.mxu0
    %3956 = vdwg.mxu0
    %3962 = vrot.lane.b32.xlu0 %v3594, 48
    %v3963 = vpop.permute.xlu0 %3962
    %3964 = vrot.lane.b32.xlu0 %v3615, 48
    %v3965 = vpop.permute.xlu0 %3964
    %3966 = vrot.lane.b32.xlu0 %v3639, 48
    %v3967 = vpop.permute.xlu0 %3966
    %3968 = vrot.lane.b32.xlu0 %v3663, 48
    %v3969 = vpop.permute.xlu0 %3968
    %3970 = vrot.lane.b32.xlu0 %v3687, 48
    %v3971 = vpop.permute.xlu0 %3970
    %v3978 = vsel %vm1433, %v3701, 0
    %3980 = vmatprep.subr.bf16.mxu0 0
    %3981 = vmatpush1.bf16.msra.mxu0 0
    %3982 = vmatprep.subr.bf16.mxu0 0
    %3983 = vmatpush1.bf16.msra.mxu0 0
    %3984 = vmatprep.subr.bf16.mxu0 0
    %3985 = vmatpush1.bf16.msra.mxu0 0
    %3986 = vmatprep.subr.bf16.mxu0 0
    %3987 = vmatpush1.bf16.msra.mxu0 %v3971
    %3988 = vmatprep.subr.bf16.mxu0 0
    %3989 = vmatpush1.bf16.msra.mxu0 %v3969
    %3990 = vmatprep.subr.bf16.mxu0 0
    %3991 = vmatpush1.bf16.msra.mxu0 %v3967
    %3992 = vmatprep.subr.bf16.mxu0 0
    %3993 = vmatpush1.bf16.msra.mxu0 %v3965
    %3994 = vmatprep.subr.bf16.mxu0 0
    %3995 = vmatpush1.bf16.msra.mxu0 %v3963
    %3996 = vmatprep.subr.bf16.mxu0 0
    %3997 = vmatpush2.bf16.msra.mxu0 0
    %3998 = vmatprep.subr.bf16.mxu0 0
    %3999 = vmatpush2.bf16.msra.mxu0 0
    %4000 = vmatprep.subr.bf16.mxu0 0
    %4001 = vmatpush2.bf16.msra.mxu0 0
    %4002 = vmatprep.subr.bf16.mxu0 0
    %4003 = vmatpush2.bf16.msra.mxu0 0
    %4004 = vmatprep.subr.bf16.mxu0 0
    %4005 = vmatpush2.bf16.msra.mxu0 0
    %4006 = vmatprep.subr.bf16.mxu0 0
    %4007 = vmatpush2.bf16.msra.mxu0 0
    %4008 = vmatprep.subr.bf16.mxu0 0
    %4009 = vmatpush2.bf16.msra.mxu0 0
    %4010 = vmatprep.subr.bf16.mxu0 0
    %4011 = vmatpush2.bf16.msra.mxu0 0
    %4012 = vmatprep.mubr.bf16.mxu0 0
    %4013 = vmatmul.mubr.bf16.gmra.mxu0 %v3978
    %v4014 = vpop.f32.mrf.mxu0
    %v4015 = vadd.f32 0.0, %v4014
    %v4016 = vpop.f32.mrf.mxu0
    %v4017 = vpop.f32.mrf.mxu0
    %v4018 = vpop.f32.mrf.mxu0
    %4019 = vdwg.mxu0
    %4025 = vrot.lane.b32.xlu0 %v3596, 48
    %v4026 = vpop.permute.xlu0 %4025
    %4027 = vrot.lane.b32.xlu0 %v3618, 48
    %v4028 = vpop.permute.xlu0 %4027
    %4029 = vrot.lane.b32.xlu0 %v3642, 48
    %v4030 = vpop.permute.xlu0 %4029
    %4031 = vrot.lane.b32.xlu0 %v3666, 48
    %v4032 = vpop.permute.xlu0 %4031
    %4033 = vrot.lane.b32.xlu0 %v3690, 48
    %v4034 = vpop.permute.xlu0 %4033
    %v4041 = vsel %vm1433, %v3702, 0
    %4043 = vmatprep.subr.bf16.mxu0 0
    %4044 = vmatpush1.bf16.msra.mxu0 0
    %4045 = vmatprep.subr.bf16.mxu0 0
    %4046 = vmatpush1.bf16.msra.mxu0 0
    %4047 = vmatprep.subr.bf16.mxu0 0
    %4048 = vmatpush1.bf16.msra.mxu0 0
    %4049 = vmatprep.subr.bf16.mxu0 0
    %4050 = vmatpush1.bf16.msra.mxu0 %v4034
    %4051 = vmatprep.subr.bf16.mxu0 0
    %4052 = vmatpush1.bf16.msra.mxu0 %v4032
    %4053 = vmatprep.subr.bf16.mxu0 0
    %4054 = vmatpush1.bf16.msra.mxu0 %v4030
    %4055 = vmatprep.subr.bf16.mxu0 0
    %4056 = vmatpush1.bf16.msra.mxu0 %v4028
    %4057 = vmatprep.subr.bf16.mxu0 0
    %4058 = vmatpush1.bf16.msra.mxu0 %v4026
    %4059 = vmatprep.subr.bf16.mxu0 0
    %4060 = vmatpush2.bf16.msra.mxu0 0
    %4061 = vmatprep.subr.bf16.mxu0 0
    %4062 = vmatpush2.bf16.msra.mxu0 0
    %4063 = vmatprep.subr.bf16.mxu0 0
    %4064 = vmatpush2.bf16.msra.mxu0 0
    %4065 = vmatprep.subr.bf16.mxu0 0
    %4066 = vmatpush2.bf16.msra.mxu0 0
    %4067 = vmatprep.subr.bf16.mxu0 0
    %4068 = vmatpush2.bf16.msra.mxu0 0
    %4069 = vmatprep.subr.bf16.mxu0 0
    %4070 = vmatpush2.bf16.msra.mxu0 0
    %4071 = vmatprep.subr.bf16.mxu0 0
    %4072 = vmatpush2.bf16.msra.mxu0 0
    %4073 = vmatprep.subr.bf16.mxu0 0
    %4074 = vmatpush2.bf16.msra.mxu0 0
    %4075 = vmatprep.mubr.bf16.mxu0 0
    %4076 = vmatmul.mubr.bf16.gmra.mxu0 %v4041
    %v4077 = vpop.f32.mrf.mxu0
    %v4078 = vadd.f32 0.0, %v4077
    %v4079 = vpop.f32.mrf.mxu0
    %v4080 = vpop.f32.mrf.mxu0
    %v4081 = vpop.f32.mrf.mxu0
    %4082 = vdwg.mxu0
    %4088 = vrot.lane.b32.xlu0 %v3598, 48
    %v4089 = vpop.permute.xlu0 %4088
    %4090 = vrot.lane.b32.xlu0 %v3621, 48
    %v4091 = vpop.permute.xlu0 %4090
    %4092 = vrot.lane.b32.xlu0 %v3645, 48
    %v4093 = vpop.permute.xlu0 %4092
    %4094 = vrot.lane.b32.xlu0 %v3669, 48
    %v4095 = vpop.permute.xlu0 %4094
    %4096 = vrot.lane.b32.xlu0 %v3693, 48
    %v4097 = vpop.permute.xlu0 %4096
    %v4104 = vsel %vm1433, %v3703, 0
    %4106 = vmatprep.subr.bf16.mxu0 0
    %4107 = vmatpush1.bf16.msra.mxu0 0
    %4108 = vmatprep.subr.bf16.mxu0 0
    %4109 = vmatpush1.bf16.msra.mxu0 0
    %4110 = vmatprep.subr.bf16.mxu0 0
    %4111 = vmatpush1.bf16.msra.mxu0 0
    %4112 = vmatprep.subr.bf16.mxu0 0
    %4113 = vmatpush1.bf16.msra.mxu0 %v4097
    %4114 = vmatprep.subr.bf16.mxu0 0
    %4115 = vmatpush1.bf16.msra.mxu0 %v4095
    %4116 = vmatprep.subr.bf16.mxu0 0
    %4117 = vmatpush1.bf16.msra.mxu0 %v4093
    %4118 = vmatprep.subr.bf16.mxu0 0
    %4119 = vmatpush1.bf16.msra.mxu0 %v4091
    %4120 = vmatprep.subr.bf16.mxu0 0
    %4121 = vmatpush1.bf16.msra.mxu0 %v4089
    %4122 = vmatprep.subr.bf16.mxu0 0
    %4123 = vmatpush2.bf16.msra.mxu0 0
    %4124 = vmatprep.subr.bf16.mxu0 0
    %4125 = vmatpush2.bf16.msra.mxu0 0
    %4126 = vmatprep.subr.bf16.mxu0 0
    %4127 = vmatpush2.bf16.msra.mxu0 0
    %4128 = vmatprep.subr.bf16.mxu0 0
    %4129 = vmatpush2.bf16.msra.mxu0 0
    %4130 = vmatprep.subr.bf16.mxu0 0
    %4131 = vmatpush2.bf16.msra.mxu0 0
    %4132 = vmatprep.subr.bf16.mxu0 0
    %4133 = vmatpush2.bf16.msra.mxu0 0
    %4134 = vmatprep.subr.bf16.mxu0 0
    %4135 = vmatpush2.bf16.msra.mxu0 0
    %4136 = vmatprep.subr.bf16.mxu0 0
    %4137 = vmatpush2.bf16.msra.mxu0 0
    %4138 = vmatprep.mubr.bf16.mxu0 0
    %4139 = vmatmul.mubr.bf16.gmra.mxu0 %v4104
    %v4140 = vpop.f32.mrf.mxu0
    %v4141 = vadd.f32 0.0, %v4140
    %v4142 = vpop.f32.mrf.mxu0
    %v4143 = vpop.f32.mrf.mxu0
    %v4144 = vpop.f32.mrf.mxu0
    %4145 = vdwg.mxu0
    %4151 = vrot.lane.b32.xlu0 %v3600, 48
    %v4152 = vpop.permute.xlu0 %4151
    %4153 = vrot.lane.b32.xlu0 %v3624, 48
    %v4154 = vpop.permute.xlu0 %4153
    %4155 = vrot.lane.b32.xlu0 %v3648, 48
    %v4156 = vpop.permute.xlu0 %4155
    %4157 = vrot.lane.b32.xlu0 %v3672, 48
    %v4158 = vpop.permute.xlu0 %4157
    %4159 = vrot.lane.b32.xlu0 %v3696, 48
    %v4160 = vpop.permute.xlu0 %4159
    %v4167 = vsel %vm1433, %v3704, 0
    %4169 = vmatprep.subr.bf16.mxu0 0
    %4170 = vmatpush1.bf16.msra.mxu0 0
    %4171 = vmatprep.subr.bf16.mxu0 0
    %4172 = vmatpush1.bf16.msra.mxu0 0
    %4173 = vmatprep.subr.bf16.mxu0 0
    %4174 = vmatpush1.bf16.msra.mxu0 0
    %4175 = vmatprep.subr.bf16.mxu0 0
    %4176 = vmatpush1.bf16.msra.mxu0 %v4160
    %4177 = vmatprep.subr.bf16.mxu0 0
    %4178 = vmatpush1.bf16.msra.mxu0 %v4158
    %4179 = vmatprep.subr.bf16.mxu0 0
    %4180 = vmatpush1.bf16.msra.mxu0 %v4156
    %4181 = vmatprep.subr.bf16.mxu0 0
    %4182 = vmatpush1.bf16.msra.mxu0 %v4154
    %4183 = vmatprep.subr.bf16.mxu0 0
    %4184 = vmatpush1.bf16.msra.mxu0 %v4152
    %4185 = vmatprep.subr.bf16.mxu0 0
    %4186 = vmatpush2.bf16.msra.mxu0 0
    %4187 = vmatprep.subr.bf16.mxu0 0
    %4188 = vmatpush2.bf16.msra.mxu0 0
    %4189 = vmatprep.subr.bf16.mxu0 0
    %4190 = vmatpush2.bf16.msra.mxu0 0
    %4191 = vmatprep.subr.bf16.mxu0 0
    %4192 = vmatpush2.bf16.msra.mxu0 0
    %4193 = vmatprep.subr.bf16.mxu0 0
    %4194 = vmatpush2.bf16.msra.mxu0 0
    %4195 = vmatprep.subr.bf16.mxu0 0
    %4196 = vmatpush2.bf16.msra.mxu0 0
    %4197 = vmatprep.subr.bf16.mxu0 0
    %4198 = vmatpush2.bf16.msra.mxu0 0
    %4199 = vmatprep.subr.bf16.mxu0 0
    %4200 = vmatpush2.bf16.msra.mxu0 0
    %4201 = vmatprep.mubr.bf16.mxu0 0
    %4202 = vmatmul.mubr.bf16.gmra.mxu0 %v4167
    %v4203 = vpop.f32.mrf.mxu0
    %v4204 = vadd.f32 0.0, %v4203
    %v4205 = vpop.f32.mrf.mxu0
    %v4206 = vpop.f32.mrf.mxu0
    %v4207 = vpop.f32.mrf.mxu0
    %4208 = vdwg.mxu0
    %v4209 = vld [vmem:[#allocation2] sm:$0xff]
    %v4210 = vld [vmem:[#allocation2 + $0x8] sm:$0xff]
    %v4211 = vld [vmem:[#allocation2 + $0x10] sm:$0xff]
    %v4212 = vld [vmem:[#allocation2 + $0x18] sm:$0xff]
    %v4213 = vld [vmem:[#allocation2 + $0x20] sm:$0xff]
    %v4214 = vld [vmem:[#allocation2 + $0x28] sm:$0xff]
    %v4215 = vld [vmem:[#allocation2 + $0x30] sm:$0xff]
    %v4216 = vld [vmem:[#allocation2 + $0x38] sm:$0xff]
    %vm4217 = vcmp.gt.f32.partialorder %v4209, 0.0
    %vm4218 = vcmp.gt.f32.partialorder %v4210, 0.0
    %vm4219 = vcmp.gt.f32.partialorder %v4211, 0.0
    %vm4220 = vcmp.gt.f32.partialorder %v4212, 0.0
    %vm4221 = vcmp.gt.f32.partialorder %v4213, 0.0
    %vm4222 = vcmp.gt.f32.partialorder %v4214, 0.0
    %vm4223 = vcmp.gt.f32.partialorder %v4215, 0.0
    %vm4224 = vcmp.gt.f32.partialorder %v4216, 0.0
    %v4225 = vsel %vm4217, %v3294, -9e+15
    %v4226 = vsel %vm4218, %v3295, -9e+15
    %v4227 = vsel %vm4219, %v3296, -9e+15
    %v4228 = vsel %vm4220, %v3297, -9e+15
    %v4229 = vsel %vm4221, %v3298, -9e+15
    %v4230 = vsel %vm4222, %v3299, -9e+15
    %v4231 = vsel %vm4223, %v3300, -9e+15
    %v4232 = vsel %vm4224, %v3301, -9e+15
    %vm4233 = vcmask 64512
    %v4235 = vsel %vm4233, %v4225, 0
    %4237 = vmatprep.subr.mxu0 0.0
    %4238 = vmatpush1.msra.mxu0 0.0
    %4239 = vmatprep.subr.mxu0 0.0
    %4240 = vmatpush1.msra.mxu0 0.0
    %4241 = vmatprep.subr.mxu0 0.0
    %4242 = vmatpush1.msra.mxu0 0.0
    %4243 = vmatprep.subr.mxu0 0.0
    %4244 = vmatpush1.msra.mxu0 0.0
    %4245 = vmatprep.subr.mxu0 0.0
    %4246 = vmatpush1.msra.mxu0 0.0
    %4247 = vmatprep.subr.mxu0 0.0
    %4248 = vmatpush1.msra.mxu0 0.0
    %4249 = vmatprep.subr.mxu0 0.0
    %4250 = vmatpush1.msra.mxu0 0.0
    %4251 = vmatprep.subr.mxu0 0.0
    %4252 = vmatpush1.msra.mxu0 0.0
    %4253 = vmatprep.subr.mxu0 0.0
    %4254 = vmatpush1.msra.mxu0 0.0
    %4255 = vmatprep.subr.mxu0 0.0
    %4256 = vmatpush1.msra.mxu0 0.0
    %4257 = vmatprep.subr.mxu0 0.0
    %4258 = vmatpush1.msra.mxu0 0.0
    %4259 = vmatprep.subr.mxu0 0.0
    %4260 = vmatpush1.msra.mxu0 0.0
    %4261 = vmatprep.subr.mxu0 0.0
    %4262 = vmatpush1.msra.mxu0 0.0
    %4263 = vmatprep.subr.mxu0 0.0
    %4264 = vmatpush1.msra.mxu0 0.0
    %4265 = vmatprep.subr.mxu0 0.0
    %4266 = vmatpush1.msra.mxu0 0.0
    %4267 = vmatprep.subr.mxu0 0.0
    %v4268 = vand.u32 %v3763, 4294901760
    %4269 = vmatpush1.msra.mxu0 %v4268
    %4270 = vmatprep.subr.mxu0 0.0
    %4271 = vmatpush2.msra.mxu0 0.0
    %4272 = vmatprep.subr.mxu0 0.0
    %4273 = vmatpush2.msra.mxu0 0.0
    %4274 = vmatprep.subr.mxu0 0.0
    %4275 = vmatpush2.msra.mxu0 0.0
    %4276 = vmatprep.subr.mxu0 0.0
    %4277 = vmatpush2.msra.mxu0 0.0
    %4278 = vmatprep.subr.mxu0 0.0
    %4279 = vmatpush2.msra.mxu0 0.0
    %4280 = vmatprep.subr.mxu0 0.0
    %4281 = vmatpush2.msra.mxu0 0.0
    %4282 = vmatprep.subr.mxu0 0.0
    %4283 = vmatpush2.msra.mxu0 0.0
    %4284 = vmatprep.subr.mxu0 0.0
    %4285 = vmatpush2.msra.mxu0 0.0
    %4286 = vmatprep.subr.mxu0 0.0
    %4287 = vmatpush2.msra.mxu0 0.0
    %4288 = vmatprep.subr.mxu0 0.0
    %4289 = vmatpush2.msra.mxu0 0.0
    %4290 = vmatprep.subr.mxu0 0.0
    %4291 = vmatpush2.msra.mxu0 0.0
    %4292 = vmatprep.subr.mxu0 0.0
    %4293 = vmatpush2.msra.mxu0 0.0
    %4294 = vmatprep.subr.mxu0 0.0
    %4295 = vmatpush2.msra.mxu0 0.0
    %4296 = vmatprep.subr.mxu0 0.0
    %4297 = vmatpush2.msra.mxu0 0.0
    %4298 = vmatprep.subr.mxu0 0.0
    %4299 = vmatpush2.msra.mxu0 0.0
    %4300 = vmatprep.subr.mxu0 0.0
    %4301 = vmatpush2.msra.mxu0 0.0
    %4302 = vmatprep.mubr.f32.mxu0 0.0
    %v4303 = vand.u32 %v4235, 4294901760
    %v4304 = vsub.f32 %v4235, %v4303
    %v4305 = vand.u32 %v4304, 4294901760
    %v4306 = vsub.f32 %v4304, %v4305
    %v4307 = vand.u32 %v4306, 4294901760
    %4308 = vmatmul.mubr.f32.gmra.mxu0 %v4307
    %v4309 = vpop.f32.mrf.mxu0
    %v4310 = vadd.f32 0.0, %v4309
    %v4311 = vpop.f32.mrf.mxu0
    %4312 = vdwg.mxu0
    %4313 = vmatprep.subr.mxu0 0.0
    %4314 = vmatpush1.msra.mxu0 0.0
    %4315 = vmatprep.subr.mxu0 0.0
    %4316 = vmatpush1.msra.mxu0 0.0
    %4317 = vmatprep.subr.mxu0 0.0
    %4318 = vmatpush1.msra.mxu0 0.0
    %4319 = vmatprep.subr.mxu0 0.0
    %4320 = vmatpush1.msra.mxu0 0.0
    %4321 = vmatprep.subr.mxu0 0.0
    %4322 = vmatpush1.msra.mxu0 0.0
    %4323 = vmatprep.subr.mxu0 0.0
    %4324 = vmatpush1.msra.mxu0 0.0
    %4325 = vmatprep.subr.mxu0 0.0
    %4326 = vmatpush1.msra.mxu0 0.0
    %4327 = vmatprep.subr.mxu0 0.0
    %4328 = vmatpush1.msra.mxu0 0.0
    %4329 = vmatprep.subr.mxu0 0.0
    %4330 = vmatpush1.msra.mxu0 0.0
    %4331 = vmatprep.subr.mxu0 0.0
    %4332 = vmatpush1.msra.mxu0 0.0
    %4333 = vmatprep.subr.mxu0 0.0
    %4334 = vmatpush1.msra.mxu0 0.0
    %4335 = vmatprep.subr.mxu0 0.0
    %4336 = vmatpush1.msra.mxu0 0.0
    %4337 = vmatprep.subr.mxu0 0.0
    %4338 = vmatpush1.msra.mxu0 0.0
    %4339 = vmatprep.subr.mxu0 0.0
    %4340 = vmatpush1.msra.mxu0 0.0
    %4341 = vmatprep.subr.mxu0 0.0
    %4342 = vmatpush1.msra.mxu0 0.0
    %4343 = vmatprep.subr.mxu0 0.0
    %v4344 = vand.u32 %v3763, 4294901760
    %v4345 = vsub.f32 %v3763, %v4344
    %v4346 = vand.u32 %v4345, 4294901760
    %v4347 = vsub.f32 %v4345, %v4346
    %v4348 = vand.u32 %v4347, 4294901760
    %4349 = vmatpush1.msra.mxu0 %v4348
    %4350 = vmatprep.subr.mxu0 0.0
    %4351 = vmatpush2.msra.mxu0 0.0
    %4352 = vmatprep.subr.mxu0 0.0
    %4353 = vmatpush2.msra.mxu0 0.0
    %4354 = vmatprep.subr.mxu0 0.0
    %4355 = vmatpush2.msra.mxu0 0.0
    %4356 = vmatprep.subr.mxu0 0.0
    %4357 = vmatpush2.msra.mxu0 0.0
    %4358 = vmatprep.subr.mxu0 0.0
    %4359 = vmatpush2.msra.mxu0 0.0
    %4360 = vmatprep.subr.mxu0 0.0
    %4361 = vmatpush2.msra.mxu0 0.0
    %4362 = vmatprep.subr.mxu0 0.0
    %4363 = vmatpush2.msra.mxu0 0.0
    %4364 = vmatprep.subr.mxu0 0.0
    %4365 = vmatpush2.msra.mxu0 0.0
    %4366 = vmatprep.subr.mxu0 0.0
    %4367 = vmatpush2.msra.mxu0 0.0
    %4368 = vmatprep.subr.mxu0 0.0
    %4369 = vmatpush2.msra.mxu0 0.0
    %4370 = vmatprep.subr.mxu0 0.0
    %4371 = vmatpush2.msra.mxu0 0.0
    %4372 = vmatprep.subr.mxu0 0.0
    %4373 = vmatpush2.msra.mxu0 0.0
    %4374 = vmatprep.subr.mxu0 0.0
    %4375 = vmatpush2.msra.mxu0 0.0
    %4376 = vmatprep.subr.mxu0 0.0
    %4377 = vmatpush2.msra.mxu0 0.0
    %4378 = vmatprep.subr.mxu0 0.0
    %4379 = vmatpush2.msra.mxu0 0.0
    %4380 = vmatprep.subr.mxu0 0.0
    %4381 = vmatpush2.msra.mxu0 0.0
    %4382 = vmatprep.mubr.f32.mxu0 0.0
    %v4383 = vand.u32 %v4235, 4294901760
    %4384 = vmatmul.mubr.f32.gmra.mxu0 %v4383
    %v4385 = vpop.f32.mrf.mxu0
    %v4386 = vadd.f32 %v4310, %v4385
    %v4387 = vpop.f32.mrf.mxu0
    %4388 = vdwg.mxu0
    %4389 = vmatprep.subr.mxu0 0.0
    %4390 = vmatpush1.msra.mxu0 0.0
    %4391 = vmatprep.subr.mxu0 0.0
    %4392 = vmatpush1.msra.mxu0 0.0
    %4393 = vmatprep.subr.mxu0 0.0
    %4394 = vmatpush1.msra.mxu0 0.0
    %4395 = vmatprep.subr.mxu0 0.0
    %4396 = vmatpush1.msra.mxu0 0.0
    %4397 = vmatprep.subr.mxu0 0.0
    %4398 = vmatpush1.msra.mxu0 0.0
    %4399 = vmatprep.subr.mxu0 0.0
    %4400 = vmatpush1.msra.mxu0 0.0
    %4401 = vmatprep.subr.mxu0 0.0
    %4402 = vmatpush1.msra.mxu0 0.0
    %4403 = vmatprep.subr.mxu0 0.0
    %4404 = vmatpush1.msra.mxu0 0.0
    %4405 = vmatprep.subr.mxu0 0.0
    %4406 = vmatpush1.msra.mxu0 0.0
    %4407 = vmatprep.subr.mxu0 0.0
    %4408 = vmatpush1.msra.mxu0 0.0
    %4409 = vmatprep.subr.mxu0 0.0
    %4410 = vmatpush1.msra.mxu0 0.0
    %4411 = vmatprep.subr.mxu0 0.0
    %4412 = vmatpush1.msra.mxu0 0.0
    %4413 = vmatprep.subr.mxu0 0.0
    %4414 = vmatpush1.msra.mxu0 0.0
    %4415 = vmatprep.subr.mxu0 0.0
    %4416 = vmatpush1.msra.mxu0 0.0
    %4417 = vmatprep.subr.mxu0 0.0
    %4418 = vmatpush1.msra.mxu0 0.0
    %4419 = vmatprep.subr.mxu0 0.0
    %v4420 = vand.u32 %v3763, 4294901760
    %v4421 = vsub.f32 %v3763, %v4420
    %4422 = vmatpush1.msra.mxu0 %v4421
    %4423 = vmatprep.subr.mxu0 0.0
    %4424 = vmatpush2.msra.mxu0 0.0
    %4425 = vmatprep.subr.mxu0 0.0
    %4426 = vmatpush2.msra.mxu0 0.0
    %4427 = vmatprep.subr.mxu0 0.0
    %4428 = vmatpush2.msra.mxu0 0.0
    %4429 = vmatprep.subr.mxu0 0.0
    %4430 = vmatpush2.msra.mxu0 0.0
    %4431 = vmatprep.subr.mxu0 0.0
    %4432 = vmatpush2.msra.mxu0 0.0
    %4433 = vmatprep.subr.mxu0 0.0
    %4434 = vmatpush2.msra.mxu0 0.0
    %4435 = vmatprep.subr.mxu0 0.0
    %4436 = vmatpush2.msra.mxu0 0.0
    %4437 = vmatprep.subr.mxu0 0.0
    %4438 = vmatpush2.msra.mxu0 0.0
    %4439 = vmatprep.subr.mxu0 0.0
    %4440 = vmatpush2.msra.mxu0 0.0
    %4441 = vmatprep.subr.mxu0 0.0
    %4442 = vmatpush2.msra.mxu0 0.0
    %4443 = vmatprep.subr.mxu0 0.0
    %4444 = vmatpush2.msra.mxu0 0.0
    %4445 = vmatprep.subr.mxu0 0.0
    %4446 = vmatpush2.msra.mxu0 0.0
    %4447 = vmatprep.subr.mxu0 0.0
    %4448 = vmatpush2.msra.mxu0 0.0
    %4449 = vmatprep.subr.mxu0 0.0
    %4450 = vmatpush2.msra.mxu0 0.0
    %4451 = vmatprep.subr.mxu0 0.0
    %4452 = vmatpush2.msra.mxu0 0.0
    %4453 = vmatprep.subr.mxu0 0.0
    %4454 = vmatpush2.msra.mxu0 0.0
    %4455 = vmatprep.mubr.f32.mxu0 0.0
    %v4456 = vand.u32 %v4235, 4294901760
    %v4457 = vsub.f32 %v4235, %v4456
    %4458 = vmatmul.mubr.f32.gmra.mxu0 %v4457
    %v4459 = vpop.f32.mrf.mxu0
    %v4460 = vadd.f32 %v4386, %v4459
    %v4461 = vpop.f32.mrf.mxu0
    %4462 = vdwg.mxu0
    %4463 = vmatprep.subr.mxu0 0.0
    %4464 = vmatpush1.msra.mxu0 0.0
    %4465 = vmatprep.subr.mxu0 0.0
    %4466 = vmatpush1.msra.mxu0 0.0
    %4467 = vmatprep.subr.mxu0 0.0
    %4468 = vmatpush1.msra.mxu0 0.0
    %4469 = vmatprep.subr.mxu0 0.0
    %4470 = vmatpush1.msra.mxu0 0.0
    %4471 = vmatprep.subr.mxu0 0.0
    %4472 = vmatpush1.msra.mxu0 0.0
    %4473 = vmatprep.subr.mxu0 0.0
    %4474 = vmatpush1.msra.mxu0 0.0
    %4475 = vmatprep.subr.mxu0 0.0
    %4476 = vmatpush1.msra.mxu0 0.0
    %4477 = vmatprep.subr.mxu0 0.0
    %4478 = vmatpush1.msra.mxu0 0.0
    %4479 = vmatprep.subr.mxu0 0.0
    %4480 = vmatpush1.msra.mxu0 0.0
    %4481 = vmatprep.subr.mxu0 0.0
    %4482 = vmatpush1.msra.mxu0 0.0
    %4483 = vmatprep.subr.mxu0 0.0
    %4484 = vmatpush1.msra.mxu0 0.0
    %4485 = vmatprep.subr.mxu0 0.0
    %4486 = vmatpush1.msra.mxu0 0.0
    %4487 = vmatprep.subr.mxu0 0.0
    %4488 = vmatpush1.msra.mxu0 0.0
    %4489 = vmatprep.subr.mxu0 0.0
    %4490 = vmatpush1.msra.mxu0 0.0
    %4491 = vmatprep.subr.mxu0 0.0
    %4492 = vmatpush1.msra.mxu0 0.0
    %4493 = vmatprep.subr.mxu0 0.0
    %v4494 = vand.u32 %v3763, 4294901760
    %4495 = vmatpush1.msra.mxu0 %v4494
    %4496 = vmatprep.subr.mxu0 0.0
    %4497 = vmatpush2.msra.mxu0 0.0
    %4498 = vmatprep.subr.mxu0 0.0
    %4499 = vmatpush2.msra.mxu0 0.0
    %4500 = vmatprep.subr.mxu0 0.0
    %4501 = vmatpush2.msra.mxu0 0.0
    %4502 = vmatprep.subr.mxu0 0.0
    %4503 = vmatpush2.msra.mxu0 0.0
    %4504 = vmatprep.subr.mxu0 0.0
    %4505 = vmatpush2.msra.mxu0 0.0
    %4506 = vmatprep.subr.mxu0 0.0
    %4507 = vmatpush2.msra.mxu0 0.0
    %4508 = vmatprep.subr.mxu0 0.0
    %4509 = vmatpush2.msra.mxu0 0.0
    %4510 = vmatprep.subr.mxu0 0.0
    %4511 = vmatpush2.msra.mxu0 0.0
    %4512 = vmatprep.subr.mxu0 0.0
    %4513 = vmatpush2.msra.mxu0 0.0
    %4514 = vmatprep.subr.mxu0 0.0
    %4515 = vmatpush2.msra.mxu0 0.0
    %4516 = vmatprep.subr.mxu0 0.0
    %4517 = vmatpush2.msra.mxu0 0.0
    %4518 = vmatprep.subr.mxu0 0.0
    %4519 = vmatpush2.msra.mxu0 0.0
    %4520 = vmatprep.subr.mxu0 0.0
    %4521 = vmatpush2.msra.mxu0 0.0
    %4522 = vmatprep.subr.mxu0 0.0
    %4523 = vmatpush2.msra.mxu0 0.0
    %4524 = vmatprep.subr.mxu0 0.0
    %4525 = vmatpush2.msra.mxu0 0.0
    %4526 = vmatprep.subr.mxu0 0.0
    %4527 = vmatpush2.msra.mxu0 0.0
    %4528 = vmatprep.mubr.f32.mxu0 0.0
    %v4529 = vand.u32 %v4235, 4294901760
    %v4530 = vsub.f32 %v4235, %v4529
    %v4531 = vand.u32 %v4530, 4294901760
    %4532 = vmatmul.mubr.f32.gmra.mxu0 %v4531
    %v4533 = vpop.f32.mrf.mxu0
    %v4534 = vadd.f32 %v4460, %v4533
    %v4535 = vpop.f32.mrf.mxu0
    %4536 = vdwg.mxu0
    %4537 = vmatprep.subr.mxu0 0.0
    %4538 = vmatpush1.msra.mxu0 0.0
    %4539 = vmatprep.subr.mxu0 0.0
    %4540 = vmatpush1.msra.mxu0 0.0
    %4541 = vmatprep.subr.mxu0 0.0
    %4542 = vmatpush1.msra.mxu0 0.0
    %4543 = vmatprep.subr.mxu0 0.0
    %4544 = vmatpush1.msra.mxu0 0.0
    %4545 = vmatprep.subr.mxu0 0.0
    %4546 = vmatpush1.msra.mxu0 0.0
    %4547 = vmatprep.subr.mxu0 0.0
    %4548 = vmatpush1.msra.mxu0 0.0
    %4549 = vmatprep.subr.mxu0 0.0
    %4550 = vmatpush1.msra.mxu0 0.0
    %4551 = vmatprep.subr.mxu0 0.0
    %4552 = vmatpush1.msra.mxu0 0.0
    %4553 = vmatprep.subr.mxu0 0.0
    %4554 = vmatpush1.msra.mxu0 0.0
    %4555 = vmatprep.subr.mxu0 0.0
    %4556 = vmatpush1.msra.mxu0 0.0
    %4557 = vmatprep.subr.mxu0 0.0
    %4558 = vmatpush1.msra.mxu0 0.0
    %4559 = vmatprep.subr.mxu0 0.0
    %4560 = vmatpush1.msra.mxu0 0.0
    %4561 = vmatprep.subr.mxu0 0.0
    %4562 = vmatpush1.msra.mxu0 0.0
    %4563 = vmatprep.subr.mxu0 0.0
    %4564 = vmatpush1.msra.mxu0 0.0
    %4565 = vmatprep.subr.mxu0 0.0
    %4566 = vmatpush1.msra.mxu0 0.0
    %4567 = vmatprep.subr.mxu0 0.0
    %v4568 = vand.u32 %v3763, 4294901760
    %v4569 = vsub.f32 %v3763, %v4568
    %v4570 = vand.u32 %v4569, 4294901760
    %4571 = vmatpush1.msra.mxu0 %v4570
    %4572 = vmatprep.subr.mxu0 0.0
    %4573 = vmatpush2.msra.mxu0 0.0
    %4574 = vmatprep.subr.mxu0 0.0
    %4575 = vmatpush2.msra.mxu0 0.0
    %4576 = vmatprep.subr.mxu0 0.0
    %4577 = vmatpush2.msra.mxu0 0.0
    %4578 = vmatprep.subr.mxu0 0.0
    %4579 = vmatpush2.msra.mxu0 0.0
    %4580 = vmatprep.subr.mxu0 0.0
    %4581 = vmatpush2.msra.mxu0 0.0
    %4582 = vmatprep.subr.mxu0 0.0
    %4583 = vmatpush2.msra.mxu0 0.0
    %4584 = vmatprep.subr.mxu0 0.0
    %4585 = vmatpush2.msra.mxu0 0.0
    %4586 = vmatprep.subr.mxu0 0.0
    %4587 = vmatpush2.msra.mxu0 0.0
    %4588 = vmatprep.subr.mxu0 0.0
    %4589 = vmatpush2.msra.mxu0 0.0
    %4590 = vmatprep.subr.mxu0 0.0
    %4591 = vmatpush2.msra.mxu0 0.0
    %4592 = vmatprep.subr.mxu0 0.0
    %4593 = vmatpush2.msra.mxu0 0.0
    %4594 = vmatprep.subr.mxu0 0.0
    %4595 = vmatpush2.msra.mxu0 0.0
    %4596 = vmatprep.subr.mxu0 0.0
    %4597 = vmatpush2.msra.mxu0 0.0
    %4598 = vmatprep.subr.mxu0 0.0
    %4599 = vmatpush2.msra.mxu0 0.0
    %4600 = vmatprep.subr.mxu0 0.0
    %4601 = vmatpush2.msra.mxu0 0.0
    %4602 = vmatprep.subr.mxu0 0.0
    %4603 = vmatpush2.msra.mxu0 0.0
    %4604 = vmatprep.mubr.f32.mxu0 0.0
    %v4605 = vand.u32 %v4235, 4294901760
    %4606 = vmatmul.mubr.f32.gmra.mxu0 %v4605
    %v4607 = vpop.f32.mrf.mxu0
    %v4608 = vadd.f32 %v4534, %v4607
    %v4609 = vpop.f32.mrf.mxu0
    %4610 = vdwg.mxu0
    %4611 = vmatprep.subr.mxu0 0.0
    %4612 = vmatpush1.msra.mxu0 0.0
    %4613 = vmatprep.subr.mxu0 0.0
    %4614 = vmatpush1.msra.mxu0 0.0
    %4615 = vmatprep.subr.mxu0 0.0
    %4616 = vmatpush1.msra.mxu0 0.0
    %4617 = vmatprep.subr.mxu0 0.0
    %4618 = vmatpush1.msra.mxu0 0.0
    %4619 = vmatprep.subr.mxu0 0.0
    %4620 = vmatpush1.msra.mxu0 0.0
    %4621 = vmatprep.subr.mxu0 0.0
    %4622 = vmatpush1.msra.mxu0 0.0
    %4623 = vmatprep.subr.mxu0 0.0
    %4624 = vmatpush1.msra.mxu0 0.0
    %4625 = vmatprep.subr.mxu0 0.0
    %4626 = vmatpush1.msra.mxu0 0.0
    %4627 = vmatprep.subr.mxu0 0.0
    %4628 = vmatpush1.msra.mxu0 0.0
    %4629 = vmatprep.subr.mxu0 0.0
    %4630 = vmatpush1.msra.mxu0 0.0
    %4631 = vmatprep.subr.mxu0 0.0
    %4632 = vmatpush1.msra.mxu0 0.0
    %4633 = vmatprep.subr.mxu0 0.0
    %4634 = vmatpush1.msra.mxu0 0.0
    %4635 = vmatprep.subr.mxu0 0.0
    %4636 = vmatpush1.msra.mxu0 0.0
    %4637 = vmatprep.subr.mxu0 0.0
    %4638 = vmatpush1.msra.mxu0 0.0
    %4639 = vmatprep.subr.mxu0 0.0
    %4640 = vmatpush1.msra.mxu0 0.0
    %4641 = vmatprep.subr.mxu0 0.0
    %v4642 = vand.u32 %v3763, 4294901760
    %4643 = vmatpush1.msra.mxu0 %v4642
    %4644 = vmatprep.subr.mxu0 0.0
    %4645 = vmatpush2.msra.mxu0 0.0
    %4646 = vmatprep.subr.mxu0 0.0
    %4647 = vmatpush2.msra.mxu0 0.0
    %4648 = vmatprep.subr.mxu0 0.0
    %4649 = vmatpush2.msra.mxu0 0.0
    %4650 = vmatprep.subr.mxu0 0.0
    %4651 = vmatpush2.msra.mxu0 0.0
    %4652 = vmatprep.subr.mxu0 0.0
    %4653 = vmatpush2.msra.mxu0 0.0
    %4654 = vmatprep.subr.mxu0 0.0
    %4655 = vmatpush2.msra.mxu0 0.0
    %4656 = vmatprep.subr.mxu0 0.0
    %4657 = vmatpush2.msra.mxu0 0.0
    %4658 = vmatprep.subr.mxu0 0.0
    %4659 = vmatpush2.msra.mxu0 0.0
    %4660 = vmatprep.subr.mxu0 0.0
    %4661 = vmatpush2.msra.mxu0 0.0
    %4662 = vmatprep.subr.mxu0 0.0
    %4663 = vmatpush2.msra.mxu0 0.0
    %4664 = vmatprep.subr.mxu0 0.0
    %4665 = vmatpush2.msra.mxu0 0.0
    %4666 = vmatprep.subr.mxu0 0.0
    %4667 = vmatpush2.msra.mxu0 0.0
    %4668 = vmatprep.subr.mxu0 0.0
    %4669 = vmatpush2.msra.mxu0 0.0
    %4670 = vmatprep.subr.mxu0 0.0
    %4671 = vmatpush2.msra.mxu0 0.0
    %4672 = vmatprep.subr.mxu0 0.0
    %4673 = vmatpush2.msra.mxu0 0.0
    %4674 = vmatprep.subr.mxu0 0.0
    %4675 = vmatpush2.msra.mxu0 0.0
    %4676 = vmatprep.mubr.f32.mxu0 0.0
    %v4677 = vand.u32 %v4235, 4294901760
    %4678 = vmatmul.mubr.f32.gmra.mxu0 %v4677
    %v4679 = vpop.f32.mrf.mxu0
    %v4680 = vadd.f32 %v4608, %v4679
    %v4681 = vpop.f32.mrf.mxu0
    %4682 = vdwg.mxu0
    %v4684 = vsel %vm4233, %v4226, 0
    %4686 = vmatprep.subr.mxu0 0.0
    %4687 = vmatpush1.msra.mxu0 0.0
    %4688 = vmatprep.subr.mxu0 0.0
    %4689 = vmatpush1.msra.mxu0 0.0
    %4690 = vmatprep.subr.mxu0 0.0
    %4691 = vmatpush1.msra.mxu0 0.0
    %4692 = vmatprep.subr.mxu0 0.0
    %4693 = vmatpush1.msra.mxu0 0.0
    %4694 = vmatprep.subr.mxu0 0.0
    %4695 = vmatpush1.msra.mxu0 0.0
    %4696 = vmatprep.subr.mxu0 0.0
    %4697 = vmatpush1.msra.mxu0 0.0
    %4698 = vmatprep.subr.mxu0 0.0
    %4699 = vmatpush1.msra.mxu0 0.0
    %4700 = vmatprep.subr.mxu0 0.0
    %4701 = vmatpush1.msra.mxu0 0.0
    %4702 = vmatprep.subr.mxu0 0.0
    %4703 = vmatpush1.msra.mxu0 0.0
    %4704 = vmatprep.subr.mxu0 0.0
    %4705 = vmatpush1.msra.mxu0 0.0
    %4706 = vmatprep.subr.mxu0 0.0
    %4707 = vmatpush1.msra.mxu0 0.0
    %4708 = vmatprep.subr.mxu0 0.0
    %4709 = vmatpush1.msra.mxu0 0.0
    %4710 = vmatprep.subr.mxu0 0.0
    %4711 = vmatpush1.msra.mxu0 0.0
    %4712 = vmatprep.subr.mxu0 0.0
    %4713 = vmatpush1.msra.mxu0 0.0
    %4714 = vmatprep.subr.mxu0 0.0
    %4715 = vmatpush1.msra.mxu0 0.0
    %4716 = vmatprep.subr.mxu0 0.0
    %v4717 = vand.u32 %v3826, 4294901760
    %4718 = vmatpush1.msra.mxu0 %v4717
    %4719 = vmatprep.subr.mxu0 0.0
    %4720 = vmatpush2.msra.mxu0 0.0
    %4721 = vmatprep.subr.mxu0 0.0
    %4722 = vmatpush2.msra.mxu0 0.0
    %4723 = vmatprep.subr.mxu0 0.0
    %4724 = vmatpush2.msra.mxu0 0.0
    %4725 = vmatprep.subr.mxu0 0.0
    %4726 = vmatpush2.msra.mxu0 0.0
    %4727 = vmatprep.subr.mxu0 0.0
    %4728 = vmatpush2.msra.mxu0 0.0
    %4729 = vmatprep.subr.mxu0 0.0
    %4730 = vmatpush2.msra.mxu0 0.0
    %4731 = vmatprep.subr.mxu0 0.0
    %4732 = vmatpush2.msra.mxu0 0.0
    %4733 = vmatprep.subr.mxu0 0.0
    %4734 = vmatpush2.msra.mxu0 0.0
    %4735 = vmatprep.subr.mxu0 0.0
    %4736 = vmatpush2.msra.mxu0 0.0
    %4737 = vmatprep.subr.mxu0 0.0
    %4738 = vmatpush2.msra.mxu0 0.0
    %4739 = vmatprep.subr.mxu0 0.0
    %4740 = vmatpush2.msra.mxu0 0.0
    %4741 = vmatprep.subr.mxu0 0.0
    %4742 = vmatpush2.msra.mxu0 0.0
    %4743 = vmatprep.subr.mxu0 0.0
    %4744 = vmatpush2.msra.mxu0 0.0
    %4745 = vmatprep.subr.mxu0 0.0
    %4746 = vmatpush2.msra.mxu0 0.0
    %4747 = vmatprep.subr.mxu0 0.0
    %4748 = vmatpush2.msra.mxu0 0.0
    %4749 = vmatprep.subr.mxu0 0.0
    %4750 = vmatpush2.msra.mxu0 0.0
    %4751 = vmatprep.mubr.f32.mxu0 0.0
    %v4752 = vand.u32 %v4684, 4294901760
    %v4753 = vsub.f32 %v4684, %v4752
    %v4754 = vand.u32 %v4753, 4294901760
    %v4755 = vsub.f32 %v4753, %v4754
    %v4756 = vand.u32 %v4755, 4294901760
    %4757 = vmatmul.mubr.f32.gmra.mxu0 %v4756
    %v4758 = vpop.f32.mrf.mxu0
    %v4759 = vadd.f32 0.0, %v4758
    %v4760 = vpop.f32.mrf.mxu0
    %4761 = vdwg.mxu0
    %4762 = vmatprep.subr.mxu0 0.0
    %4763 = vmatpush1.msra.mxu0 0.0
    %4764 = vmatprep.subr.mxu0 0.0
    %4765 = vmatpush1.msra.mxu0 0.0
    %4766 = vmatprep.subr.mxu0 0.0
    %4767 = vmatpush1.msra.mxu0 0.0
    %4768 = vmatprep.subr.mxu0 0.0
    %4769 = vmatpush1.msra.mxu0 0.0
    %4770 = vmatprep.subr.mxu0 0.0
    %4771 = vmatpush1.msra.mxu0 0.0
    %4772 = vmatprep.subr.mxu0 0.0
    %4773 = vmatpush1.msra.mxu0 0.0
    %4774 = vmatprep.subr.mxu0 0.0
    %4775 = vmatpush1.msra.mxu0 0.0
    %4776 = vmatprep.subr.mxu0 0.0
    %4777 = vmatpush1.msra.mxu0 0.0
    %4778 = vmatprep.subr.mxu0 0.0
    %4779 = vmatpush1.msra.mxu0 0.0
    %4780 = vmatprep.subr.mxu0 0.0
    %4781 = vmatpush1.msra.mxu0 0.0
    %4782 = vmatprep.subr.mxu0 0.0
    %4783 = vmatpush1.msra.mxu0 0.0
    %4784 = vmatprep.subr.mxu0 0.0
    %4785 = vmatpush1.msra.mxu0 0.0
    %4786 = vmatprep.subr.mxu0 0.0
    %4787 = vmatpush1.msra.mxu0 0.0
    %4788 = vmatprep.subr.mxu0 0.0
    %4789 = vmatpush1.msra.mxu0 0.0
    %4790 = vmatprep.subr.mxu0 0.0
    %4791 = vmatpush1.msra.mxu0 0.0
    %4792 = vmatprep.subr.mxu0 0.0
    %v4793 = vand.u32 %v3826, 4294901760
    %v4794 = vsub.f32 %v3826, %v4793
    %v4795 = vand.u32 %v4794, 4294901760
    %v4796 = vsub.f32 %v4794, %v4795
    %v4797 = vand.u32 %v4796, 4294901760
    %4798 = vmatpush1.msra.mxu0 %v4797
    %4799 = vmatprep.subr.mxu0 0.0
    %4800 = vmatpush2.msra.mxu0 0.0
    %4801 = vmatprep.subr.mxu0 0.0
    %4802 = vmatpush2.msra.mxu0 0.0
    %4803 = vmatprep.subr.mxu0 0.0
    %4804 = vmatpush2.msra.mxu0 0.0
    %4805 = vmatprep.subr.mxu0 0.0
    %4806 = vmatpush2.msra.mxu0 0.0
    %4807 = vmatprep.subr.mxu0 0.0
    %4808 = vmatpush2.msra.mxu0 0.0
    %4809 = vmatprep.subr.mxu0 0.0
    %4810 = vmatpush2.msra.mxu0 0.0
    %4811 = vmatprep.subr.mxu0 0.0
    %4812 = vmatpush2.msra.mxu0 0.0
    %4813 = vmatprep.subr.mxu0 0.0
    %4814 = vmatpush2.msra.mxu0 0.0
    %4815 = vmatprep.subr.mxu0 0.0
    %4816 = vmatpush2.msra.mxu0 0.0
    %4817 = vmatprep.subr.mxu0 0.0
    %4818 = vmatpush2.msra.mxu0 0.0
    %4819 = vmatprep.subr.mxu0 0.0
    %4820 = vmatpush2.msra.mxu0 0.0
    %4821 = vmatprep.subr.mxu0 0.0
    %4822 = vmatpush2.msra.mxu0 0.0
    %4823 = vmatprep.subr.mxu0 0.0
    %4824 = vmatpush2.msra.mxu0 0.0
    %4825 = vmatprep.subr.mxu0 0.0
    %4826 = vmatpush2.msra.mxu0 0.0
    %4827 = vmatprep.subr.mxu0 0.0
    %4828 = vmatpush2.msra.mxu0 0.0
    %4829 = vmatprep.subr.mxu0 0.0
    %4830 = vmatpush2.msra.mxu0 0.0
    %4831 = vmatprep.mubr.f32.mxu0 0.0
    %v4832 = vand.u32 %v4684, 4294901760
    %4833 = vmatmul.mubr.f32.gmra.mxu0 %v4832
    %v4834 = vpop.f32.mrf.mxu0
    %v4835 = vadd.f32 %v4759, %v4834
    %v4836 = vpop.f32.mrf.mxu0
    %4837 = vdwg.mxu0
    %4838 = vmatprep.subr.mxu0 0.0
    %4839 = vmatpush1.msra.mxu0 0.0
    %4840 = vmatprep.subr.mxu0 0.0
    %4841 = vmatpush1.msra.mxu0 0.0
    %4842 = vmatprep.subr.mxu0 0.0
    %4843 = vmatpush1.msra.mxu0 0.0
    %4844 = vmatprep.subr.mxu0 0.0
    %4845 = vmatpush1.msra.mxu0 0.0
    %4846 = vmatprep.subr.mxu0 0.0
    %4847 = vmatpush1.msra.mxu0 0.0
    %4848 = vmatprep.subr.mxu0 0.0
    %4849 = vmatpush1.msra.mxu0 0.0
    %4850 = vmatprep.subr.mxu0 0.0
    %4851 = vmatpush1.msra.mxu0 0.0
    %4852 = vmatprep.subr.mxu0 0.0
    %4853 = vmatpush1.msra.mxu0 0.0
    %4854 = vmatprep.subr.mxu0 0.0
    %4855 = vmatpush1.msra.mxu0 0.0
    %4856 = vmatprep.subr.mxu0 0.0
    %4857 = vmatpush1.msra.mxu0 0.0
    %4858 = vmatprep.subr.mxu0 0.0
    %4859 = vmatpush1.msra.mxu0 0.0
    %4860 = vmatprep.subr.mxu0 0.0
    %4861 = vmatpush1.msra.mxu0 0.0
    %4862 = vmatprep.subr.mxu0 0.0
    %4863 = vmatpush1.msra.mxu0 0.0
    %4864 = vmatprep.subr.mxu0 0.0
    %4865 = vmatpush1.msra.mxu0 0.0
    %4866 = vmatprep.subr.mxu0 0.0
    %4867 = vmatpush1.msra.mxu0 0.0
    %4868 = vmatprep.subr.mxu0 0.0
    %v4869 = vand.u32 %v3826, 4294901760
    %v4870 = vsub.f32 %v3826, %v4869
    %4871 = vmatpush1.msra.mxu0 %v4870
    %4872 = vmatprep.subr.mxu0 0.0
    %4873 = vmatpush2.msra.mxu0 0.0
    %4874 = vmatprep.subr.mxu0 0.0
    %4875 = vmatpush2.msra.mxu0 0.0
    %4876 = vmatprep.subr.mxu0 0.0
    %4877 = vmatpush2.msra.mxu0 0.0
    %4878 = vmatprep.subr.mxu0 0.0
    %4879 = vmatpush2.msra.mxu0 0.0
    %4880 = vmatprep.subr.mxu0 0.0
    %4881 = vmatpush2.msra.mxu0 0.0
    %4882 = vmatprep.subr.mxu0 0.0
    %4883 = vmatpush2.msra.mxu0 0.0
    %4884 = vmatprep.subr.mxu0 0.0
    %4885 = vmatpush2.msra.mxu0 0.0
    %4886 = vmatprep.subr.mxu0 0.0
    %4887 = vmatpush2.msra.mxu0 0.0
    %4888 = vmatprep.subr.mxu0 0.0
    %4889 = vmatpush2.msra.mxu0 0.0
    %4890 = vmatprep.subr.mxu0 0.0
    %4891 = vmatpush2.msra.mxu0 0.0
    %4892 = vmatprep.subr.mxu0 0.0
    %4893 = vmatpush2.msra.mxu0 0.0
    %4894 = vmatprep.subr.mxu0 0.0
    %4895 = vmatpush2.msra.mxu0 0.0
    %4896 = vmatprep.subr.mxu0 0.0
    %4897 = vmatpush2.msra.mxu0 0.0
    %4898 = vmatprep.subr.mxu0 0.0
    %4899 = vmatpush2.msra.mxu0 0.0
    %4900 = vmatprep.subr.mxu0 0.0
    %4901 = vmatpush2.msra.mxu0 0.0
    %4902 = vmatprep.subr.mxu0 0.0
    %4903 = vmatpush2.msra.mxu0 0.0
    %4904 = vmatprep.mubr.f32.mxu0 0.0
    %v4905 = vand.u32 %v4684, 4294901760
    %v4906 = vsub.f32 %v4684, %v4905
    %4907 = vmatmul.mubr.f32.gmra.mxu0 %v4906
    %v4908 = vpop.f32.mrf.mxu0
    %v4909 = vadd.f32 %v4835, %v4908
    %v4910 = vpop.f32.mrf.mxu0
    %4911 = vdwg.mxu0
    %4912 = vmatprep.subr.mxu0 0.0
    %4913 = vmatpush1.msra.mxu0 0.0
    %4914 = vmatprep.subr.mxu0 0.0
    %4915 = vmatpush1.msra.mxu0 0.0
    %4916 = vmatprep.subr.mxu0 0.0
    %4917 = vmatpush1.msra.mxu0 0.0
    %4918 = vmatprep.subr.mxu0 0.0
    %4919 = vmatpush1.msra.mxu0 0.0
    %4920 = vmatprep.subr.mxu0 0.0
    %4921 = vmatpush1.msra.mxu0 0.0
    %4922 = vmatprep.subr.mxu0 0.0
    %4923 = vmatpush1.msra.mxu0 0.0
    %4924 = vmatprep.subr.mxu0 0.0
    %4925 = vmatpush1.msra.mxu0 0.0
    %4926 = vmatprep.subr.mxu0 0.0
    %4927 = vmatpush1.msra.mxu0 0.0
    %4928 = vmatprep.subr.mxu0 0.0
    %4929 = vmatpush1.msra.mxu0 0.0
    %4930 = vmatprep.subr.mxu0 0.0
    %4931 = vmatpush1.msra.mxu0 0.0
    %4932 = vmatprep.subr.mxu0 0.0
    %4933 = vmatpush1.msra.mxu0 0.0
    %4934 = vmatprep.subr.mxu0 0.0
    %4935 = vmatpush1.msra.mxu0 0.0
    %4936 = vmatprep.subr.mxu0 0.0
    %4937 = vmatpush1.msra.mxu0 0.0
    %4938 = vmatprep.subr.mxu0 0.0
    %4939 = vmatpush1.msra.mxu0 0.0
    %4940 = vmatprep.subr.mxu0 0.0
    %4941 = vmatpush1.msra.mxu0 0.0
    %4942 = vmatprep.subr.mxu0 0.0
    %v4943 = vand.u32 %v3826, 4294901760
    %4944 = vmatpush1.msra.mxu0 %v4943
    %4945 = vmatprep.subr.mxu0 0.0
    %4946 = vmatpush2.msra.mxu0 0.0
    %4947 = vmatprep.subr.mxu0 0.0
    %4948 = vmatpush2.msra.mxu0 0.0
    %4949 = vmatprep.subr.mxu0 0.0
    %4950 = vmatpush2.msra.mxu0 0.0
    %4951 = vmatprep.subr.mxu0 0.0
    %4952 = vmatpush2.msra.mxu0 0.0
    %4953 = vmatprep.subr.mxu0 0.0
    %4954 = vmatpush2.msra.mxu0 0.0
    %4955 = vmatprep.subr.mxu0 0.0
    %4956 = vmatpush2.msra.mxu0 0.0
    %4957 = vmatprep.subr.mxu0 0.0
    %4958 = vmatpush2.msra.mxu0 0.0
    %4959 = vmatprep.subr.mxu0 0.0
    %4960 = vmatpush2.msra.mxu0 0.0
    %4961 = vmatprep.subr.mxu0 0.0
    %4962 = vmatpush2.msra.mxu0 0.0
    %4963 = vmatprep.subr.mxu0 0.0
    %4964 = vmatpush2.msra.mxu0 0.0
    %4965 = vmatprep.subr.mxu0 0.0
    %4966 = vmatpush2.msra.mxu0 0.0
    %4967 = vmatprep.subr.mxu0 0.0
    %4968 = vmatpush2.msra.mxu0 0.0
    %4969 = vmatprep.subr.mxu0 0.0
    %4970 = vmatpush2.msra.mxu0 0.0
    %4971 = vmatprep.subr.mxu0 0.0
    %4972 = vmatpush2.msra.mxu0 0.0
    %4973 = vmatprep.subr.mxu0 0.0
    %4974 = vmatpush2.msra.mxu0 0.0
    %4975 = vmatprep.subr.mxu0 0.0
    %4976 = vmatpush2.msra.mxu0 0.0
    %4977 = vmatprep.mubr.f32.mxu0 0.0
    %v4978 = vand.u32 %v4684, 4294901760
    %v4979 = vsub.f32 %v4684, %v4978
    %v4980 = vand.u32 %v4979, 4294901760
    %4981 = vmatmul.mubr.f32.gmra.mxu0 %v4980
    %v4982 = vpop.f32.mrf.mxu0
    %v4983 = vadd.f32 %v4909, %v4982
    %v4984 = vpop.f32.mrf.mxu0
    %4985 = vdwg.mxu0
    %4986 = vmatprep.subr.mxu0 0.0
    %4987 = vmatpush1.msra.mxu0 0.0
    %4988 = vmatprep.subr.mxu0 0.0
    %4989 = vmatpush1.msra.mxu0 0.0
    %4990 = vmatprep.subr.mxu0 0.0
    %4991 = vmatpush1.msra.mxu0 0.0
    %4992 = vmatprep.subr.mxu0 0.0
    %4993 = vmatpush1.msra.mxu0 0.0
    %4994 = vmatprep.subr.mxu0 0.0
    %4995 = vmatpush1.msra.mxu0 0.0
    %4996 = vmatprep.subr.mxu0 0.0
    %4997 = vmatpush1.msra.mxu0 0.0
    %4998 = vmatprep.subr.mxu0 0.0
    %4999 = vmatpush1.msra.mxu0 0.0
    %5000 = vmatprep.subr.mxu0 0.0
    %5001 = vmatpush1.msra.mxu0 0.0
    %5002 = vmatprep.subr.mxu0 0.0
    %5003 = vmatpush1.msra.mxu0 0.0
    %5004 = vmatprep.subr.mxu0 0.0
    %5005 = vmatpush1.msra.mxu0 0.0
    %5006 = vmatprep.subr.mxu0 0.0
    %5007 = vmatpush1.msra.mxu0 0.0
    %5008 = vmatprep.subr.mxu0 0.0
    %5009 = vmatpush1.msra.mxu0 0.0
    %5010 = vmatprep.subr.mxu0 0.0
    %5011 = vmatpush1.msra.mxu0 0.0
    %5012 = vmatprep.subr.mxu0 0.0
    %5013 = vmatpush1.msra.mxu0 0.0
    %5014 = vmatprep.subr.mxu0 0.0
    %5015 = vmatpush1.msra.mxu0 0.0
    %5016 = vmatprep.subr.mxu0 0.0
    %v5017 = vand.u32 %v3826, 4294901760
    %v5018 = vsub.f32 %v3826, %v5017
    %v5019 = vand.u32 %v5018, 4294901760
    %5020 = vmatpush1.msra.mxu0 %v5019
    %5021 = vmatprep.subr.mxu0 0.0
    %5022 = vmatpush2.msra.mxu0 0.0
    %5023 = vmatprep.subr.mxu0 0.0
    %5024 = vmatpush2.msra.mxu0 0.0
    %5025 = vmatprep.subr.mxu0 0.0
    %5026 = vmatpush2.msra.mxu0 0.0
    %5027 = vmatprep.subr.mxu0 0.0
    %5028 = vmatpush2.msra.mxu0 0.0
    %5029 = vmatprep.subr.mxu0 0.0
    %5030 = vmatpush2.msra.mxu0 0.0
    %5031 = vmatprep.subr.mxu0 0.0
    %5032 = vmatpush2.msra.mxu0 0.0
    %5033 = vmatprep.subr.mxu0 0.0
    %5034 = vmatpush2.msra.mxu0 0.0
    %5035 = vmatprep.subr.mxu0 0.0
    %5036 = vmatpush2.msra.mxu0 0.0
    %5037 = vmatprep.subr.mxu0 0.0
    %5038 = vmatpush2.msra.mxu0 0.0
    %5039 = vmatprep.subr.mxu0 0.0
    %5040 = vmatpush2.msra.mxu0 0.0
    %5041 = vmatprep.subr.mxu0 0.0
    %5042 = vmatpush2.msra.mxu0 0.0
    %5043 = vmatprep.subr.mxu0 0.0
    %5044 = vmatpush2.msra.mxu0 0.0
    %5045 = vmatprep.subr.mxu0 0.0
    %5046 = vmatpush2.msra.mxu0 0.0
    %5047 = vmatprep.subr.mxu0 0.0
    %5048 = vmatpush2.msra.mxu0 0.0
    %5049 = vmatprep.subr.mxu0 0.0
    %5050 = vmatpush2.msra.mxu0 0.0
    %5051 = vmatprep.subr.mxu0 0.0
    %5052 = vmatpush2.msra.mxu0 0.0
    %5053 = vmatprep.mubr.f32.mxu0 0.0
    %v5054 = vand.u32 %v4684, 4294901760
    %5055 = vmatmul.mubr.f32.gmra.mxu0 %v5054
    %v5056 = vpop.f32.mrf.mxu0
    %v5057 = vadd.f32 %v4983, %v5056
    %v5058 = vpop.f32.mrf.mxu0
    %5059 = vdwg.mxu0
    %5060 = vmatprep.subr.mxu0 0.0
    %5061 = vmatpush1.msra.mxu0 0.0
    %5062 = vmatprep.subr.mxu0 0.0
    %5063 = vmatpush1.msra.mxu0 0.0
    %5064 = vmatprep.subr.mxu0 0.0
    %5065 = vmatpush1.msra.mxu0 0.0
    %5066 = vmatprep.subr.mxu0 0.0
    %5067 = vmatpush1.msra.mxu0 0.0
    %5068 = vmatprep.subr.mxu0 0.0
    %5069 = vmatpush1.msra.mxu0 0.0
    %5070 = vmatprep.subr.mxu0 0.0
    %5071 = vmatpush1.msra.mxu0 0.0
    %5072 = vmatprep.subr.mxu0 0.0
    %5073 = vmatpush1.msra.mxu0 0.0
    %5074 = vmatprep.subr.mxu0 0.0
    %5075 = vmatpush1.msra.mxu0 0.0
    %5076 = vmatprep.subr.mxu0 0.0
    %5077 = vmatpush1.msra.mxu0 0.0
    %5078 = vmatprep.subr.mxu0 0.0
    %5079 = vmatpush1.msra.mxu0 0.0
    %5080 = vmatprep.subr.mxu0 0.0
    %5081 = vmatpush1.msra.mxu0 0.0
    %5082 = vmatprep.subr.mxu0 0.0
    %5083 = vmatpush1.msra.mxu0 0.0
    %5084 = vmatprep.subr.mxu0 0.0
    %5085 = vmatpush1.msra.mxu0 0.0
    %5086 = vmatprep.subr.mxu0 0.0
    %5087 = vmatpush1.msra.mxu0 0.0
    %5088 = vmatprep.subr.mxu0 0.0
    %5089 = vmatpush1.msra.mxu0 0.0
    %5090 = vmatprep.subr.mxu0 0.0
    %v5091 = vand.u32 %v3826, 4294901760
    %5092 = vmatpush1.msra.mxu0 %v5091
    %5093 = vmatprep.subr.mxu0 0.0
    %5094 = vmatpush2.msra.mxu0 0.0
    %5095 = vmatprep.subr.mxu0 0.0
    %5096 = vmatpush2.msra.mxu0 0.0
    %5097 = vmatprep.subr.mxu0 0.0
    %5098 = vmatpush2.msra.mxu0 0.0
    %5099 = vmatprep.subr.mxu0 0.0
    %5100 = vmatpush2.msra.mxu0 0.0
    %5101 = vmatprep.subr.mxu0 0.0
    %5102 = vmatpush2.msra.mxu0 0.0
    %5103 = vmatprep.subr.mxu0 0.0
    %5104 = vmatpush2.msra.mxu0 0.0
    %5105 = vmatprep.subr.mxu0 0.0
    %5106 = vmatpush2.msra.mxu0 0.0
    %5107 = vmatprep.subr.mxu0 0.0
    %5108 = vmatpush2.msra.mxu0 0.0
    %5109 = vmatprep.subr.mxu0 0.0
    %5110 = vmatpush2.msra.mxu0 0.0
    %5111 = vmatprep.subr.mxu0 0.0
    %5112 = vmatpush2.msra.mxu0 0.0
    %5113 = vmatprep.subr.mxu0 0.0
    %5114 = vmatpush2.msra.mxu0 0.0
    %5115 = vmatprep.subr.mxu0 0.0
    %5116 = vmatpush2.msra.mxu0 0.0
    %5117 = vmatprep.subr.mxu0 0.0
    %5118 = vmatpush2.msra.mxu0 0.0
    %5119 = vmatprep.subr.mxu0 0.0
    %5120 = vmatpush2.msra.mxu0 0.0
    %5121 = vmatprep.subr.mxu0 0.0
    %5122 = vmatpush2.msra.mxu0 0.0
    %5123 = vmatprep.subr.mxu0 0.0
    %5124 = vmatpush2.msra.mxu0 0.0
    %5125 = vmatprep.mubr.f32.mxu0 0.0
    %v5126 = vand.u32 %v4684, 4294901760
    %5127 = vmatmul.mubr.f32.gmra.mxu0 %v5126
    %v5128 = vpop.f32.mrf.mxu0
    %v5129 = vadd.f32 %v5057, %v5128
    %v5130 = vpop.f32.mrf.mxu0
    %5131 = vdwg.mxu0
    %v5133 = vsel %vm4233, %v4227, 0
    %5135 = vmatprep.subr.mxu0 0.0
    %5136 = vmatpush1.msra.mxu0 0.0
    %5137 = vmatprep.subr.mxu0 0.0
    %5138 = vmatpush1.msra.mxu0 0.0
    %5139 = vmatprep.subr.mxu0 0.0
    %5140 = vmatpush1.msra.mxu0 0.0
    %5141 = vmatprep.subr.mxu0 0.0
    %5142 = vmatpush1.msra.mxu0 0.0
    %5143 = vmatprep.subr.mxu0 0.0
    %5144 = vmatpush1.msra.mxu0 0.0
    %5145 = vmatprep.subr.mxu0 0.0
    %5146 = vmatpush1.msra.mxu0 0.0
    %5147 = vmatprep.subr.mxu0 0.0
    %5148 = vmatpush1.msra.mxu0 0.0
    %5149 = vmatprep.subr.mxu0 0.0
    %5150 = vmatpush1.msra.mxu0 0.0
    %5151 = vmatprep.subr.mxu0 0.0
    %5152 = vmatpush1.msra.mxu0 0.0
    %5153 = vmatprep.subr.mxu0 0.0
    %5154 = vmatpush1.msra.mxu0 0.0
    %5155 = vmatprep.subr.mxu0 0.0
    %5156 = vmatpush1.msra.mxu0 0.0
    %5157 = vmatprep.subr.mxu0 0.0
    %5158 = vmatpush1.msra.mxu0 0.0
    %5159 = vmatprep.subr.mxu0 0.0
    %5160 = vmatpush1.msra.mxu0 0.0
    %5161 = vmatprep.subr.mxu0 0.0
    %5162 = vmatpush1.msra.mxu0 0.0
    %5163 = vmatprep.subr.mxu0 0.0
    %5164 = vmatpush1.msra.mxu0 0.0
    %5165 = vmatprep.subr.mxu0 0.0
    %v5166 = vand.u32 %v3889, 4294901760
    %5167 = vmatpush1.msra.mxu0 %v5166
    %5168 = vmatprep.subr.mxu0 0.0
    %5169 = vmatpush2.msra.mxu0 0.0
    %5170 = vmatprep.subr.mxu0 0.0
    %5171 = vmatpush2.msra.mxu0 0.0
    %5172 = vmatprep.subr.mxu0 0.0
    %5173 = vmatpush2.msra.mxu0 0.0
    %5174 = vmatprep.subr.mxu0 0.0
    %5175 = vmatpush2.msra.mxu0 0.0
    %5176 = vmatprep.subr.mxu0 0.0
    %5177 = vmatpush2.msra.mxu0 0.0
    %5178 = vmatprep.subr.mxu0 0.0
    %5179 = vmatpush2.msra.mxu0 0.0
    %5180 = vmatprep.subr.mxu0 0.0
    %5181 = vmatpush2.msra.mxu0 0.0
    %5182 = vmatprep.subr.mxu0 0.0
    %5183 = vmatpush2.msra.mxu0 0.0
    %5184 = vmatprep.subr.mxu0 0.0
    %5185 = vmatpush2.msra.mxu0 0.0
    %5186 = vmatprep.subr.mxu0 0.0
    %5187 = vmatpush2.msra.mxu0 0.0
    %5188 = vmatprep.subr.mxu0 0.0
    %5189 = vmatpush2.msra.mxu0 0.0
    %5190 = vmatprep.subr.mxu0 0.0
    %5191 = vmatpush2.msra.mxu0 0.0
    %5192 = vmatprep.subr.mxu0 0.0
    %5193 = vmatpush2.msra.mxu0 0.0
    %5194 = vmatprep.subr.mxu0 0.0
    %5195 = vmatpush2.msra.mxu0 0.0
    %5196 = vmatprep.subr.mxu0 0.0
    %5197 = vmatpush2.msra.mxu0 0.0
    %5198 = vmatprep.subr.mxu0 0.0
    %5199 = vmatpush2.msra.mxu0 0.0
    %5200 = vmatprep.mubr.f32.mxu0 0.0
    %v5201 = vand.u32 %v5133, 4294901760
    %v5202 = vsub.f32 %v5133, %v5201
    %v5203 = vand.u32 %v5202, 4294901760
    %v5204 = vsub.f32 %v5202, %v5203
    %v5205 = vand.u32 %v5204, 4294901760
    %5206 = vmatmul.mubr.f32.gmra.mxu0 %v5205
    %v5207 = vpop.f32.mrf.mxu0
    %v5208 = vadd.f32 0.0, %v5207
    %v5209 = vpop.f32.mrf.mxu0
    %5210 = vdwg.mxu0
    %5211 = vmatprep.subr.mxu0 0.0
    %5212 = vmatpush1.msra.mxu0 0.0
    %5213 = vmatprep.subr.mxu0 0.0
    %5214 = vmatpush1.msra.mxu0 0.0
    %5215 = vmatprep.subr.mxu0 0.0
    %5216 = vmatpush1.msra.mxu0 0.0
    %5217 = vmatprep.subr.mxu0 0.0
    %5218 = vmatpush1.msra.mxu0 0.0
    %5219 = vmatprep.subr.mxu0 0.0
    %5220 = vmatpush1.msra.mxu0 0.0
    %5221 = vmatprep.subr.mxu0 0.0
    %5222 = vmatpush1.msra.mxu0 0.0
    %5223 = vmatprep.subr.mxu0 0.0
    %5224 = vmatpush1.msra.mxu0 0.0
    %5225 = vmatprep.subr.mxu0 0.0
    %5226 = vmatpush1.msra.mxu0 0.0
    %5227 = vmatprep.subr.mxu0 0.0
    %5228 = vmatpush1.msra.mxu0 0.0
    %5229 = vmatprep.subr.mxu0 0.0
    %5230 = vmatpush1.msra.mxu0 0.0
    %5231 = vmatprep.subr.mxu0 0.0
    %5232 = vmatpush1.msra.mxu0 0.0
    %5233 = vmatprep.subr.mxu0 0.0
    %5234 = vmatpush1.msra.mxu0 0.0
    %5235 = vmatprep.subr.mxu0 0.0
    %5236 = vmatpush1.msra.mxu0 0.0
    %5237 = vmatprep.subr.mxu0 0.0
    %5238 = vmatpush1.msra.mxu0 0.0
    %5239 = vmatprep.subr.mxu0 0.0
    %5240 = vmatpush1.msra.mxu0 0.0
    %5241 = vmatprep.subr.mxu0 0.0
    %v5242 = vand.u32 %v3889, 4294901760
    %v5243 = vsub.f32 %v3889, %v5242
    %v5244 = vand.u32 %v5243, 4294901760
    %v5245 = vsub.f32 %v5243, %v5244
    %v5246 = vand.u32 %v5245, 4294901760
    %5247 = vmatpush1.msra.mxu0 %v5246
    %5248 = vmatprep.subr.mxu0 0.0
    %5249 = vmatpush2.msra.mxu0 0.0
    %5250 = vmatprep.subr.mxu0 0.0
    %5251 = vmatpush2.msra.mxu0 0.0
    %5252 = vmatprep.subr.mxu0 0.0
    %5253 = vmatpush2.msra.mxu0 0.0
    %5254 = vmatprep.subr.mxu0 0.0
    %5255 = vmatpush2.msra.mxu0 0.0
    %5256 = vmatprep.subr.mxu0 0.0
    %5257 = vmatpush2.msra.mxu0 0.0
    %5258 = vmatprep.subr.mxu0 0.0
    %5259 = vmatpush2.msra.mxu0 0.0
    %5260 = vmatprep.subr.mxu0 0.0
    %5261 = vmatpush2.msra.mxu0 0.0
    %5262 = vmatprep.subr.mxu0 0.0
    %5263 = vmatpush2.msra.mxu0 0.0
    %5264 = vmatprep.subr.mxu0 0.0
    %5265 = vmatpush2.msra.mxu0 0.0
    %5266 = vmatprep.subr.mxu0 0.0
    %5267 = vmatpush2.msra.mxu0 0.0
    %5268 = vmatprep.subr.mxu0 0.0
    %5269 = vmatpush2.msra.mxu0 0.0
    %5270 = vmatprep.subr.mxu0 0.0
    %5271 = vmatpush2.msra.mxu0 0.0
    %5272 = vmatprep.subr.mxu0 0.0
    %5273 = vmatpush2.msra.mxu0 0.0
    %5274 = vmatprep.subr.mxu0 0.0
    %5275 = vmatpush2.msra.mxu0 0.0
    %5276 = vmatprep.subr.mxu0 0.0
    %5277 = vmatpush2.msra.mxu0 0.0
    %5278 = vmatprep.subr.mxu0 0.0
    %5279 = vmatpush2.msra.mxu0 0.0
    %5280 = vmatprep.mubr.f32.mxu0 0.0
    %v5281 = vand.u32 %v5133, 4294901760
    %5282 = vmatmul.mubr.f32.gmra.mxu0 %v5281
    %v5283 = vpop.f32.mrf.mxu0
    %v5284 = vadd.f32 %v5208, %v5283
    %v5285 = vpop.f32.mrf.mxu0
    %5286 = vdwg.mxu0
    %5287 = vmatprep.subr.mxu0 0.0
    %5288 = vmatpush1.msra.mxu0 0.0
    %5289 = vmatprep.subr.mxu0 0.0
    %5290 = vmatpush1.msra.mxu0 0.0
    %5291 = vmatprep.subr.mxu0 0.0
    %5292 = vmatpush1.msra.mxu0 0.0
    %5293 = vmatprep.subr.mxu0 0.0
    %5294 = vmatpush1.msra.mxu0 0.0
    %5295 = vmatprep.subr.mxu0 0.0
    %5296 = vmatpush1.msra.mxu0 0.0
    %5297 = vmatprep.subr.mxu0 0.0
    %5298 = vmatpush1.msra.mxu0 0.0
    %5299 = vmatprep.subr.mxu0 0.0
    %5300 = vmatpush1.msra.mxu0 0.0
    %5301 = vmatprep.subr.mxu0 0.0
    %5302 = vmatpush1.msra.mxu0 0.0
    %5303 = vmatprep.subr.mxu0 0.0
    %5304 = vmatpush1.msra.mxu0 0.0
    %5305 = vmatprep.subr.mxu0 0.0
    %5306 = vmatpush1.msra.mxu0 0.0
    %5307 = vmatprep.subr.mxu0 0.0
    %5308 = vmatpush1.msra.mxu0 0.0
    %5309 = vmatprep.subr.mxu0 0.0
    %5310 = vmatpush1.msra.mxu0 0.0
    %5311 = vmatprep.subr.mxu0 0.0
    %5312 = vmatpush1.msra.mxu0 0.0
    %5313 = vmatprep.subr.mxu0 0.0
    %5314 = vmatpush1.msra.mxu0 0.0
    %5315 = vmatprep.subr.mxu0 0.0
    %5316 = vmatpush1.msra.mxu0 0.0
    %5317 = vmatprep.subr.mxu0 0.0
    %v5318 = vand.u32 %v3889, 4294901760
    %v5319 = vsub.f32 %v3889, %v5318
    %5320 = vmatpush1.msra.mxu0 %v5319
    %5321 = vmatprep.subr.mxu0 0.0
    %5322 = vmatpush2.msra.mxu0 0.0
    %5323 = vmatprep.subr.mxu0 0.0
    %5324 = vmatpush2.msra.mxu0 0.0
    %5325 = vmatprep.subr.mxu0 0.0
    %5326 = vmatpush2.msra.mxu0 0.0
    %5327 = vmatprep.subr.mxu0 0.0
    %5328 = vmatpush2.msra.mxu0 0.0
    %5329 = vmatprep.subr.mxu0 0.0
    %5330 = vmatpush2.msra.mxu0 0.0
    %5331 = vmatprep.subr.mxu0 0.0
    %5332 = vmatpush2.msra.mxu0 0.0
    %5333 = vmatprep.subr.mxu0 0.0
    %5334 = vmatpush2.msra.mxu0 0.0
    %5335 = vmatprep.subr.mxu0 0.0
    %5336 = vmatpush2.msra.mxu0 0.0
    %5337 = vmatprep.subr.mxu0 0.0
    %5338 = vmatpush2.msra.mxu0 0.0
    %5339 = vmatprep.subr.mxu0 0.0
    %5340 = vmatpush2.msra.mxu0 0.0
    %5341 = vmatprep.subr.mxu0 0.0
    %5342 = vmatpush2.msra.mxu0 0.0
    %5343 = vmatprep.subr.mxu0 0.0
    %5344 = vmatpush2.msra.mxu0 0.0
    %5345 = vmatprep.subr.mxu0 0.0
    %5346 = vmatpush2.msra.mxu0 0.0
    %5347 = vmatprep.subr.mxu0 0.0
    %5348 = vmatpush2.msra.mxu0 0.0
    %5349 = vmatprep.subr.mxu0 0.0
    %5350 = vmatpush2.msra.mxu0 0.0
    %5351 = vmatprep.subr.mxu0 0.0
    %5352 = vmatpush2.msra.mxu0 0.0
    %5353 = vmatprep.mubr.f32.mxu0 0.0
    %v5354 = vand.u32 %v5133, 4294901760
    %v5355 = vsub.f32 %v5133, %v5354
    %5356 = vmatmul.mubr.f32.gmra.mxu0 %v5355
    %v5357 = vpop.f32.mrf.mxu0
    %v5358 = vadd.f32 %v5284, %v5357
    %v5359 = vpop.f32.mrf.mxu0
    %5360 = vdwg.mxu0
    %5361 = vmatprep.subr.mxu0 0.0
    %5362 = vmatpush1.msra.mxu0 0.0
    %5363 = vmatprep.subr.mxu0 0.0
    %5364 = vmatpush1.msra.mxu0 0.0
    %5365 = vmatprep.subr.mxu0 0.0
    %5366 = vmatpush1.msra.mxu0 0.0
    %5367 = vmatprep.subr.mxu0 0.0
    %5368 = vmatpush1.msra.mxu0 0.0
    %5369 = vmatprep.subr.mxu0 0.0
    %5370 = vmatpush1.msra.mxu0 0.0
    %5371 = vmatprep.subr.mxu0 0.0
    %5372 = vmatpush1.msra.mxu0 0.0
    %5373 = vmatprep.subr.mxu0 0.0
    %5374 = vmatpush1.msra.mxu0 0.0
    %5375 = vmatprep.subr.mxu0 0.0
    %5376 = vmatpush1.msra.mxu0 0.0
    %5377 = vmatprep.subr.mxu0 0.0
    %5378 = vmatpush1.msra.mxu0 0.0
    %5379 = vmatprep.subr.mxu0 0.0
    %5380 = vmatpush1.msra.mxu0 0.0
    %5381 = vmatprep.subr.mxu0 0.0
    %5382 = vmatpush1.msra.mxu0 0.0
    %5383 = vmatprep.subr.mxu0 0.0
    %5384 = vmatpush1.msra.mxu0 0.0
    %5385 = vmatprep.subr.mxu0 0.0
    %5386 = vmatpush1.msra.mxu0 0.0
    %5387 = vmatprep.subr.mxu0 0.0
    %5388 = vmatpush1.msra.mxu0 0.0
    %5389 = vmatprep.subr.mxu0 0.0
    %5390 = vmatpush1.msra.mxu0 0.0
    %5391 = vmatprep.subr.mxu0 0.0
    %v5392 = vand.u32 %v3889, 4294901760
    %5393 = vmatpush1.msra.mxu0 %v5392
    %5394 = vmatprep.subr.mxu0 0.0
    %5395 = vmatpush2.msra.mxu0 0.0
    %5396 = vmatprep.subr.mxu0 0.0
    %5397 = vmatpush2.msra.mxu0 0.0
    %5398 = vmatprep.subr.mxu0 0.0
    %5399 = vmatpush2.msra.mxu0 0.0
    %5400 = vmatprep.subr.mxu0 0.0
    %5401 = vmatpush2.msra.mxu0 0.0
    %5402 = vmatprep.subr.mxu0 0.0
    %5403 = vmatpush2.msra.mxu0 0.0
    %5404 = vmatprep.subr.mxu0 0.0
    %5405 = vmatpush2.msra.mxu0 0.0
    %5406 = vmatprep.subr.mxu0 0.0
    %5407 = vmatpush2.msra.mxu0 0.0
    %5408 = vmatprep.subr.mxu0 0.0
    %5409 = vmatpush2.msra.mxu0 0.0
    %5410 = vmatprep.subr.mxu0 0.0
    %5411 = vmatpush2.msra.mxu0 0.0
    %5412 = vmatprep.subr.mxu0 0.0
    %5413 = vmatpush2.msra.mxu0 0.0
    %5414 = vmatprep.subr.mxu0 0.0
    %5415 = vmatpush2.msra.mxu0 0.0
    %5416 = vmatprep.subr.mxu0 0.0
    %5417 = vmatpush2.msra.mxu0 0.0
    %5418 = vmatprep.subr.mxu0 0.0
    %5419 = vmatpush2.msra.mxu0 0.0
    %5420 = vmatprep.subr.mxu0 0.0
    %5421 = vmatpush2.msra.mxu0 0.0
    %5422 = vmatprep.subr.mxu0 0.0
    %5423 = vmatpush2.msra.mxu0 0.0
    %5424 = vmatprep.subr.mxu0 0.0
    %5425 = vmatpush2.msra.mxu0 0.0
    %5426 = vmatprep.mubr.f32.mxu0 0.0
    %v5427 = vand.u32 %v5133, 4294901760
    %v5428 = vsub.f32 %v5133, %v5427
    %v5429 = vand.u32 %v5428, 4294901760
    %5430 = vmatmul.mubr.f32.gmra.mxu0 %v5429
    %v5431 = vpop.f32.mrf.mxu0
    %v5432 = vadd.f32 %v5358, %v5431
    %v5433 = vpop.f32.mrf.mxu0
    %5434 = vdwg.mxu0
    %5435 = vmatprep.subr.mxu0 0.0
    %5436 = vmatpush1.msra.mxu0 0.0
    %5437 = vmatprep.subr.mxu0 0.0
    %5438 = vmatpush1.msra.mxu0 0.0
    %5439 = vmatprep.subr.mxu0 0.0
    %5440 = vmatpush1.msra.mxu0 0.0
    %5441 = vmatprep.subr.mxu0 0.0
    %5442 = vmatpush1.msra.mxu0 0.0
    %5443 = vmatprep.subr.mxu0 0.0
    %5444 = vmatpush1.msra.mxu0 0.0
    %5445 = vmatprep.subr.mxu0 0.0
    %5446 = vmatpush1.msra.mxu0 0.0
    %5447 = vmatprep.subr.mxu0 0.0
    %5448 = vmatpush1.msra.mxu0 0.0
    %5449 = vmatprep.subr.mxu0 0.0
    %5450 = vmatpush1.msra.mxu0 0.0
    %5451 = vmatprep.subr.mxu0 0.0
    %5452 = vmatpush1.msra.mxu0 0.0
    %5453 = vmatprep.subr.mxu0 0.0
    %5454 = vmatpush1.msra.mxu0 0.0
    %5455 = vmatprep.subr.mxu0 0.0
    %5456 = vmatpush1.msra.mxu0 0.0
    %5457 = vmatprep.subr.mxu0 0.0
    %5458 = vmatpush1.msra.mxu0 0.0
    %5459 = vmatprep.subr.mxu0 0.0
    %5460 = vmatpush1.msra.mxu0 0.0
    %5461 = vmatprep.subr.mxu0 0.0
    %5462 = vmatpush1.msra.mxu0 0.0
    %5463 = vmatprep.subr.mxu0 0.0
    %5464 = vmatpush1.msra.mxu0 0.0
    %5465 = vmatprep.subr.mxu0 0.0
    %v5466 = vand.u32 %v3889, 4294901760
    %v5467 = vsub.f32 %v3889, %v5466
    %v5468 = vand.u32 %v5467, 4294901760
    %5469 = vmatpush1.msra.mxu0 %v5468
    %5470 = vmatprep.subr.mxu0 0.0
    %5471 = vmatpush2.msra.mxu0 0.0
    %5472 = vmatprep.subr.mxu0 0.0
    %5473 = vmatpush2.msra.mxu0 0.0
    %5474 = vmatprep.subr.mxu0 0.0
    %5475 = vmatpush2.msra.mxu0 0.0
    %5476 = vmatprep.subr.mxu0 0.0
    %5477 = vmatpush2.msra.mxu0 0.0
    %5478 = vmatprep.subr.mxu0 0.0
    %5479 = vmatpush2.msra.mxu0 0.0
    %5480 = vmatprep.subr.mxu0 0.0
    %5481 = vmatpush2.msra.mxu0 0.0
    %5482 = vmatprep.subr.mxu0 0.0
    %5483 = vmatpush2.msra.mxu0 0.0
    %5484 = vmatprep.subr.mxu0 0.0
    %5485 = vmatpush2.msra.mxu0 0.0
    %5486 = vmatprep.subr.mxu0 0.0
    %5487 = vmatpush2.msra.mxu0 0.0
    %5488 = vmatprep.subr.mxu0 0.0
    %5489 = vmatpush2.msra.mxu0 0.0
    %5490 = vmatprep.subr.mxu0 0.0
    %5491 = vmatpush2.msra.mxu0 0.0
    %5492 = vmatprep.subr.mxu0 0.0
    %5493 = vmatpush2.msra.mxu0 0.0
    %5494 = vmatprep.subr.mxu0 0.0
    %5495 = vmatpush2.msra.mxu0 0.0
    %5496 = vmatprep.subr.mxu0 0.0
    %5497 = vmatpush2.msra.mxu0 0.0
    %5498 = vmatprep.subr.mxu0 0.0
    %5499 = vmatpush2.msra.mxu0 0.0
    %5500 = vmatprep.subr.mxu0 0.0
    %5501 = vmatpush2.msra.mxu0 0.0
    %5502 = vmatprep.mubr.f32.mxu0 0.0
    %v5503 = vand.u32 %v5133, 4294901760
    %5504 = vmatmul.mubr.f32.gmra.mxu0 %v5503
    %v5505 = vpop.f32.mrf.mxu0
    %v5506 = vadd.f32 %v5432, %v5505
    %v5507 = vpop.f32.mrf.mxu0
    %5508 = vdwg.mxu0
    %5509 = vmatprep.subr.mxu0 0.0
    %5510 = vmatpush1.msra.mxu0 0.0
    %5511 = vmatprep.subr.mxu0 0.0
    %5512 = vmatpush1.msra.mxu0 0.0
    %5513 = vmatprep.subr.mxu0 0.0
    %5514 = vmatpush1.msra.mxu0 0.0
    %5515 = vmatprep.subr.mxu0 0.0
    %5516 = vmatpush1.msra.mxu0 0.0
    %5517 = vmatprep.subr.mxu0 0.0
    %5518 = vmatpush1.msra.mxu0 0.0
    %5519 = vmatprep.subr.mxu0 0.0
    %5520 = vmatpush1.msra.mxu0 0.0
    %5521 = vmatprep.subr.mxu0 0.0
    %5522 = vmatpush1.msra.mxu0 0.0
    %5523 = vmatprep.subr.mxu0 0.0
    %5524 = vmatpush1.msra.mxu0 0.0
    %5525 = vmatprep.subr.mxu0 0.0
    %5526 = vmatpush1.msra.mxu0 0.0
    %5527 = vmatprep.subr.mxu0 0.0
    %5528 = vmatpush1.msra.mxu0 0.0
    %5529 = vmatprep.subr.mxu0 0.0
    %5530 = vmatpush1.msra.mxu0 0.0
    %5531 = vmatprep.subr.mxu0 0.0
    %5532 = vmatpush1.msra.mxu0 0.0
    %5533 = vmatprep.subr.mxu0 0.0
    %5534 = vmatpush1.msra.mxu0 0.0
    %5535 = vmatprep.subr.mxu0 0.0
    %5536 = vmatpush1.msra.mxu0 0.0
    %5537 = vmatprep.subr.mxu0 0.0
    %5538 = vmatpush1.msra.mxu0 0.0
    %5539 = vmatprep.subr.mxu0 0.0
    %v5540 = vand.u32 %v3889, 4294901760
    %5541 = vmatpush1.msra.mxu0 %v5540
    %5542 = vmatprep.subr.mxu0 0.0
    %5543 = vmatpush2.msra.mxu0 0.0
    %5544 = vmatprep.subr.mxu0 0.0
    %5545 = vmatpush2.msra.mxu0 0.0
    %5546 = vmatprep.subr.mxu0 0.0
    %5547 = vmatpush2.msra.mxu0 0.0
    %5548 = vmatprep.subr.mxu0 0.0
    %5549 = vmatpush2.msra.mxu0 0.0
    %5550 = vmatprep.subr.mxu0 0.0
    %5551 = vmatpush2.msra.mxu0 0.0
    %5552 = vmatprep.subr.mxu0 0.0
    %5553 = vmatpush2.msra.mxu0 0.0
    %5554 = vmatprep.subr.mxu0 0.0
    %5555 = vmatpush2.msra.mxu0 0.0
    %5556 = vmatprep.subr.mxu0 0.0
    %5557 = vmatpush2.msra.mxu0 0.0
    %5558 = vmatprep.subr.mxu0 0.0
    %5559 = vmatpush2.msra.mxu0 0.0
    %5560 = vmatprep.subr.mxu0 0.0
    %5561 = vmatpush2.msra.mxu0 0.0
    %5562 = vmatprep.subr.mxu0 0.0
    %5563 = vmatpush2.msra.mxu0 0.0
    %5564 = vmatprep.subr.mxu0 0.0
    %5565 = vmatpush2.msra.mxu0 0.0
    %5566 = vmatprep.subr.mxu0 0.0
    %5567 = vmatpush2.msra.mxu0 0.0
    %5568 = vmatprep.subr.mxu0 0.0
    %5569 = vmatpush2.msra.mxu0 0.0
    %5570 = vmatprep.subr.mxu0 0.0
    %5571 = vmatpush2.msra.mxu0 0.0
    %5572 = vmatprep.subr.mxu0 0.0
    %5573 = vmatpush2.msra.mxu0 0.0
    %5574 = vmatprep.mubr.f32.mxu0 0.0
    %v5575 = vand.u32 %v5133, 4294901760
    %5576 = vmatmul.mubr.f32.gmra.mxu0 %v5575
    %v5577 = vpop.f32.mrf.mxu0
    %v5578 = vadd.f32 %v5506, %v5577
    %v5579 = vpop.f32.mrf.mxu0
    %5580 = vdwg.mxu0
    %v5582 = vsel %vm4233, %v4228, 0
    %5584 = vmatprep.subr.mxu0 0.0
    %5585 = vmatpush1.msra.mxu0 0.0
    %5586 = vmatprep.subr.mxu0 0.0
    %5587 = vmatpush1.msra.mxu0 0.0
    %5588 = vmatprep.subr.mxu0 0.0
    %5589 = vmatpush1.msra.mxu0 0.0
    %5590 = vmatprep.subr.mxu0 0.0
    %5591 = vmatpush1.msra.mxu0 0.0
    %5592 = vmatprep.subr.mxu0 0.0
    %5593 = vmatpush1.msra.mxu0 0.0
    %5594 = vmatprep.subr.mxu0 0.0
    %5595 = vmatpush1.msra.mxu0 0.0
    %5596 = vmatprep.subr.mxu0 0.0
    %5597 = vmatpush1.msra.mxu0 0.0
    %5598 = vmatprep.subr.mxu0 0.0
    %5599 = vmatpush1.msra.mxu0 0.0
    %5600 = vmatprep.subr.mxu0 0.0
    %5601 = vmatpush1.msra.mxu0 0.0
    %5602 = vmatprep.subr.mxu0 0.0
    %5603 = vmatpush1.msra.mxu0 0.0
    %5604 = vmatprep.subr.mxu0 0.0
    %5605 = vmatpush1.msra.mxu0 0.0
    %5606 = vmatprep.subr.mxu0 0.0
    %5607 = vmatpush1.msra.mxu0 0.0
    %5608 = vmatprep.subr.mxu0 0.0
    %5609 = vmatpush1.msra.mxu0 0.0
    %5610 = vmatprep.subr.mxu0 0.0
    %5611 = vmatpush1.msra.mxu0 0.0
    %5612 = vmatprep.subr.mxu0 0.0
    %5613 = vmatpush1.msra.mxu0 0.0
    %5614 = vmatprep.subr.mxu0 0.0
    %v5615 = vand.u32 %v3952, 4294901760
    %5616 = vmatpush1.msra.mxu0 %v5615
    %5617 = vmatprep.subr.mxu0 0.0
    %5618 = vmatpush2.msra.mxu0 0.0
    %5619 = vmatprep.subr.mxu0 0.0
    %5620 = vmatpush2.msra.mxu0 0.0
    %5621 = vmatprep.subr.mxu0 0.0
    %5622 = vmatpush2.msra.mxu0 0.0
    %5623 = vmatprep.subr.mxu0 0.0
    %5624 = vmatpush2.msra.mxu0 0.0
    %5625 = vmatprep.subr.mxu0 0.0
    %5626 = vmatpush2.msra.mxu0 0.0
    %5627 = vmatprep.subr.mxu0 0.0
    %5628 = vmatpush2.msra.mxu0 0.0
    %5629 = vmatprep.subr.mxu0 0.0
    %5630 = vmatpush2.msra.mxu0 0.0
    %5631 = vmatprep.subr.mxu0 0.0
    %5632 = vmatpush2.msra.mxu0 0.0
    %5633 = vmatprep.subr.mxu0 0.0
    %5634 = vmatpush2.msra.mxu0 0.0
    %5635 = vmatprep.subr.mxu0 0.0
    %5636 = vmatpush2.msra.mxu0 0.0
    %5637 = vmatprep.subr.mxu0 0.0
    %5638 = vmatpush2.msra.mxu0 0.0
    %5639 = vmatprep.subr.mxu0 0.0
    %5640 = vmatpush2.msra.mxu0 0.0
    %5641 = vmatprep.subr.mxu0 0.0
    %5642 = vmatpush2.msra.mxu0 0.0
    %5643 = vmatprep.subr.mxu0 0.0
    %5644 = vmatpush2.msra.mxu0 0.0
    %5645 = vmatprep.subr.mxu0 0.0
    %5646 = vmatpush2.msra.mxu0 0.0
    %5647 = vmatprep.subr.mxu0 0.0
    %5648 = vmatpush2.msra.mxu0 0.0
    %5649 = vmatprep.mubr.f32.mxu0 0.0
    %v5650 = vand.u32 %v5582, 4294901760
    %v5651 = vsub.f32 %v5582, %v5650
    %v5652 = vand.u32 %v5651, 4294901760
    %v5653 = vsub.f32 %v5651, %v5652
    %v5654 = vand.u32 %v5653, 4294901760
    %5655 = vmatmul.mubr.f32.gmra.mxu0 %v5654
    %v5656 = vpop.f32.mrf.mxu0
    %v5657 = vadd.f32 0.0, %v5656
    %v5658 = vpop.f32.mrf.mxu0
    %5659 = vdwg.mxu0
    %5660 = vmatprep.subr.mxu0 0.0
    %5661 = vmatpush1.msra.mxu0 0.0
    %5662 = vmatprep.subr.mxu0 0.0
    %5663 = vmatpush1.msra.mxu0 0.0
    %5664 = vmatprep.subr.mxu0 0.0
    %5665 = vmatpush1.msra.mxu0 0.0
    %5666 = vmatprep.subr.mxu0 0.0
    %5667 = vmatpush1.msra.mxu0 0.0
    %5668 = vmatprep.subr.mxu0 0.0
    %5669 = vmatpush1.msra.mxu0 0.0
    %5670 = vmatprep.subr.mxu0 0.0
    %5671 = vmatpush1.msra.mxu0 0.0
    %5672 = vmatprep.subr.mxu0 0.0
    %5673 = vmatpush1.msra.mxu0 0.0
    %5674 = vmatprep.subr.mxu0 0.0
    %5675 = vmatpush1.msra.mxu0 0.0
    %5676 = vmatprep.subr.mxu0 0.0
    %5677 = vmatpush1.msra.mxu0 0.0
    %5678 = vmatprep.subr.mxu0 0.0
    %5679 = vmatpush1.msra.mxu0 0.0
    %5680 = vmatprep.subr.mxu0 0.0
    %5681 = vmatpush1.msra.mxu0 0.0
    %5682 = vmatprep.subr.mxu0 0.0
    %5683 = vmatpush1.msra.mxu0 0.0
    %5684 = vmatprep.subr.mxu0 0.0
    %5685 = vmatpush1.msra.mxu0 0.0
    %5686 = vmatprep.subr.mxu0 0.0
    %5687 = vmatpush1.msra.mxu0 0.0
    %5688 = vmatprep.subr.mxu0 0.0
    %5689 = vmatpush1.msra.mxu0 0.0
    %5690 = vmatprep.subr.mxu0 0.0
    %v5691 = vand.u32 %v3952, 4294901760
    %v5692 = vsub.f32 %v3952, %v5691
    %v5693 = vand.u32 %v5692, 4294901760
    %v5694 = vsub.f32 %v5692, %v5693
    %v5695 = vand.u32 %v5694, 4294901760
    %5696 = vmatpush1.msra.mxu0 %v5695
    %5697 = vmatprep.subr.mxu0 0.0
    %5698 = vmatpush2.msra.mxu0 0.0
    %5699 = vmatprep.subr.mxu0 0.0
    %5700 = vmatpush2.msra.mxu0 0.0
    %5701 = vmatprep.subr.mxu0 0.0
    %5702 = vmatpush2.msra.mxu0 0.0
    %5703 = vmatprep.subr.mxu0 0.0
    %5704 = vmatpush2.msra.mxu0 0.0
    %5705 = vmatprep.subr.mxu0 0.0
    %5706 = vmatpush2.msra.mxu0 0.0
    %5707 = vmatprep.subr.mxu0 0.0
    %5708 = vmatpush2.msra.mxu0 0.0
    %5709 = vmatprep.subr.mxu0 0.0
    %5710 = vmatpush2.msra.mxu0 0.0
    %5711 = vmatprep.subr.mxu0 0.0
    %5712 = vmatpush2.msra.mxu0 0.0
    %5713 = vmatprep.subr.mxu0 0.0
    %5714 = vmatpush2.msra.mxu0 0.0
    %5715 = vmatprep.subr.mxu0 0.0
    %5716 = vmatpush2.msra.mxu0 0.0
    %5717 = vmatprep.subr.mxu0 0.0
    %5718 = vmatpush2.msra.mxu0 0.0
    %5719 = vmatprep.subr.mxu0 0.0
    %5720 = vmatpush2.msra.mxu0 0.0
    %5721 = vmatprep.subr.mxu0 0.0
    %5722 = vmatpush2.msra.mxu0 0.0
    %5723 = vmatprep.subr.mxu0 0.0
    %5724 = vmatpush2.msra.mxu0 0.0
    %5725 = vmatprep.subr.mxu0 0.0
    %5726 = vmatpush2.msra.mxu0 0.0
    %5727 = vmatprep.subr.mxu0 0.0
    %5728 = vmatpush2.msra.mxu0 0.0
    %5729 = vmatprep.mubr.f32.mxu0 0.0
    %v5730 = vand.u32 %v5582, 4294901760
    %5731 = vmatmul.mubr.f32.gmra.mxu0 %v5730
    %v5732 = vpop.f32.mrf.mxu0
    %v5733 = vadd.f32 %v5657, %v5732
    %v5734 = vpop.f32.mrf.mxu0
    %5735 = vdwg.mxu0
    %5736 = vmatprep.subr.mxu0 0.0
    %5737 = vmatpush1.msra.mxu0 0.0
    %5738 = vmatprep.subr.mxu0 0.0
    %5739 = vmatpush1.msra.mxu0 0.0
    %5740 = vmatprep.subr.mxu0 0.0
    %5741 = vmatpush1.msra.mxu0 0.0
    %5742 = vmatprep.subr.mxu0 0.0
    %5743 = vmatpush1.msra.mxu0 0.0
    %5744 = vmatprep.subr.mxu0 0.0
    %5745 = vmatpush1.msra.mxu0 0.0
    %5746 = vmatprep.subr.mxu0 0.0
    %5747 = vmatpush1.msra.mxu0 0.0
    %5748 = vmatprep.subr.mxu0 0.0
    %5749 = vmatpush1.msra.mxu0 0.0
    %5750 = vmatprep.subr.mxu0 0.0
    %5751 = vmatpush1.msra.mxu0 0.0
    %5752 = vmatprep.subr.mxu0 0.0
    %5753 = vmatpush1.msra.mxu0 0.0
    %5754 = vmatprep.subr.mxu0 0.0
    %5755 = vmatpush1.msra.mxu0 0.0
    %5756 = vmatprep.subr.mxu0 0.0
    %5757 = vmatpush1.msra.mxu0 0.0
    %5758 = vmatprep.subr.mxu0 0.0
    %5759 = vmatpush1.msra.mxu0 0.0
    %5760 = vmatprep.subr.mxu0 0.0
    %5761 = vmatpush1.msra.mxu0 0.0
    %5762 = vmatprep.subr.mxu0 0.0
    %5763 = vmatpush1.msra.mxu0 0.0
    %5764 = vmatprep.subr.mxu0 0.0
    %5765 = vmatpush1.msra.mxu0 0.0
    %5766 = vmatprep.subr.mxu0 0.0
    %v5767 = vand.u32 %v3952, 4294901760
    %v5768 = vsub.f32 %v3952, %v5767
    %5769 = vmatpush1.msra.mxu0 %v5768
    %5770 = vmatprep.subr.mxu0 0.0
    %5771 = vmatpush2.msra.mxu0 0.0
    %5772 = vmatprep.subr.mxu0 0.0
    %5773 = vmatpush2.msra.mxu0 0.0
    %5774 = vmatprep.subr.mxu0 0.0
    %5775 = vmatpush2.msra.mxu0 0.0
    %5776 = vmatprep.subr.mxu0 0.0
    %5777 = vmatpush2.msra.mxu0 0.0
    %5778 = vmatprep.subr.mxu0 0.0
    %5779 = vmatpush2.msra.mxu0 0.0
    %5780 = vmatprep.subr.mxu0 0.0
    %5781 = vmatpush2.msra.mxu0 0.0
    %5782 = vmatprep.subr.mxu0 0.0
    %5783 = vmatpush2.msra.mxu0 0.0
    %5784 = vmatprep.subr.mxu0 0.0
    %5785 = vmatpush2.msra.mxu0 0.0
    %5786 = vmatprep.subr.mxu0 0.0
    %5787 = vmatpush2.msra.mxu0 0.0
    %5788 = vmatprep.subr.mxu0 0.0
    %5789 = vmatpush2.msra.mxu0 0.0
    %5790 = vmatprep.subr.mxu0 0.0
    %5791 = vmatpush2.msra.mxu0 0.0
    %5792 = vmatprep.subr.mxu0 0.0
    %5793 = vmatpush2.msra.mxu0 0.0
    %5794 = vmatprep.subr.mxu0 0.0
    %5795 = vmatpush2.msra.mxu0 0.0
    %5796 = vmatprep.subr.mxu0 0.0
    %5797 = vmatpush2.msra.mxu0 0.0
    %5798 = vmatprep.subr.mxu0 0.0
    %5799 = vmatpush2.msra.mxu0 0.0
    %5800 = vmatprep.subr.mxu0 0.0
    %5801 = vmatpush2.msra.mxu0 0.0
    %5802 = vmatprep.mubr.f32.mxu0 0.0
    %v5803 = vand.u32 %v5582, 4294901760
    %v5804 = vsub.f32 %v5582, %v5803
    %5805 = vmatmul.mubr.f32.gmra.mxu0 %v5804
    %v5806 = vpop.f32.mrf.mxu0
    %v5807 = vadd.f32 %v5733, %v5806
    %v5808 = vpop.f32.mrf.mxu0
    %5809 = vdwg.mxu0
    %5810 = vmatprep.subr.mxu0 0.0
    %5811 = vmatpush1.msra.mxu0 0.0
    %5812 = vmatprep.subr.mxu0 0.0
    %5813 = vmatpush1.msra.mxu0 0.0
    %5814 = vmatprep.subr.mxu0 0.0
    %5815 = vmatpush1.msra.mxu0 0.0
    %5816 = vmatprep.subr.mxu0 0.0
    %5817 = vmatpush1.msra.mxu0 0.0
    %5818 = vmatprep.subr.mxu0 0.0
    %5819 = vmatpush1.msra.mxu0 0.0
    %5820 = vmatprep.subr.mxu0 0.0
    %5821 = vmatpush1.msra.mxu0 0.0
    %5822 = vmatprep.subr.mxu0 0.0
    %5823 = vmatpush1.msra.mxu0 0.0
    %5824 = vmatprep.subr.mxu0 0.0
    %5825 = vmatpush1.msra.mxu0 0.0
    %5826 = vmatprep.subr.mxu0 0.0
    %5827 = vmatpush1.msra.mxu0 0.0
    %5828 = vmatprep.subr.mxu0 0.0
    %5829 = vmatpush1.msra.mxu0 0.0
    %5830 = vmatprep.subr.mxu0 0.0
    %5831 = vmatpush1.msra.mxu0 0.0
    %5832 = vmatprep.subr.mxu0 0.0
    %5833 = vmatpush1.msra.mxu0 0.0
    %5834 = vmatprep.subr.mxu0 0.0
    %5835 = vmatpush1.msra.mxu0 0.0
    %5836 = vmatprep.subr.mxu0 0.0
    %5837 = vmatpush1.msra.mxu0 0.0
    %5838 = vmatprep.subr.mxu0 0.0
    %5839 = vmatpush1.msra.mxu0 0.0
    %5840 = vmatprep.subr.mxu0 0.0
    %v5841 = vand.u32 %v3952, 4294901760
    %5842 = vmatpush1.msra.mxu0 %v5841
    %5843 = vmatprep.subr.mxu0 0.0
    %5844 = vmatpush2.msra.mxu0 0.0
    %5845 = vmatprep.subr.mxu0 0.0
    %5846 = vmatpush2.msra.mxu0 0.0
    %5847 = vmatprep.subr.mxu0 0.0
    %5848 = vmatpush2.msra.mxu0 0.0
    %5849 = vmatprep.subr.mxu0 0.0
    %5850 = vmatpush2.msra.mxu0 0.0
    %5851 = vmatprep.subr.mxu0 0.0
    %5852 = vmatpush2.msra.mxu0 0.0
    %5853 = vmatprep.subr.mxu0 0.0
    %5854 = vmatpush2.msra.mxu0 0.0
    %5855 = vmatprep.subr.mxu0 0.0
    %5856 = vmatpush2.msra.mxu0 0.0
    %5857 = vmatprep.subr.mxu0 0.0
    %5858 = vmatpush2.msra.mxu0 0.0
    %5859 = vmatprep.subr.mxu0 0.0
    %5860 = vmatpush2.msra.mxu0 0.0
    %5861 = vmatprep.subr.mxu0 0.0
    %5862 = vmatpush2.msra.mxu0 0.0
    %5863 = vmatprep.subr.mxu0 0.0
    %5864 = vmatpush2.msra.mxu0 0.0
    %5865 = vmatprep.subr.mxu0 0.0
    %5866 = vmatpush2.msra.mxu0 0.0
    %5867 = vmatprep.subr.mxu0 0.0
    %5868 = vmatpush2.msra.mxu0 0.0
    %5869 = vmatprep.subr.mxu0 0.0
    %5870 = vmatpush2.msra.mxu0 0.0
    %5871 = vmatprep.subr.mxu0 0.0
    %5872 = vmatpush2.msra.mxu0 0.0
    %5873 = vmatprep.subr.mxu0 0.0
    %5874 = vmatpush2.msra.mxu0 0.0
    %5875 = vmatprep.mubr.f32.mxu0 0.0
    %v5876 = vand.u32 %v5582, 4294901760
    %v5877 = vsub.f32 %v5582, %v5876
    %v5878 = vand.u32 %v5877, 4294901760
    %5879 = vmatmul.mubr.f32.gmra.mxu0 %v5878
    %v5880 = vpop.f32.mrf.mxu0
    %v5881 = vadd.f32 %v5807, %v5880
    %v5882 = vpop.f32.mrf.mxu0
    %5883 = vdwg.mxu0
    %5884 = vmatprep.subr.mxu0 0.0
    %5885 = vmatpush1.msra.mxu0 0.0
    %5886 = vmatprep.subr.mxu0 0.0
    %5887 = vmatpush1.msra.mxu0 0.0
    %5888 = vmatprep.subr.mxu0 0.0
    %5889 = vmatpush1.msra.mxu0 0.0
    %5890 = vmatprep.subr.mxu0 0.0
    %5891 = vmatpush1.msra.mxu0 0.0
    %5892 = vmatprep.subr.mxu0 0.0
    %5893 = vmatpush1.msra.mxu0 0.0
    %5894 = vmatprep.subr.mxu0 0.0
    %5895 = vmatpush1.msra.mxu0 0.0
    %5896 = vmatprep.subr.mxu0 0.0
    %5897 = vmatpush1.msra.mxu0 0.0
    %5898 = vmatprep.subr.mxu0 0.0
    %5899 = vmatpush1.msra.mxu0 0.0
    %5900 = vmatprep.subr.mxu0 0.0
    %5901 = vmatpush1.msra.mxu0 0.0
    %5902 = vmatprep.subr.mxu0 0.0
    %5903 = vmatpush1.msra.mxu0 0.0
    %5904 = vmatprep.subr.mxu0 0.0
    %5905 = vmatpush1.msra.mxu0 0.0
    %5906 = vmatprep.subr.mxu0 0.0
    %5907 = vmatpush1.msra.mxu0 0.0
    %5908 = vmatprep.subr.mxu0 0.0
    %5909 = vmatpush1.msra.mxu0 0.0
    %5910 = vmatprep.subr.mxu0 0.0
    %5911 = vmatpush1.msra.mxu0 0.0
    %5912 = vmatprep.subr.mxu0 0.0
    %5913 = vmatpush1.msra.mxu0 0.0
    %5914 = vmatprep.subr.mxu0 0.0
    %v5915 = vand.u32 %v3952, 4294901760
    %v5916 = vsub.f32 %v3952, %v5915
    %v5917 = vand.u32 %v5916, 4294901760
    %5918 = vmatpush1.msra.mxu0 %v5917
    %5919 = vmatprep.subr.mxu0 0.0
    %5920 = vmatpush2.msra.mxu0 0.0
    %5921 = vmatprep.subr.mxu0 0.0
    %5922 = vmatpush2.msra.mxu0 0.0
    %5923 = vmatprep.subr.mxu0 0.0
    %5924 = vmatpush2.msra.mxu0 0.0
    %5925 = vmatprep.subr.mxu0 0.0
    %5926 = vmatpush2.msra.mxu0 0.0
    %5927 = vmatprep.subr.mxu0 0.0
    %5928 = vmatpush2.msra.mxu0 0.0
    %5929 = vmatprep.subr.mxu0 0.0
    %5930 = vmatpush2.msra.mxu0 0.0
    %5931 = vmatprep.subr.mxu0 0.0
    %5932 = vmatpush2.msra.mxu0 0.0
    %5933 = vmatprep.subr.mxu0 0.0
    %5934 = vmatpush2.msra.mxu0 0.0
    %5935 = vmatprep.subr.mxu0 0.0
    %5936 = vmatpush2.msra.mxu0 0.0
    %5937 = vmatprep.subr.mxu0 0.0
    %5938 = vmatpush2.msra.mxu0 0.0
    %5939 = vmatprep.subr.mxu0 0.0
    %5940 = vmatpush2.msra.mxu0 0.0
    %5941 = vmatprep.subr.mxu0 0.0
    %5942 = vmatpush2.msra.mxu0 0.0
    %5943 = vmatprep.subr.mxu0 0.0
    %5944 = vmatpush2.msra.mxu0 0.0
    %5945 = vmatprep.subr.mxu0 0.0
    %5946 = vmatpush2.msra.mxu0 0.0
    %5947 = vmatprep.subr.mxu0 0.0
    %5948 = vmatpush2.msra.mxu0 0.0
    %5949 = vmatprep.subr.mxu0 0.0
    %5950 = vmatpush2.msra.mxu0 0.0
    %5951 = vmatprep.mubr.f32.mxu0 0.0
    %v5952 = vand.u32 %v5582, 4294901760
    %5953 = vmatmul.mubr.f32.gmra.mxu0 %v5952
    %v5954 = vpop.f32.mrf.mxu0
    %v5955 = vadd.f32 %v5881, %v5954
    %v5956 = vpop.f32.mrf.mxu0
    %5957 = vdwg.mxu0
    %5958 = vmatprep.subr.mxu0 0.0
    %5959 = vmatpush1.msra.mxu0 0.0
    %5960 = vmatprep.subr.mxu0 0.0
    %5961 = vmatpush1.msra.mxu0 0.0
    %5962 = vmatprep.subr.mxu0 0.0
    %5963 = vmatpush1.msra.mxu0 0.0
    %5964 = vmatprep.subr.mxu0 0.0
    %5965 = vmatpush1.msra.mxu0 0.0
    %5966 = vmatprep.subr.mxu0 0.0
    %5967 = vmatpush1.msra.mxu0 0.0
    %5968 = vmatprep.subr.mxu0 0.0
    %5969 = vmatpush1.msra.mxu0 0.0
    %5970 = vmatprep.subr.mxu0 0.0
    %5971 = vmatpush1.msra.mxu0 0.0
    %5972 = vmatprep.subr.mxu0 0.0
    %5973 = vmatpush1.msra.mxu0 0.0
    %5974 = vmatprep.subr.mxu0 0.0
    %5975 = vmatpush1.msra.mxu0 0.0
    %5976 = vmatprep.subr.mxu0 0.0
    %5977 = vmatpush1.msra.mxu0 0.0
    %5978 = vmatprep.subr.mxu0 0.0
    %5979 = vmatpush1.msra.mxu0 0.0
    %5980 = vmatprep.subr.mxu0 0.0
    %5981 = vmatpush1.msra.mxu0 0.0
    %5982 = vmatprep.subr.mxu0 0.0
    %5983 = vmatpush1.msra.mxu0 0.0
    %5984 = vmatprep.subr.mxu0 0.0
    %5985 = vmatpush1.msra.mxu0 0.0
    %5986 = vmatprep.subr.mxu0 0.0
    %5987 = vmatpush1.msra.mxu0 0.0
    %5988 = vmatprep.subr.mxu0 0.0
    %v5989 = vand.u32 %v3952, 4294901760
    %5990 = vmatpush1.msra.mxu0 %v5989
    %5991 = vmatprep.subr.mxu0 0.0
    %5992 = vmatpush2.msra.mxu0 0.0
    %5993 = vmatprep.subr.mxu0 0.0
    %5994 = vmatpush2.msra.mxu0 0.0
    %5995 = vmatprep.subr.mxu0 0.0
    %5996 = vmatpush2.msra.mxu0 0.0
    %5997 = vmatprep.subr.mxu0 0.0
    %5998 = vmatpush2.msra.mxu0 0.0
    %5999 = vmatprep.subr.mxu0 0.0
    %6000 = vmatpush2.msra.mxu0 0.0
    %6001 = vmatprep.subr.mxu0 0.0
    %6002 = vmatpush2.msra.mxu0 0.0
    %6003 = vmatprep.subr.mxu0 0.0
    %6004 = vmatpush2.msra.mxu0 0.0
    %6005 = vmatprep.subr.mxu0 0.0
    %6006 = vmatpush2.msra.mxu0 0.0
    %6007 = vmatprep.subr.mxu0 0.0
    %6008 = vmatpush2.msra.mxu0 0.0
    %6009 = vmatprep.subr.mxu0 0.0
    %6010 = vmatpush2.msra.mxu0 0.0
    %6011 = vmatprep.subr.mxu0 0.0
    %6012 = vmatpush2.msra.mxu0 0.0
    %6013 = vmatprep.subr.mxu0 0.0
    %6014 = vmatpush2.msra.mxu0 0.0
    %6015 = vmatprep.subr.mxu0 0.0
    %6016 = vmatpush2.msra.mxu0 0.0
    %6017 = vmatprep.subr.mxu0 0.0
    %6018 = vmatpush2.msra.mxu0 0.0
    %6019 = vmatprep.subr.mxu0 0.0
    %6020 = vmatpush2.msra.mxu0 0.0
    %6021 = vmatprep.subr.mxu0 0.0
    %6022 = vmatpush2.msra.mxu0 0.0
    %6023 = vmatprep.mubr.f32.mxu0 0.0
    %v6024 = vand.u32 %v5582, 4294901760
    %6025 = vmatmul.mubr.f32.gmra.mxu0 %v6024
    %v6026 = vpop.f32.mrf.mxu0
    %v6027 = vadd.f32 %v5955, %v6026
    %v6028 = vpop.f32.mrf.mxu0
    %6029 = vdwg.mxu0
    %v6031 = vsel %vm4233, %v4229, 0
    %6033 = vmatprep.subr.mxu0 0.0
    %6034 = vmatpush1.msra.mxu0 0.0
    %6035 = vmatprep.subr.mxu0 0.0
    %6036 = vmatpush1.msra.mxu0 0.0
    %6037 = vmatprep.subr.mxu0 0.0
    %6038 = vmatpush1.msra.mxu0 0.0
    %6039 = vmatprep.subr.mxu0 0.0
    %6040 = vmatpush1.msra.mxu0 0.0
    %6041 = vmatprep.subr.mxu0 0.0
    %6042 = vmatpush1.msra.mxu0 0.0
    %6043 = vmatprep.subr.mxu0 0.0
    %6044 = vmatpush1.msra.mxu0 0.0
    %6045 = vmatprep.subr.mxu0 0.0
    %6046 = vmatpush1.msra.mxu0 0.0
    %6047 = vmatprep.subr.mxu0 0.0
    %6048 = vmatpush1.msra.mxu0 0.0
    %6049 = vmatprep.subr.mxu0 0.0
    %6050 = vmatpush1.msra.mxu0 0.0
    %6051 = vmatprep.subr.mxu0 0.0
    %6052 = vmatpush1.msra.mxu0 0.0
    %6053 = vmatprep.subr.mxu0 0.0
    %6054 = vmatpush1.msra.mxu0 0.0
    %6055 = vmatprep.subr.mxu0 0.0
    %6056 = vmatpush1.msra.mxu0 0.0
    %6057 = vmatprep.subr.mxu0 0.0
    %6058 = vmatpush1.msra.mxu0 0.0
    %6059 = vmatprep.subr.mxu0 0.0
    %6060 = vmatpush1.msra.mxu0 0.0
    %6061 = vmatprep.subr.mxu0 0.0
    %6062 = vmatpush1.msra.mxu0 0.0
    %6063 = vmatprep.subr.mxu0 0.0
    %v6064 = vand.u32 %v4015, 4294901760
    %6065 = vmatpush1.msra.mxu0 %v6064
    %6066 = vmatprep.subr.mxu0 0.0
    %6067 = vmatpush2.msra.mxu0 0.0
    %6068 = vmatprep.subr.mxu0 0.0
    %6069 = vmatpush2.msra.mxu0 0.0
    %6070 = vmatprep.subr.mxu0 0.0
    %6071 = vmatpush2.msra.mxu0 0.0
    %6072 = vmatprep.subr.mxu0 0.0
    %6073 = vmatpush2.msra.mxu0 0.0
    %6074 = vmatprep.subr.mxu0 0.0
    %6075 = vmatpush2.msra.mxu0 0.0
    %6076 = vmatprep.subr.mxu0 0.0
    %6077 = vmatpush2.msra.mxu0 0.0
    %6078 = vmatprep.subr.mxu0 0.0
    %6079 = vmatpush2.msra.mxu0 0.0
    %6080 = vmatprep.subr.mxu0 0.0
    %6081 = vmatpush2.msra.mxu0 0.0
    %6082 = vmatprep.subr.mxu0 0.0
    %6083 = vmatpush2.msra.mxu0 0.0
    %6084 = vmatprep.subr.mxu0 0.0
    %6085 = vmatpush2.msra.mxu0 0.0
    %6086 = vmatprep.subr.mxu0 0.0
    %6087 = vmatpush2.msra.mxu0 0.0
    %6088 = vmatprep.subr.mxu0 0.0
    %6089 = vmatpush2.msra.mxu0 0.0
    %6090 = vmatprep.subr.mxu0 0.0
    %6091 = vmatpush2.msra.mxu0 0.0
    %6092 = vmatprep.subr.mxu0 0.0
    %6093 = vmatpush2.msra.mxu0 0.0
    %6094 = vmatprep.subr.mxu0 0.0
    %6095 = vmatpush2.msra.mxu0 0.0
    %6096 = vmatprep.subr.mxu0 0.0
    %6097 = vmatpush2.msra.mxu0 0.0
    %6098 = vmatprep.mubr.f32.mxu0 0.0
    %v6099 = vand.u32 %v6031, 4294901760
    %v6100 = vsub.f32 %v6031, %v6099
    %v6101 = vand.u32 %v6100, 4294901760
    %v6102 = vsub.f32 %v6100, %v6101
    %v6103 = vand.u32 %v6102, 4294901760
    %6104 = vmatmul.mubr.f32.gmra.mxu0 %v6103
    %v6105 = vpop.f32.mrf.mxu0
    %v6106 = vadd.f32 0.0, %v6105
    %v6107 = vpop.f32.mrf.mxu0
    %6108 = vdwg.mxu0
    %6109 = vmatprep.subr.mxu0 0.0
    %6110 = vmatpush1.msra.mxu0 0.0
    %6111 = vmatprep.subr.mxu0 0.0
    %6112 = vmatpush1.msra.mxu0 0.0
    %6113 = vmatprep.subr.mxu0 0.0
    %6114 = vmatpush1.msra.mxu0 0.0
    %6115 = vmatprep.subr.mxu0 0.0
    %6116 = vmatpush1.msra.mxu0 0.0
    %6117 = vmatprep.subr.mxu0 0.0
    %6118 = vmatpush1.msra.mxu0 0.0
    %6119 = vmatprep.subr.mxu0 0.0
    %6120 = vmatpush1.msra.mxu0 0.0
    %6121 = vmatprep.subr.mxu0 0.0
    %6122 = vmatpush1.msra.mxu0 0.0
    %6123 = vmatprep.subr.mxu0 0.0
    %6124 = vmatpush1.msra.mxu0 0.0
    %6125 = vmatprep.subr.mxu0 0.0
    %6126 = vmatpush1.msra.mxu0 0.0
    %6127 = vmatprep.subr.mxu0 0.0
    %6128 = vmatpush1.msra.mxu0 0.0
    %6129 = vmatprep.subr.mxu0 0.0
    %6130 = vmatpush1.msra.mxu0 0.0
    %6131 = vmatprep.subr.mxu0 0.0
    %6132 = vmatpush1.msra.mxu0 0.0
    %6133 = vmatprep.subr.mxu0 0.0
    %6134 = vmatpush1.msra.mxu0 0.0
    %6135 = vmatprep.subr.mxu0 0.0
    %6136 = vmatpush1.msra.mxu0 0.0
    %6137 = vmatprep.subr.mxu0 0.0
    %6138 = vmatpush1.msra.mxu0 0.0
    %6139 = vmatprep.subr.mxu0 0.0
    %v6140 = vand.u32 %v4015, 4294901760
    %v6141 = vsub.f32 %v4015, %v6140
    %v6142 = vand.u32 %v6141, 4294901760
    %v6143 = vsub.f32 %v6141, %v6142
    %v6144 = vand.u32 %v6143, 4294901760
    %6145 = vmatpush1.msra.mxu0 %v6144
    %6146 = vmatprep.subr.mxu0 0.0
    %6147 = vmatpush2.msra.mxu0 0.0
    %6148 = vmatprep.subr.mxu0 0.0
    %6149 = vmatpush2.msra.mxu0 0.0
    %6150 = vmatprep.subr.mxu0 0.0
    %6151 = vmatpush2.msra.mxu0 0.0
    %6152 = vmatprep.subr.mxu0 0.0
    %6153 = vmatpush2.msra.mxu0 0.0
    %6154 = vmatprep.subr.mxu0 0.0
    %6155 = vmatpush2.msra.mxu0 0.0
    %6156 = vmatprep.subr.mxu0 0.0
    %6157 = vmatpush2.msra.mxu0 0.0
    %6158 = vmatprep.subr.mxu0 0.0
    %6159 = vmatpush2.msra.mxu0 0.0
    %6160 = vmatprep.subr.mxu0 0.0
    %6161 = vmatpush2.msra.mxu0 0.0
    %6162 = vmatprep.subr.mxu0 0.0
    %6163 = vmatpush2.msra.mxu0 0.0
    %6164 = vmatprep.subr.mxu0 0.0
    %6165 = vmatpush2.msra.mxu0 0.0
    %6166 = vmatprep.subr.mxu0 0.0
    %6167 = vmatpush2.msra.mxu0 0.0
    %6168 = vmatprep.subr.mxu0 0.0
    %6169 = vmatpush2.msra.mxu0 0.0
    %6170 = vmatprep.subr.mxu0 0.0
    %6171 = vmatpush2.msra.mxu0 0.0
    %6172 = vmatprep.subr.mxu0 0.0
    %6173 = vmatpush2.msra.mxu0 0.0
    %6174 = vmatprep.subr.mxu0 0.0
    %6175 = vmatpush2.msra.mxu0 0.0
    %6176 = vmatprep.subr.mxu0 0.0
    %6177 = vmatpush2.msra.mxu0 0.0
    %6178 = vmatprep.mubr.f32.mxu0 0.0
    %v6179 = vand.u32 %v6031, 4294901760
    %6180 = vmatmul.mubr.f32.gmra.mxu0 %v6179
    %v6181 = vpop.f32.mrf.mxu0
    %v6182 = vadd.f32 %v6106, %v6181
    %v6183 = vpop.f32.mrf.mxu0
    %6184 = vdwg.mxu0
    %6185 = vmatprep.subr.mxu0 0.0
    %6186 = vmatpush1.msra.mxu0 0.0
    %6187 = vmatprep.subr.mxu0 0.0
    %6188 = vmatpush1.msra.mxu0 0.0
    %6189 = vmatprep.subr.mxu0 0.0
    %6190 = vmatpush1.msra.mxu0 0.0
    %6191 = vmatprep.subr.mxu0 0.0
    %6192 = vmatpush1.msra.mxu0 0.0
    %6193 = vmatprep.subr.mxu0 0.0
    %6194 = vmatpush1.msra.mxu0 0.0
    %6195 = vmatprep.subr.mxu0 0.0
    %6196 = vmatpush1.msra.mxu0 0.0
    %6197 = vmatprep.subr.mxu0 0.0
    %6198 = vmatpush1.msra.mxu0 0.0
    %6199 = vmatprep.subr.mxu0 0.0
    %6200 = vmatpush1.msra.mxu0 0.0
    %6201 = vmatprep.subr.mxu0 0.0
    %6202 = vmatpush1.msra.mxu0 0.0
    %6203 = vmatprep.subr.mxu0 0.0
    %6204 = vmatpush1.msra.mxu0 0.0
    %6205 = vmatprep.subr.mxu0 0.0
    %6206 = vmatpush1.msra.mxu0 0.0
    %6207 = vmatprep.subr.mxu0 0.0
    %6208 = vmatpush1.msra.mxu0 0.0
    %6209 = vmatprep.subr.mxu0 0.0
    %6210 = vmatpush1.msra.mxu0 0.0
    %6211 = vmatprep.subr.mxu0 0.0
    %6212 = vmatpush1.msra.mxu0 0.0
    %6213 = vmatprep.subr.mxu0 0.0
    %6214 = vmatpush1.msra.mxu0 0.0
    %6215 = vmatprep.subr.mxu0 0.0
    %v6216 = vand.u32 %v4015, 4294901760
    %v6217 = vsub.f32 %v4015, %v6216
    %6218 = vmatpush1.msra.mxu0 %v6217
    %6219 = vmatprep.subr.mxu0 0.0
    %6220 = vmatpush2.msra.mxu0 0.0
    %6221 = vmatprep.subr.mxu0 0.0
    %6222 = vmatpush2.msra.mxu0 0.0
    %6223 = vmatprep.subr.mxu0 0.0
    %6224 = vmatpush2.msra.mxu0 0.0
    %6225 = vmatprep.subr.mxu0 0.0
    %6226 = vmatpush2.msra.mxu0 0.0
    %6227 = vmatprep.subr.mxu0 0.0
    %6228 = vmatpush2.msra.mxu0 0.0
    %6229 = vmatprep.subr.mxu0 0.0
    %6230 = vmatpush2.msra.mxu0 0.0
    %6231 = vmatprep.subr.mxu0 0.0
    %6232 = vmatpush2.msra.mxu0 0.0
    %6233 = vmatprep.subr.mxu0 0.0
    %6234 = vmatpush2.msra.mxu0 0.0
    %6235 = vmatprep.subr.mxu0 0.0
    %6236 = vmatpush2.msra.mxu0 0.0
    %6237 = vmatprep.subr.mxu0 0.0
    %6238 = vmatpush2.msra.mxu0 0.0
    %6239 = vmatprep.subr.mxu0 0.0
    %6240 = vmatpush2.msra.mxu0 0.0
    %6241 = vmatprep.subr.mxu0 0.0
    %6242 = vmatpush2.msra.mxu0 0.0
    %6243 = vmatprep.subr.mxu0 0.0
    %6244 = vmatpush2.msra.mxu0 0.0
    %6245 = vmatprep.subr.mxu0 0.0
    %6246 = vmatpush2.msra.mxu0 0.0
    %6247 = vmatprep.subr.mxu0 0.0
    %6248 = vmatpush2.msra.mxu0 0.0
    %6249 = vmatprep.subr.mxu0 0.0
    %6250 = vmatpush2.msra.mxu0 0.0
    %6251 = vmatprep.mubr.f32.mxu0 0.0
    %v6252 = vand.u32 %v6031, 4294901760
    %v6253 = vsub.f32 %v6031, %v6252
    %6254 = vmatmul.mubr.f32.gmra.mxu0 %v6253
    %v6255 = vpop.f32.mrf.mxu0
    %v6256 = vadd.f32 %v6182, %v6255
    %v6257 = vpop.f32.mrf.mxu0
    %6258 = vdwg.mxu0
    %6259 = vmatprep.subr.mxu0 0.0
    %6260 = vmatpush1.msra.mxu0 0.0
    %6261 = vmatprep.subr.mxu0 0.0
    %6262 = vmatpush1.msra.mxu0 0.0
    %6263 = vmatprep.subr.mxu0 0.0
    %6264 = vmatpush1.msra.mxu0 0.0
    %6265 = vmatprep.subr.mxu0 0.0
    %6266 = vmatpush1.msra.mxu0 0.0
    %6267 = vmatprep.subr.mxu0 0.0
    %6268 = vmatpush1.msra.mxu0 0.0
    %6269 = vmatprep.subr.mxu0 0.0
    %6270 = vmatpush1.msra.mxu0 0.0
    %6271 = vmatprep.subr.mxu0 0.0
    %6272 = vmatpush1.msra.mxu0 0.0
    %6273 = vmatprep.subr.mxu0 0.0
    %6274 = vmatpush1.msra.mxu0 0.0
    %6275 = vmatprep.subr.mxu0 0.0
    %6276 = vmatpush1.msra.mxu0 0.0
    %6277 = vmatprep.subr.mxu0 0.0
    %6278 = vmatpush1.msra.mxu0 0.0
    %6279 = vmatprep.subr.mxu0 0.0
    %6280 = vmatpush1.msra.mxu0 0.0
    %6281 = vmatprep.subr.mxu0 0.0
    %6282 = vmatpush1.msra.mxu0 0.0
    %6283 = vmatprep.subr.mxu0 0.0
    %6284 = vmatpush1.msra.mxu0 0.0
    %6285 = vmatprep.subr.mxu0 0.0
    %6286 = vmatpush1.msra.mxu0 0.0
    %6287 = vmatprep.subr.mxu0 0.0
    %6288 = vmatpush1.msra.mxu0 0.0
    %6289 = vmatprep.subr.mxu0 0.0
    %v6290 = vand.u32 %v4015, 4294901760
    %6291 = vmatpush1.msra.mxu0 %v6290
    %6292 = vmatprep.subr.mxu0 0.0
    %6293 = vmatpush2.msra.mxu0 0.0
    %6294 = vmatprep.subr.mxu0 0.0
    %6295 = vmatpush2.msra.mxu0 0.0
    %6296 = vmatprep.subr.mxu0 0.0
    %6297 = vmatpush2.msra.mxu0 0.0
    %6298 = vmatprep.subr.mxu0 0.0
    %6299 = vmatpush2.msra.mxu0 0.0
    %6300 = vmatprep.subr.mxu0 0.0
    %6301 = vmatpush2.msra.mxu0 0.0
    %6302 = vmatprep.subr.mxu0 0.0
    %6303 = vmatpush2.msra.mxu0 0.0
    %6304 = vmatprep.subr.mxu0 0.0
    %6305 = vmatpush2.msra.mxu0 0.0
    %6306 = vmatprep.subr.mxu0 0.0
    %6307 = vmatpush2.msra.mxu0 0.0
    %6308 = vmatprep.subr.mxu0 0.0
    %6309 = vmatpush2.msra.mxu0 0.0
    %6310 = vmatprep.subr.mxu0 0.0
    %6311 = vmatpush2.msra.mxu0 0.0
    %6312 = vmatprep.subr.mxu0 0.0
    %6313 = vmatpush2.msra.mxu0 0.0
    %6314 = vmatprep.subr.mxu0 0.0
    %6315 = vmatpush2.msra.mxu0 0.0
    %6316 = vmatprep.subr.mxu0 0.0
    %6317 = vmatpush2.msra.mxu0 0.0
    %6318 = vmatprep.subr.mxu0 0.0
    %6319 = vmatpush2.msra.mxu0 0.0
    %6320 = vmatprep.subr.mxu0 0.0
    %6321 = vmatpush2.msra.mxu0 0.0
    %6322 = vmatprep.subr.mxu0 0.0
    %6323 = vmatpush2.msra.mxu0 0.0
    %6324 = vmatprep.mubr.f32.mxu0 0.0
    %v6325 = vand.u32 %v6031, 4294901760
    %v6326 = vsub.f32 %v6031, %v6325
    %v6327 = vand.u32 %v6326, 4294901760
    %6328 = vmatmul.mubr.f32.gmra.mxu0 %v6327
    %v6329 = vpop.f32.mrf.mxu0
    %v6330 = vadd.f32 %v6256, %v6329
    %v6331 = vpop.f32.mrf.mxu0
    %6332 = vdwg.mxu0
    %6333 = vmatprep.subr.mxu0 0.0
    %6334 = vmatpush1.msra.mxu0 0.0
    %6335 = vmatprep.subr.mxu0 0.0
    %6336 = vmatpush1.msra.mxu0 0.0
    %6337 = vmatprep.subr.mxu0 0.0
    %6338 = vmatpush1.msra.mxu0 0.0
    %6339 = vmatprep.subr.mxu0 0.0
    %6340 = vmatpush1.msra.mxu0 0.0
    %6341 = vmatprep.subr.mxu0 0.0
    %6342 = vmatpush1.msra.mxu0 0.0
    %6343 = vmatprep.subr.mxu0 0.0
    %6344 = vmatpush1.msra.mxu0 0.0
    %6345 = vmatprep.subr.mxu0 0.0
    %6346 = vmatpush1.msra.mxu0 0.0
    %6347 = vmatprep.subr.mxu0 0.0
    %6348 = vmatpush1.msra.mxu0 0.0
    %6349 = vmatprep.subr.mxu0 0.0
    %6350 = vmatpush1.msra.mxu0 0.0
    %6351 = vmatprep.subr.mxu0 0.0
    %6352 = vmatpush1.msra.mxu0 0.0
    %6353 = vmatprep.subr.mxu0 0.0
    %6354 = vmatpush1.msra.mxu0 0.0
    %6355 = vmatprep.subr.mxu0 0.0
    %6356 = vmatpush1.msra.mxu0 0.0
    %6357 = vmatprep.subr.mxu0 0.0
    %6358 = vmatpush1.msra.mxu0 0.0
    %6359 = vmatprep.subr.mxu0 0.0
    %6360 = vmatpush1.msra.mxu0 0.0
    %6361 = vmatprep.subr.mxu0 0.0
    %6362 = vmatpush1.msra.mxu0 0.0
    %6363 = vmatprep.subr.mxu0 0.0
    %v6364 = vand.u32 %v4015, 4294901760
    %v6365 = vsub.f32 %v4015, %v6364
    %v6366 = vand.u32 %v6365, 4294901760
    %6367 = vmatpush1.msra.mxu0 %v6366
    %6368 = vmatprep.subr.mxu0 0.0
    %6369 = vmatpush2.msra.mxu0 0.0
    %6370 = vmatprep.subr.mxu0 0.0
    %6371 = vmatpush2.msra.mxu0 0.0
    %6372 = vmatprep.subr.mxu0 0.0
    %6373 = vmatpush2.msra.mxu0 0.0
    %6374 = vmatprep.subr.mxu0 0.0
    %6375 = vmatpush2.msra.mxu0 0.0
    %6376 = vmatprep.subr.mxu0 0.0
    %6377 = vmatpush2.msra.mxu0 0.0
    %6378 = vmatprep.subr.mxu0 0.0
    %6379 = vmatpush2.msra.mxu0 0.0
    %6380 = vmatprep.subr.mxu0 0.0
    %6381 = vmatpush2.msra.mxu0 0.0
    %6382 = vmatprep.subr.mxu0 0.0
    %6383 = vmatpush2.msra.mxu0 0.0
    %6384 = vmatprep.subr.mxu0 0.0
    %6385 = vmatpush2.msra.mxu0 0.0
    %6386 = vmatprep.subr.mxu0 0.0
    %6387 = vmatpush2.msra.mxu0 0.0
    %6388 = vmatprep.subr.mxu0 0.0
    %6389 = vmatpush2.msra.mxu0 0.0
    %6390 = vmatprep.subr.mxu0 0.0
    %6391 = vmatpush2.msra.mxu0 0.0
    %6392 = vmatprep.subr.mxu0 0.0
    %6393 = vmatpush2.msra.mxu0 0.0
    %6394 = vmatprep.subr.mxu0 0.0
    %6395 = vmatpush2.msra.mxu0 0.0
    %6396 = vmatprep.subr.mxu0 0.0
    %6397 = vmatpush2.msra.mxu0 0.0
    %6398 = vmatprep.subr.mxu0 0.0
    %6399 = vmatpush2.msra.mxu0 0.0
    %6400 = vmatprep.mubr.f32.mxu0 0.0
    %v6401 = vand.u32 %v6031, 4294901760
    %6402 = vmatmul.mubr.f32.gmra.mxu0 %v6401
    %v6403 = vpop.f32.mrf.mxu0
    %v6404 = vadd.f32 %v6330, %v6403
    %v6405 = vpop.f32.mrf.mxu0
    %6406 = vdwg.mxu0
    %6407 = vmatprep.subr.mxu0 0.0
    %6408 = vmatpush1.msra.mxu0 0.0
    %6409 = vmatprep.subr.mxu0 0.0
    %6410 = vmatpush1.msra.mxu0 0.0
    %6411 = vmatprep.subr.mxu0 0.0
    %6412 = vmatpush1.msra.mxu0 0.0
    %6413 = vmatprep.subr.mxu0 0.0
    %6414 = vmatpush1.msra.mxu0 0.0
    %6415 = vmatprep.subr.mxu0 0.0
    %6416 = vmatpush1.msra.mxu0 0.0
    %6417 = vmatprep.subr.mxu0 0.0
    %6418 = vmatpush1.msra.mxu0 0.0
    %6419 = vmatprep.subr.mxu0 0.0
    %6420 = vmatpush1.msra.mxu0 0.0
    %6421 = vmatprep.subr.mxu0 0.0
    %6422 = vmatpush1.msra.mxu0 0.0
    %6423 = vmatprep.subr.mxu0 0.0
    %6424 = vmatpush1.msra.mxu0 0.0
    %6425 = vmatprep.subr.mxu0 0.0
    %6426 = vmatpush1.msra.mxu0 0.0
    %6427 = vmatprep.subr.mxu0 0.0
    %6428 = vmatpush1.msra.mxu0 0.0
    %6429 = vmatprep.subr.mxu0 0.0
    %6430 = vmatpush1.msra.mxu0 0.0
    %6431 = vmatprep.subr.mxu0 0.0
    %6432 = vmatpush1.msra.mxu0 0.0
    %6433 = vmatprep.subr.mxu0 0.0
    %6434 = vmatpush1.msra.mxu0 0.0
    %6435 = vmatprep.subr.mxu0 0.0
    %6436 = vmatpush1.msra.mxu0 0.0
    %6437 = vmatprep.subr.mxu0 0.0
    %v6438 = vand.u32 %v4015, 4294901760
    %6439 = vmatpush1.msra.mxu0 %v6438
    %6440 = vmatprep.subr.mxu0 0.0
    %6441 = vmatpush2.msra.mxu0 0.0
    %6442 = vmatprep.subr.mxu0 0.0
    %6443 = vmatpush2.msra.mxu0 0.0
    %6444 = vmatprep.subr.mxu0 0.0
    %6445 = vmatpush2.msra.mxu0 0.0
    %6446 = vmatprep.subr.mxu0 0.0
    %6447 = vmatpush2.msra.mxu0 0.0
    %6448 = vmatprep.subr.mxu0 0.0
    %6449 = vmatpush2.msra.mxu0 0.0
    %6450 = vmatprep.subr.mxu0 0.0
    %6451 = vmatpush2.msra.mxu0 0.0
    %6452 = vmatprep.subr.mxu0 0.0
    %6453 = vmatpush2.msra.mxu0 0.0
    %6454 = vmatprep.subr.mxu0 0.0
    %6455 = vmatpush2.msra.mxu0 0.0
    %6456 = vmatprep.subr.mxu0 0.0
    %6457 = vmatpush2.msra.mxu0 0.0
    %6458 = vmatprep.subr.mxu0 0.0
    %6459 = vmatpush2.msra.mxu0 0.0
    %6460 = vmatprep.subr.mxu0 0.0
    %6461 = vmatpush2.msra.mxu0 0.0
    %6462 = vmatprep.subr.mxu0 0.0
    %6463 = vmatpush2.msra.mxu0 0.0
    %6464 = vmatprep.subr.mxu0 0.0
    %6465 = vmatpush2.msra.mxu0 0.0
    %6466 = vmatprep.subr.mxu0 0.0
    %6467 = vmatpush2.msra.mxu0 0.0
    %6468 = vmatprep.subr.mxu0 0.0
    %6469 = vmatpush2.msra.mxu0 0.0
    %6470 = vmatprep.subr.mxu0 0.0
    %6471 = vmatpush2.msra.mxu0 0.0
    %6472 = vmatprep.mubr.f32.mxu0 0.0
    %v6473 = vand.u32 %v6031, 4294901760
    %6474 = vmatmul.mubr.f32.gmra.mxu0 %v6473
    %v6475 = vpop.f32.mrf.mxu0
    %v6476 = vadd.f32 %v6404, %v6475
    %v6477 = vpop.f32.mrf.mxu0
    %6478 = vdwg.mxu0
    %v6480 = vsel %vm4233, %v4230, 0
    %6482 = vmatprep.subr.mxu0 0.0
    %6483 = vmatpush1.msra.mxu0 0.0
    %6484 = vmatprep.subr.mxu0 0.0
    %6485 = vmatpush1.msra.mxu0 0.0
    %6486 = vmatprep.subr.mxu0 0.0
    %6487 = vmatpush1.msra.mxu0 0.0
    %6488 = vmatprep.subr.mxu0 0.0
    %6489 = vmatpush1.msra.mxu0 0.0
    %6490 = vmatprep.subr.mxu0 0.0
    %6491 = vmatpush1.msra.mxu0 0.0
    %6492 = vmatprep.subr.mxu0 0.0
    %6493 = vmatpush1.msra.mxu0 0.0
    %6494 = vmatprep.subr.mxu0 0.0
    %6495 = vmatpush1.msra.mxu0 0.0
    %6496 = vmatprep.subr.mxu0 0.0
    %6497 = vmatpush1.msra.mxu0 0.0
    %6498 = vmatprep.subr.mxu0 0.0
    %6499 = vmatpush1.msra.mxu0 0.0
    %6500 = vmatprep.subr.mxu0 0.0
    %6501 = vmatpush1.msra.mxu0 0.0
    %6502 = vmatprep.subr.mxu0 0.0
    %6503 = vmatpush1.msra.mxu0 0.0
    %6504 = vmatprep.subr.mxu0 0.0
    %6505 = vmatpush1.msra.mxu0 0.0
    %6506 = vmatprep.subr.mxu0 0.0
    %6507 = vmatpush1.msra.mxu0 0.0
    %6508 = vmatprep.subr.mxu0 0.0
    %6509 = vmatpush1.msra.mxu0 0.0
    %6510 = vmatprep.subr.mxu0 0.0
    %6511 = vmatpush1.msra.mxu0 0.0
    %6512 = vmatprep.subr.mxu0 0.0
    %v6513 = vand.u32 %v4078, 4294901760
    %6514 = vmatpush1.msra.mxu0 %v6513
    %6515 = vmatprep.subr.mxu0 0.0
    %6516 = vmatpush2.msra.mxu0 0.0
    %6517 = vmatprep.subr.mxu0 0.0
    %6518 = vmatpush2.msra.mxu0 0.0
    %6519 = vmatprep.subr.mxu0 0.0
    %6520 = vmatpush2.msra.mxu0 0.0
    %6521 = vmatprep.subr.mxu0 0.0
    %6522 = vmatpush2.msra.mxu0 0.0
    %6523 = vmatprep.subr.mxu0 0.0
    %6524 = vmatpush2.msra.mxu0 0.0
    %6525 = vmatprep.subr.mxu0 0.0
    %6526 = vmatpush2.msra.mxu0 0.0
    %6527 = vmatprep.subr.mxu0 0.0
    %6528 = vmatpush2.msra.mxu0 0.0
    %6529 = vmatprep.subr.mxu0 0.0
    %6530 = vmatpush2.msra.mxu0 0.0
    %6531 = vmatprep.subr.mxu0 0.0
    %6532 = vmatpush2.msra.mxu0 0.0
    %6533 = vmatprep.subr.mxu0 0.0
    %6534 = vmatpush2.msra.mxu0 0.0
    %6535 = vmatprep.subr.mxu0 0.0
    %6536 = vmatpush2.msra.mxu0 0.0
    %6537 = vmatprep.subr.mxu0 0.0
    %6538 = vmatpush2.msra.mxu0 0.0
    %6539 = vmatprep.subr.mxu0 0.0
    %6540 = vmatpush2.msra.mxu0 0.0
    %6541 = vmatprep.subr.mxu0 0.0
    %6542 = vmatpush2.msra.mxu0 0.0
    %6543 = vmatprep.subr.mxu0 0.0
    %6544 = vmatpush2.msra.mxu0 0.0
    %6545 = vmatprep.subr.mxu0 0.0
    %6546 = vmatpush2.msra.mxu0 0.0
    %6547 = vmatprep.mubr.f32.mxu0 0.0
    %v6548 = vand.u32 %v6480, 4294901760
    %v6549 = vsub.f32 %v6480, %v6548
    %v6550 = vand.u32 %v6549, 4294901760
    %v6551 = vsub.f32 %v6549, %v6550
    %v6552 = vand.u32 %v6551, 4294901760
    %6553 = vmatmul.mubr.f32.gmra.mxu0 %v6552
    %v6554 = vpop.f32.mrf.mxu0
    %v6555 = vadd.f32 0.0, %v6554
    %v6556 = vpop.f32.mrf.mxu0
    %6557 = vdwg.mxu0
    %6558 = vmatprep.subr.mxu0 0.0
    %6559 = vmatpush1.msra.mxu0 0.0
    %6560 = vmatprep.subr.mxu0 0.0
    %6561 = vmatpush1.msra.mxu0 0.0
    %6562 = vmatprep.subr.mxu0 0.0
    %6563 = vmatpush1.msra.mxu0 0.0
    %6564 = vmatprep.subr.mxu0 0.0
    %6565 = vmatpush1.msra.mxu0 0.0
    %6566 = vmatprep.subr.mxu0 0.0
    %6567 = vmatpush1.msra.mxu0 0.0
    %6568 = vmatprep.subr.mxu0 0.0
    %6569 = vmatpush1.msra.mxu0 0.0
    %6570 = vmatprep.subr.mxu0 0.0
    %6571 = vmatpush1.msra.mxu0 0.0
    %6572 = vmatprep.subr.mxu0 0.0
    %6573 = vmatpush1.msra.mxu0 0.0
    %6574 = vmatprep.subr.mxu0 0.0
    %6575 = vmatpush1.msra.mxu0 0.0
    %6576 = vmatprep.subr.mxu0 0.0
    %6577 = vmatpush1.msra.mxu0 0.0
    %6578 = vmatprep.subr.mxu0 0.0
    %6579 = vmatpush1.msra.mxu0 0.0
    %6580 = vmatprep.subr.mxu0 0.0
    %6581 = vmatpush1.msra.mxu0 0.0
    %6582 = vmatprep.subr.mxu0 0.0
    %6583 = vmatpush1.msra.mxu0 0.0
    %6584 = vmatprep.subr.mxu0 0.0
    %6585 = vmatpush1.msra.mxu0 0.0
    %6586 = vmatprep.subr.mxu0 0.0
    %6587 = vmatpush1.msra.mxu0 0.0
    %6588 = vmatprep.subr.mxu0 0.0
    %v6589 = vand.u32 %v4078, 4294901760
    %v6590 = vsub.f32 %v4078, %v6589
    %v6591 = vand.u32 %v6590, 4294901760
    %v6592 = vsub.f32 %v6590, %v6591
    %v6593 = vand.u32 %v6592, 4294901760
    %6594 = vmatpush1.msra.mxu0 %v6593
    %6595 = vmatprep.subr.mxu0 0.0
    %6596 = vmatpush2.msra.mxu0 0.0
    %6597 = vmatprep.subr.mxu0 0.0
    %6598 = vmatpush2.msra.mxu0 0.0
    %6599 = vmatprep.subr.mxu0 0.0
    %6600 = vmatpush2.msra.mxu0 0.0
    %6601 = vmatprep.subr.mxu0 0.0
    %6602 = vmatpush2.msra.mxu0 0.0
    %6603 = vmatprep.subr.mxu0 0.0
    %6604 = vmatpush2.msra.mxu0 0.0
    %6605 = vmatprep.subr.mxu0 0.0
    %6606 = vmatpush2.msra.mxu0 0.0
    %6607 = vmatprep.subr.mxu0 0.0
    %6608 = vmatpush2.msra.mxu0 0.0
    %6609 = vmatprep.subr.mxu0 0.0
    %6610 = vmatpush2.msra.mxu0 0.0
    %6611 = vmatprep.subr.mxu0 0.0
    %6612 = vmatpush2.msra.mxu0 0.0
    %6613 = vmatprep.subr.mxu0 0.0
    %6614 = vmatpush2.msra.mxu0 0.0
    %6615 = vmatprep.subr.mxu0 0.0
    %6616 = vmatpush2.msra.mxu0 0.0
    %6617 = vmatprep.subr.mxu0 0.0
    %6618 = vmatpush2.msra.mxu0 0.0
    %6619 = vmatprep.subr.mxu0 0.0
    %6620 = vmatpush2.msra.mxu0 0.0
    %6621 = vmatprep.subr.mxu0 0.0
    %6622 = vmatpush2.msra.mxu0 0.0
    %6623 = vmatprep.subr.mxu0 0.0
    %6624 = vmatpush2.msra.mxu0 0.0
    %6625 = vmatprep.subr.mxu0 0.0
    %6626 = vmatpush2.msra.mxu0 0.0
    %6627 = vmatprep.mubr.f32.mxu0 0.0
    %v6628 = vand.u32 %v6480, 4294901760
    %6629 = vmatmul.mubr.f32.gmra.mxu0 %v6628
    %v6630 = vpop.f32.mrf.mxu0
    %v6631 = vadd.f32 %v6555, %v6630
    %v6632 = vpop.f32.mrf.mxu0
    %6633 = vdwg.mxu0
    %6634 = vmatprep.subr.mxu0 0.0
    %6635 = vmatpush1.msra.mxu0 0.0
    %6636 = vmatprep.subr.mxu0 0.0
    %6637 = vmatpush1.msra.mxu0 0.0
    %6638 = vmatprep.subr.mxu0 0.0
    %6639 = vmatpush1.msra.mxu0 0.0
    %6640 = vmatprep.subr.mxu0 0.0
    %6641 = vmatpush1.msra.mxu0 0.0
    %6642 = vmatprep.subr.mxu0 0.0
    %6643 = vmatpush1.msra.mxu0 0.0
    %6644 = vmatprep.subr.mxu0 0.0
    %6645 = vmatpush1.msra.mxu0 0.0
    %6646 = vmatprep.subr.mxu0 0.0
    %6647 = vmatpush1.msra.mxu0 0.0
    %6648 = vmatprep.subr.mxu0 0.0
    %6649 = vmatpush1.msra.mxu0 0.0
    %6650 = vmatprep.subr.mxu0 0.0
    %6651 = vmatpush1.msra.mxu0 0.0
    %6652 = vmatprep.subr.mxu0 0.0
    %6653 = vmatpush1.msra.mxu0 0.0
    %6654 = vmatprep.subr.mxu0 0.0
    %6655 = vmatpush1.msra.mxu0 0.0
    %6656 = vmatprep.subr.mxu0 0.0
    %6657 = vmatpush1.msra.mxu0 0.0
    %6658 = vmatprep.subr.mxu0 0.0
    %6659 = vmatpush1.msra.mxu0 0.0
    %6660 = vmatprep.subr.mxu0 0.0
    %6661 = vmatpush1.msra.mxu0 0.0
    %6662 = vmatprep.subr.mxu0 0.0
    %6663 = vmatpush1.msra.mxu0 0.0
    %6664 = vmatprep.subr.mxu0 0.0
    %v6665 = vand.u32 %v4078, 4294901760
    %v6666 = vsub.f32 %v4078, %v6665
    %6667 = vmatpush1.msra.mxu0 %v6666
    %6668 = vmatprep.subr.mxu0 0.0
    %6669 = vmatpush2.msra.mxu0 0.0
    %6670 = vmatprep.subr.mxu0 0.0
    %6671 = vmatpush2.msra.mxu0 0.0
    %6672 = vmatprep.subr.mxu0 0.0
    %6673 = vmatpush2.msra.mxu0 0.0
    %6674 = vmatprep.subr.mxu0 0.0
    %6675 = vmatpush2.msra.mxu0 0.0
    %6676 = vmatprep.subr.mxu0 0.0
    %6677 = vmatpush2.msra.mxu0 0.0
    %6678 = vmatprep.subr.mxu0 0.0
    %6679 = vmatpush2.msra.mxu0 0.0
    %6680 = vmatprep.subr.mxu0 0.0
    %6681 = vmatpush2.msra.mxu0 0.0
    %6682 = vmatprep.subr.mxu0 0.0
    %6683 = vmatpush2.msra.mxu0 0.0
    %6684 = vmatprep.subr.mxu0 0.0
    %6685 = vmatpush2.msra.mxu0 0.0
    %6686 = vmatprep.subr.mxu0 0.0
    %6687 = vmatpush2.msra.mxu0 0.0
    %6688 = vmatprep.subr.mxu0 0.0
    %6689 = vmatpush2.msra.mxu0 0.0
    %6690 = vmatprep.subr.mxu0 0.0
    %6691 = vmatpush2.msra.mxu0 0.0
    %6692 = vmatprep.subr.mxu0 0.0
    %6693 = vmatpush2.msra.mxu0 0.0
    %6694 = vmatprep.subr.mxu0 0.0
    %6695 = vmatpush2.msra.mxu0 0.0
    %6696 = vmatprep.subr.mxu0 0.0
    %6697 = vmatpush2.msra.mxu0 0.0
    %6698 = vmatprep.subr.mxu0 0.0
    %6699 = vmatpush2.msra.mxu0 0.0
    %6700 = vmatprep.mubr.f32.mxu0 0.0
    %v6701 = vand.u32 %v6480, 4294901760
    %v6702 = vsub.f32 %v6480, %v6701
    %6703 = vmatmul.mubr.f32.gmra.mxu0 %v6702
    %v6704 = vpop.f32.mrf.mxu0
    %v6705 = vadd.f32 %v6631, %v6704
    %v6706 = vpop.f32.mrf.mxu0
    %6707 = vdwg.mxu0
    %6708 = vmatprep.subr.mxu0 0.0
    %6709 = vmatpush1.msra.mxu0 0.0
    %6710 = vmatprep.subr.mxu0 0.0
    %6711 = vmatpush1.msra.mxu0 0.0
    %6712 = vmatprep.subr.mxu0 0.0
    %6713 = vmatpush1.msra.mxu0 0.0
    %6714 = vmatprep.subr.mxu0 0.0
    %6715 = vmatpush1.msra.mxu0 0.0
    %6716 = vmatprep.subr.mxu0 0.0
    %6717 = vmatpush1.msra.mxu0 0.0
    %6718 = vmatprep.subr.mxu0 0.0
    %6719 = vmatpush1.msra.mxu0 0.0
    %6720 = vmatprep.subr.mxu0 0.0
    %6721 = vmatpush1.msra.mxu0 0.0
    %6722 = vmatprep.subr.mxu0 0.0
    %6723 = vmatpush1.msra.mxu0 0.0
    %6724 = vmatprep.subr.mxu0 0.0
    %6725 = vmatpush1.msra.mxu0 0.0
    %6726 = vmatprep.subr.mxu0 0.0
    %6727 = vmatpush1.msra.mxu0 0.0
    %6728 = vmatprep.subr.mxu0 0.0
    %6729 = vmatpush1.msra.mxu0 0.0
    %6730 = vmatprep.subr.mxu0 0.0
    %6731 = vmatpush1.msra.mxu0 0.0
    %6732 = vmatprep.subr.mxu0 0.0
    %6733 = vmatpush1.msra.mxu0 0.0
    %6734 = vmatprep.subr.mxu0 0.0
    %6735 = vmatpush1.msra.mxu0 0.0
    %6736 = vmatprep.subr.mxu0 0.0
    %6737 = vmatpush1.msra.mxu0 0.0
    %6738 = vmatprep.subr.mxu0 0.0
    %v6739 = vand.u32 %v4078, 4294901760
    %6740 = vmatpush1.msra.mxu0 %v6739
    %6741 = vmatprep.subr.mxu0 0.0
    %6742 = vmatpush2.msra.mxu0 0.0
    %6743 = vmatprep.subr.mxu0 0.0
    %6744 = vmatpush2.msra.mxu0 0.0
    %6745 = vmatprep.subr.mxu0 0.0
    %6746 = vmatpush2.msra.mxu0 0.0
    %6747 = vmatprep.subr.mxu0 0.0
    %6748 = vmatpush2.msra.mxu0 0.0
    %6749 = vmatprep.subr.mxu0 0.0
    %6750 = vmatpush2.msra.mxu0 0.0
    %6751 = vmatprep.subr.mxu0 0.0
    %6752 = vmatpush2.msra.mxu0 0.0
    %6753 = vmatprep.subr.mxu0 0.0
    %6754 = vmatpush2.msra.mxu0 0.0
    %6755 = vmatprep.subr.mxu0 0.0
    %6756 = vmatpush2.msra.mxu0 0.0
    %6757 = vmatprep.subr.mxu0 0.0
    %6758 = vmatpush2.msra.mxu0 0.0
    %6759 = vmatprep.subr.mxu0 0.0
    %6760 = vmatpush2.msra.mxu0 0.0
    %6761 = vmatprep.subr.mxu0 0.0
    %6762 = vmatpush2.msra.mxu0 0.0
    %6763 = vmatprep.subr.mxu0 0.0
    %6764 = vmatpush2.msra.mxu0 0.0
    %6765 = vmatprep.subr.mxu0 0.0
    %6766 = vmatpush2.msra.mxu0 0.0
    %6767 = vmatprep.subr.mxu0 0.0
    %6768 = vmatpush2.msra.mxu0 0.0
    %6769 = vmatprep.subr.mxu0 0.0
    %6770 = vmatpush2.msra.mxu0 0.0
    %6771 = vmatprep.subr.mxu0 0.0
    %6772 = vmatpush2.msra.mxu0 0.0
    %6773 = vmatprep.mubr.f32.mxu0 0.0
    %v6774 = vand.u32 %v6480, 4294901760
    %v6775 = vsub.f32 %v6480, %v6774
    %v6776 = vand.u32 %v6775, 4294901760
    %6777 = vmatmul.mubr.f32.gmra.mxu0 %v6776
    %v6778 = vpop.f32.mrf.mxu0
    %v6779 = vadd.f32 %v6705, %v6778
    %v6780 = vpop.f32.mrf.mxu0
    %6781 = vdwg.mxu0
    %6782 = vmatprep.subr.mxu0 0.0
    %6783 = vmatpush1.msra.mxu0 0.0
    %6784 = vmatprep.subr.mxu0 0.0
    %6785 = vmatpush1.msra.mxu0 0.0
    %6786 = vmatprep.subr.mxu0 0.0
    %6787 = vmatpush1.msra.mxu0 0.0
    %6788 = vmatprep.subr.mxu0 0.0
    %6789 = vmatpush1.msra.mxu0 0.0
    %6790 = vmatprep.subr.mxu0 0.0
    %6791 = vmatpush1.msra.mxu0 0.0
    %6792 = vmatprep.subr.mxu0 0.0
    %6793 = vmatpush1.msra.mxu0 0.0
    %6794 = vmatprep.subr.mxu0 0.0
    %6795 = vmatpush1.msra.mxu0 0.0
    %6796 = vmatprep.subr.mxu0 0.0
    %6797 = vmatpush1.msra.mxu0 0.0
    %6798 = vmatprep.subr.mxu0 0.0
    %6799 = vmatpush1.msra.mxu0 0.0
    %6800 = vmatprep.subr.mxu0 0.0
    %6801 = vmatpush1.msra.mxu0 0.0
    %6802 = vmatprep.subr.mxu0 0.0
    %6803 = vmatpush1.msra.mxu0 0.0
    %6804 = vmatprep.subr.mxu0 0.0
    %6805 = vmatpush1.msra.mxu0 0.0
    %6806 = vmatprep.subr.mxu0 0.0
    %6807 = vmatpush1.msra.mxu0 0.0
    %6808 = vmatprep.subr.mxu0 0.0
    %6809 = vmatpush1.msra.mxu0 0.0
    %6810 = vmatprep.subr.mxu0 0.0
    %6811 = vmatpush1.msra.mxu0 0.0
    %6812 = vmatprep.subr.mxu0 0.0
    %v6813 = vand.u32 %v4078, 4294901760
    %v6814 = vsub.f32 %v4078, %v6813
    %v6815 = vand.u32 %v6814, 4294901760
    %6816 = vmatpush1.msra.mxu0 %v6815
    %6817 = vmatprep.subr.mxu0 0.0
    %6818 = vmatpush2.msra.mxu0 0.0
    %6819 = vmatprep.subr.mxu0 0.0
    %6820 = vmatpush2.msra.mxu0 0.0
    %6821 = vmatprep.subr.mxu0 0.0
    %6822 = vmatpush2.msra.mxu0 0.0
    %6823 = vmatprep.subr.mxu0 0.0
    %6824 = vmatpush2.msra.mxu0 0.0
    %6825 = vmatprep.subr.mxu0 0.0
    %6826 = vmatpush2.msra.mxu0 0.0
    %6827 = vmatprep.subr.mxu0 0.0
    %6828 = vmatpush2.msra.mxu0 0.0
    %6829 = vmatprep.subr.mxu0 0.0
    %6830 = vmatpush2.msra.mxu0 0.0
    %6831 = vmatprep.subr.mxu0 0.0
    %6832 = vmatpush2.msra.mxu0 0.0
    %6833 = vmatprep.subr.mxu0 0.0
    %6834 = vmatpush2.msra.mxu0 0.0
    %6835 = vmatprep.subr.mxu0 0.0
    %6836 = vmatpush2.msra.mxu0 0.0
    %6837 = vmatprep.subr.mxu0 0.0
    %6838 = vmatpush2.msra.mxu0 0.0
    %6839 = vmatprep.subr.mxu0 0.0
    %6840 = vmatpush2.msra.mxu0 0.0
    %6841 = vmatprep.subr.mxu0 0.0
    %6842 = vmatpush2.msra.mxu0 0.0
    %6843 = vmatprep.subr.mxu0 0.0
    %6844 = vmatpush2.msra.mxu0 0.0
    %6845 = vmatprep.subr.mxu0 0.0
    %6846 = vmatpush2.msra.mxu0 0.0
    %6847 = vmatprep.subr.mxu0 0.0
    %6848 = vmatpush2.msra.mxu0 0.0
    %6849 = vmatprep.mubr.f32.mxu0 0.0
    %v6850 = vand.u32 %v6480, 4294901760
    %6851 = vmatmul.mubr.f32.gmra.mxu0 %v6850
    %v6852 = vpop.f32.mrf.mxu0
    %v6853 = vadd.f32 %v6779, %v6852
    %v6854 = vpop.f32.mrf.mxu0
    %6855 = vdwg.mxu0
    %6856 = vmatprep.subr.mxu0 0.0
    %6857 = vmatpush1.msra.mxu0 0.0
    %6858 = vmatprep.subr.mxu0 0.0
    %6859 = vmatpush1.msra.mxu0 0.0
    %6860 = vmatprep.subr.mxu0 0.0
    %6861 = vmatpush1.msra.mxu0 0.0
    %6862 = vmatprep.subr.mxu0 0.0
    %6863 = vmatpush1.msra.mxu0 0.0
    %6864 = vmatprep.subr.mxu0 0.0
    %6865 = vmatpush1.msra.mxu0 0.0
    %6866 = vmatprep.subr.mxu0 0.0
    %6867 = vmatpush1.msra.mxu0 0.0
    %6868 = vmatprep.subr.mxu0 0.0
    %6869 = vmatpush1.msra.mxu0 0.0
    %6870 = vmatprep.subr.mxu0 0.0
    %6871 = vmatpush1.msra.mxu0 0.0
    %6872 = vmatprep.subr.mxu0 0.0
    %6873 = vmatpush1.msra.mxu0 0.0
    %6874 = vmatprep.subr.mxu0 0.0
    %6875 = vmatpush1.msra.mxu0 0.0
    %6876 = vmatprep.subr.mxu0 0.0
    %6877 = vmatpush1.msra.mxu0 0.0
    %6878 = vmatprep.subr.mxu0 0.0
    %6879 = vmatpush1.msra.mxu0 0.0
    %6880 = vmatprep.subr.mxu0 0.0
    %6881 = vmatpush1.msra.mxu0 0.0
    %6882 = vmatprep.subr.mxu0 0.0
    %6883 = vmatpush1.msra.mxu0 0.0
    %6884 = vmatprep.subr.mxu0 0.0
    %6885 = vmatpush1.msra.mxu0 0.0
    %6886 = vmatprep.subr.mxu0 0.0
    %v6887 = vand.u32 %v4078, 4294901760
    %6888 = vmatpush1.msra.mxu0 %v6887
    %6889 = vmatprep.subr.mxu0 0.0
    %6890 = vmatpush2.msra.mxu0 0.0
    %6891 = vmatprep.subr.mxu0 0.0
    %6892 = vmatpush2.msra.mxu0 0.0
    %6893 = vmatprep.subr.mxu0 0.0
    %6894 = vmatpush2.msra.mxu0 0.0
    %6895 = vmatprep.subr.mxu0 0.0
    %6896 = vmatpush2.msra.mxu0 0.0
    %6897 = vmatprep.subr.mxu0 0.0
    %6898 = vmatpush2.msra.mxu0 0.0
    %6899 = vmatprep.subr.mxu0 0.0
    %6900 = vmatpush2.msra.mxu0 0.0
    %6901 = vmatprep.subr.mxu0 0.0
    %6902 = vmatpush2.msra.mxu0 0.0
    %6903 = vmatprep.subr.mxu0 0.0
    %6904 = vmatpush2.msra.mxu0 0.0
    %6905 = vmatprep.subr.mxu0 0.0
    %6906 = vmatpush2.msra.mxu0 0.0
    %6907 = vmatprep.subr.mxu0 0.0
    %6908 = vmatpush2.msra.mxu0 0.0
    %6909 = vmatprep.subr.mxu0 0.0
    %6910 = vmatpush2.msra.mxu0 0.0
    %6911 = vmatprep.subr.mxu0 0.0
    %6912 = vmatpush2.msra.mxu0 0.0
    %6913 = vmatprep.subr.mxu0 0.0
    %6914 = vmatpush2.msra.mxu0 0.0
    %6915 = vmatprep.subr.mxu0 0.0
    %6916 = vmatpush2.msra.mxu0 0.0
    %6917 = vmatprep.subr.mxu0 0.0
    %6918 = vmatpush2.msra.mxu0 0.0
    %6919 = vmatprep.subr.mxu0 0.0
    %6920 = vmatpush2.msra.mxu0 0.0
    %6921 = vmatprep.mubr.f32.mxu0 0.0
    %v6922 = vand.u32 %v6480, 4294901760
    %6923 = vmatmul.mubr.f32.gmra.mxu0 %v6922
    %v6924 = vpop.f32.mrf.mxu0
    %v6925 = vadd.f32 %v6853, %v6924
    %v6926 = vpop.f32.mrf.mxu0
    %6927 = vdwg.mxu0
    %v6929 = vsel %vm4233, %v4231, 0
    %6931 = vmatprep.subr.mxu0 0.0
    %6932 = vmatpush1.msra.mxu0 0.0
    %6933 = vmatprep.subr.mxu0 0.0
    %6934 = vmatpush1.msra.mxu0 0.0
    %6935 = vmatprep.subr.mxu0 0.0
    %6936 = vmatpush1.msra.mxu0 0.0
    %6937 = vmatprep.subr.mxu0 0.0
    %6938 = vmatpush1.msra.mxu0 0.0
    %6939 = vmatprep.subr.mxu0 0.0
    %6940 = vmatpush1.msra.mxu0 0.0
    %6941 = vmatprep.subr.mxu0 0.0
    %6942 = vmatpush1.msra.mxu0 0.0
    %6943 = vmatprep.subr.mxu0 0.0
    %6944 = vmatpush1.msra.mxu0 0.0
    %6945 = vmatprep.subr.mxu0 0.0
    %6946 = vmatpush1.msra.mxu0 0.0
    %6947 = vmatprep.subr.mxu0 0.0
    %6948 = vmatpush1.msra.mxu0 0.0
    %6949 = vmatprep.subr.mxu0 0.0
    %6950 = vmatpush1.msra.mxu0 0.0
    %6951 = vmatprep.subr.mxu0 0.0
    %6952 = vmatpush1.msra.mxu0 0.0
    %6953 = vmatprep.subr.mxu0 0.0
    %6954 = vmatpush1.msra.mxu0 0.0
    %6955 = vmatprep.subr.mxu0 0.0
    %6956 = vmatpush1.msra.mxu0 0.0
    %6957 = vmatprep.subr.mxu0 0.0
    %6958 = vmatpush1.msra.mxu0 0.0
    %6959 = vmatprep.subr.mxu0 0.0
    %6960 = vmatpush1.msra.mxu0 0.0
    %6961 = vmatprep.subr.mxu0 0.0
    %v6962 = vand.u32 %v4141, 4294901760
    %6963 = vmatpush1.msra.mxu0 %v6962
    %6964 = vmatprep.subr.mxu0 0.0
    %6965 = vmatpush2.msra.mxu0 0.0
    %6966 = vmatprep.subr.mxu0 0.0
    %6967 = vmatpush2.msra.mxu0 0.0
    %6968 = vmatprep.subr.mxu0 0.0
    %6969 = vmatpush2.msra.mxu0 0.0
    %6970 = vmatprep.subr.mxu0 0.0
    %6971 = vmatpush2.msra.mxu0 0.0
    %6972 = vmatprep.subr.mxu0 0.0
    %6973 = vmatpush2.msra.mxu0 0.0
    %6974 = vmatprep.subr.mxu0 0.0
    %6975 = vmatpush2.msra.mxu0 0.0
    %6976 = vmatprep.subr.mxu0 0.0
    %6977 = vmatpush2.msra.mxu0 0.0
    %6978 = vmatprep.subr.mxu0 0.0
    %6979 = vmatpush2.msra.mxu0 0.0
    %6980 = vmatprep.subr.mxu0 0.0
    %6981 = vmatpush2.msra.mxu0 0.0
    %6982 = vmatprep.subr.mxu0 0.0
    %6983 = vmatpush2.msra.mxu0 0.0
    %6984 = vmatprep.subr.mxu0 0.0
    %6985 = vmatpush2.msra.mxu0 0.0
    %6986 = vmatprep.subr.mxu0 0.0
    %6987 = vmatpush2.msra.mxu0 0.0
    %6988 = vmatprep.subr.mxu0 0.0
    %6989 = vmatpush2.msra.mxu0 0.0
    %6990 = vmatprep.subr.mxu0 0.0
    %6991 = vmatpush2.msra.mxu0 0.0
    %6992 = vmatprep.subr.mxu0 0.0
    %6993 = vmatpush2.msra.mxu0 0.0
    %6994 = vmatprep.subr.mxu0 0.0
    %6995 = vmatpush2.msra.mxu0 0.0
    %6996 = vmatprep.mubr.f32.mxu0 0.0
    %v6997 = vand.u32 %v6929, 4294901760
    %v6998 = vsub.f32 %v6929, %v6997
    %v6999 = vand.u32 %v6998, 4294901760
    %v7000 = vsub.f32 %v6998, %v6999
    %v7001 = vand.u32 %v7000, 4294901760
    %7002 = vmatmul.mubr.f32.gmra.mxu0 %v7001
    %v7003 = vpop.f32.mrf.mxu0
    %v7004 = vadd.f32 0.0, %v7003
    %v7005 = vpop.f32.mrf.mxu0
    %7006 = vdwg.mxu0
    %7007 = vmatprep.subr.mxu0 0.0
    %7008 = vmatpush1.msra.mxu0 0.0
    %7009 = vmatprep.subr.mxu0 0.0
    %7010 = vmatpush1.msra.mxu0 0.0
    %7011 = vmatprep.subr.mxu0 0.0
    %7012 = vmatpush1.msra.mxu0 0.0
    %7013 = vmatprep.subr.mxu0 0.0
    %7014 = vmatpush1.msra.mxu0 0.0
    %7015 = vmatprep.subr.mxu0 0.0
    %7016 = vmatpush1.msra.mxu0 0.0
    %7017 = vmatprep.subr.mxu0 0.0
    %7018 = vmatpush1.msra.mxu0 0.0
    %7019 = vmatprep.subr.mxu0 0.0
    %7020 = vmatpush1.msra.mxu0 0.0
    %7021 = vmatprep.subr.mxu0 0.0
    %7022 = vmatpush1.msra.mxu0 0.0
    %7023 = vmatprep.subr.mxu0 0.0
    %7024 = vmatpush1.msra.mxu0 0.0
    %7025 = vmatprep.subr.mxu0 0.0
    %7026 = vmatpush1.msra.mxu0 0.0
    %7027 = vmatprep.subr.mxu0 0.0
    %7028 = vmatpush1.msra.mxu0 0.0
    %7029 = vmatprep.subr.mxu0 0.0
    %7030 = vmatpush1.msra.mxu0 0.0
    %7031 = vmatprep.subr.mxu0 0.0
    %7032 = vmatpush1.msra.mxu0 0.0
    %7033 = vmatprep.subr.mxu0 0.0
    %7034 = vmatpush1.msra.mxu0 0.0
    %7035 = vmatprep.subr.mxu0 0.0
    %7036 = vmatpush1.msra.mxu0 0.0
    %7037 = vmatprep.subr.mxu0 0.0
    %v7038 = vand.u32 %v4141, 4294901760
    %v7039 = vsub.f32 %v4141, %v7038
    %v7040 = vand.u32 %v7039, 4294901760
    %v7041 = vsub.f32 %v7039, %v7040
    %v7042 = vand.u32 %v7041, 4294901760
    %7043 = vmatpush1.msra.mxu0 %v7042
    %7044 = vmatprep.subr.mxu0 0.0
    %7045 = vmatpush2.msra.mxu0 0.0
    %7046 = vmatprep.subr.mxu0 0.0
    %7047 = vmatpush2.msra.mxu0 0.0
    %7048 = vmatprep.subr.mxu0 0.0
    %7049 = vmatpush2.msra.mxu0 0.0
    %7050 = vmatprep.subr.mxu0 0.0
    %7051 = vmatpush2.msra.mxu0 0.0
    %7052 = vmatprep.subr.mxu0 0.0
    %7053 = vmatpush2.msra.mxu0 0.0
    %7054 = vmatprep.subr.mxu0 0.0
    %7055 = vmatpush2.msra.mxu0 0.0
    %7056 = vmatprep.subr.mxu0 0.0
    %7057 = vmatpush2.msra.mxu0 0.0
    %7058 = vmatprep.subr.mxu0 0.0
    %7059 = vmatpush2.msra.mxu0 0.0
    %7060 = vmatprep.subr.mxu0 0.0
    %7061 = vmatpush2.msra.mxu0 0.0
    %7062 = vmatprep.subr.mxu0 0.0
    %7063 = vmatpush2.msra.mxu0 0.0
    %7064 = vmatprep.subr.mxu0 0.0
    %7065 = vmatpush2.msra.mxu0 0.0
    %7066 = vmatprep.subr.mxu0 0.0
    %7067 = vmatpush2.msra.mxu0 0.0
    %7068 = vmatprep.subr.mxu0 0.0
    %7069 = vmatpush2.msra.mxu0 0.0
    %7070 = vmatprep.subr.mxu0 0.0
    %7071 = vmatpush2.msra.mxu0 0.0
    %7072 = vmatprep.subr.mxu0 0.0
    %7073 = vmatpush2.msra.mxu0 0.0
    %7074 = vmatprep.subr.mxu0 0.0
    %7075 = vmatpush2.msra.mxu0 0.0
    %7076 = vmatprep.mubr.f32.mxu0 0.0
    %v7077 = vand.u32 %v6929, 4294901760
    %7078 = vmatmul.mubr.f32.gmra.mxu0 %v7077
    %v7079 = vpop.f32.mrf.mxu0
    %v7080 = vadd.f32 %v7004, %v7079
    %v7081 = vpop.f32.mrf.mxu0
    %7082 = vdwg.mxu0
    %7083 = vmatprep.subr.mxu0 0.0
    %7084 = vmatpush1.msra.mxu0 0.0
    %7085 = vmatprep.subr.mxu0 0.0
    %7086 = vmatpush1.msra.mxu0 0.0
    %7087 = vmatprep.subr.mxu0 0.0
    %7088 = vmatpush1.msra.mxu0 0.0
    %7089 = vmatprep.subr.mxu0 0.0
    %7090 = vmatpush1.msra.mxu0 0.0
    %7091 = vmatprep.subr.mxu0 0.0
    %7092 = vmatpush1.msra.mxu0 0.0
    %7093 = vmatprep.subr.mxu0 0.0
    %7094 = vmatpush1.msra.mxu0 0.0
    %7095 = vmatprep.subr.mxu0 0.0
    %7096 = vmatpush1.msra.mxu0 0.0
    %7097 = vmatprep.subr.mxu0 0.0
    %7098 = vmatpush1.msra.mxu0 0.0
    %7099 = vmatprep.subr.mxu0 0.0
    %7100 = vmatpush1.msra.mxu0 0.0
    %7101 = vmatprep.subr.mxu0 0.0
    %7102 = vmatpush1.msra.mxu0 0.0
    %7103 = vmatprep.subr.mxu0 0.0
    %7104 = vmatpush1.msra.mxu0 0.0
    %7105 = vmatprep.subr.mxu0 0.0
    %7106 = vmatpush1.msra.mxu0 0.0
    %7107 = vmatprep.subr.mxu0 0.0
    %7108 = vmatpush1.msra.mxu0 0.0
    %7109 = vmatprep.subr.mxu0 0.0
    %7110 = vmatpush1.msra.mxu0 0.0
    %7111 = vmatprep.subr.mxu0 0.0
    %7112 = vmatpush1.msra.mxu0 0.0
    %7113 = vmatprep.subr.mxu0 0.0
    %v7114 = vand.u32 %v4141, 4294901760
    %v7115 = vsub.f32 %v4141, %v7114
    %7116 = vmatpush1.msra.mxu0 %v7115
    %7117 = vmatprep.subr.mxu0 0.0
    %7118 = vmatpush2.msra.mxu0 0.0
    %7119 = vmatprep.subr.mxu0 0.0
    %7120 = vmatpush2.msra.mxu0 0.0
    %7121 = vmatprep.subr.mxu0 0.0
    %7122 = vmatpush2.msra.mxu0 0.0
    %7123 = vmatprep.subr.mxu0 0.0
    %7124 = vmatpush2.msra.mxu0 0.0
    %7125 = vmatprep.subr.mxu0 0.0
    %7126 = vmatpush2.msra.mxu0 0.0
    %7127 = vmatprep.subr.mxu0 0.0
    %7128 = vmatpush2.msra.mxu0 0.0
    %7129 = vmatprep.subr.mxu0 0.0
    %7130 = vmatpush2.msra.mxu0 0.0
    %7131 = vmatprep.subr.mxu0 0.0
    %7132 = vmatpush2.msra.mxu0 0.0
    %7133 = vmatprep.subr.mxu0 0.0
    %7134 = vmatpush2.msra.mxu0 0.0
    %7135 = vmatprep.subr.mxu0 0.0
    %7136 = vmatpush2.msra.mxu0 0.0
    %7137 = vmatprep.subr.mxu0 0.0
    %7138 = vmatpush2.msra.mxu0 0.0
    %7139 = vmatprep.subr.mxu0 0.0
    %7140 = vmatpush2.msra.mxu0 0.0
    %7141 = vmatprep.subr.mxu0 0.0
    %7142 = vmatpush2.msra.mxu0 0.0
    %7143 = vmatprep.subr.mxu0 0.0
    %7144 = vmatpush2.msra.mxu0 0.0
    %7145 = vmatprep.subr.mxu0 0.0
    %7146 = vmatpush2.msra.mxu0 0.0
    %7147 = vmatprep.subr.mxu0 0.0
    %7148 = vmatpush2.msra.mxu0 0.0
    %7149 = vmatprep.mubr.f32.mxu0 0.0
    %v7150 = vand.u32 %v6929, 4294901760
    %v7151 = vsub.f32 %v6929, %v7150
    %7152 = vmatmul.mubr.f32.gmra.mxu0 %v7151
    %v7153 = vpop.f32.mrf.mxu0
    %v7154 = vadd.f32 %v7080, %v7153
    %v7155 = vpop.f32.mrf.mxu0
    %7156 = vdwg.mxu0
    %7157 = vmatprep.subr.mxu0 0.0
    %7158 = vmatpush1.msra.mxu0 0.0
    %7159 = vmatprep.subr.mxu0 0.0
    %7160 = vmatpush1.msra.mxu0 0.0
    %7161 = vmatprep.subr.mxu0 0.0
    %7162 = vmatpush1.msra.mxu0 0.0
    %7163 = vmatprep.subr.mxu0 0.0
    %7164 = vmatpush1.msra.mxu0 0.0
    %7165 = vmatprep.subr.mxu0 0.0
    %7166 = vmatpush1.msra.mxu0 0.0
    %7167 = vmatprep.subr.mxu0 0.0
    %7168 = vmatpush1.msra.mxu0 0.0
    %7169 = vmatprep.subr.mxu0 0.0
    %7170 = vmatpush1.msra.mxu0 0.0
    %7171 = vmatprep.subr.mxu0 0.0
    %7172 = vmatpush1.msra.mxu0 0.0
    %7173 = vmatprep.subr.mxu0 0.0
    %7174 = vmatpush1.msra.mxu0 0.0
    %7175 = vmatprep.subr.mxu0 0.0
    %7176 = vmatpush1.msra.mxu0 0.0
    %7177 = vmatprep.subr.mxu0 0.0
    %7178 = vmatpush1.msra.mxu0 0.0
    %7179 = vmatprep.subr.mxu0 0.0
    %7180 = vmatpush1.msra.mxu0 0.0
    %7181 = vmatprep.subr.mxu0 0.0
    %7182 = vmatpush1.msra.mxu0 0.0
    %7183 = vmatprep.subr.mxu0 0.0
    %7184 = vmatpush1.msra.mxu0 0.0
    %7185 = vmatprep.subr.mxu0 0.0
    %7186 = vmatpush1.msra.mxu0 0.0
    %7187 = vmatprep.subr.mxu0 0.0
    %v7188 = vand.u32 %v4141, 4294901760
    %7189 = vmatpush1.msra.mxu0 %v7188
    %7190 = vmatprep.subr.mxu0 0.0
    %7191 = vmatpush2.msra.mxu0 0.0
    %7192 = vmatprep.subr.mxu0 0.0
    %7193 = vmatpush2.msra.mxu0 0.0
    %7194 = vmatprep.subr.mxu0 0.0
    %7195 = vmatpush2.msra.mxu0 0.0
    %7196 = vmatprep.subr.mxu0 0.0
    %7197 = vmatpush2.msra.mxu0 0.0
    %7198 = vmatprep.subr.mxu0 0.0
    %7199 = vmatpush2.msra.mxu0 0.0
    %7200 = vmatprep.subr.mxu0 0.0
    %7201 = vmatpush2.msra.mxu0 0.0
    %7202 = vmatprep.subr.mxu0 0.0
    %7203 = vmatpush2.msra.mxu0 0.0
    %7204 = vmatprep.subr.mxu0 0.0
    %7205 = vmatpush2.msra.mxu0 0.0
    %7206 = vmatprep.subr.mxu0 0.0
    %7207 = vmatpush2.msra.mxu0 0.0
    %7208 = vmatprep.subr.mxu0 0.0
    %7209 = vmatpush2.msra.mxu0 0.0
    %7210 = vmatprep.subr.mxu0 0.0
    %7211 = vmatpush2.msra.mxu0 0.0
    %7212 = vmatprep.subr.mxu0 0.0
    %7213 = vmatpush2.msra.mxu0 0.0
    %7214 = vmatprep.subr.mxu0 0.0
    %7215 = vmatpush2.msra.mxu0 0.0
    %7216 = vmatprep.subr.mxu0 0.0
    %7217 = vmatpush2.msra.mxu0 0.0
    %7218 = vmatprep.subr.mxu0 0.0
    %7219 = vmatpush2.msra.mxu0 0.0
    %7220 = vmatprep.subr.mxu0 0.0
    %7221 = vmatpush2.msra.mxu0 0.0
    %7222 = vmatprep.mubr.f32.mxu0 0.0
    %v7223 = vand.u32 %v6929, 4294901760
    %v7224 = vsub.f32 %v6929, %v7223
    %v7225 = vand.u32 %v7224, 4294901760
    %7226 = vmatmul.mubr.f32.gmra.mxu0 %v7225
    %v7227 = vpop.f32.mrf.mxu0
    %v7228 = vadd.f32 %v7154, %v7227
    %v7229 = vpop.f32.mrf.mxu0
    %7230 = vdwg.mxu0
    %7231 = vmatprep.subr.mxu0 0.0
    %7232 = vmatpush1.msra.mxu0 0.0
    %7233 = vmatprep.subr.mxu0 0.0
    %7234 = vmatpush1.msra.mxu0 0.0
    %7235 = vmatprep.subr.mxu0 0.0
    %7236 = vmatpush1.msra.mxu0 0.0
    %7237 = vmatprep.subr.mxu0 0.0
    %7238 = vmatpush1.msra.mxu0 0.0
    %7239 = vmatprep.subr.mxu0 0.0
    %7240 = vmatpush1.msra.mxu0 0.0
    %7241 = vmatprep.subr.mxu0 0.0
    %7242 = vmatpush1.msra.mxu0 0.0
    %7243 = vmatprep.subr.mxu0 0.0
    %7244 = vmatpush1.msra.mxu0 0.0
    %7245 = vmatprep.subr.mxu0 0.0
    %7246 = vmatpush1.msra.mxu0 0.0
    %7247 = vmatprep.subr.mxu0 0.0
    %7248 = vmatpush1.msra.mxu0 0.0
    %7249 = vmatprep.subr.mxu0 0.0
    %7250 = vmatpush1.msra.mxu0 0.0
    %7251 = vmatprep.subr.mxu0 0.0
    %7252 = vmatpush1.msra.mxu0 0.0
    %7253 = vmatprep.subr.mxu0 0.0
    %7254 = vmatpush1.msra.mxu0 0.0
    %7255 = vmatprep.subr.mxu0 0.0
    %7256 = vmatpush1.msra.mxu0 0.0
    %7257 = vmatprep.subr.mxu0 0.0
    %7258 = vmatpush1.msra.mxu0 0.0
    %7259 = vmatprep.subr.mxu0 0.0
    %7260 = vmatpush1.msra.mxu0 0.0
    %7261 = vmatprep.subr.mxu0 0.0
    %v7262 = vand.u32 %v4141, 4294901760
    %v7263 = vsub.f32 %v4141, %v7262
    %v7264 = vand.u32 %v7263, 4294901760
    %7265 = vmatpush1.msra.mxu0 %v7264
    %7266 = vmatprep.subr.mxu0 0.0
    %7267 = vmatpush2.msra.mxu0 0.0
    %7268 = vmatprep.subr.mxu0 0.0
    %7269 = vmatpush2.msra.mxu0 0.0
    %7270 = vmatprep.subr.mxu0 0.0
    %7271 = vmatpush2.msra.mxu0 0.0
    %7272 = vmatprep.subr.mxu0 0.0
    %7273 = vmatpush2.msra.mxu0 0.0
    %7274 = vmatprep.subr.mxu0 0.0
    %7275 = vmatpush2.msra.mxu0 0.0
    %7276 = vmatprep.subr.mxu0 0.0
    %7277 = vmatpush2.msra.mxu0 0.0
    %7278 = vmatprep.subr.mxu0 0.0
    %7279 = vmatpush2.msra.mxu0 0.0
    %7280 = vmatprep.subr.mxu0 0.0
    %7281 = vmatpush2.msra.mxu0 0.0
    %7282 = vmatprep.subr.mxu0 0.0
    %7283 = vmatpush2.msra.mxu0 0.0
    %7284 = vmatprep.subr.mxu0 0.0
    %7285 = vmatpush2.msra.mxu0 0.0
    %7286 = vmatprep.subr.mxu0 0.0
    %7287 = vmatpush2.msra.mxu0 0.0
    %7288 = vmatprep.subr.mxu0 0.0
    %7289 = vmatpush2.msra.mxu0 0.0
    %7290 = vmatprep.subr.mxu0 0.0
    %7291 = vmatpush2.msra.mxu0 0.0
    %7292 = vmatprep.subr.mxu0 0.0
    %7293 = vmatpush2.msra.mxu0 0.0
    %7294 = vmatprep.subr.mxu0 0.0
    %7295 = vmatpush2.msra.mxu0 0.0
    %7296 = vmatprep.subr.mxu0 0.0
    %7297 = vmatpush2.msra.mxu0 0.0
    %7298 = vmatprep.mubr.f32.mxu0 0.0
    %v7299 = vand.u32 %v6929, 4294901760
    %7300 = vmatmul.mubr.f32.gmra.mxu0 %v7299
    %v7301 = vpop.f32.mrf.mxu0
    %v7302 = vadd.f32 %v7228, %v7301
    %v7303 = vpop.f32.mrf.mxu0
    %7304 = vdwg.mxu0
    %7305 = vmatprep.subr.mxu0 0.0
    %7306 = vmatpush1.msra.mxu0 0.0
    %7307 = vmatprep.subr.mxu0 0.0
    %7308 = vmatpush1.msra.mxu0 0.0
    %7309 = vmatprep.subr.mxu0 0.0
    %7310 = vmatpush1.msra.mxu0 0.0
    %7311 = vmatprep.subr.mxu0 0.0
    %7312 = vmatpush1.msra.mxu0 0.0
    %7313 = vmatprep.subr.mxu0 0.0
    %7314 = vmatpush1.msra.mxu0 0.0
    %7315 = vmatprep.subr.mxu0 0.0
    %7316 = vmatpush1.msra.mxu0 0.0
    %7317 = vmatprep.subr.mxu0 0.0
    %7318 = vmatpush1.msra.mxu0 0.0
    %7319 = vmatprep.subr.mxu0 0.0
    %7320 = vmatpush1.msra.mxu0 0.0
    %7321 = vmatprep.subr.mxu0 0.0
    %7322 = vmatpush1.msra.mxu0 0.0
    %7323 = vmatprep.subr.mxu0 0.0
    %7324 = vmatpush1.msra.mxu0 0.0
    %7325 = vmatprep.subr.mxu0 0.0
    %7326 = vmatpush1.msra.mxu0 0.0
    %7327 = vmatprep.subr.mxu0 0.0
    %7328 = vmatpush1.msra.mxu0 0.0
    %7329 = vmatprep.subr.mxu0 0.0
    %7330 = vmatpush1.msra.mxu0 0.0
    %7331 = vmatprep.subr.mxu0 0.0
    %7332 = vmatpush1.msra.mxu0 0.0
    %7333 = vmatprep.subr.mxu0 0.0
    %7334 = vmatpush1.msra.mxu0 0.0
    %7335 = vmatprep.subr.mxu0 0.0
    %v7336 = vand.u32 %v4141, 4294901760
    %7337 = vmatpush1.msra.mxu0 %v7336
    %7338 = vmatprep.subr.mxu0 0.0
    %7339 = vmatpush2.msra.mxu0 0.0
    %7340 = vmatprep.subr.mxu0 0.0
    %7341 = vmatpush2.msra.mxu0 0.0
    %7342 = vmatprep.subr.mxu0 0.0
    %7343 = vmatpush2.msra.mxu0 0.0
    %7344 = vmatprep.subr.mxu0 0.0
    %7345 = vmatpush2.msra.mxu0 0.0
    %7346 = vmatprep.subr.mxu0 0.0
    %7347 = vmatpush2.msra.mxu0 0.0
    %7348 = vmatprep.subr.mxu0 0.0
    %7349 = vmatpush2.msra.mxu0 0.0
    %7350 = vmatprep.subr.mxu0 0.0
    %7351 = vmatpush2.msra.mxu0 0.0
    %7352 = vmatprep.subr.mxu0 0.0
    %7353 = vmatpush2.msra.mxu0 0.0
    %7354 = vmatprep.subr.mxu0 0.0
    %7355 = vmatpush2.msra.mxu0 0.0
    %7356 = vmatprep.subr.mxu0 0.0
    %7357 = vmatpush2.msra.mxu0 0.0
    %7358 = vmatprep.subr.mxu0 0.0
    %7359 = vmatpush2.msra.mxu0 0.0
    %7360 = vmatprep.subr.mxu0 0.0
    %7361 = vmatpush2.msra.mxu0 0.0
    %7362 = vmatprep.subr.mxu0 0.0
    %7363 = vmatpush2.msra.mxu0 0.0
    %7364 = vmatprep.subr.mxu0 0.0
    %7365 = vmatpush2.msra.mxu0 0.0
    %7366 = vmatprep.subr.mxu0 0.0
    %7367 = vmatpush2.msra.mxu0 0.0
    %7368 = vmatprep.subr.mxu0 0.0
    %7369 = vmatpush2.msra.mxu0 0.0
    %7370 = vmatprep.mubr.f32.mxu0 0.0
    %v7371 = vand.u32 %v6929, 4294901760
    %7372 = vmatmul.mubr.f32.gmra.mxu0 %v7371
    %v7373 = vpop.f32.mrf.mxu0
    %v7374 = vadd.f32 %v7302, %v7373
    %v7375 = vpop.f32.mrf.mxu0
    %7376 = vdwg.mxu0
    %v7378 = vsel %vm4233, %v4232, 0
    %7380 = vmatprep.subr.mxu0 0.0
    %7381 = vmatpush1.msra.mxu0 0.0
    %7382 = vmatprep.subr.mxu0 0.0
    %7383 = vmatpush1.msra.mxu0 0.0
    %7384 = vmatprep.subr.mxu0 0.0
    %7385 = vmatpush1.msra.mxu0 0.0
    %7386 = vmatprep.subr.mxu0 0.0
    %7387 = vmatpush1.msra.mxu0 0.0
    %7388 = vmatprep.subr.mxu0 0.0
    %7389 = vmatpush1.msra.mxu0 0.0
    %7390 = vmatprep.subr.mxu0 0.0
    %7391 = vmatpush1.msra.mxu0 0.0
    %7392 = vmatprep.subr.mxu0 0.0
    %7393 = vmatpush1.msra.mxu0 0.0
    %7394 = vmatprep.subr.mxu0 0.0
    %7395 = vmatpush1.msra.mxu0 0.0
    %7396 = vmatprep.subr.mxu0 0.0
    %7397 = vmatpush1.msra.mxu0 0.0
    %7398 = vmatprep.subr.mxu0 0.0
    %7399 = vmatpush1.msra.mxu0 0.0
    %7400 = vmatprep.subr.mxu0 0.0
    %7401 = vmatpush1.msra.mxu0 0.0
    %7402 = vmatprep.subr.mxu0 0.0
    %7403 = vmatpush1.msra.mxu0 0.0
    %7404 = vmatprep.subr.mxu0 0.0
    %7405 = vmatpush1.msra.mxu0 0.0
    %7406 = vmatprep.subr.mxu0 0.0
    %7407 = vmatpush1.msra.mxu0 0.0
    %7408 = vmatprep.subr.mxu0 0.0
    %7409 = vmatpush1.msra.mxu0 0.0
    %7410 = vmatprep.subr.mxu0 0.0
    %v7411 = vand.u32 %v4204, 4294901760
    %7412 = vmatpush1.msra.mxu0 %v7411
    %7413 = vmatprep.subr.mxu0 0.0
    %7414 = vmatpush2.msra.mxu0 0.0
    %7415 = vmatprep.subr.mxu0 0.0
    %7416 = vmatpush2.msra.mxu0 0.0
    %7417 = vmatprep.subr.mxu0 0.0
    %7418 = vmatpush2.msra.mxu0 0.0
    %7419 = vmatprep.subr.mxu0 0.0
    %7420 = vmatpush2.msra.mxu0 0.0
    %7421 = vmatprep.subr.mxu0 0.0
    %7422 = vmatpush2.msra.mxu0 0.0
    %7423 = vmatprep.subr.mxu0 0.0
    %7424 = vmatpush2.msra.mxu0 0.0
    %7425 = vmatprep.subr.mxu0 0.0
    %7426 = vmatpush2.msra.mxu0 0.0
    %7427 = vmatprep.subr.mxu0 0.0
    %7428 = vmatpush2.msra.mxu0 0.0
    %7429 = vmatprep.subr.mxu0 0.0
    %7430 = vmatpush2.msra.mxu0 0.0
    %7431 = vmatprep.subr.mxu0 0.0
    %7432 = vmatpush2.msra.mxu0 0.0
    %7433 = vmatprep.subr.mxu0 0.0
    %7434 = vmatpush2.msra.mxu0 0.0
    %7435 = vmatprep.subr.mxu0 0.0
    %7436 = vmatpush2.msra.mxu0 0.0
    %7437 = vmatprep.subr.mxu0 0.0
    %7438 = vmatpush2.msra.mxu0 0.0
    %7439 = vmatprep.subr.mxu0 0.0
    %7440 = vmatpush2.msra.mxu0 0.0
    %7441 = vmatprep.subr.mxu0 0.0
    %7442 = vmatpush2.msra.mxu0 0.0
    %7443 = vmatprep.subr.mxu0 0.0
    %7444 = vmatpush2.msra.mxu0 0.0
    %7445 = vmatprep.mubr.f32.mxu0 0.0
    %v7446 = vand.u32 %v7378, 4294901760
    %v7447 = vsub.f32 %v7378, %v7446
    %v7448 = vand.u32 %v7447, 4294901760
    %v7449 = vsub.f32 %v7447, %v7448
    %v7450 = vand.u32 %v7449, 4294901760
    %7451 = vmatmul.mubr.f32.gmra.mxu0 %v7450
    %v7452 = vpop.f32.mrf.mxu0
    %v7453 = vadd.f32 0.0, %v7452
    %v7454 = vpop.f32.mrf.mxu0
    %7455 = vdwg.mxu0
    %7456 = vmatprep.subr.mxu0 0.0
    %7457 = vmatpush1.msra.mxu0 0.0
    %7458 = vmatprep.subr.mxu0 0.0
    %7459 = vmatpush1.msra.mxu0 0.0
    %7460 = vmatprep.subr.mxu0 0.0
    %7461 = vmatpush1.msra.mxu0 0.0
    %7462 = vmatprep.subr.mxu0 0.0
    %7463 = vmatpush1.msra.mxu0 0.0
    %7464 = vmatprep.subr.mxu0 0.0
    %7465 = vmatpush1.msra.mxu0 0.0
    %7466 = vmatprep.subr.mxu0 0.0
    %7467 = vmatpush1.msra.mxu0 0.0
    %7468 = vmatprep.subr.mxu0 0.0
    %7469 = vmatpush1.msra.mxu0 0.0
    %7470 = vmatprep.subr.mxu0 0.0
    %7471 = vmatpush1.msra.mxu0 0.0
    %7472 = vmatprep.subr.mxu0 0.0
    %7473 = vmatpush1.msra.mxu0 0.0
    %7474 = vmatprep.subr.mxu0 0.0
    %7475 = vmatpush1.msra.mxu0 0.0
    %7476 = vmatprep.subr.mxu0 0.0
    %7477 = vmatpush1.msra.mxu0 0.0
    %7478 = vmatprep.subr.mxu0 0.0
    %7479 = vmatpush1.msra.mxu0 0.0
    %7480 = vmatprep.subr.mxu0 0.0
    %7481 = vmatpush1.msra.mxu0 0.0
    %7482 = vmatprep.subr.mxu0 0.0
    %7483 = vmatpush1.msra.mxu0 0.0
    %7484 = vmatprep.subr.mxu0 0.0
    %7485 = vmatpush1.msra.mxu0 0.0
    %7486 = vmatprep.subr.mxu0 0.0
    %v7487 = vand.u32 %v4204, 4294901760
    %v7488 = vsub.f32 %v4204, %v7487
    %v7489 = vand.u32 %v7488, 4294901760
    %v7490 = vsub.f32 %v7488, %v7489
    %v7491 = vand.u32 %v7490, 4294901760
    %7492 = vmatpush1.msra.mxu0 %v7491
    %7493 = vmatprep.subr.mxu0 0.0
    %7494 = vmatpush2.msra.mxu0 0.0
    %7495 = vmatprep.subr.mxu0 0.0
    %7496 = vmatpush2.msra.mxu0 0.0
    %7497 = vmatprep.subr.mxu0 0.0
    %7498 = vmatpush2.msra.mxu0 0.0
    %7499 = vmatprep.subr.mxu0 0.0
    %7500 = vmatpush2.msra.mxu0 0.0
    %7501 = vmatprep.subr.mxu0 0.0
    %7502 = vmatpush2.msra.mxu0 0.0
    %7503 = vmatprep.subr.mxu0 0.0
    %7504 = vmatpush2.msra.mxu0 0.0
    %7505 = vmatprep.subr.mxu0 0.0
    %7506 = vmatpush2.msra.mxu0 0.0
    %7507 = vmatprep.subr.mxu0 0.0
    %7508 = vmatpush2.msra.mxu0 0.0
    %7509 = vmatprep.subr.mxu0 0.0
    %7510 = vmatpush2.msra.mxu0 0.0
    %7511 = vmatprep.subr.mxu0 0.0
    %7512 = vmatpush2.msra.mxu0 0.0
    %7513 = vmatprep.subr.mxu0 0.0
    %7514 = vmatpush2.msra.mxu0 0.0
    %7515 = vmatprep.subr.mxu0 0.0
    %7516 = vmatpush2.msra.mxu0 0.0
    %7517 = vmatprep.subr.mxu0 0.0
    %7518 = vmatpush2.msra.mxu0 0.0
    %7519 = vmatprep.subr.mxu0 0.0
    %7520 = vmatpush2.msra.mxu0 0.0
    %7521 = vmatprep.subr.mxu0 0.0
    %7522 = vmatpush2.msra.mxu0 0.0
    %7523 = vmatprep.subr.mxu0 0.0
    %7524 = vmatpush2.msra.mxu0 0.0
    %7525 = vmatprep.mubr.f32.mxu0 0.0
    %v7526 = vand.u32 %v7378, 4294901760
    %7527 = vmatmul.mubr.f32.gmra.mxu0 %v7526
    %v7528 = vpop.f32.mrf.mxu0
    %v7529 = vadd.f32 %v7453, %v7528
    %v7530 = vpop.f32.mrf.mxu0
    %7531 = vdwg.mxu0
    %7532 = vmatprep.subr.mxu0 0.0
    %7533 = vmatpush1.msra.mxu0 0.0
    %7534 = vmatprep.subr.mxu0 0.0
    %7535 = vmatpush1.msra.mxu0 0.0
    %7536 = vmatprep.subr.mxu0 0.0
    %7537 = vmatpush1.msra.mxu0 0.0
    %7538 = vmatprep.subr.mxu0 0.0
    %7539 = vmatpush1.msra.mxu0 0.0
    %7540 = vmatprep.subr.mxu0 0.0
    %7541 = vmatpush1.msra.mxu0 0.0
    %7542 = vmatprep.subr.mxu0 0.0
    %7543 = vmatpush1.msra.mxu0 0.0
    %7544 = vmatprep.subr.mxu0 0.0
    %7545 = vmatpush1.msra.mxu0 0.0
    %7546 = vmatprep.subr.mxu0 0.0
    %7547 = vmatpush1.msra.mxu0 0.0
    %7548 = vmatprep.subr.mxu0 0.0
    %7549 = vmatpush1.msra.mxu0 0.0
    %7550 = vmatprep.subr.mxu0 0.0
    %7551 = vmatpush1.msra.mxu0 0.0
    %7552 = vmatprep.subr.mxu0 0.0
    %7553 = vmatpush1.msra.mxu0 0.0
    %7554 = vmatprep.subr.mxu0 0.0
    %7555 = vmatpush1.msra.mxu0 0.0
    %7556 = vmatprep.subr.mxu0 0.0
    %7557 = vmatpush1.msra.mxu0 0.0
    %7558 = vmatprep.subr.mxu0 0.0
    %7559 = vmatpush1.msra.mxu0 0.0
    %7560 = vmatprep.subr.mxu0 0.0
    %7561 = vmatpush1.msra.mxu0 0.0
    %7562 = vmatprep.subr.mxu0 0.0
    %v7563 = vand.u32 %v4204, 4294901760
    %v7564 = vsub.f32 %v4204, %v7563
    %7565 = vmatpush1.msra.mxu0 %v7564
    %7566 = vmatprep.subr.mxu0 0.0
    %7567 = vmatpush2.msra.mxu0 0.0
    %7568 = vmatprep.subr.mxu0 0.0
    %7569 = vmatpush2.msra.mxu0 0.0
    %7570 = vmatprep.subr.mxu0 0.0
    %7571 = vmatpush2.msra.mxu0 0.0
    %7572 = vmatprep.subr.mxu0 0.0
    %7573 = vmatpush2.msra.mxu0 0.0
    %7574 = vmatprep.subr.mxu0 0.0
    %7575 = vmatpush2.msra.mxu0 0.0
    %7576 = vmatprep.subr.mxu0 0.0
    %7577 = vmatpush2.msra.mxu0 0.0
    %7578 = vmatprep.subr.mxu0 0.0
    %7579 = vmatpush2.msra.mxu0 0.0
    %7580 = vmatprep.subr.mxu0 0.0
    %7581 = vmatpush2.msra.mxu0 0.0
    %7582 = vmatprep.subr.mxu0 0.0
    %7583 = vmatpush2.msra.mxu0 0.0
    %7584 = vmatprep.subr.mxu0 0.0
    %7585 = vmatpush2.msra.mxu0 0.0
    %7586 = vmatprep.subr.mxu0 0.0
    %7587 = vmatpush2.msra.mxu0 0.0
    %7588 = vmatprep.subr.mxu0 0.0
    %7589 = vmatpush2.msra.mxu0 0.0
    %7590 = vmatprep.subr.mxu0 0.0
    %7591 = vmatpush2.msra.mxu0 0.0
    %7592 = vmatprep.subr.mxu0 0.0
    %7593 = vmatpush2.msra.mxu0 0.0
    %7594 = vmatprep.subr.mxu0 0.0
    %7595 = vmatpush2.msra.mxu0 0.0
    %7596 = vmatprep.subr.mxu0 0.0
    %7597 = vmatpush2.msra.mxu0 0.0
    %7598 = vmatprep.mubr.f32.mxu0 0.0
    %v7599 = vand.u32 %v7378, 4294901760
    %v7600 = vsub.f32 %v7378, %v7599
    %7601 = vmatmul.mubr.f32.gmra.mxu0 %v7600
    %v7602 = vpop.f32.mrf.mxu0
    %v7603 = vadd.f32 %v7529, %v7602
    %v7604 = vpop.f32.mrf.mxu0
    %7605 = vdwg.mxu0
    %7606 = vmatprep.subr.mxu0 0.0
    %7607 = vmatpush1.msra.mxu0 0.0
    %7608 = vmatprep.subr.mxu0 0.0
    %7609 = vmatpush1.msra.mxu0 0.0
    %7610 = vmatprep.subr.mxu0 0.0
    %7611 = vmatpush1.msra.mxu0 0.0
    %7612 = vmatprep.subr.mxu0 0.0
    %7613 = vmatpush1.msra.mxu0 0.0
    %7614 = vmatprep.subr.mxu0 0.0
    %7615 = vmatpush1.msra.mxu0 0.0
    %7616 = vmatprep.subr.mxu0 0.0
    %7617 = vmatpush1.msra.mxu0 0.0
    %7618 = vmatprep.subr.mxu0 0.0
    %7619 = vmatpush1.msra.mxu0 0.0
    %7620 = vmatprep.subr.mxu0 0.0
    %7621 = vmatpush1.msra.mxu0 0.0
    %7622 = vmatprep.subr.mxu0 0.0
    %7623 = vmatpush1.msra.mxu0 0.0
    %7624 = vmatprep.subr.mxu0 0.0
    %7625 = vmatpush1.msra.mxu0 0.0
    %7626 = vmatprep.subr.mxu0 0.0
    %7627 = vmatpush1.msra.mxu0 0.0
    %7628 = vmatprep.subr.mxu0 0.0
    %7629 = vmatpush1.msra.mxu0 0.0
    %7630 = vmatprep.subr.mxu0 0.0
    %7631 = vmatpush1.msra.mxu0 0.0
    %7632 = vmatprep.subr.mxu0 0.0
    %7633 = vmatpush1.msra.mxu0 0.0
    %7634 = vmatprep.subr.mxu0 0.0
    %7635 = vmatpush1.msra.mxu0 0.0
    %7636 = vmatprep.subr.mxu0 0.0
    %v7637 = vand.u32 %v4204, 4294901760
    %7638 = vmatpush1.msra.mxu0 %v7637
    %7639 = vmatprep.subr.mxu0 0.0
    %7640 = vmatpush2.msra.mxu0 0.0
    %7641 = vmatprep.subr.mxu0 0.0
    %7642 = vmatpush2.msra.mxu0 0.0
    %7643 = vmatprep.subr.mxu0 0.0
    %7644 = vmatpush2.msra.mxu0 0.0
    %7645 = vmatprep.subr.mxu0 0.0
    %7646 = vmatpush2.msra.mxu0 0.0
    %7647 = vmatprep.subr.mxu0 0.0
    %7648 = vmatpush2.msra.mxu0 0.0
    %7649 = vmatprep.subr.mxu0 0.0
    %7650 = vmatpush2.msra.mxu0 0.0
    %7651 = vmatprep.subr.mxu0 0.0
    %7652 = vmatpush2.msra.mxu0 0.0
    %7653 = vmatprep.subr.mxu0 0.0
    %7654 = vmatpush2.msra.mxu0 0.0
    %7655 = vmatprep.subr.mxu0 0.0
    %7656 = vmatpush2.msra.mxu0 0.0
    %7657 = vmatprep.subr.mxu0 0.0
    %7658 = vmatpush2.msra.mxu0 0.0
    %7659 = vmatprep.subr.mxu0 0.0
    %7660 = vmatpush2.msra.mxu0 0.0
    %7661 = vmatprep.subr.mxu0 0.0
    %7662 = vmatpush2.msra.mxu0 0.0
    %7663 = vmatprep.subr.mxu0 0.0
    %7664 = vmatpush2.msra.mxu0 0.0
    %7665 = vmatprep.subr.mxu0 0.0
    %7666 = vmatpush2.msra.mxu0 0.0
    %7667 = vmatprep.subr.mxu0 0.0
    %7668 = vmatpush2.msra.mxu0 0.0
    %7669 = vmatprep.subr.mxu0 0.0
    %7670 = vmatpush2.msra.mxu0 0.0
    %7671 = vmatprep.mubr.f32.mxu0 0.0
    %v7672 = vand.u32 %v7378, 4294901760
    %v7673 = vsub.f32 %v7378, %v7672
    %v7674 = vand.u32 %v7673, 4294901760
    %7675 = vmatmul.mubr.f32.gmra.mxu0 %v7674
    %v7676 = vpop.f32.mrf.mxu0
    %v7677 = vadd.f32 %v7603, %v7676
    %v7678 = vpop.f32.mrf.mxu0
    %7679 = vdwg.mxu0
    %7680 = vmatprep.subr.mxu0 0.0
    %7681 = vmatpush1.msra.mxu0 0.0
    %7682 = vmatprep.subr.mxu0 0.0
    %7683 = vmatpush1.msra.mxu0 0.0
    %7684 = vmatprep.subr.mxu0 0.0
    %7685 = vmatpush1.msra.mxu0 0.0
    %7686 = vmatprep.subr.mxu0 0.0
    %7687 = vmatpush1.msra.mxu0 0.0
    %7688 = vmatprep.subr.mxu0 0.0
    %7689 = vmatpush1.msra.mxu0 0.0
    %7690 = vmatprep.subr.mxu0 0.0
    %7691 = vmatpush1.msra.mxu0 0.0
    %7692 = vmatprep.subr.mxu0 0.0
    %7693 = vmatpush1.msra.mxu0 0.0
    %7694 = vmatprep.subr.mxu0 0.0
    %7695 = vmatpush1.msra.mxu0 0.0
    %7696 = vmatprep.subr.mxu0 0.0
    %7697 = vmatpush1.msra.mxu0 0.0
    %7698 = vmatprep.subr.mxu0 0.0
    %7699 = vmatpush1.msra.mxu0 0.0
    %7700 = vmatprep.subr.mxu0 0.0
    %7701 = vmatpush1.msra.mxu0 0.0
    %7702 = vmatprep.subr.mxu0 0.0
    %7703 = vmatpush1.msra.mxu0 0.0
    %7704 = vmatprep.subr.mxu0 0.0
    %7705 = vmatpush1.msra.mxu0 0.0
    %7706 = vmatprep.subr.mxu0 0.0
    %7707 = vmatpush1.msra.mxu0 0.0
    %7708 = vmatprep.subr.mxu0 0.0
    %7709 = vmatpush1.msra.mxu0 0.0
    %7710 = vmatprep.subr.mxu0 0.0
    %v7711 = vand.u32 %v4204, 4294901760
    %v7712 = vsub.f32 %v4204, %v7711
    %v7713 = vand.u32 %v7712, 4294901760
    %7714 = vmatpush1.msra.mxu0 %v7713
    %7715 = vmatprep.subr.mxu0 0.0
    %7716 = vmatpush2.msra.mxu0 0.0
    %7717 = vmatprep.subr.mxu0 0.0
    %7718 = vmatpush2.msra.mxu0 0.0
    %7719 = vmatprep.subr.mxu0 0.0
    %7720 = vmatpush2.msra.mxu0 0.0
    %7721 = vmatprep.subr.mxu0 0.0
    %7722 = vmatpush2.msra.mxu0 0.0
    %7723 = vmatprep.subr.mxu0 0.0
    %7724 = vmatpush2.msra.mxu0 0.0
    %7725 = vmatprep.subr.mxu0 0.0
    %7726 = vmatpush2.msra.mxu0 0.0
    %7727 = vmatprep.subr.mxu0 0.0
    %7728 = vmatpush2.msra.mxu0 0.0
    %7729 = vmatprep.subr.mxu0 0.0
    %7730 = vmatpush2.msra.mxu0 0.0
    %7731 = vmatprep.subr.mxu0 0.0
    %7732 = vmatpush2.msra.mxu0 0.0
    %7733 = vmatprep.subr.mxu0 0.0
    %7734 = vmatpush2.msra.mxu0 0.0
    %7735 = vmatprep.subr.mxu0 0.0
    %7736 = vmatpush2.msra.mxu0 0.0
    %7737 = vmatprep.subr.mxu0 0.0
    %7738 = vmatpush2.msra.mxu0 0.0
    %7739 = vmatprep.subr.mxu0 0.0
    %7740 = vmatpush2.msra.mxu0 0.0
    %7741 = vmatprep.subr.mxu0 0.0
    %7742 = vmatpush2.msra.mxu0 0.0
    %7743 = vmatprep.subr.mxu0 0.0
    %7744 = vmatpush2.msra.mxu0 0.0
    %7745 = vmatprep.subr.mxu0 0.0
    %7746 = vmatpush2.msra.mxu0 0.0
    %7747 = vmatprep.mubr.f32.mxu0 0.0
    %v7748 = vand.u32 %v7378, 4294901760
    %7749 = vmatmul.mubr.f32.gmra.mxu0 %v7748
    %v7750 = vpop.f32.mrf.mxu0
    %v7751 = vadd.f32 %v7677, %v7750
    %v7752 = vpop.f32.mrf.mxu0
    %7753 = vdwg.mxu0
    %7754 = vmatprep.subr.mxu0 0.0
    %7755 = vmatpush1.msra.mxu0 0.0
    %7756 = vmatprep.subr.mxu0 0.0
    %7757 = vmatpush1.msra.mxu0 0.0
    %7758 = vmatprep.subr.mxu0 0.0
    %7759 = vmatpush1.msra.mxu0 0.0
    %7760 = vmatprep.subr.mxu0 0.0
    %7761 = vmatpush1.msra.mxu0 0.0
    %7762 = vmatprep.subr.mxu0 0.0
    %7763 = vmatpush1.msra.mxu0 0.0
    %7764 = vmatprep.subr.mxu0 0.0
    %7765 = vmatpush1.msra.mxu0 0.0
    %7766 = vmatprep.subr.mxu0 0.0
    %7767 = vmatpush1.msra.mxu0 0.0
    %7768 = vmatprep.subr.mxu0 0.0
    %7769 = vmatpush1.msra.mxu0 0.0
    %7770 = vmatprep.subr.mxu0 0.0
    %7771 = vmatpush1.msra.mxu0 0.0
    %7772 = vmatprep.subr.mxu0 0.0
    %7773 = vmatpush1.msra.mxu0 0.0
    %7774 = vmatprep.subr.mxu0 0.0
    %7775 = vmatpush1.msra.mxu0 0.0
    %7776 = vmatprep.subr.mxu0 0.0
    %7777 = vmatpush1.msra.mxu0 0.0
    %7778 = vmatprep.subr.mxu0 0.0
    %7779 = vmatpush1.msra.mxu0 0.0
    %7780 = vmatprep.subr.mxu0 0.0
    %7781 = vmatpush1.msra.mxu0 0.0
    %7782 = vmatprep.subr.mxu0 0.0
    %7783 = vmatpush1.msra.mxu0 0.0
    %7784 = vmatprep.subr.mxu0 0.0
    %v7785 = vand.u32 %v4204, 4294901760
    %7786 = vmatpush1.msra.mxu0 %v7785
    %7787 = vmatprep.subr.mxu0 0.0
    %7788 = vmatpush2.msra.mxu0 0.0
    %7789 = vmatprep.subr.mxu0 0.0
    %7790 = vmatpush2.msra.mxu0 0.0
    %7791 = vmatprep.subr.mxu0 0.0
    %7792 = vmatpush2.msra.mxu0 0.0
    %7793 = vmatprep.subr.mxu0 0.0
    %7794 = vmatpush2.msra.mxu0 0.0
    %7795 = vmatprep.subr.mxu0 0.0
    %7796 = vmatpush2.msra.mxu0 0.0
    %7797 = vmatprep.subr.mxu0 0.0
    %7798 = vmatpush2.msra.mxu0 0.0
    %7799 = vmatprep.subr.mxu0 0.0
    %7800 = vmatpush2.msra.mxu0 0.0
    %7801 = vmatprep.subr.mxu0 0.0
    %7802 = vmatpush2.msra.mxu0 0.0
    %7803 = vmatprep.subr.mxu0 0.0
    %7804 = vmatpush2.msra.mxu0 0.0
    %7805 = vmatprep.subr.mxu0 0.0
    %7806 = vmatpush2.msra.mxu0 0.0
    %7807 = vmatprep.subr.mxu0 0.0
    %7808 = vmatpush2.msra.mxu0 0.0
    %7809 = vmatprep.subr.mxu0 0.0
    %7810 = vmatpush2.msra.mxu0 0.0
    %7811 = vmatprep.subr.mxu0 0.0
    %7812 = vmatpush2.msra.mxu0 0.0
    %7813 = vmatprep.subr.mxu0 0.0
    %7814 = vmatpush2.msra.mxu0 0.0
    %7815 = vmatprep.subr.mxu0 0.0
    %7816 = vmatpush2.msra.mxu0 0.0
    %7817 = vmatprep.subr.mxu0 0.0
    %7818 = vmatpush2.msra.mxu0 0.0
    %7819 = vmatprep.mubr.f32.mxu0 0.0
    %v7820 = vand.u32 %v7378, 4294901760
    %7821 = vmatmul.mubr.f32.gmra.mxu0 %v7820
    %v7822 = vpop.f32.mrf.mxu0
    %v7823 = vadd.f32 %v7751, %v7822
    %v7824 = vpop.f32.mrf.mxu0
    %7825 = vdwg.mxu0
    %v7826 = vadd.f32 %v75, %v4680
    %v7827 = vadd.f32 %v76, %v5129
    %v7828 = vadd.f32 %v77, %v5578
    %v7829 = vadd.f32 %v78, %v6027
    %v7830 = vadd.f32 %v79, %v6476
    %v7831 = vadd.f32 %v80, %v6925
    %v7832 = vadd.f32 %v81, %v7374
    %v7833 = vadd.f32 %v82, %v7823
    %v7834 = vsel %vm147, %v7826, 0.0
    %7835 = vadd.xlane.f32.xlu0 %v7834
    %v7836 = vpop.xlane.xlu0 %7835
    %v7837 = vsel %vm147, %v7827, 0.0
    %7838 = vadd.xlane.f32.xlu0 %v7837
    %v7839 = vpop.xlane.xlu0 %7838
    %v7840 = vsel %vm147, %v7828, 0.0
    %7841 = vadd.xlane.f32.xlu0 %v7840
    %v7842 = vpop.xlane.xlu0 %7841
    %v7843 = vsel %vm147, %v7829, 0.0
    %7844 = vadd.xlane.f32.xlu0 %v7843
    %v7845 = vpop.xlane.xlu0 %7844
    %v7846 = vsel %vm147, %v7830, 0.0
    %7847 = vadd.xlane.f32.xlu0 %v7846
    %v7848 = vpop.xlane.xlu0 %7847
    %v7849 = vsel %vm147, %v7831, 0.0
    %7850 = vadd.xlane.f32.xlu0 %v7849
    %v7851 = vpop.xlane.xlu0 %7850
    %v7852 = vsel %vm147, %v7832, 0.0
    %7853 = vadd.xlane.f32.xlu0 %v7852
    %v7854 = vpop.xlane.xlu0 %7853
    %v7855 = vsel %vm147, %v7833, 0.0
    %7856 = vadd.xlane.f32.xlu0 %v7855
    %v7857 = vpop.xlane.xlu0 %7856
    %v7858 = vrcp.pop 40.0
    %v7859 = vmul.f32 %v7836, %v7858
    %v7860 = vmul.f32 %v7839, %v7858
    %v7861 = vmul.f32 %v7842, %v7858
    %v7862 = vmul.f32 %v7845, %v7858
    %v7863 = vmul.f32 %v7848, %v7858
    %v7864 = vmul.f32 %v7851, %v7858
    %v7865 = vmul.f32 %v7854, %v7858
    %v7866 = vmul.f32 %v7857, %v7858
    %v7867 = vsub.f32 %v7826, %v7859
    %v7868 = vsub.f32 %v7827, %v7860
    %v7869 = vsub.f32 %v7828, %v7861
    %v7870 = vsub.f32 %v7829, %v7862
    %v7871 = vsub.f32 %v7830, %v7863
    %v7872 = vsub.f32 %v7831, %v7864
    %v7873 = vsub.f32 %v7832, %v7865
    %v7874 = vsub.f32 %v7833, %v7866
    %v7875 = vmul.f32 %v7867, %v7867
    %v7876 = vmul.f32 %v7868, %v7868
    %v7877 = vmul.f32 %v7869, %v7869
    %v7878 = vmul.f32 %v7870, %v7870
    %v7879 = vmul.f32 %v7871, %v7871
    %v7880 = vmul.f32 %v7872, %v7872
    %v7881 = vmul.f32 %v7873, %v7873
    %v7882 = vmul.f32 %v7874, %v7874
    %v7883 = vsel %vm147, %v7875, 0.0
    %7884 = vadd.xlane.f32.xlu0 %v7883
    %v7885 = vpop.xlane.xlu0 %7884
    %v7886 = vsel %vm147, %v7876, 0.0
    %7887 = vadd.xlane.f32.xlu0 %v7886
    %v7888 = vpop.xlane.xlu0 %7887
    %v7889 = vsel %vm147, %v7877, 0.0
    %7890 = vadd.xlane.f32.xlu0 %v7889
    %v7891 = vpop.xlane.xlu0 %7890
    %v7892 = vsel %vm147, %v7878, 0.0
    %7893 = vadd.xlane.f32.xlu0 %v7892
    %v7894 = vpop.xlane.xlu0 %7893
    %v7895 = vsel %vm147, %v7879, 0.0
    %7896 = vadd.xlane.f32.xlu0 %v7895
    %v7897 = vpop.xlane.xlu0 %7896
    %v7898 = vsel %vm147, %v7880, 0.0
    %7899 = vadd.xlane.f32.xlu0 %v7898
    %v7900 = vpop.xlane.xlu0 %7899
    %v7901 = vsel %vm147, %v7881, 0.0
    %7902 = vadd.xlane.f32.xlu0 %v7901
    %v7903 = vpop.xlane.xlu0 %7902
    %v7904 = vsel %vm147, %v7882, 0.0
    %7905 = vadd.xlane.f32.xlu0 %v7904
    %v7906 = vpop.xlane.xlu0 %7905
    %v7907 = vmul.f32 %v7885, %v7858
    %v7908 = vmul.f32 %v7888, %v7858
    %v7909 = vmul.f32 %v7891, %v7858
    %v7910 = vmul.f32 %v7894, %v7858
    %v7911 = vmul.f32 %v7897, %v7858
    %v7912 = vmul.f32 %v7900, %v7858
    %v7913 = vmul.f32 %v7903, %v7858
    %v7914 = vmul.f32 %v7906, %v7858
    %v7915 = vadd.f32 %v7907, 1e-05
    %v7916 = vadd.f32 %v7908, 1e-05
    %v7917 = vadd.f32 %v7909, 1e-05
    %v7918 = vadd.f32 %v7910, 1e-05
    %v7919 = vadd.f32 %v7911, 1e-05
    %v7920 = vadd.f32 %v7912, 1e-05
    %v7921 = vadd.f32 %v7913, 1e-05
    %v7922 = vadd.f32 %v7914, 1e-05
    %v7923 = vrsqrt.pop %v7915
    %v7924 = vrsqrt.pop %v7916
    %v7925 = vrsqrt.pop %v7917
    %v7926 = vrsqrt.pop %v7918
    %v7927 = vrsqrt.pop %v7919
    %v7928 = vrsqrt.pop %v7920
    %v7929 = vrsqrt.pop %v7921
    %v7930 = vrsqrt.pop %v7922
    %v7931 = vmul.f32 %v7867, %v7923
    %v7932 = vmul.f32 %v7868, %v7924
    %v7933 = vmul.f32 %v7869, %v7925
    %v7934 = vmul.f32 %v7870, %v7926
    %v7935 = vmul.f32 %v7871, %v7927
    %v7936 = vmul.f32 %v7872, %v7928
    %v7937 = vmul.f32 %v7873, %v7929
    %v7938 = vmul.f32 %v7874, %v7930
    %v7939 = vld [vmem:[%s7] sm:$0x1]
    %v7941 = vlaneseq
    %v7942 = vshrl.u32 %v7941, 7
    %v7943 = vsub.s32 0, %v7942
    %v7944 = vrot.slane %v7939, %v7943
    %v7946 = vmul.f32 %v7931, %v7944
    %v7947 = vmul.f32 %v7932, %v7944
    %v7948 = vmul.f32 %v7933, %v7944
    %v7949 = vmul.f32 %v7934, %v7944
    %v7950 = vmul.f32 %v7935, %v7944
    %v7951 = vmul.f32 %v7936, %v7944
    %v7952 = vmul.f32 %v7937, %v7944
    %v7953 = vmul.f32 %v7938, %v7944
    %v7954 = vld [vmem:[%s8] sm:$0x1]
    %v7956 = vlaneseq
    %v7957 = vshrl.u32 %v7956, 7
    %v7958 = vsub.s32 0, %v7957
    %v7959 = vrot.slane %v7954, %v7958
    %v7961 = vadd.f32 %v7946, %v7959
    %v7962 = vadd.f32 %v7947, %v7959
    %v7963 = vadd.f32 %v7948, %v7959
    %v7964 = vadd.f32 %v7949, %v7959
    %v7965 = vadd.f32 %v7950, %v7959
    %v7966 = vadd.f32 %v7951, %v7959
    %v7967 = vadd.f32 %v7952, %v7959
    %v7968 = vadd.f32 %v7953, %v7959
    %7969 = vst.msk [vmem:[#allocation8] sm:$0xff] %vm147, %v7961
    %7970 = vst.msk [vmem:[#allocation8 + $0x8] sm:$0xff] %vm147, %v7962
    %7971 = vst.msk [vmem:[#allocation8 + $0x10] sm:$0xff] %vm147, %v7963
    %7972 = vst.msk [vmem:[#allocation8 + $0x18] sm:$0xff] %vm147, %v7964
    %7973 = vst.msk [vmem:[#allocation8 + $0x20] sm:$0xff] %vm147, %v7965
    %7974 = vst.msk [vmem:[#allocation8 + $0x28] sm:$0xff] %vm147, %v7966
    %7975 = vst.msk [vmem:[#allocation8 + $0x30] sm:$0xff] %vm147, %v7967
    %7976 = vst.msk [vmem:[#allocation8 + $0x38] sm:$0xff] %vm147, %v7968
    // Predicated region
    $region50: #{tpu_custom_call.1} parent=1 // pred_check
      _
    $region51: #{tpu_custom_call.1} parent=1 // pred_check_branch
      %7978 = sbr.rel (0) target = $region53
    $region52: #{tpu_custom_call.1} parent=1 // pred_region
      %s7980 = ssub.s32 1024, 1024
      %7981 = vsyncadd [#allocation4], %s7980
      %s7982 = sshll.u32 [#allocation8], 4
      %s7983 = int_to_ptr.vmem [resolvable:$true] %s7982
      %7988 = dma.vmem_to_hbm [thread:$0]  %s7983, 1024, %s9, [#allocation4], 128, 128, 8
    $region53: #{tpu_custom_call.1} parent=1 // pred_fallthru
      _
    // Predicated region
    $region54: #{tpu_custom_call.1} parent=1 // pred_check
      _
    $region55: #{tpu_custom_call.1} parent=1 // pred_check_branch
      %7990 = sbr.rel (0) target = $region57
    $region56: #{tpu_custom_call.1} parent=1 // pred_region
      %7991 = dma.done [#allocation4], 1024
    $region57: #{tpu_custom_call.1} parent=1 // pred_fallthru
      _
    %7992 = vsyncpa [#allocation3], 1
    %7993 = vsyncpa [#allocation6], 1
    %7994 = vsyncpa [#allocation4], 1

</llo_original>
